<compile_context>
chip_gen: v6e
topology: v6e:2x2x1
jax: 0.10.0
libtpu: 0.0.40
codegen_flags: <defaults>
</compile_context>

<pallas_src>
from functools import partial

import jax
import jax.numpy as jnp
from jax.experimental import pallas as pl
from jax.experimental.pallas import tpu as pltpu


_VMEM = pl.BlockSpec(memory_space=pltpu.MemorySpace.VMEM)
_VMEM_LIMIT = 32 * 1024 * 1024   # safe scoped limit on v5e/v6e/v7x; tiny footprint here
_N_PAD = 128                     # lane-dense head output width


# ----------------------------- Pallas kernels ------------------------------


def _conv2_relu_kernel(x_ref, w1_ref, b1_ref, w2_ref, b2_ref, out_ref):
    """Fused conv1d(k=3,pad=1)+ReLU -> conv1d(k=3,pad=1)+ReLU, time-major.

    x:   (T, B, E)        time-major input (padding done in-kernel)
    w1:  (3, E, E/2)      per-tap weights, tap-major
    b1:  (1, E/2)
    w2:  (3, E/2, E/4)
    b2:  (1, E/4)
    out: (T, B, E/4)
    """
    T, B, E = x_ref.shape
    x = x_ref[...]

    # conv1: three accumulating matmuls over shifted time slices (no K=3E unfold).
    z1 = jnp.zeros((1, B, E), x.dtype)
    xp = jnp.concatenate([z1, x, z1], axis=0)                       # (T+2, B, E)
    h1 = jnp.maximum(
        jnp.einsum("tbc,cd->tbd", xp[0:T], w1_ref[0],
                   preferred_element_type=jnp.float32)
        + jnp.einsum("tbc,cd->tbd", xp[1:T + 1], w1_ref[1],
                     preferred_element_type=jnp.float32)
        + jnp.einsum("tbc,cd->tbd", xp[2:T + 2], w1_ref[2],
                     preferred_element_type=jnp.float32)
        + b1_ref[...][None], 0.0)

    # conv2 on the VMEM-resident intermediate (never leaves the kernel).
    z2 = jnp.zeros((1, B, h1.shape[-1]), h1.dtype)
    h1p = jnp.concatenate([z2, h1, z2], axis=0)                     # (T+2, B, E/2)
    out_ref[...] = jnp.maximum(
        jnp.einsum("tbc,cd->tbd", h1p[0:T], w2_ref[0],
                   preferred_element_type=jnp.float32)
        + jnp.einsum("tbc,cd->tbd", h1p[1:T + 1], w2_ref[1],
                     preferred_element_type=jnp.float32)
        + jnp.einsum("tbc,cd->tbd", h1p[2:T + 2], w2_ref[2],
                     preferred_element_type=jnp.float32)
        + b2_ref[...][None], 0.0)


def _bilstm_into(x, wih_fb_ref, whh_f_ref, whh_b_ref, b_fb_ref, gx_ref, h_out):
    """Bi-directional LSTM; writes [fwd | bwd] hidden sequence into h_out (T,B,2H).

    x:       (T, B, Din) f32 value (time-major)
    wih_fb:  (Din, 8H)   [fwd 4H | bwd 4H] input-projection weights (PyTorch gate order)
    whh_f/b: (H, 4H)     recurrent weights
    b_fb:    (1, 8H)     combined (b_ih + b_hh) biases, [fwd | bwd]
    gx_ref:  VMEM scratch (T, B, 8H) — hoisted input projections for both directions
    h_out:   (T, B, 2H) ref — per-step hidden states stored directly (no concat pass)
    """
    T, B, _ = x.shape
    H = whh_f_ref.shape[0]
    G = 4 * H

    # Hoisted input projection for BOTH directions: one (T*B, Din) x (Din, 8H) matmul.
    gx_ref[...] = (jnp.einsum("tbd,dg->tbg", x, wih_fb_ref[...],
                              preferred_element_type=jnp.float32)
                   + b_fb_ref[...][None])

    whh_f = whh_f_ref[...]
    whh_b = whh_b_ref[...]

    def cell(gates_x, h, c, whh):
        # Only the (B,H)@(H,4H) recurrent matmul remains on the serial path.
        gates = gates_x + jnp.dot(h, whh, preferred_element_type=jnp.float32)
        # Full-width transcendentals (EUP slack) instead of pre-sliced lane repacks.
        sig = jax.nn.sigmoid(gates)
        tnh = jnp.tanh(gates)
        i = sig[:, :H]
        f = sig[:, H:2 * H]
        g = tnh[:, 2 * H:3 * H]
        o = sig[:, 3 * H:]
        c_new = f * c + i * g
        h_new = o * jnp.tanh(c_new)
        return h_new, c_new

    zeros = jnp.zeros((B, H), jnp.float32)

    def body(t, carry):
        # Interleave the two independent directions in one loop to hide latency.
        hf, cf, hb, cb = carry
        tb = T - 1 - t
        hf, cf = cell(gx_ref[t, :, :G], hf, cf, whh_f)
        hb, cb = cell(gx_ref[tb, :, G:], hb, cb, whh_b)
        h_out[t, :, :H] = hf
        h_out[tb, :, H:] = hb
        return (hf, cf, hb, cb)

    jax.lax.fori_loop(0, T, body, (zeros, zeros, zeros, zeros), unroll=True)


def _bilstm_kernel(x_ref, wih_fb_ref, whh_f_ref, whh_b_ref, b_fb_ref,
                   out_ref, gx_ref):
    """Bi-LSTM layer: x (T,B,Din) -> out (T,B,2H), hidden states written in-loop."""
    _bilstm_into(x_ref[...], wih_fb_ref, whh_f_ref, whh_b_ref, b_fb_ref,
                 gx_ref, out_ref)


def _bilstm_head_kernel(h1_ref, wih_fb_ref, whh_f_ref, whh_b_ref, b_fb_ref,
                        w1_ref, b1_ref, w2_ref, b2_ref, wo_ref, bo_ref,
                        out_ref, gx_ref, h2_ref):
    """Second bi-LSTM fused with the linear head (h_lstm2 never leaves VMEM).

    hidden = h1 + h2 + relu(h1@W1+b1) + relu(h2@W2+b2);  out = hidden@Wpad + bpad.
    wo/bo are lane-padded to 128 classes; the wrapper slices the real n_classes.
    """
    h1 = h1_ref[...]                                   # (T, B, 2H)
    _bilstm_into(h1, wih_fb_ref, whh_f_ref, whh_b_ref, b_fb_ref, gx_ref, h2_ref)
    h2 = h2_ref[...]
    l1 = jnp.maximum(
        jnp.einsum("tbk,kd->tbd", h1, w1_ref[...],
                   preferred_element_type=jnp.float32) + b1_ref[...][None], 0.0)
    l2 = jnp.maximum(
        jnp.einsum("tbk,kd->tbd", h2, w2_ref[...],
                   preferred_element_type=jnp.float32) + b2_ref[...][None], 0.0)
    hidden = h1 + h2 + l1 + l2
    out_ref[...] = (jnp.einsum("tbk,kd->tbd", hidden, wo_ref[...],
                               preferred_element_type=jnp.float32)
                    + bo_ref[...][None])


# ----------------------------- cost estimates -------------------------------


def _conv_cost(T, B, E):
    flops = 2 * T * B * 3 * (E * (E // 2) + (E // 2) * (E // 4))
    byts = 4 * (T * B * E + 3 * (E * (E // 2) + (E // 2) * (E // 4))
                + (E // 2) + (E // 4) + T * B * (E // 4))
    return pl.CostEstimate(flops=flops, transcendentals=0, bytes_accessed=byts)


def _lstm_cost(T, B, Din, H, head=False, n_out=0):
    flops = 2 * T * B * Din * 8 * H              # hoisted input projection
    flops += 2 * 2 * T * B * H * 4 * H           # recurrent matmuls, both directions
    flops += 2 * T * B * 10 * H                  # gate elementwise
    trans = 2 * T * B * (8 * H + H)              # full-width sigmoid/tanh + tanh(c)
    byts = 4 * (T * B * Din + Din * 8 * H + 2 * H * 4 * H + 8 * H + T * B * 2 * H)
    if head:
        flops += 2 * T * B * 2 * H * (4 * H + n_out)
        byts += 4 * (2 * (2 * H * 2 * H + 2 * H) + 2 * H * n_out + n_out
                     + T * B * n_out)
    return pl.CostEstimate(flops=flops, transcendentals=trans, bytes_accessed=byts)


# ----------------------------- weight prep & wrappers ------------------------


def prepare_params(p, n_pad=_N_PAD):
    """One-time weight preprocessing (tap stacking, direction concat, head padding)."""
    def conv_w3(w):   # PyTorch conv weight (Cout, Cin, 3) -> (3, Cin, Cout)
        return jnp.stack([jnp.transpose(w[:, :, k]) for k in range(3)], axis=0)

    def lstm(prm):
        return dict(
            wih_fb=jnp.concatenate([prm["wih_f"], prm["wih_b"]], axis=-1),
            whh_f=prm["whh_f"],
            whh_b=prm["whh_b"],
            b_fb=jnp.concatenate([prm["b_f"], prm["b_b"]], axis=-1),
        )

    n_classes = p["lin_w"].shape[1]
    pad = n_pad - n_classes
    return {
        "conv1_w3": conv_w3(p["conv1_w"]), "conv1_b": p["conv1_b"].reshape(1, -1),
        "conv2_w3": conv_w3(p["conv2_w"]), "conv2_b": p["conv2_b"].reshape(1, -1),
        "lstm1": lstm(p["lstm1"]), "lstm2": lstm(p["lstm2"]),
        "lin1_w": p["lin1_w"], "lin1_b": p["lin1_b"],
        "lin2_w": p["lin2_w"], "lin2_b": p["lin2_b"],
        "lin_w_pad": jnp.pad(p["lin_w"], ((0, 0), (0, pad))),
        "lin_b_pad": jnp.pad(p["lin_b"], ((0, 0), (0, pad))),
    }


def conv_block(x_tm, kp):
    """x_tm: (T, B, E) time-major -> (T, B, E/4) (conv1+relu+conv2+relu, pad in-kernel)."""
    T, B, E = x_tm.shape
    c2 = kp["conv2_w3"].shape[2]
    return pl.pallas_call(
        _conv2_relu_kernel,
        out_shape=jax.ShapeDtypeStruct((T, B, c2), jnp.float32),
        in_specs=[_VMEM] * 5,
        out_specs=_VMEM,
        compiler_params=pltpu.CompilerParams(vmem_limit_bytes=_VMEM_LIMIT),
        cost_estimate=_conv_cost(T, B, E),
    )(x_tm, kp["conv1_w3"], kp["conv1_b"], kp["conv2_w3"], kp["conv2_b"])


def bilstm(x_tm, lp):
    """x_tm: (T, B, Din) -> (T, B, 2H); both directions fused, no flips / no concat."""
    T, B, Din = x_tm.shape
    H = lp["whh_f"].shape[0]
    return pl.pallas_call(
        _bilstm_kernel,
        out_shape=jax.ShapeDtypeStruct((T, B, 2 * H), jnp.float32),
        in_specs=[_VMEM] * 5,
        out_specs=_VMEM,
        scratch_shapes=[pltpu.VMEM((T, B, 8 * H), jnp.float32)],
        compiler_params=pltpu.CompilerParams(vmem_limit_bytes=_VMEM_LIMIT),
        cost_estimate=_lstm_cost(T, B, Din, H),
    )(x_tm, lp["wih_fb"], lp["whh_f"], lp["whh_b"], lp["b_fb"])


def bilstm_head(h1_tm, lp, kp):
    """Second bi-LSTM + linear head (lane-padded output). h1_tm: (T,B,2H) -> (T,B,128)."""
    T, B, Din = h1_tm.shape
    H = lp["whh_f"].shape[0]
    n_pad = kp["lin_w_pad"].shape[1]
    return pl.pallas_call(
        _bilstm_head_kernel,
        out_shape=jax.ShapeDtypeStruct((T, B, n_pad), jnp.float32),
        in_specs=[_VMEM] * 11,
        out_specs=_VMEM,
        scratch_shapes=[pltpu.VMEM((T, B, 8 * H), jnp.float32),
                        pltpu.VMEM((T, B, 2 * H), jnp.float32)],
        compiler_params=pltpu.CompilerParams(vmem_limit_bytes=_VMEM_LIMIT),
        cost_estimate=_lstm_cost(T, B, Din, H, head=True, n_out=n_pad),
    )(h1_tm, lp["wih_fb"], lp["whh_f"], lp["whh_b"], lp["b_fb"],
      kp["lin1_w"], kp["lin1_b"], kp["lin2_w"], kp["lin2_b"],
      kp["lin_w_pad"], kp["lin_b_pad"])


def neural_net_forward(x, kp, *, n_classes):
    # embedding_dropout (Dropout2d) is identity in eval mode (inference forward).
    x_tm = jnp.transpose(x, (1, 0, 2))            # single input layout change
    h_tm = conv_block(x_tm, kp)                   # (T, B, E/4)
    h1_tm = bilstm(h_tm, kp["lstm1"])             # (T, B, 2H)
    out_tm = bilstm_head(h1_tm, kp["lstm2"], kp)  # (T, B, 128) lane-dense
    return jnp.transpose(out_tm, (1, 0, 2))[:, :, :n_classes]   # (B, T, n_classes)


# ----------------------------- parameters ------------------------------------


def init_params(key, embed_size, lstm_units, n_classes):
    E, H = embed_size, lstm_units
    ks = iter(jax.random.split(key, 32))
    s = 0.1

    def rnd(shape):
        return s * jax.random.normal(next(ks), shape, dtype=jnp.float32)

    def lstm_dir(din):
        return dict(wih=rnd((din, 4 * H)), whh=rnd((H, 4 * H)), b=rnd((1, 4 * H)))

    p = {
        "conv1_w": rnd((E // 2, E, 3)), "conv1_b": rnd((E // 2,)),
        "conv2_w": rnd((E // 4, E // 2, 3)), "conv2_b": rnd((E // 4,)),
        "lstm1": {}, "lstm2": {},
        "lin1_w": rnd((2 * H, 2 * H)), "lin1_b": rnd((1, 2 * H)),
        "lin2_w": rnd((2 * H, 2 * H)), "lin2_b": rnd((1, 2 * H)),
        "lin_w": rnd((2 * H, n_classes)), "lin_b": rnd((1, n_classes)),
    }
    d = lstm_dir(E // 4)
    p["lstm1"].update(wih_f=d["wih"], whh_f=d["whh"], b_f=d["b"])
    d = lstm_dir(E // 4)
    p["lstm1"].update(wih_b=d["wih"], whh_b=d["whh"], b_b=d["b"])
    d = lstm_dir(2 * H)
    p["lstm2"].update(wih_f=d["wih"], whh_f=d["whh"], b_f=d["b"])
    d = lstm_dir(2 * H)
    p["lstm2"].update(wih_b=d["wih"], whh_b=d["whh"], b_b=d["b"])
    return p


# ----------------------------- reference (pure jnp) --------------------------


def _ref_conv(x, w, b):
    xpad = jnp.pad(x, ((0, 0), (1, 1), (0, 0)))
    T = x.shape[1]
    acc = sum(jnp.einsum("btc,cd->btd", xpad[:, k:k + T, :], jnp.transpose(w[:, :, k]))
              for k in range(3)) + b[None, None, :]
    return jnp.maximum(acc, 0.0)


def _ref_lstm_dir(x_tm, wih, whh, b):
    T, B, _ = x_tm.shape
    H = whh.shape[0]

    def step(carry, x_t):
        h, c = carry
        g = x_t @ wih + h @ whh + b
        i, f, gg, o = (jax.nn.sigmoid(g[:, :H]), jax.nn.sigmoid(g[:, H:2 * H]),
                       jnp.tanh(g[:, 2 * H:3 * H]), jax.nn.sigmoid(g[:, 3 * H:]))
        c = f * c + i * gg
        h = o * jnp.tanh(c)
        return (h, c), h

    init = (jnp.zeros((B, H)), jnp.zeros((B, H)))
    _, hs = jax.lax.scan(step, init, x_tm)
    return hs


def _ref_bilstm(x, prm):
    x_tm = jnp.transpose(x, (1, 0, 2))
    f = _ref_lstm_dir(x_tm, prm["wih_f"], prm["whh_f"], prm["b_f"])
    bwd = jnp.flip(_ref_lstm_dir(jnp.flip(x_tm, 0), prm["wih_b"], prm["whh_b"],
                                 prm["b_b"]), 0)
    return jnp.transpose(jnp.concatenate([f, bwd], -1), (1, 0, 2))


def reference_forward(x, p):
    h = _ref_conv(x, p["conv1_w"], p["conv1_b"])
    h = _ref_conv(h, p["conv2_w"], p["conv2_b"])
    h1 = _ref_bilstm(h, p["lstm1"])
    h2 = _ref_bilstm(h1, p["lstm2"])
    l1 = jnp.maximum(jnp.einsum("btk,kd->btd", h1, p["lin1_w"]) + p["lin1_b"][None], 0.0)
    l2 = jnp.maximum(jnp.einsum("btk,kd->btd", h2, p["lin2_w"]) + p["lin2_b"][None], 0.0)
    hidden = h1 + h2 + l1 + l2
    return jnp.einsum("btk,kd->btd", hidden, p["lin_w"]) + p["lin_b"][None]


# ----------------------------- main -----------------------------------------

if __name__ == "__main__":
    B, T = 2, 8
    EMBED = 32          # embed_size (divisible by 4, as the module requires)
    LSTM_UNITS = 32
    N_CLASSES = 6

    key = jax.random.PRNGKey(0)
    k_x, k_p = jax.random.split(key)
    x = jax.random.normal(k_x, (B, T, EMBED), dtype=jnp.float32)
    raw_params = init_params(k_p, EMBED, LSTM_UNITS, N_CLASSES)
    kernel_params = prepare_params(raw_params)      # one-time weight preprocessing

    fwd = jax.jit(partial(neural_net_forward, n_classes=N_CLASSES))
    out = jax.block_until_ready(fwd(x, kernel_params))
    ref = jax.block_until_ready(reference_forward(x, raw_params))

    assert out.shape == (B, T, N_CLASSES), out.shape
    assert jnp.allclose(out, ref, rtol=1e-3, atol=1e-3), float(jnp.max(jnp.abs(out - ref)))
    print("KERNEL_OK")
</pallas_src>

<mosaic_0001>
module attributes {stable_mosaic.version = 11 : i64} {
  func.func @_conv2_relu_kernel(%arg0: memref<8x2x32xf32, #tpu.memory_space<vmem>>, %arg1: memref<3x32x16xf32, #tpu.memory_space<vmem>>, %arg2: memref<1x16xf32, #tpu.memory_space<vmem>>, %arg3: memref<3x16x8xf32, #tpu.memory_space<vmem>>, %arg4: memref<1x8xf32, #tpu.memory_space<vmem>>, %arg5: memref<8x2x8xf32, #tpu.memory_space<vmem>>) attributes {dimension_semantics = [], scalar_prefetch = 0 : i64, scratch_operands = 0 : i64, tpu.core_type = #tpu.core_type<tc>} {
    %c0 = arith.constant 0 : index
    %c0_0 = arith.constant 0 : index
    %c0_1 = arith.constant 0 : index
    %0 = vector.load %arg0[%c0, %c0_0, %c0_1] : memref<8x2x32xf32, #tpu.memory_space<vmem>>, vector<8x2x32xf32>
    %cst = arith.constant 0.000000e+00 : f32
    %1 = vector.broadcast %cst : f32 to vector<1x2x32xf32>
    %2 = tpu.concatenate %1, %0, %1 in 0 : vector<1x2x32xf32>, vector<8x2x32xf32>, vector<1x2x32xf32> -> vector<10x2x32xf32>
    %3 = vector.extract_strided_slice %2 {offsets = [0, 0, 0], sizes = [8, 2, 32], strides = [1, 1, 1]} : vector<10x2x32xf32> to vector<8x2x32xf32>
    %c0_2 = arith.constant 0 : index
    %c0_3 = arith.constant 0 : index
    %c0_4 = arith.constant 0 : index
    %4 = vector.load %arg1[%c0_2, %c0_3, %c0_4] : memref<3x32x16xf32, #tpu.memory_space<vmem>>, vector<1x32x16xf32>
    %5 = vector.shape_cast %4 : vector<1x32x16xf32> to vector<32x16xf32>
    "tpu.trace_start"() <{level = 10 : i32, message = "tbc,cd->tbd"}> : () -> ()
    %cst_5 = arith.constant dense<0.000000e+00> : vector<8x2x16xf32>
    %6 = tpu.matmul %3, %5, %cst_5 {dimension_numbers = #tpu.dot_dimension_numbers<[2], [0], [0, 1], [1], [0, 0, 0, 1, 1, 1], [], []>} : vector<8x2x32xf32>, vector<32x16xf32>, vector<8x2x16xf32> -> vector<8x2x16xf32>
    "tpu.trace_stop"() : () -> ()
    %7 = vector.extract_strided_slice %2 {offsets = [1, 0, 0], sizes = [8, 2, 32], strides = [1, 1, 1]} : vector<10x2x32xf32> to vector<8x2x32xf32>
    %c1 = arith.constant 1 : index
    %c0_6 = arith.constant 0 : index
    %c0_7 = arith.constant 0 : index
    %8 = vector.load %arg1[%c1, %c0_6, %c0_7] : memref<3x32x16xf32, #tpu.memory_space<vmem>>, vector<1x32x16xf32>
    %9 = vector.shape_cast %8 : vector<1x32x16xf32> to vector<32x16xf32>
    "tpu.trace_start"() <{level = 10 : i32, message = "tbc,cd->tbd"}> : () -> ()
    %cst_8 = arith.constant dense<0.000000e+00> : vector<8x2x16xf32>
    %10 = tpu.matmul %7, %9, %cst_8 {dimension_numbers = #tpu.dot_dimension_numbers<[2], [0], [0, 1], [1], [0, 0, 0, 1, 1, 1], [], []>} : vector<8x2x32xf32>, vector<32x16xf32>, vector<8x2x16xf32> -> vector<8x2x16xf32>
    "tpu.trace_stop"() : () -> ()
    %11 = arith.addf %6, %10 : vector<8x2x16xf32>
    %12 = vector.extract_strided_slice %2 {offsets = [2, 0, 0], sizes = [8, 2, 32], strides = [1, 1, 1]} : vector<10x2x32xf32> to vector<8x2x32xf32>
    %c2 = arith.constant 2 : index
    %c0_9 = arith.constant 0 : index
    %c0_10 = arith.constant 0 : index
    %13 = vector.load %arg1[%c2, %c0_9, %c0_10] : memref<3x32x16xf32, #tpu.memory_space<vmem>>, vector<1x32x16xf32>
    %14 = vector.shape_cast %13 : vector<1x32x16xf32> to vector<32x16xf32>
    "tpu.trace_start"() <{level = 10 : i32, message = "tbc,cd->tbd"}> : () -> ()
    %cst_11 = arith.constant dense<0.000000e+00> : vector<8x2x16xf32>
    %15 = tpu.matmul %12, %14, %cst_11 {dimension_numbers = #tpu.dot_dimension_numbers<[2], [0], [0, 1], [1], [0, 0, 0, 1, 1, 1], [], []>} : vector<8x2x32xf32>, vector<32x16xf32>, vector<8x2x16xf32> -> vector<8x2x16xf32>
    "tpu.trace_stop"() : () -> ()
    %16 = arith.addf %11, %15 : vector<8x2x16xf32>
    %c0_12 = arith.constant 0 : index
    %c0_13 = arith.constant 0 : index
    %17 = vector.load %arg2[%c0_12, %c0_13] : memref<1x16xf32, #tpu.memory_space<vmem>>, vector<1x16xf32>
    %18 = vector.shape_cast %17 : vector<1x16xf32> to vector<1x1x16xf32>
    %19 = vector.broadcast %18 : vector<1x1x16xf32> to vector<8x2x16xf32>
    %20 = arith.addf %16, %19 : vector<8x2x16xf32>
    %cst_14 = arith.constant 0.000000e+00 : f32
    %21 = vector.broadcast %cst_14 : f32 to vector<8x2x16xf32>
    %22 = arith.maximumf %20, %21 : vector<8x2x16xf32>
    %cst_15 = arith.constant 0.000000e+00 : f32
    %23 = vector.broadcast %cst_15 : f32 to vector<1x2x16xf32>
    %24 = tpu.concatenate %23, %22, %23 in 0 : vector<1x2x16xf32>, vector<8x2x16xf32>, vector<1x2x16xf32> -> vector<10x2x16xf32>
    %25 = vector.extract_strided_slice %24 {offsets = [0, 0, 0], sizes = [8, 2, 16], strides = [1, 1, 1]} : vector<10x2x16xf32> to vector<8x2x16xf32>
    %c0_16 = arith.constant 0 : index
    %c0_17 = arith.constant 0 : index
    %c0_18 = arith.constant 0 : index
    %26 = vector.load %arg3[%c0_16, %c0_17, %c0_18] : memref<3x16x8xf32, #tpu.memory_space<vmem>>, vector<1x16x8xf32>
    %27 = vector.shape_cast %26 : vector<1x16x8xf32> to vector<16x8xf32>
    "tpu.trace_start"() <{level = 10 : i32, message = "tbc,cd->tbd"}> : () -> ()
    %cst_19 = arith.constant dense<0.000000e+00> : vector<8x2x8xf32>
    %28 = tpu.matmul %25, %27, %cst_19 {dimension_numbers = #tpu.dot_dimension_numbers<[2], [0], [0, 1], [1], [0, 0, 0, 1, 1, 1], [], []>} : vector<8x2x16xf32>, vector<16x8xf32>, vector<8x2x8xf32> -> vector<8x2x8xf32>
    "tpu.trace_stop"() : () -> ()
    %29 = vector.extract_strided_slice %24 {offsets = [1, 0, 0], sizes = [8, 2, 16], strides = [1, 1, 1]} : vector<10x2x16xf32> to vector<8x2x16xf32>
    %c1_20 = arith.constant 1 : index
    %c0_21 = arith.constant 0 : index
    %c0_22 = arith.constant 0 : index
    %30 = vector.load %arg3[%c1_20, %c0_21, %c0_22] : memref<3x16x8xf32, #tpu.memory_space<vmem>>, vector<1x16x8xf32>
    %31 = vector.shape_cast %30 : vector<1x16x8xf32> to vector<16x8xf32>
    "tpu.trace_start"() <{level = 10 : i32, message = "tbc,cd->tbd"}> : () -> ()
    %cst_23 = arith.constant dense<0.000000e+00> : vector<8x2x8xf32>
    %32 = tpu.matmul %29, %31, %cst_23 {dimension_numbers = #tpu.dot_dimension_numbers<[2], [0], [0, 1], [1], [0, 0, 0, 1, 1, 1], [], []>} : vector<8x2x16xf32>, vector<16x8xf32>, vector<8x2x8xf32> -> vector<8x2x8xf32>
    "tpu.trace_stop"() : () -> ()
    %33 = arith.addf %28, %32 : vector<8x2x8xf32>
    %34 = vector.extract_strided_slice %24 {offsets = [2, 0, 0], sizes = [8, 2, 16], strides = [1, 1, 1]} : vector<10x2x16xf32> to vector<8x2x16xf32>
    %c2_24 = arith.constant 2 : index
    %c0_25 = arith.constant 0 : index
    %c0_26 = arith.constant 0 : index
    %35 = vector.load %arg3[%c2_24, %c0_25, %c0_26] : memref<3x16x8xf32, #tpu.memory_space<vmem>>, vector<1x16x8xf32>
    %36 = vector.shape_cast %35 : vector<1x16x8xf32> to vector<16x8xf32>
    "tpu.trace_start"() <{level = 10 : i32, message = "tbc,cd->tbd"}> : () -> ()
    %cst_27 = arith.constant dense<0.000000e+00> : vector<8x2x8xf32>
    %37 = tpu.matmul %34, %36, %cst_27 {dimension_numbers = #tpu.dot_dimension_numbers<[2], [0], [0, 1], [1], [0, 0, 0, 1, 1, 1], [], []>} : vector<8x2x16xf32>, vector<16x8xf32>, vector<8x2x8xf32> -> vector<8x2x8xf32>
    "tpu.trace_stop"() : () -> ()
    %38 = arith.addf %33, %37 : vector<8x2x8xf32>
    %c0_28 = arith.constant 0 : index
    %c0_29 = arith.constant 0 : index
    %39 = vector.load %arg4[%c0_28, %c0_29] : memref<1x8xf32, #tpu.memory_space<vmem>>, vector<1x8xf32>
    %40 = vector.shape_cast %39 : vector<1x8xf32> to vector<1x1x8xf32>
    %41 = vector.broadcast %40 : vector<1x1x8xf32> to vector<8x2x8xf32>
    %42 = arith.addf %38, %41 : vector<8x2x8xf32>
    %cst_30 = arith.constant 0.000000e+00 : f32
    %43 = vector.broadcast %cst_30 : f32 to vector<8x2x8xf32>
    %44 = arith.maximumf %42, %43 : vector<8x2x8xf32>
    %c0_31 = arith.constant 0 : index
    %c0_32 = arith.constant 0 : index
    %c0_33 = arith.constant 0 : index
    %45 = vector.load %arg5[%c0_31, %c0_32, %c0_33] : memref<8x2x8xf32, #tpu.memory_space<vmem>>, vector<8x2x8xf32>
    tpu.vector_store %arg5[%c0_31, %c0_32, %c0_33], %44 {strides = array<i32>} : memref<8x2x8xf32, #tpu.memory_space<vmem>>, vector<8x2x8xf32>,
    return
  }
}

module attributes {stable_mosaic.version = 11 : i64} {
  func.func @_bilstm_kernel(%arg0: memref<8x2x8xf32, #tpu.memory_space<vmem>>, %arg1: memref<8x256xf32, #tpu.memory_space<vmem>>, %arg2: memref<32x128xf32, #tpu.memory_space<vmem>>, %arg3: memref<32x128xf32, #tpu.memory_space<vmem>>, %arg4: memref<1x256xf32, #tpu.memory_space<vmem>>, %arg5: memref<8x2x64xf32, #tpu.memory_space<vmem>>, %arg6: memref<8x2x256xf32, #tpu.memory_space<vmem>>) attributes {dimension_semantics = [], scalar_prefetch = 0 : i64, scratch_operands = 1 : i64, tpu.core_type = #tpu.core_type<tc>} {
    %c0 = arith.constant 0 : index
    %c0_0 = arith.constant 0 : index
    %c0_1 = arith.constant 0 : index
    %0 = vector.load %arg0[%c0, %c0_0, %c0_1] : memref<8x2x8xf32, #tpu.memory_space<vmem>>, vector<8x2x8xf32>
    %c0_2 = arith.constant 0 : index
    %c0_3 = arith.constant 0 : index
    %1 = vector.load %arg1[%c0_2, %c0_3] : memref<8x256xf32, #tpu.memory_space<vmem>>, vector<8x256xf32>
    "tpu.trace_start"() <{level = 10 : i32, message = "tbd,dg->tbg"}> : () -> ()
    %cst = arith.constant dense<0.000000e+00> : vector<8x2x256xf32>
    %2 = tpu.matmul %0, %1, %cst {dimension_numbers = #tpu.dot_dimension_numbers<[2], [0], [0, 1], [1], [0, 0, 0, 1, 1, 1], [], []>} : vector<8x2x8xf32>, vector<8x256xf32>, vector<8x2x256xf32> -> vector<8x2x256xf32>
    "tpu.trace_stop"() : () -> ()
    %c0_4 = arith.constant 0 : index
    %c0_5 = arith.constant 0 : index
    %3 = vector.load %arg4[%c0_4, %c0_5] : memref<1x256xf32, #tpu.memory_space<vmem>>, vector<1x256xf32>
    %4 = vector.shape_cast %3 : vector<1x256xf32> to vector<1x1x256xf32>
    %5 = vector.broadcast %4 : vector<1x1x256xf32> to vector<8x2x256xf32>
    %6 = arith.addf %2, %5 : vector<8x2x256xf32>
    %c0_6 = arith.constant 0 : index
    %c0_7 = arith.constant 0 : index
    %c0_8 = arith.constant 0 : index
    %7 = vector.load %arg6[%c0_6, %c0_7, %c0_8] : memref<8x2x256xf32, #tpu.memory_space<vmem>>, vector<8x2x256xf32>
    tpu.vector_store %arg6[%c0_6, %c0_7, %c0_8], %6 {strides = array<i32>} : memref<8x2x256xf32, #tpu.memory_space<vmem>>, vector<8x2x256xf32>,
    %c0_9 = arith.constant 0 : index
    %c0_10 = arith.constant 0 : index
    %8 = vector.load %arg2[%c0_9, %c0_10] : memref<32x128xf32, #tpu.memory_space<vmem>>, vector<32x128xf32>
    %c0_11 = arith.constant 0 : index
    %c0_12 = arith.constant 0 : index
    %9 = vector.load %arg3[%c0_11, %c0_12] : memref<32x128xf32, #tpu.memory_space<vmem>>, vector<32x128xf32>
    %cst_13 = arith.constant 0.000000e+00 : f32
    %10 = vector.broadcast %cst_13 : f32 to vector<2x32xf32>
    %c0_i32 = arith.constant 0 : i32
    %c7_i32 = arith.constant 7 : i32
    %11 = arith.subi %c7_i32, %c0_i32 : i32
    %12 = arith.index_cast %c0_i32 : i32 to index
    %c0_14 = arith.constant 0 : index
    %c0_15 = arith.constant 0 : index
    %13 = vector.load %arg6[%12, %c0_14, %c0_15] : memref<8x2x256xf32, #tpu.memory_space<vmem>>, vector<1x2x128xf32>
    %14 = vector.shape_cast %13 : vector<1x2x128xf32> to vector<2x128xf32>
    %cst_16 = arith.constant dense<0.000000e+00> : vector<2x128xf32>
    %15 = tpu.matmul %10, %8, %cst_16 {dimension_numbers = #tpu.dot_dimension_numbers<[1], [0], [0], [1], [0, 0, 1, 1], [], []>} : vector<2x32xf32>, vector<32x128xf32>, vector<2x128xf32> -> vector<2x128xf32>
    %16 = arith.addf %14, %15 : vector<2x128xf32>
    %17 = arith.negf %16 : vector<2x128xf32>
    %18 = math.exp %17 : vector<2x128xf32>
    %cst_17 = arith.constant 1.000000e+00 : f32
    %19 = vector.broadcast %cst_17 : f32 to vector<2x128xf32>
    %20 = arith.addf %19, %18 : vector<2x128xf32>
    %21 = arith.divf %19, %20 : vector<2x128xf32>
    %22 = math.tanh %16 : vector<2x128xf32>
    %23 = vector.extract_strided_slice %21 {offsets = [0, 0], sizes = [2, 32], strides = [1, 1]} : vector<2x128xf32> to vector<2x32xf32>
    %24 = vector.extract_strided_slice %21 {offsets = [0, 32], sizes = [2, 32], strides = [1, 1]} : vector<2x128xf32> to vector<2x32xf32>
    %25 = vector.extract_strided_slice %22 {offsets = [0, 64], sizes = [2, 32], strides = [1, 1]} : vector<2x128xf32> to vector<2x32xf32>
    %26 = vector.extract_strided_slice %21 {offsets = [0, 96], sizes = [2, 32], strides = [1, 1]} : vector<2x128xf32> to vector<2x32xf32>
    %27 = arith.mulf %24, %10 : vector<2x32xf32>
    %28 = arith.mulf %23, %25 : vector<2x32xf32>
    %29 = arith.addf %27, %28 : vector<2x32xf32>
    %30 = math.tanh %29 : vector<2x32xf32>
    %31 = arith.mulf %26, %30 : vector<2x32xf32>
    %32 = arith.index_cast %11 : i32 to index
    %c0_18 = arith.constant 0 : index
    %c128 = arith.constant 128 : index
    %33 = vector.load %arg6[%32, %c0_18, %c128] : memref<8x2x256xf32, #tpu.memory_space<vmem>>, vector<1x2x128xf32>
    %34 = vector.shape_cast %33 : vector<1x2x128xf32> to vector<2x128xf32>
    %cst_19 = arith.constant dense<0.000000e+00> : vector<2x128xf32>
    %35 = tpu.matmul %10, %9, %cst_19 {dimension_numbers = #tpu.dot_dimension_numbers<[1], [0], [0], [1], [0, 0, 1, 1], [], []>} : vector<2x32xf32>, vector<32x128xf32>, vector<2x128xf32> -> vector<2x128xf32>
    %36 = arith.addf %34, %35 : vector<2x128xf32>
    %37 = arith.negf %36 : vector<2x128xf32>
    %38 = math.exp %37 : vector<2x128xf32>
    %cst_20 = arith.constant 1.000000e+00 : f32
    %39 = vector.broadcast %cst_20 : f32 to vector<2x128xf32>
    %40 = arith.addf %39, %38 : vector<2x128xf32>
    %41 = arith.divf %39, %40 : vector<2x128xf32>
    %42 = math.tanh %36 : vector<2x128xf32>
    %43 = vector.extract_strided_slice %41 {offsets = [0, 0], sizes = [2, 32], strides = [1, 1]} : vector<2x128xf32> to vector<2x32xf32>
    %44 = vector.extract_strided_slice %41 {offsets = [0, 32], sizes = [2, 32], strides = [1, 1]} : vector<2x128xf32> to vector<2x32xf32>
    %45 = vector.extract_strided_slice %42 {offsets = [0, 64], sizes = [2, 32], strides = [1, 1]} : vector<2x128xf32> to vector<2x32xf32>
    %46 = vector.extract_strided_slice %41 {offsets = [0, 96], sizes = [2, 32], strides = [1, 1]} : vector<2x128xf32> to vector<2x32xf32>
    %47 = arith.mulf %44, %10 : vector<2x32xf32>
    %48 = arith.mulf %43, %45 : vector<2x32xf32>
    %49 = arith.addf %47, %48 : vector<2x32xf32>
    %50 = math.tanh %49 : vector<2x32xf32>
    %51 = arith.mulf %46, %50 : vector<2x32xf32>
    %52 = arith.index_cast %c0_i32 : i32 to index
    %c0_21 = arith.constant 0 : index
    %c0_22 = arith.constant 0 : index
    %53 = vector.load %arg5[%52, %c0_21, %c0_22] : memref<8x2x64xf32, #tpu.memory_space<vmem>>, vector<1x2x32xf32>
    %54 = vector.shape_cast %53 : vector<1x2x32xf32> to vector<2x32xf32>
    %55 = vector.shape_cast %31 : vector<2x32xf32> to vector<1x2x32xf32>
    tpu.vector_store %arg5[%52, %c0_21, %c0_22], %55 {strides = array<i32>} : memref<8x2x64xf32, #tpu.memory_space<vmem>>, vector<1x2x32xf32>,
    %56 = arith.index_cast %11 : i32 to index
    %c0_23 = arith.constant 0 : index
    %c32 = arith.constant 32 : index
    %57 = vector.load %arg5[%56, %c0_23, %c32] : memref<8x2x64xf32, #tpu.memory_space<vmem>>, vector<1x2x32xf32>
    %58 = vector.shape_cast %57 : vector<1x2x32xf32> to vector<2x32xf32>
    %59 = vector.shape_cast %51 : vector<2x32xf32> to vector<1x2x32xf32>
    tpu.vector_store %arg5[%56, %c0_23, %c32], %59 {strides = array<i32>} : memref<8x2x64xf32, #tpu.memory_space<vmem>>, vector<1x2x32xf32>,
    %c1_i32 = arith.constant 1 : i32
    %c7_i32_24 = arith.constant 7 : i32
    %60 = arith.subi %c7_i32_24, %c1_i32 : i32
    %61 = arith.index_cast %c1_i32 : i32 to index
    %c0_25 = arith.constant 0 : index
    %c0_26 = arith.constant 0 : index
    %62 = vector.load %arg6[%61, %c0_25, %c0_26] : memref<8x2x256xf32, #tpu.memory_space<vmem>>, vector<1x2x128xf32>
    %63 = vector.shape_cast %62 : vector<1x2x128xf32> to vector<2x128xf32>
    %cst_27 = arith.constant dense<0.000000e+00> : vector<2x128xf32>
    %64 = tpu.matmul %31, %8, %cst_27 {dimension_numbers = #tpu.dot_dimension_numbers<[1], [0], [0], [1], [0, 0, 1, 1], [], []>} : vector<2x32xf32>, vector<32x128xf32>, vector<2x128xf32> -> vector<2x128xf32>
    %65 = arith.addf %63, %64 : vector<2x128xf32>
    %66 = arith.negf %65 : vector<2x128xf32>
    %67 = math.exp %66 : vector<2x128xf32>
    %cst_28 = arith.constant 1.000000e+00 : f32
    %68 = vector.broadcast %cst_28 : f32 to vector<2x128xf32>
    %69 = arith.addf %68, %67 : vector<2x128xf32>
    %70 = arith.divf %68, %69 : vector<2x128xf32>
    %71 = math.tanh %65 : vector<2x128xf32>
    %72 = vector.extract_strided_slice %70 {offsets = [0, 0], sizes = [2, 32], strides = [1, 1]} : vector<2x128xf32> to vector<2x32xf32>
    %73 = vector.extract_strided_slice %70 {offsets = [0, 32], sizes = [2, 32], strides = [1, 1]} : vector<2x128xf32> to vector<2x32xf32>
    %74 = vector.extract_strided_slice %71 {offsets = [0, 64], sizes = [2, 32], strides = [1, 1]} : vector<2x128xf32> to vector<2x32xf32>
    %75 = vector.extract_strided_slice %70 {offsets = [0, 96], sizes = [2, 32], strides = [1, 1]} : vector<2x128xf32> to vector<2x32xf32>
    %76 = arith.mulf %73, %29 : vector<2x32xf32>
    %77 = arith.mulf %72, %74 : vector<2x32xf32>
    %78 = arith.addf %76, %77 : vector<2x32xf32>
    %79 = math.tanh %78 : vector<2x32xf32>
    %80 = arith.mulf %75, %79 : vector<2x32xf32>
    %81 = arith.index_cast %60 : i32 to index
    %c0_29 = arith.constant 0 : index
    %c128_30 = arith.constant 128 : index
    %82 = vector.load %arg6[%81, %c0_29, %c128_30] : memref<8x2x256xf32, #tpu.memory_space<vmem>>, vector<1x2x128xf32>
    %83 = vector.shape_cast %82 : vector<1x2x128xf32> to vector<2x128xf32>
    %cst_31 = arith.constant dense<0.000000e+00> : vector<2x128xf32>
    %84 = tpu.matmul %51, %9, %cst_31 {dimension_numbers = #tpu.dot_dimension_numbers<[1], [0], [0], [1], [0, 0, 1, 1], [], []>} : vector<2x32xf32>, vector<32x128xf32>, vector<2x128xf32> -> vector<2x128xf32>
    %85 = arith.addf %83, %84 : vector<2x128xf32>
    %86 = arith.negf %85 : vector<2x128xf32>
    %87 = math.exp %86 : vector<2x128xf32>
    %cst_32 = arith.constant 1.000000e+00 : f32
    %88 = vector.broadcast %cst_32 : f32 to vector<2x128xf32>
    %89 = arith.addf %88, %87 : vector<2x128xf32>
    %90 = arith.divf %88, %89 : vector<2x128xf32>
    %91 = math.tanh %85 : vector<2x128xf32>
    %92 = vector.extract_strided_slice %90 {offsets = [0, 0], sizes = [2, 32], strides = [1, 1]} : vector<2x128xf32> to vector<2x32xf32>
    %93 = vector.extract_strided_slice %90 {offsets = [0, 32], sizes = [2, 32], strides = [1, 1]} : vector<2x128xf32> to vector<2x32xf32>
    %94 = vector.extract_strided_slice %91 {offsets = [0, 64], sizes = [2, 32], strides = [1, 1]} : vector<2x128xf32> to vector<2x32xf32>
    %95 = vector.extract_strided_slice %90 {offsets = [0, 96], sizes = [2, 32], strides = [1, 1]} : vector<2x128xf32> to vector<2x32xf32>
    %96 = arith.mulf %93, %49 : vector<2x32xf32>
    %97 = arith.mulf %92, %94 : vector<2x32xf32>
    %98 = arith.addf %96, %97 : vector<2x32xf32>
    %99 = math.tanh %98 : vector<2x32xf32>
    %100 = arith.mulf %95, %99 : vector<2x32xf32>
    %101 = arith.index_cast %c1_i32 : i32 to index
    %c0_33 = arith.constant 0 : index
    %c0_34 = arith.constant 0 : index
    %102 = vector.load %arg5[%101, %c0_33, %c0_34] : memref<8x2x64xf32, #tpu.memory_space<vmem>>, vector<1x2x32xf32>
    %103 = vector.shape_cast %102 : vector<1x2x32xf32> to vector<2x32xf32>
    %104 = vector.shape_cast %80 : vector<2x32xf32> to vector<1x2x32xf32>
    tpu.vector_store %arg5[%101, %c0_33, %c0_34], %104 {strides = array<i32>} : memref<8x2x64xf32, #tpu.memory_space<vmem>>, vector<1x2x32xf32>,
    %105 = arith.index_cast %60 : i32 to index
    %c0_35 = arith.constant 0 : index
    %c32_36 = arith.constant 32 : index
    %106 = vector.load %arg5[%105, %c0_35, %c32_36] : memref<8x2x64xf32, #tpu.memory_space<vmem>>, vector<1x2x32xf32>
    %107 = vector.shape_cast %106 : vector<1x2x32xf32> to vector<2x32xf32>
    %108 = vector.shape_cast %100 : vector<2x32xf32> to vector<1x2x32xf32>
    tpu.vector_store %arg5[%105, %c0_35, %c32_36], %108 {strides = array<i32>} : memref<8x2x64xf32, #tpu.memory_space<vmem>>, vector<1x2x32xf32>,
    %c2_i32 = arith.constant 2 : i32
    %c7_i32_37 = arith.constant 7 : i32
    %109 = arith.subi %c7_i32_37, %c2_i32 : i32
    %110 = arith.index_cast %c2_i32 : i32 to index
    %c0_38 = arith.constant 0 : index
    %c0_39 = arith.constant 0 : index
    %111 = vector.load %arg6[%110, %c0_38, %c0_39] : memref<8x2x256xf32, #tpu.memory_space<vmem>>, vector<1x2x128xf32>
    %112 = vector.shape_cast %111 : vector<1x2x128xf32> to vector<2x128xf32>
    %cst_40 = arith.constant dense<0.000000e+00> : vector<2x128xf32>
    %113 = tpu.matmul %80, %8, %cst_40 {dimension_numbers = #tpu.dot_dimension_numbers<[1], [0], [0], [1], [0, 0, 1, 1], [], []>} : vector<2x32xf32>, vector<32x128xf32>, vector<2x128xf32> -> vector<2x128xf32>
    %114 = arith.addf %112, %113 : vector<2x128xf32>
    %115 = arith.negf %114 : vector<2x128xf32>
    %116 = math.exp %115 : vector<2x128xf32>
    %cst_41 = arith.constant 1.000000e+00 : f32
    %117 = vector.broadcast %cst_41 : f32 to vector<2x128xf32>
    %118 = arith.addf %117, %116 : vector<2x128xf32>
    %119 = arith.divf %117, %118 : vector<2x128xf32>
    %120 = math.tanh %114 : vector<2x128xf32>
    %121 = vector.extract_strided_slice %119 {offsets = [0, 0], sizes = [2, 32], strides = [1, 1]} : vector<2x128xf32> to vector<2x32xf32>
    %122 = vector.extract_strided_slice %119 {offsets = [0, 32], sizes = [2, 32], strides = [1, 1]} : vector<2x128xf32> to vector<2x32xf32>
    %123 = vector.extract_strided_slice %120 {offsets = [0, 64], sizes = [2, 32], strides = [1, 1]} : vector<2x128xf32> to vector<2x32xf32>
    %124 = vector.extract_strided_slice %119 {offsets = [0, 96], sizes = [2, 32], strides = [1, 1]} : vector<2x128xf32> to vector<2x32xf32>
    %125 = arith.mulf %122, %78 : vector<2x32xf32>
    %126 = arith.mulf %121, %123 : vector<2x32xf32>
    %127 = arith.addf %125, %126 : vector<2x32xf32>
    %128 = math.tanh %127 : vector<2x32xf32>
    %129 = arith.mulf %124, %128 : vector<2x32xf32>
    %130 = arith.index_cast %109 : i32 to index
    %c0_42 = arith.constant 0 : index
    %c128_43 = arith.constant 128 : index
    %131 = vector.load %arg6[%130, %c0_42, %c128_43] : memref<8x2x256xf32, #tpu.memory_space<vmem>>, vector<1x2x128xf32>
    %132 = vector.shape_cast %131 : vector<1x2x128xf32> to vector<2x128xf32>
    %cst_44 = arith.constant dense<0.000000e+00> : vector<2x128xf32>
    %133 = tpu.matmul %100, %9, %cst_44 {dimension_numbers = #tpu.dot_dimension_numbers<[1], [0], [0], [1], [0, 0, 1, 1], [], []>} : vector<2x32xf32>, vector<32x128xf32>, vector<2x128xf32> -> vector<2x128xf32>
    %134 = arith.addf %132, %133 : vector<2x128xf32>
    %135 = arith.negf %134 : vector<2x128xf32>
    %136 = math.exp %135 : vector<2x128xf32>
    %cst_45 = arith.constant 1.000000e+00 : f32
    %137 = vector.broadcast %cst_45 : f32 to vector<2x128xf32>
    %138 = arith.addf %137, %136 : vector<2x128xf32>
    %139 = arith.divf %137, %138 : vector<2x128xf32>
    %140 = math.tanh %134 : vector<2x128xf32>
    %141 = vector.extract_strided_slice %139 {offsets = [0, 0], sizes = [2, 32], strides = [1, 1]} : vector<2x128xf32> to vector<2x32xf32>
    %142 = vector.extract_strided_slice %139 {offsets = [0, 32], sizes = [2, 32], strides = [1, 1]} : vector<2x128xf32> to vector<2x32xf32>
    %143 = vector.extract_strided_slice %140 {offsets = [0, 64], sizes = [2, 32], strides = [1, 1]} : vector<2x128xf32> to vector<2x32xf32>
    %144 = vector.extract_strided_slice %139 {offsets = [0, 96], sizes = [2, 32], strides = [1, 1]} : vector<2x128xf32> to vector<2x32xf32>
    %145 = arith.mulf %142, %98 : vector<2x32xf32>
    %146 = arith.mulf %141, %143 : vector<2x32xf32>
    %147 = arith.addf %145, %146 : vector<2x32xf32>
    %148 = math.tanh %147 : vector<2x32xf32>
    %149 = arith.mulf %144, %148 : vector<2x32xf32>
    %150 = arith.index_cast %c2_i32 : i32 to index
    %c0_46 = arith.constant 0 : index
    %c0_47 = arith.constant 0 : index
    %151 = vector.load %arg5[%150, %c0_46, %c0_47] : memref<8x2x64xf32, #tpu.memory_space<vmem>>, vector<1x2x32xf32>
    %152 = vector.shape_cast %151 : vector<1x2x32xf32> to vector<2x32xf32>
    %153 = vector.shape_cast %129 : vector<2x32xf32> to vector<1x2x32xf32>
    tpu.vector_store %arg5[%150, %c0_46, %c0_47], %153 {strides = array<i32>} : memref<8x2x64xf32, #tpu.memory_space<vmem>>, vector<1x2x32xf32>,
    %154 = arith.index_cast %109 : i32 to index
    %c0_48 = arith.constant 0 : index
    %c32_49 = arith.constant 32 : index
    %155 = vector.load %arg5[%154, %c0_48, %c32_49] : memref<8x2x64xf32, #tpu.memory_space<vmem>>, vector<1x2x32xf32>
    %156 = vector.shape_cast %155 : vector<1x2x32xf32> to vector<2x32xf32>
    %157 = vector.shape_cast %149 : vector<2x32xf32> to vector<1x2x32xf32>
    tpu.vector_store %arg5[%154, %c0_48, %c32_49], %157 {strides = array<i32>} : memref<8x2x64xf32, #tpu.memory_space<vmem>>, vector<1x2x32xf32>,
    %c3_i32 = arith.constant 3 : i32
    %c7_i32_50 = arith.constant 7 : i32
    %158 = arith.subi %c7_i32_50, %c3_i32 : i32
    %159 = arith.index_cast %c3_i32 : i32 to index
    %c0_51 = arith.constant 0 : index
    %c0_52 = arith.constant 0 : index
    %160 = vector.load %arg6[%159, %c0_51, %c0_52] : memref<8x2x256xf32, #tpu.memory_space<vmem>>, vector<1x2x128xf32>
    %161 = vector.shape_cast %160 : vector<1x2x128xf32> to vector<2x128xf32>
    %cst_53 = arith.constant dense<0.000000e+00> : vector<2x128xf32>
    %162 = tpu.matmul %129, %8, %cst_53 {dimension_numbers = #tpu.dot_dimension_numbers<[1], [0], [0], [1], [0, 0, 1, 1], [], []>} : vector<2x32xf32>, vector<32x128xf32>, vector<2x128xf32> -> vector<2x128xf32>
    %163 = arith.addf %161, %162 : vector<2x128xf32>
    %164 = arith.negf %163 : vector<2x128xf32>
    %165 = math.exp %164 : vector<2x128xf32>
    %cst_54 = arith.constant 1.000000e+00 : f32
    %166 = vector.broadcast %cst_54 : f32 to vector<2x128xf32>
    %167 = arith.addf %166, %165 : vector<2x128xf32>
    %168 = arith.divf %166, %167 : vector<2x128xf32>
    %169 = math.tanh %163 : vector<2x128xf32>
    %170 = vector.extract_strided_slice %168 {offsets = [0, 0], sizes = [2, 32], strides = [1, 1]} : vector<2x128xf32> to vector<2x32xf32>
    %171 = vector.extract_strided_slice %168 {offsets = [0, 32], sizes = [2, 32], strides = [1, 1]} : vector<2x128xf32> to vector<2x32xf32>
    %172 = vector.extract_strided_slice %169 {offsets = [0, 64], sizes = [2, 32], strides = [1, 1]} : vector<2x128xf32> to vector<2x32xf32>
    %173 = vector.extract_strided_slice %168 {offsets = [0, 96], sizes = [2, 32], strides = [1, 1]} : vector<2x128xf32> to vector<2x32xf32>
    %174 = arith.mulf %171, %127 : vector<2x32xf32>
    %175 = arith.mulf %170, %172 : vector<2x32xf32>
    %176 = arith.addf %174, %175 : vector<2x32xf32>
    %177 = math.tanh %176 : vector<2x32xf32>
    %178 = arith.mulf %173, %177 : vector<2x32xf32>
    %179 = arith.index_cast %158 : i32 to index
    %c0_55 = arith.constant 0 : index
    %c128_56 = arith.constant 128 : index
    %180 = vector.load %arg6[%179, %c0_55, %c128_56] : memref<8x2x256xf32, #tpu.memory_space<vmem>>, vector<1x2x128xf32>
    %181 = vector.shape_cast %180 : vector<1x2x128xf32> to vector<2x128xf32>
    %cst_57 = arith.constant dense<0.000000e+00> : vector<2x128xf32>
    %182 = tpu.matmul %149, %9, %cst_57 {dimension_numbers = #tpu.dot_dimension_numbers<[1], [0], [0], [1], [0, 0, 1, 1], [], []>} : vector<2x32xf32>, vector<32x128xf32>, vector<2x128xf32> -> vector<2x128xf32>
    %183 = arith.addf %181, %182 : vector<2x128xf32>
    %184 = arith.negf %183 : vector<2x128xf32>
    %185 = math.exp %184 : vector<2x128xf32>
    %cst_58 = arith.constant 1.000000e+00 : f32
    %186 = vector.broadcast %cst_58 : f32 to vector<2x128xf32>
    %187 = arith.addf %186, %185 : vector<2x128xf32>
    %188 = arith.divf %186, %187 : vector<2x128xf32>
    %189 = math.tanh %183 : vector<2x128xf32>
    %190 = vector.extract_strided_slice %188 {offsets = [0, 0], sizes = [2, 32], strides = [1, 1]} : vector<2x128xf32> to vector<2x32xf32>
    %191 = vector.extract_strided_slice %188 {offsets = [0, 32], sizes = [2, 32], strides = [1, 1]} : vector<2x128xf32> to vector<2x32xf32>
    %192 = vector.extract_strided_slice %189 {offsets = [0, 64], sizes = [2, 32], strides = [1, 1]} : vector<2x128xf32> to vector<2x32xf32>
    %193 = vector.extract_strided_slice %188 {offsets = [0, 96], sizes = [2, 32], strides = [1, 1]} : vector<2x128xf32> to vector<2x32xf32>
    %194 = arith.mulf %191, %147 : vector<2x32xf32>
    %195 = arith.mulf %190, %192 : vector<2x32xf32>
    %196 = arith.addf %194, %195 : vector<2x32xf32>
    %197 = math.tanh %196 : vector<2x32xf32>
    %198 = arith.mulf %193, %197 : vector<2x32xf32>
    %199 = arith.index_cast %c3_i32 : i32 to index
    %c0_59 = arith.constant 0 : index
    %c0_60 = arith.constant 0 : index
    %200 = vector.load %arg5[%199, %c0_59, %c0_60] : memref<8x2x64xf32, #tpu.memory_space<vmem>>, vector<1x2x32xf32>
    %201 = vector.shape_cast %200 : vector<1x2x32xf32> to vector<2x32xf32>
    %202 = vector.shape_cast %178 : vector<2x32xf32> to vector<1x2x32xf32>
    tpu.vector_store %arg5[%199, %c0_59, %c0_60], %202 {strides = array<i32>} : memref<8x2x64xf32, #tpu.memory_space<vmem>>, vector<1x2x32xf32>,
    %203 = arith.index_cast %158 : i32 to index
    %c0_61 = arith.constant 0 : index
    %c32_62 = arith.constant 32 : index
    %204 = vector.load %arg5[%203, %c0_61, %c32_62] : memref<8x2x64xf32, #tpu.memory_space<vmem>>, vector<1x2x32xf32>
    %205 = vector.shape_cast %204 : vector<1x2x32xf32> to vector<2x32xf32>
    %206 = vector.shape_cast %198 : vector<2x32xf32> to vector<1x2x32xf32>
    tpu.vector_store %arg5[%203, %c0_61, %c32_62], %206 {strides = array<i32>} : memref<8x2x64xf32, #tpu.memory_space<vmem>>, vector<1x2x32xf32>,
    %c4_i32 = arith.constant 4 : i32
    %c7_i32_63 = arith.constant 7 : i32
    %207 = arith.subi %c7_i32_63, %c4_i32 : i32
    %208 = arith.index_cast %c4_i32 : i32 to index
    %c0_64 = arith.constant 0 : index
    %c0_65 = arith.constant 0 : index
    %209 = vector.load %arg6[%208, %c0_64, %c0_65] : memref<8x2x256xf32, #tpu.memory_space<vmem>>, vector<1x2x128xf32>
    %210 = vector.shape_cast %209 : vector<1x2x128xf32> to vector<2x128xf32>
    %cst_66 = arith.constant dense<0.000000e+00> : vector<2x128xf32>
    %211 = tpu.matmul %178, %8, %cst_66 {dimension_numbers = #tpu.dot_dimension_numbers<[1], [0], [0], [1], [0, 0, 1, 1], [], []>} : vector<2x32xf32>, vector<32x128xf32>, vector<2x128xf32> -> vector<2x128xf32>
    %212 = arith.addf %210, %211 : vector<2x128xf32>
    %213 = arith.negf %212 : vector<2x128xf32>
    %214 = math.exp %213 : vector<2x128xf32>
    %cst_67 = arith.constant 1.000000e+00 : f32
    %215 = vector.broadcast %cst_67 : f32 to vector<2x128xf32>
    %216 = arith.addf %215, %214 : vector<2x128xf32>
    %217 = arith.divf %215, %216 : vector<2x128xf32>
    %218 = math.tanh %212 : vector<2x128xf32>
    %219 = vector.extract_strided_slice %217 {offsets = [0, 0], sizes = [2, 32], strides = [1, 1]} : vector<2x128xf32> to vector<2x32xf32>
    %220 = vector.extract_strided_slice %217 {offsets = [0, 32], sizes = [2, 32], strides = [1, 1]} : vector<2x128xf32> to vector<2x32xf32>
    %221 = vector.extract_strided_slice %218 {offsets = [0, 64], sizes = [2, 32], strides = [1, 1]} : vector<2x128xf32> to vector<2x32xf32>
    %222 = vector.extract_strided_slice %217 {offsets = [0, 96], sizes = [2, 32], strides = [1, 1]} : vector<2x128xf32> to vector<2x32xf32>
    %223 = arith.mulf %220, %176 : vector<2x32xf32>
    %224 = arith.mulf %219, %221 : vector<2x32xf32>
    %225 = arith.addf %223, %224 : vector<2x32xf32>
    %226 = math.tanh %225 : vector<2x32xf32>
    %227 = arith.mulf %222, %226 : vector<2x32xf32>
    %228 = arith.index_cast %207 : i32 to index
    %c0_68 = arith.constant 0 : index
    %c128_69 = arith.constant 128 : index
    %229 = vector.load %arg6[%228, %c0_68, %c128_69] : memref<8x2x256xf32, #tpu.memory_space<vmem>>, vector<1x2x128xf32>
    %230 = vector.shape_cast %229 : vector<1x2x128xf32> to vector<2x128xf32>
    %cst_70 = arith.constant dense<0.000000e+00> : vector<2x128xf32>
    %231 = tpu.matmul %198, %9, %cst_70 {dimension_numbers = #tpu.dot_dimension_numbers<[1], [0], [0], [1], [0, 0, 1, 1], [], []>} : vector<2x32xf32>, vector<32x128xf32>, vector<2x128xf32> -> vector<2x128xf32>
    %232 = arith.addf %230, %231 : vector<2x128xf32>
    %233 = arith.negf %232 : vector<2x128xf32>
    %234 = math.exp %233 : vector<2x128xf32>
    %cst_71 = arith.constant 1.000000e+00 : f32
    %235 = vector.broadcast %cst_71 : f32 to vector<2x128xf32>
    %236 = arith.addf %235, %234 : vector<2x128xf32>
    %237 = arith.divf %235, %236 : vector<2x128xf32>
    %238 = math.tanh %232 : vector<2x128xf32>
    %239 = vector.extract_strided_slice %237 {offsets = [0, 0], sizes = [2, 32], strides = [1, 1]} : vector<2x128xf32> to vector<2x32xf32>
    %240 = vector.extract_strided_slice %237 {offsets = [0, 32], sizes = [2, 32], strides = [1, 1]} : vector<2x128xf32> to vector<2x32xf32>
    %241 = vector.extract_strided_slice %238 {offsets = [0, 64], sizes = [2, 32], strides = [1, 1]} : vector<2x128xf32> to vector<2x32xf32>
    %242 = vector.extract_strided_slice %237 {offsets = [0, 96], sizes = [2, 32], strides = [1, 1]} : vector<2x128xf32> to vector<2x32xf32>
    %243 = arith.mulf %240, %196 : vector<2x32xf32>
    %244 = arith.mulf %239, %241 : vector<2x32xf32>
    %245 = arith.addf %243, %244 : vector<2x32xf32>
    %246 = math.tanh %245 : vector<2x32xf32>
    %247 = arith.mulf %242, %246 : vector<2x32xf32>
    %248 = arith.index_cast %c4_i32 : i32 to index
    %c0_72 = arith.constant 0 : index
    %c0_73 = arith.constant 0 : index
    %249 = vector.load %arg5[%248, %c0_72, %c0_73] : memref<8x2x64xf32, #tpu.memory_space<vmem>>, vector<1x2x32xf32>
    %250 = vector.shape_cast %249 : vector<1x2x32xf32> to vector<2x32xf32>
    %251 = vector.shape_cast %227 : vector<2x32xf32> to vector<1x2x32xf32>
    tpu.vector_store %arg5[%248, %c0_72, %c0_73], %251 {strides = array<i32>} : memref<8x2x64xf32, #tpu.memory_space<vmem>>, vector<1x2x32xf32>,
    %252 = arith.index_cast %207 : i32 to index
    %c0_74 = arith.constant 0 : index
    %c32_75 = arith.constant 32 : index
    %253 = vector.load %arg5[%252, %c0_74, %c32_75] : memref<8x2x64xf32, #tpu.memory_space<vmem>>, vector<1x2x32xf32>
    %254 = vector.shape_cast %253 : vector<1x2x32xf32> to vector<2x32xf32>
    %255 = vector.shape_cast %247 : vector<2x32xf32> to vector<1x2x32xf32>
    tpu.vector_store %arg5[%252, %c0_74, %c32_75], %255 {strides = array<i32>} : memref<8x2x64xf32, #tpu.memory_space<vmem>>, vector<1x2x32xf32>,
    %c5_i32 = arith.constant 5 : i32
    %c7_i32_76 = arith.constant 7 : i32
    %256 = arith.subi %c7_i32_76, %c5_i32 : i32
    %257 = arith.index_cast %c5_i32 : i32 to index
    %c0_77 = arith.constant 0 : index
    %c0_78 = arith.constant 0 : index
    %258 = vector.load %arg6[%257, %c0_77, %c0_78] : memref<8x2x256xf32, #tpu.memory_space<vmem>>, vector<1x2x128xf32>
    %259 = vector.shape_cast %258 : vector<1x2x128xf32> to vector<2x128xf32>
    %cst_79 = arith.constant dense<0.000000e+00> : vector<2x128xf32>
    %260 = tpu.matmul %227, %8, %cst_79 {dimension_numbers = #tpu.dot_dimension_numbers<[1], [0], [0], [1], [0, 0, 1, 1], [], []>} : vector<2x32xf32>, vector<32x128xf32>, vector<2x128xf32> -> vector<2x128xf32>
    %261 = arith.addf %259, %260 : vector<2x128xf32>
    %262 = arith.negf %261 : vector<2x128xf32>
    %263 = math.exp %262 : vector<2x128xf32>
    %cst_80 = arith.constant 1.000000e+00 : f32
    %264 = vector.broadcast %cst_80 : f32 to vector<2x128xf32>
    %265 = arith.addf %264, %263 : vector<2x128xf32>
    %266 = arith.divf %264, %265 : vector<2x128xf32>
    %267 = math.tanh %261 : vector<2x128xf32>
    %268 = vector.extract_strided_slice %266 {offsets = [0, 0], sizes = [2, 32], strides = [1, 1]} : vector<2x128xf32> to vector<2x32xf32>
    %269 = vector.extract_strided_slice %266 {offsets = [0, 32], sizes = [2, 32], strides = [1, 1]} : vector<2x128xf32> to vector<2x32xf32>
    %270 = vector.extract_strided_slice %267 {offsets = [0, 64], sizes = [2, 32], strides = [1, 1]} : vector<2x128xf32> to vector<2x32xf32>
    %271 = vector.extract_strided_slice %266 {offsets = [0, 96], sizes = [2, 32], strides = [1, 1]} : vector<2x128xf32> to vector<2x32xf32>
    %272 = arith.mulf %269, %225 : vector<2x32xf32>
    %273 = arith.mulf %268, %270 : vector<2x32xf32>
    %274 = arith.addf %272, %273 : vector<2x32xf32>
    %275 = math.tanh %274 : vector<2x32xf32>
    %276 = arith.mulf %271, %275 : vector<2x32xf32>
    %277 = arith.index_cast %256 : i32 to index
    %c0_81 = arith.constant 0 : index
    %c128_82 = arith.constant 128 : index
    %278 = vector.load %arg6[%277, %c0_81, %c128_82] : memref<8x2x256xf32, #tpu.memory_space<vmem>>, vector<1x2x128xf32>
    %279 = vector.shape_cast %278 : vector<1x2x128xf32> to vector<2x128xf32>
    %cst_83 = arith.constant dense<0.000000e+00> : vector<2x128xf32>
    %280 = tpu.matmul %247, %9, %cst_83 {dimension_numbers = #tpu.dot_dimension_numbers<[1], [0], [0], [1], [0, 0, 1, 1], [], []>} : vector<2x32xf32>, vector<32x128xf32>, vector<2x128xf32> -> vector<2x128xf32>
    %281 = arith.addf %279, %280 : vector<2x128xf32>
    %282 = arith.negf %281 : vector<2x128xf32>
    %283 = math.exp %282 : vector<2x128xf32>
    %cst_84 = arith.constant 1.000000e+00 : f32
    %284 = vector.broadcast %cst_84 : f32 to vector<2x128xf32>
    %285 = arith.addf %284, %283 : vector<2x128xf32>
    %286 = arith.divf %284, %285 : vector<2x128xf32>
    %287 = math.tanh %281 : vector<2x128xf32>
    %288 = vector.extract_strided_slice %286 {offsets = [0, 0], sizes = [2, 32], strides = [1, 1]} : vector<2x128xf32> to vector<2x32xf32>
    %289 = vector.extract_strided_slice %286 {offsets = [0, 32], sizes = [2, 32], strides = [1, 1]} : vector<2x128xf32> to vector<2x32xf32>
    %290 = vector.extract_strided_slice %287 {offsets = [0, 64], sizes = [2, 32], strides = [1, 1]} : vector<2x128xf32> to vector<2x32xf32>
    %291 = vector.extract_strided_slice %286 {offsets = [0, 96], sizes = [2, 32], strides = [1, 1]} : vector<2x128xf32> to vector<2x32xf32>
    %292 = arith.mulf %289, %245 : vector<2x32xf32>
    %293 = arith.mulf %288, %290 : vector<2x32xf32>
    %294 = arith.addf %292, %293 : vector<2x32xf32>
    %295 = math.tanh %294 : vector<2x32xf32>
    %296 = arith.mulf %291, %295 : vector<2x32xf32>
    %297 = arith.index_cast %c5_i32 : i32 to index
    %c0_85 = arith.constant 0 : index
    %c0_86 = arith.constant 0 : index
    %298 = vector.load %arg5[%297, %c0_85, %c0_86] : memref<8x2x64xf32, #tpu.memory_space<vmem>>, vector<1x2x32xf32>
    %299 = vector.shape_cast %298 : vector<1x2x32xf32> to vector<2x32xf32>
    %300 = vector.shape_cast %276 : vector<2x32xf32> to vector<1x2x32xf32>
    tpu.vector_store %arg5[%297, %c0_85, %c0_86], %300 {strides = array<i32>} : memref<8x2x64xf32, #tpu.memory_space<vmem>>, vector<1x2x32xf32>,
    %301 = arith.index_cast %256 : i32 to index
    %c0_87 = arith.constant 0 : index
    %c32_88 = arith.constant 32 : index
    %302 = vector.load %arg5[%301, %c0_87, %c32_88] : memref<8x2x64xf32, #tpu.memory_space<vmem>>, vector<1x2x32xf32>
    %303 = vector.shape_cast %302 : vector<1x2x32xf32> to vector<2x32xf32>
    %304 = vector.shape_cast %296 : vector<2x32xf32> to vector<1x2x32xf32>
    tpu.vector_store %arg5[%301, %c0_87, %c32_88], %304 {strides = array<i32>} : memref<8x2x64xf32, #tpu.memory_space<vmem>>, vector<1x2x32xf32>,
    %c6_i32 = arith.constant 6 : i32
    %c7_i32_89 = arith.constant 7 : i32
    %305 = arith.subi %c7_i32_89, %c6_i32 : i32
    %306 = arith.index_cast %c6_i32 : i32 to index
    %c0_90 = arith.constant 0 : index
    %c0_91 = arith.constant 0 : index
    %307 = vector.load %arg6[%306, %c0_90, %c0_91] : memref<8x2x256xf32, #tpu.memory_space<vmem>>, vector<1x2x128xf32>
    %308 = vector.shape_cast %307 : vector<1x2x128xf32> to vector<2x128xf32>
    %cst_92 = arith.constant dense<0.000000e+00> : vector<2x128xf32>
    %309 = tpu.matmul %276, %8, %cst_92 {dimension_numbers = #tpu.dot_dimension_numbers<[1], [0], [0], [1], [0, 0, 1, 1], [], []>} : vector<2x32xf32>, vector<32x128xf32>, vector<2x128xf32> -> vector<2x128xf32>
    %310 = arith.addf %308, %309 : vector<2x128xf32>
    %311 = arith.negf %310 : vector<2x128xf32>
    %312 = math.exp %311 : vector<2x128xf32>
    %cst_93 = arith.constant 1.000000e+00 : f32
    %313 = vector.broadcast %cst_93 : f32 to vector<2x128xf32>
    %314 = arith.addf %313, %312 : vector<2x128xf32>
    %315 = arith.divf %313, %314 : vector<2x128xf32>
    %316 = math.tanh %310 : vector<2x128xf32>
    %317 = vector.extract_strided_slice %315 {offsets = [0, 0], sizes = [2, 32], strides = [1, 1]} : vector<2x128xf32> to vector<2x32xf32>
    %318 = vector.extract_strided_slice %315 {offsets = [0, 32], sizes = [2, 32], strides = [1, 1]} : vector<2x128xf32> to vector<2x32xf32>
    %319 = vector.extract_strided_slice %316 {offsets = [0, 64], sizes = [2, 32], strides = [1, 1]} : vector<2x128xf32> to vector<2x32xf32>
    %320 = vector.extract_strided_slice %315 {offsets = [0, 96], sizes = [2, 32], strides = [1, 1]} : vector<2x128xf32> to vector<2x32xf32>
    %321 = arith.mulf %318, %274 : vector<2x32xf32>
    %322 = arith.mulf %317, %319 : vector<2x32xf32>
    %323 = arith.addf %321, %322 : vector<2x32xf32>
    %324 = math.tanh %323 : vector<2x32xf32>
    %325 = arith.mulf %320, %324 : vector<2x32xf32>
    %326 = arith.index_cast %305 : i32 to index
    %c0_94 = arith.constant 0 : index
    %c128_95 = arith.constant 128 : index
    %327 = vector.load %arg6[%326, %c0_94, %c128_95] : memref<8x2x256xf32, #tpu.memory_space<vmem>>, vector<1x2x128xf32>
    %328 = vector.shape_cast %327 : vector<1x2x128xf32> to vector<2x128xf32>
    %cst_96 = arith.constant dense<0.000000e+00> : vector<2x128xf32>
    %329 = tpu.matmul %296, %9, %cst_96 {dimension_numbers = #tpu.dot_dimension_numbers<[1], [0], [0], [1], [0, 0, 1, 1], [], []>} : vector<2x32xf32>, vector<32x128xf32>, vector<2x128xf32> -> vector<2x128xf32>
    %330 = arith.addf %328, %329 : vector<2x128xf32>
    %331 = arith.negf %330 : vector<2x128xf32>
    %332 = math.exp %331 : vector<2x128xf32>
    %cst_97 = arith.constant 1.000000e+00 : f32
    %333 = vector.broadcast %cst_97 : f32 to vector<2x128xf32>
    %334 = arith.addf %333, %332 : vector<2x128xf32>
    %335 = arith.divf %333, %334 : vector<2x128xf32>
    %336 = math.tanh %330 : vector<2x128xf32>
    %337 = vector.extract_strided_slice %335 {offsets = [0, 0], sizes = [2, 32], strides = [1, 1]} : vector<2x128xf32> to vector<2x32xf32>
    %338 = vector.extract_strided_slice %335 {offsets = [0, 32], sizes = [2, 32], strides = [1, 1]} : vector<2x128xf32> to vector<2x32xf32>
    %339 = vector.extract_strided_slice %336 {offsets = [0, 64], sizes = [2, 32], strides = [1, 1]} : vector<2x128xf32> to vector<2x32xf32>
    %340 = vector.extract_strided_slice %335 {offsets = [0, 96], sizes = [2, 32], strides = [1, 1]} : vector<2x128xf32> to vector<2x32xf32>
    %341 = arith.mulf %338, %294 : vector<2x32xf32>
    %342 = arith.mulf %337, %339 : vector<2x32xf32>
    %343 = arith.addf %341, %342 : vector<2x32xf32>
    %344 = math.tanh %343 : vector<2x32xf32>
    %345 = arith.mulf %340, %344 : vector<2x32xf32>
    %346 = arith.index_cast %c6_i32 : i32 to index
    %c0_98 = arith.constant 0 : index
    %c0_99 = arith.constant 0 : index
    %347 = vector.load %arg5[%346, %c0_98, %c0_99] : memref<8x2x64xf32, #tpu.memory_space<vmem>>, vector<1x2x32xf32>
    %348 = vector.shape_cast %347 : vector<1x2x32xf32> to vector<2x32xf32>
    %349 = vector.shape_cast %325 : vector<2x32xf32> to vector<1x2x32xf32>
    tpu.vector_store %arg5[%346, %c0_98, %c0_99], %349 {strides = array<i32>} : memref<8x2x64xf32, #tpu.memory_space<vmem>>, vector<1x2x32xf32>,
    %350 = arith.index_cast %305 : i32 to index
    %c0_100 = arith.constant 0 : index
    %c32_101 = arith.constant 32 : index
    %351 = vector.load %arg5[%350, %c0_100, %c32_101] : memref<8x2x64xf32, #tpu.memory_space<vmem>>, vector<1x2x32xf32>
    %352 = vector.shape_cast %351 : vector<1x2x32xf32> to vector<2x32xf32>
    %353 = vector.shape_cast %345 : vector<2x32xf32> to vector<1x2x32xf32>
    tpu.vector_store %arg5[%350, %c0_100, %c32_101], %353 {strides = array<i32>} : memref<8x2x64xf32, #tpu.memory_space<vmem>>, vector<1x2x32xf32>,
    %c7_i32_102 = arith.constant 7 : i32
    %c7_i32_103 = arith.constant 7 : i32
    %354 = arith.subi %c7_i32_103, %c7_i32_102 : i32
    %355 = arith.index_cast %c7_i32_102 : i32 to index
    %c0_104 = arith.constant 0 : index
    %c0_105 = arith.constant 0 : index
    %356 = vector.load %arg6[%355, %c0_104, %c0_105] : memref<8x2x256xf32, #tpu.memory_space<vmem>>, vector<1x2x128xf32>
    %357 = vector.shape_cast %356 : vector<1x2x128xf32> to vector<2x128xf32>
    %cst_106 = arith.constant dense<0.000000e+00> : vector<2x128xf32>
    %358 = tpu.matmul %325, %8, %cst_106 {dimension_numbers = #tpu.dot_dimension_numbers<[1], [0], [0], [1], [0, 0, 1, 1], [], []>} : vector<2x32xf32>, vector<32x128xf32>, vector<2x128xf32> -> vector<2x128xf32>
    %359 = arith.addf %357, %358 : vector<2x128xf32>
    %360 = arith.negf %359 : vector<2x128xf32>
    %361 = math.exp %360 : vector<2x128xf32>
    %cst_107 = arith.constant 1.000000e+00 : f32
    %362 = vector.broadcast %cst_107 : f32 to vector<2x128xf32>
    %363 = arith.addf %362, %361 : vector<2x128xf32>
    %364 = arith.divf %362, %363 : vector<2x128xf32>
    %365 = math.tanh %359 : vector<2x128xf32>
    %366 = vector.extract_strided_slice %364 {offsets = [0, 0], sizes = [2, 32], strides = [1, 1]} : vector<2x128xf32> to vector<2x32xf32>
    %367 = vector.extract_strided_slice %364 {offsets = [0, 32], sizes = [2, 32], strides = [1, 1]} : vector<2x128xf32> to vector<2x32xf32>
    %368 = vector.extract_strided_slice %365 {offsets = [0, 64], sizes = [2, 32], strides = [1, 1]} : vector<2x128xf32> to vector<2x32xf32>
    %369 = vector.extract_strided_slice %364 {offsets = [0, 96], sizes = [2, 32], strides = [1, 1]} : vector<2x128xf32> to vector<2x32xf32>
    %370 = arith.mulf %367, %323 : vector<2x32xf32>
    %371 = arith.mulf %366, %368 : vector<2x32xf32>
    %372 = arith.addf %370, %371 : vector<2x32xf32>
    %373 = math.tanh %372 : vector<2x32xf32>
    %374 = arith.mulf %369, %373 : vector<2x32xf32>
    %375 = arith.index_cast %354 : i32 to index
    %c0_108 = arith.constant 0 : index
    %c128_109 = arith.constant 128 : index
    %376 = vector.load %arg6[%375, %c0_108, %c128_109] : memref<8x2x256xf32, #tpu.memory_space<vmem>>, vector<1x2x128xf32>
    %377 = vector.shape_cast %376 : vector<1x2x128xf32> to vector<2x128xf32>
    %cst_110 = arith.constant dense<0.000000e+00> : vector<2x128xf32>
    %378 = tpu.matmul %345, %9, %cst_110 {dimension_numbers = #tpu.dot_dimension_numbers<[1], [0], [0], [1], [0, 0, 1, 1], [], []>} : vector<2x32xf32>, vector<32x128xf32>, vector<2x128xf32> -> vector<2x128xf32>
    %379 = arith.addf %377, %378 : vector<2x128xf32>
    %380 = arith.negf %379 : vector<2x128xf32>
    %381 = math.exp %380 : vector<2x128xf32>
    %cst_111 = arith.constant 1.000000e+00 : f32
    %382 = vector.broadcast %cst_111 : f32 to vector<2x128xf32>
    %383 = arith.addf %382, %381 : vector<2x128xf32>
    %384 = arith.divf %382, %383 : vector<2x128xf32>
    %385 = math.tanh %379 : vector<2x128xf32>
    %386 = vector.extract_strided_slice %384 {offsets = [0, 0], sizes = [2, 32], strides = [1, 1]} : vector<2x128xf32> to vector<2x32xf32>
    %387 = vector.extract_strided_slice %384 {offsets = [0, 32], sizes = [2, 32], strides = [1, 1]} : vector<2x128xf32> to vector<2x32xf32>
    %388 = vector.extract_strided_slice %385 {offsets = [0, 64], sizes = [2, 32], strides = [1, 1]} : vector<2x128xf32> to vector<2x32xf32>
    %389 = vector.extract_strided_slice %384 {offsets = [0, 96], sizes = [2, 32], strides = [1, 1]} : vector<2x128xf32> to vector<2x32xf32>
    %390 = arith.mulf %387, %343 : vector<2x32xf32>
    %391 = arith.mulf %386, %388 : vector<2x32xf32>
    %392 = arith.addf %390, %391 : vector<2x32xf32>
    %393 = math.tanh %392 : vector<2x32xf32>
    %394 = arith.mulf %389, %393 : vector<2x32xf32>
    %395 = arith.index_cast %c7_i32_102 : i32 to index
    %c0_112 = arith.constant 0 : index
    %c0_113 = arith.constant 0 : index
    %396 = vector.load %arg5[%395, %c0_112, %c0_113] : memref<8x2x64xf32, #tpu.memory_space<vmem>>, vector<1x2x32xf32>
    %397 = vector.shape_cast %396 : vector<1x2x32xf32> to vector<2x32xf32>
    %398 = vector.shape_cast %374 : vector<2x32xf32> to vector<1x2x32xf32>
    tpu.vector_store %arg5[%395, %c0_112, %c0_113], %398 {strides = array<i32>} : memref<8x2x64xf32, #tpu.memory_space<vmem>>, vector<1x2x32xf32>,
    %399 = arith.index_cast %354 : i32 to index
    %c0_114 = arith.constant 0 : index
    %c32_115 = arith.constant 32 : index
    %400 = vector.load %arg5[%399, %c0_114, %c32_115] : memref<8x2x64xf32, #tpu.memory_space<vmem>>, vector<1x2x32xf32>
    %401 = vector.shape_cast %400 : vector<1x2x32xf32> to vector<2x32xf32>
    %402 = vector.shape_cast %394 : vector<2x32xf32> to vector<1x2x32xf32>
    tpu.vector_store %arg5[%399, %c0_114, %c32_115], %402 {strides = array<i32>} : memref<8x2x64xf32, #tpu.memory_space<vmem>>, vector<1x2x32xf32>,
    %c8_i32 = arith.constant 8 : i32
    return
  }
}

module attributes {stable_mosaic.version = 11 : i64} {
  func.func @_bilstm_head_kernel(%arg0: memref<8x2x64xf32, #tpu.memory_space<vmem>>, %arg1: memref<64x256xf32, #tpu.memory_space<vmem>>, %arg2: memref<32x128xf32, #tpu.memory_space<vmem>>, %arg3: memref<32x128xf32, #tpu.memory_space<vmem>>, %arg4: memref<1x256xf32, #tpu.memory_space<vmem>>, %arg5: memref<64x64xf32, #tpu.memory_space<vmem>>, %arg6: memref<1x64xf32, #tpu.memory_space<vmem>>, %arg7: memref<64x64xf32, #tpu.memory_space<vmem>>, %arg8: memref<1x64xf32, #tpu.memory_space<vmem>>, %arg9: memref<64x128xf32, #tpu.memory_space<vmem>>, %arg10: memref<1x128xf32, #tpu.memory_space<vmem>>, %arg11: memref<8x2x128xf32, #tpu.memory_space<vmem>>, %arg12: memref<8x2x256xf32, #tpu.memory_space<vmem>>, %arg13: memref<8x2x64xf32, #tpu.memory_space<vmem>>) attributes {dimension_semantics = [], scalar_prefetch = 0 : i64, scratch_operands = 2 : i64, tpu.core_type = #tpu.core_type<tc>} {
    %c0 = arith.constant 0 : index
    %c0_0 = arith.constant 0 : index
    %c0_1 = arith.constant 0 : index
    %0 = vector.load %arg0[%c0, %c0_0, %c0_1] : memref<8x2x64xf32, #tpu.memory_space<vmem>>, vector<8x2x64xf32>
    %c0_2 = arith.constant 0 : index
    %c0_3 = arith.constant 0 : index
    %1 = vector.load %arg1[%c0_2, %c0_3] : memref<64x256xf32, #tpu.memory_space<vmem>>, vector<64x256xf32>
    "tpu.trace_start"() <{level = 10 : i32, message = "tbd,dg->tbg"}> : () -> ()
    %cst = arith.constant dense<0.000000e+00> : vector<8x2x256xf32>
    %2 = tpu.matmul %0, %1, %cst {dimension_numbers = #tpu.dot_dimension_numbers<[2], [0], [0, 1], [1], [0, 0, 0, 1, 1, 1], [], []>} : vector<8x2x64xf32>, vector<64x256xf32>, vector<8x2x256xf32> -> vector<8x2x256xf32>
    "tpu.trace_stop"() : () -> ()
    %c0_4 = arith.constant 0 : index
    %c0_5 = arith.constant 0 : index
    %3 = vector.load %arg4[%c0_4, %c0_5] : memref<1x256xf32, #tpu.memory_space<vmem>>, vector<1x256xf32>
    %4 = vector.shape_cast %3 : vector<1x256xf32> to vector<1x1x256xf32>
    %5 = vector.broadcast %4 : vector<1x1x256xf32> to vector<8x2x256xf32>
    %6 = arith.addf %2, %5 : vector<8x2x256xf32>
    %c0_6 = arith.constant 0 : index
    %c0_7 = arith.constant 0 : index
    %c0_8 = arith.constant 0 : index
    %7 = vector.load %arg12[%c0_6, %c0_7, %c0_8] : memref<8x2x256xf32, #tpu.memory_space<vmem>>, vector<8x2x256xf32>
    tpu.vector_store %arg12[%c0_6, %c0_7, %c0_8], %6 {strides = array<i32>} : memref<8x2x256xf32, #tpu.memory_space<vmem>>, vector<8x2x256xf32>,
    %c0_9 = arith.constant 0 : index
    %c0_10 = arith.constant 0 : index
    %8 = vector.load %arg2[%c0_9, %c0_10] : memref<32x128xf32, #tpu.memory_space<vmem>>, vector<32x128xf32>
    %c0_11 = arith.constant 0 : index
    %c0_12 = arith.constant 0 : index
    %9 = vector.load %arg3[%c0_11, %c0_12] : memref<32x128xf32, #tpu.memory_space<vmem>>, vector<32x128xf32>
    %cst_13 = arith.constant 0.000000e+00 : f32
    %10 = vector.broadcast %cst_13 : f32 to vector<2x32xf32>
    %c0_i32 = arith.constant 0 : i32
    %c7_i32 = arith.constant 7 : i32
    %11 = arith.subi %c7_i32, %c0_i32 : i32
    %12 = arith.index_cast %c0_i32 : i32 to index
    %c0_14 = arith.constant 0 : index
    %c0_15 = arith.constant 0 : index
    %13 = vector.load %arg12[%12, %c0_14, %c0_15] : memref<8x2x256xf32, #tpu.memory_space<vmem>>, vector<1x2x128xf32>
    %14 = vector.shape_cast %13 : vector<1x2x128xf32> to vector<2x128xf32>
    %cst_16 = arith.constant dense<0.000000e+00> : vector<2x128xf32>
    %15 = tpu.matmul %10, %8, %cst_16 {dimension_numbers = #tpu.dot_dimension_numbers<[1], [0], [0], [1], [0, 0, 1, 1], [], []>} : vector<2x32xf32>, vector<32x128xf32>, vector<2x128xf32> -> vector<2x128xf32>
    %16 = arith.addf %14, %15 : vector<2x128xf32>
    %17 = arith.negf %16 : vector<2x128xf32>
    %18 = math.exp %17 : vector<2x128xf32>
    %cst_17 = arith.constant 1.000000e+00 : f32
    %19 = vector.broadcast %cst_17 : f32 to vector<2x128xf32>
    %20 = arith.addf %19, %18 : vector<2x128xf32>
    %21 = arith.divf %19, %20 : vector<2x128xf32>
    %22 = math.tanh %16 : vector<2x128xf32>
    %23 = vector.extract_strided_slice %21 {offsets = [0, 0], sizes = [2, 32], strides = [1, 1]} : vector<2x128xf32> to vector<2x32xf32>
    %24 = vector.extract_strided_slice %21 {offsets = [0, 32], sizes = [2, 32], strides = [1, 1]} : vector<2x128xf32> to vector<2x32xf32>
    %25 = vector.extract_strided_slice %22 {offsets = [0, 64], sizes = [2, 32], strides = [1, 1]} : vector<2x128xf32> to vector<2x32xf32>
    %26 = vector.extract_strided_slice %21 {offsets = [0, 96], sizes = [2, 32], strides = [1, 1]} : vector<2x128xf32> to vector<2x32xf32>
    %27 = arith.mulf %24, %10 : vector<2x32xf32>
    %28 = arith.mulf %23, %25 : vector<2x32xf32>
    %29 = arith.addf %27, %28 : vector<2x32xf32>
    %30 = math.tanh %29 : vector<2x32xf32>
    %31 = arith.mulf %26, %30 : vector<2x32xf32>
    %32 = arith.index_cast %11 : i32 to index
    %c0_18 = arith.constant 0 : index
    %c128 = arith.constant 128 : index
    %33 = vector.load %arg12[%32, %c0_18, %c128] : memref<8x2x256xf32, #tpu.memory_space<vmem>>, vector<1x2x128xf32>
    %34 = vector.shape_cast %33 : vector<1x2x128xf32> to vector<2x128xf32>
    %cst_19 = arith.constant dense<0.000000e+00> : vector<2x128xf32>
    %35 = tpu.matmul %10, %9, %cst_19 {dimension_numbers = #tpu.dot_dimension_numbers<[1], [0], [0], [1], [0, 0, 1, 1], [], []>} : vector<2x32xf32>, vector<32x128xf32>, vector<2x128xf32> -> vector<2x128xf32>
    %36 = arith.addf %34, %35 : vector<2x128xf32>
    %37 = arith.negf %36 : vector<2x128xf32>
    %38 = math.exp %37 : vector<2x128xf32>
    %cst_20 = arith.constant 1.000000e+00 : f32
    %39 = vector.broadcast %cst_20 : f32 to vector<2x128xf32>
    %40 = arith.addf %39, %38 : vector<2x128xf32>
    %41 = arith.divf %39, %40 : vector<2x128xf32>
    %42 = math.tanh %36 : vector<2x128xf32>
    %43 = vector.extract_strided_slice %41 {offsets = [0, 0], sizes = [2, 32], strides = [1, 1]} : vector<2x128xf32> to vector<2x32xf32>
    %44 = vector.extract_strided_slice %41 {offsets = [0, 32], sizes = [2, 32], strides = [1, 1]} : vector<2x128xf32> to vector<2x32xf32>
    %45 = vector.extract_strided_slice %42 {offsets = [0, 64], sizes = [2, 32], strides = [1, 1]} : vector<2x128xf32> to vector<2x32xf32>
    %46 = vector.extract_strided_slice %41 {offsets = [0, 96], sizes = [2, 32], strides = [1, 1]} : vector<2x128xf32> to vector<2x32xf32>
    %47 = arith.mulf %44, %10 : vector<2x32xf32>
    %48 = arith.mulf %43, %45 : vector<2x32xf32>
    %49 = arith.addf %47, %48 : vector<2x32xf32>
    %50 = math.tanh %49 : vector<2x32xf32>
    %51 = arith.mulf %46, %50 : vector<2x32xf32>
    %52 = arith.index_cast %c0_i32 : i32 to index
    %c0_21 = arith.constant 0 : index
    %c0_22 = arith.constant 0 : index
    %53 = vector.load %arg13[%52, %c0_21, %c0_22] : memref<8x2x64xf32, #tpu.memory_space<vmem>>, vector<1x2x32xf32>
    %54 = vector.shape_cast %53 : vector<1x2x32xf32> to vector<2x32xf32>
    %55 = vector.shape_cast %31 : vector<2x32xf32> to vector<1x2x32xf32>
    tpu.vector_store %arg13[%52, %c0_21, %c0_22], %55 {strides = array<i32>} : memref<8x2x64xf32, #tpu.memory_space<vmem>>, vector<1x2x32xf32>,
    %56 = arith.index_cast %11 : i32 to index
    %c0_23 = arith.constant 0 : index
    %c32 = arith.constant 32 : index
    %57 = vector.load %arg13[%56, %c0_23, %c32] : memref<8x2x64xf32, #tpu.memory_space<vmem>>, vector<1x2x32xf32>
    %58 = vector.shape_cast %57 : vector<1x2x32xf32> to vector<2x32xf32>
    %59 = vector.shape_cast %51 : vector<2x32xf32> to vector<1x2x32xf32>
    tpu.vector_store %arg13[%56, %c0_23, %c32], %59 {strides = array<i32>} : memref<8x2x64xf32, #tpu.memory_space<vmem>>, vector<1x2x32xf32>,
    %c1_i32 = arith.constant 1 : i32
    %c7_i32_24 = arith.constant 7 : i32
    %60 = arith.subi %c7_i32_24, %c1_i32 : i32
    %61 = arith.index_cast %c1_i32 : i32 to index
    %c0_25 = arith.constant 0 : index
    %c0_26 = arith.constant 0 : index
    %62 = vector.load %arg12[%61, %c0_25, %c0_26] : memref<8x2x256xf32, #tpu.memory_space<vmem>>, vector<1x2x128xf32>
    %63 = vector.shape_cast %62 : vector<1x2x128xf32> to vector<2x128xf32>
    %cst_27 = arith.constant dense<0.000000e+00> : vector<2x128xf32>
    %64 = tpu.matmul %31, %8, %cst_27 {dimension_numbers = #tpu.dot_dimension_numbers<[1], [0], [0], [1], [0, 0, 1, 1], [], []>} : vector<2x32xf32>, vector<32x128xf32>, vector<2x128xf32> -> vector<2x128xf32>
    %65 = arith.addf %63, %64 : vector<2x128xf32>
    %66 = arith.negf %65 : vector<2x128xf32>
    %67 = math.exp %66 : vector<2x128xf32>
    %cst_28 = arith.constant 1.000000e+00 : f32
    %68 = vector.broadcast %cst_28 : f32 to vector<2x128xf32>
    %69 = arith.addf %68, %67 : vector<2x128xf32>
    %70 = arith.divf %68, %69 : vector<2x128xf32>
    %71 = math.tanh %65 : vector<2x128xf32>
    %72 = vector.extract_strided_slice %70 {offsets = [0, 0], sizes = [2, 32], strides = [1, 1]} : vector<2x128xf32> to vector<2x32xf32>
    %73 = vector.extract_strided_slice %70 {offsets = [0, 32], sizes = [2, 32], strides = [1, 1]} : vector<2x128xf32> to vector<2x32xf32>
    %74 = vector.extract_strided_slice %71 {offsets = [0, 64], sizes = [2, 32], strides = [1, 1]} : vector<2x128xf32> to vector<2x32xf32>
    %75 = vector.extract_strided_slice %70 {offsets = [0, 96], sizes = [2, 32], strides = [1, 1]} : vector<2x128xf32> to vector<2x32xf32>
    %76 = arith.mulf %73, %29 : vector<2x32xf32>
    %77 = arith.mulf %72, %74 : vector<2x32xf32>
    %78 = arith.addf %76, %77 : vector<2x32xf32>
    %79 = math.tanh %78 : vector<2x32xf32>
    %80 = arith.mulf %75, %79 : vector<2x32xf32>
    %81 = arith.index_cast %60 : i32 to index
    %c0_29 = arith.constant 0 : index
    %c128_30 = arith.constant 128 : index
    %82 = vector.load %arg12[%81, %c0_29, %c128_30] : memref<8x2x256xf32, #tpu.memory_space<vmem>>, vector<1x2x128xf32>
    %83 = vector.shape_cast %82 : vector<1x2x128xf32> to vector<2x128xf32>
    %cst_31 = arith.constant dense<0.000000e+00> : vector<2x128xf32>
    %84 = tpu.matmul %51, %9, %cst_31 {dimension_numbers = #tpu.dot_dimension_numbers<[1], [0], [0], [1], [0, 0, 1, 1], [], []>} : vector<2x32xf32>, vector<32x128xf32>, vector<2x128xf32> -> vector<2x128xf32>
    %85 = arith.addf %83, %84 : vector<2x128xf32>
    %86 = arith.negf %85 : vector<2x128xf32>
    %87 = math.exp %86 : vector<2x128xf32>
    %cst_32 = arith.constant 1.000000e+00 : f32
    %88 = vector.broadcast %cst_32 : f32 to vector<2x128xf32>
    %89 = arith.addf %88, %87 : vector<2x128xf32>
    %90 = arith.divf %88, %89 : vector<2x128xf32>
    %91 = math.tanh %85 : vector<2x128xf32>
    %92 = vector.extract_strided_slice %90 {offsets = [0, 0], sizes = [2, 32], strides = [1, 1]} : vector<2x128xf32> to vector<2x32xf32>
    %93 = vector.extract_strided_slice %90 {offsets = [0, 32], sizes = [2, 32], strides = [1, 1]} : vector<2x128xf32> to vector<2x32xf32>
    %94 = vector.extract_strided_slice %91 {offsets = [0, 64], sizes = [2, 32], strides = [1, 1]} : vector<2x128xf32> to vector<2x32xf32>
    %95 = vector.extract_strided_slice %90 {offsets = [0, 96], sizes = [2, 32], strides = [1, 1]} : vector<2x128xf32> to vector<2x32xf32>
    %96 = arith.mulf %93, %49 : vector<2x32xf32>
    %97 = arith.mulf %92, %94 : vector<2x32xf32>
    %98 = arith.addf %96, %97 : vector<2x32xf32>
    %99 = math.tanh %98 : vector<2x32xf32>
    %100 = arith.mulf %95, %99 : vector<2x32xf32>
    %101 = arith.index_cast %c1_i32 : i32 to index
    %c0_33 = arith.constant 0 : index
    %c0_34 = arith.constant 0 : index
    %102 = vector.load %arg13[%101, %c0_33, %c0_34] : memref<8x2x64xf32, #tpu.memory_space<vmem>>, vector<1x2x32xf32>
    %103 = vector.shape_cast %102 : vector<1x2x32xf32> to vector<2x32xf32>
    %104 = vector.shape_cast %80 : vector<2x32xf32> to vector<1x2x32xf32>
    tpu.vector_store %arg13[%101, %c0_33, %c0_34], %104 {strides = array<i32>} : memref<8x2x64xf32, #tpu.memory_space<vmem>>, vector<1x2x32xf32>,
    %105 = arith.index_cast %60 : i32 to index
    %c0_35 = arith.constant 0 : index
    %c32_36 = arith.constant 32 : index
    %106 = vector.load %arg13[%105, %c0_35, %c32_36] : memref<8x2x64xf32, #tpu.memory_space<vmem>>, vector<1x2x32xf32>
    %107 = vector.shape_cast %106 : vector<1x2x32xf32> to vector<2x32xf32>
    %108 = vector.shape_cast %100 : vector<2x32xf32> to vector<1x2x32xf32>
    tpu.vector_store %arg13[%105, %c0_35, %c32_36], %108 {strides = array<i32>} : memref<8x2x64xf32, #tpu.memory_space<vmem>>, vector<1x2x32xf32>,
    %c2_i32 = arith.constant 2 : i32
    %c7_i32_37 = arith.constant 7 : i32
    %109 = arith.subi %c7_i32_37, %c2_i32 : i32
    %110 = arith.index_cast %c2_i32 : i32 to index
    %c0_38 = arith.constant 0 : index
    %c0_39 = arith.constant 0 : index
    %111 = vector.load %arg12[%110, %c0_38, %c0_39] : memref<8x2x256xf32, #tpu.memory_space<vmem>>, vector<1x2x128xf32>
    %112 = vector.shape_cast %111 : vector<1x2x128xf32> to vector<2x128xf32>
    %cst_40 = arith.constant dense<0.000000e+00> : vector<2x128xf32>
    %113 = tpu.matmul %80, %8, %cst_40 {dimension_numbers = #tpu.dot_dimension_numbers<[1], [0], [0], [1], [0, 0, 1, 1], [], []>} : vector<2x32xf32>, vector<32x128xf32>, vector<2x128xf32> -> vector<2x128xf32>
    %114 = arith.addf %112, %113 : vector<2x128xf32>
    %115 = arith.negf %114 : vector<2x128xf32>
    %116 = math.exp %115 : vector<2x128xf32>
    %cst_41 = arith.constant 1.000000e+00 : f32
    %117 = vector.broadcast %cst_41 : f32 to vector<2x128xf32>
    %118 = arith.addf %117, %116 : vector<2x128xf32>
    %119 = arith.divf %117, %118 : vector<2x128xf32>
    %120 = math.tanh %114 : vector<2x128xf32>
    %121 = vector.extract_strided_slice %119 {offsets = [0, 0], sizes = [2, 32], strides = [1, 1]} : vector<2x128xf32> to vector<2x32xf32>
    %122 = vector.extract_strided_slice %119 {offsets = [0, 32], sizes = [2, 32], strides = [1, 1]} : vector<2x128xf32> to vector<2x32xf32>
    %123 = vector.extract_strided_slice %120 {offsets = [0, 64], sizes = [2, 32], strides = [1, 1]} : vector<2x128xf32> to vector<2x32xf32>
    %124 = vector.extract_strided_slice %119 {offsets = [0, 96], sizes = [2, 32], strides = [1, 1]} : vector<2x128xf32> to vector<2x32xf32>
    %125 = arith.mulf %122, %78 : vector<2x32xf32>
    %126 = arith.mulf %121, %123 : vector<2x32xf32>
    %127 = arith.addf %125, %126 : vector<2x32xf32>
    %128 = math.tanh %127 : vector<2x32xf32>
    %129 = arith.mulf %124, %128 : vector<2x32xf32>
    %130 = arith.index_cast %109 : i32 to index
    %c0_42 = arith.constant 0 : index
    %c128_43 = arith.constant 128 : index
    %131 = vector.load %arg12[%130, %c0_42, %c128_43] : memref<8x2x256xf32, #tpu.memory_space<vmem>>, vector<1x2x128xf32>
    %132 = vector.shape_cast %131 : vector<1x2x128xf32> to vector<2x128xf32>
    %cst_44 = arith.constant dense<0.000000e+00> : vector<2x128xf32>
    %133 = tpu.matmul %100, %9, %cst_44 {dimension_numbers = #tpu.dot_dimension_numbers<[1], [0], [0], [1], [0, 0, 1, 1], [], []>} : vector<2x32xf32>, vector<32x128xf32>, vector<2x128xf32> -> vector<2x128xf32>
    %134 = arith.addf %132, %133 : vector<2x128xf32>
    %135 = arith.negf %134 : vector<2x128xf32>
    %136 = math.exp %135 : vector<2x128xf32>
    %cst_45 = arith.constant 1.000000e+00 : f32
    %137 = vector.broadcast %cst_45 : f32 to vector<2x128xf32>
    %138 = arith.addf %137, %136 : vector<2x128xf32>
    %139 = arith.divf %137, %138 : vector<2x128xf32>
    %140 = math.tanh %134 : vector<2x128xf32>
    %141 = vector.extract_strided_slice %139 {offsets = [0, 0], sizes = [2, 32], strides = [1, 1]} : vector<2x128xf32> to vector<2x32xf32>
    %142 = vector.extract_strided_slice %139 {offsets = [0, 32], sizes = [2, 32], strides = [1, 1]} : vector<2x128xf32> to vector<2x32xf32>
    %143 = vector.extract_strided_slice %140 {offsets = [0, 64], sizes = [2, 32], strides = [1, 1]} : vector<2x128xf32> to vector<2x32xf32>
    %144 = vector.extract_strided_slice %139 {offsets = [0, 96], sizes = [2, 32], strides = [1, 1]} : vector<2x128xf32> to vector<2x32xf32>
    %145 = arith.mulf %142, %98 : vector<2x32xf32>
    %146 = arith.mulf %141, %143 : vector<2x32xf32>
    %147 = arith.addf %145, %146 : vector<2x32xf32>
    %148 = math.tanh %147 : vector<2x32xf32>
    %149 = arith.mulf %144, %148 : vector<2x32xf32>
    %150 = arith.index_cast %c2_i32 : i32 to index
    %c0_46 = arith.constant 0 : index
    %c0_47 = arith.constant 0 : index
    %151 = vector.load %arg13[%150, %c0_46, %c0_47] : memref<8x2x64xf32, #tpu.memory_space<vmem>>, vector<1x2x32xf32>
    %152 = vector.shape_cast %151 : vector<1x2x32xf32> to vector<2x32xf32>
    %153 = vector.shape_cast %129 : vector<2x32xf32> to vector<1x2x32xf32>
    tpu.vector_store %arg13[%150, %c0_46, %c0_47], %153 {strides = array<i32>} : memref<8x2x64xf32, #tpu.memory_space<vmem>>, vector<1x2x32xf32>,
    %154 = arith.index_cast %109 : i32 to index
    %c0_48 = arith.constant 0 : index
    %c32_49 = arith.constant 32 : index
    %155 = vector.load %arg13[%154, %c0_48, %c32_49] : memref<8x2x64xf32, #tpu.memory_space<vmem>>, vector<1x2x32xf32>
    %156 = vector.shape_cast %155 : vector<1x2x32xf32> to vector<2x32xf32>
    %157 = vector.shape_cast %149 : vector<2x32xf32> to vector<1x2x32xf32>
    tpu.vector_store %arg13[%154, %c0_48, %c32_49], %157 {strides = array<i32>} : memref<8x2x64xf32, #tpu.memory_space<vmem>>, vector<1x2x32xf32>,
    %c3_i32 = arith.constant 3 : i32
    %c7_i32_50 = arith.constant 7 : i32
    %158 = arith.subi %c7_i32_50, %c3_i32 : i32
    %159 = arith.index_cast %c3_i32 : i32 to index
    %c0_51 = arith.constant 0 : index
    %c0_52 = arith.constant 0 : index
    %160 = vector.load %arg12[%159, %c0_51, %c0_52] : memref<8x2x256xf32, #tpu.memory_space<vmem>>, vector<1x2x128xf32>
    %161 = vector.shape_cast %160 : vector<1x2x128xf32> to vector<2x128xf32>
    %cst_53 = arith.constant dense<0.000000e+00> : vector<2x128xf32>
    %162 = tpu.matmul %129, %8, %cst_53 {dimension_numbers = #tpu.dot_dimension_numbers<[1], [0], [0], [1], [0, 0, 1, 1], [], []>} : vector<2x32xf32>, vector<32x128xf32>, vector<2x128xf32> -> vector<2x128xf32>
    %163 = arith.addf %161, %162 : vector<2x128xf32>
    %164 = arith.negf %163 : vector<2x128xf32>
    %165 = math.exp %164 : vector<2x128xf32>
    %cst_54 = arith.constant 1.000000e+00 : f32
    %166 = vector.broadcast %cst_54 : f32 to vector<2x128xf32>
    %167 = arith.addf %166, %165 : vector<2x128xf32>
    %168 = arith.divf %166, %167 : vector<2x128xf32>
    %169 = math.tanh %163 : vector<2x128xf32>
    %170 = vector.extract_strided_slice %168 {offsets = [0, 0], sizes = [2, 32], strides = [1, 1]} : vector<2x128xf32> to vector<2x32xf32>
    %171 = vector.extract_strided_slice %168 {offsets = [0, 32], sizes = [2, 32], strides = [1, 1]} : vector<2x128xf32> to vector<2x32xf32>
    %172 = vector.extract_strided_slice %169 {offsets = [0, 64], sizes = [2, 32], strides = [1, 1]} : vector<2x128xf32> to vector<2x32xf32>
    %173 = vector.extract_strided_slice %168 {offsets = [0, 96], sizes = [2, 32], strides = [1, 1]} : vector<2x128xf32> to vector<2x32xf32>
    %174 = arith.mulf %171, %127 : vector<2x32xf32>
    %175 = arith.mulf %170, %172 : vector<2x32xf32>
    %176 = arith.addf %174, %175 : vector<2x32xf32>
    %177 = math.tanh %176 : vector<2x32xf32>
    %178 = arith.mulf %173, %177 : vector<2x32xf32>
    %179 = arith.index_cast %158 : i32 to index
    %c0_55 = arith.constant 0 : index
    %c128_56 = arith.constant 128 : index
    %180 = vector.load %arg12[%179, %c0_55, %c128_56] : memref<8x2x256xf32, #tpu.memory_space<vmem>>, vector<1x2x128xf32>
    %181 = vector.shape_cast %180 : vector<1x2x128xf32> to vector<2x128xf32>
    %cst_57 = arith.constant dense<0.000000e+00> : vector<2x128xf32>
    %182 = tpu.matmul %149, %9, %cst_57 {dimension_numbers = #tpu.dot_dimension_numbers<[1], [0], [0], [1], [0, 0, 1, 1], [], []>} : vector<2x32xf32>, vector<32x128xf32>, vector<2x128xf32> -> vector<2x128xf32>
    %183 = arith.addf %181, %182 : vector<2x128xf32>
    %184 = arith.negf %183 : vector<2x128xf32>
    %185 = math.exp %184 : vector<2x128xf32>
    %cst_58 = arith.constant 1.000000e+00 : f32
    %186 = vector.broadcast %cst_58 : f32 to vector<2x128xf32>
    %187 = arith.addf %186, %185 : vector<2x128xf32>
    %188 = arith.divf %186, %187 : vector<2x128xf32>
    %189 = math.tanh %183 : vector<2x128xf32>
    %190 = vector.extract_strided_slice %188 {offsets = [0, 0], sizes = [2, 32], strides = [1, 1]} : vector<2x128xf32> to vector<2x32xf32>
    %191 = vector.extract_strided_slice %188 {offsets = [0, 32], sizes = [2, 32], strides = [1, 1]} : vector<2x128xf32> to vector<2x32xf32>
    %192 = vector.extract_strided_slice %189 {offsets = [0, 64], sizes = [2, 32], strides = [1, 1]} : vector<2x128xf32> to vector<2x32xf32>
    %193 = vector.extract_strided_slice %188 {offsets = [0, 96], sizes = [2, 32], strides = [1, 1]} : vector<2x128xf32> to vector<2x32xf32>
    %194 = arith.mulf %191, %147 : vector<2x32xf32>
    %195 = arith.mulf %190, %192 : vector<2x32xf32>
    %196 = arith.addf %194, %195 : vector<2x32xf32>
    %197 = math.tanh %196 : vector<2x32xf32>
    %198 = arith.mulf %193, %197 : vector<2x32xf32>
    %199 = arith.index_cast %c3_i32 : i32 to index
    %c0_59 = arith.constant 0 : index
    %c0_60 = arith.constant 0 : index
    %200 = vector.load %arg13[%199, %c0_59, %c0_60] : memref<8x2x64xf32, #tpu.memory_space<vmem>>, vector<1x2x32xf32>
    %201 = vector.shape_cast %200 : vector<1x2x32xf32> to vector<2x32xf32>
    %202 = vector.shape_cast %178 : vector<2x32xf32> to vector<1x2x32xf32>
    tpu.vector_store %arg13[%199, %c0_59, %c0_60], %202 {strides = array<i32>} : memref<8x2x64xf32, #tpu.memory_space<vmem>>, vector<1x2x32xf32>,
    %203 = arith.index_cast %158 : i32 to index
    %c0_61 = arith.constant 0 : index
    %c32_62 = arith.constant 32 : index
    %204 = vector.load %arg13[%203, %c0_61, %c32_62] : memref<8x2x64xf32, #tpu.memory_space<vmem>>, vector<1x2x32xf32>
    %205 = vector.shape_cast %204 : vector<1x2x32xf32> to vector<2x32xf32>
    %206 = vector.shape_cast %198 : vector<2x32xf32> to vector<1x2x32xf32>
    tpu.vector_store %arg13[%203, %c0_61, %c32_62], %206 {strides = array<i32>} : memref<8x2x64xf32, #tpu.memory_space<vmem>>, vector<1x2x32xf32>,
    %c4_i32 = arith.constant 4 : i32
    %c7_i32_63 = arith.constant 7 : i32
    %207 = arith.subi %c7_i32_63, %c4_i32 : i32
    %208 = arith.index_cast %c4_i32 : i32 to index
    %c0_64 = arith.constant 0 : index
    %c0_65 = arith.constant 0 : index
    %209 = vector.load %arg12[%208, %c0_64, %c0_65] : memref<8x2x256xf32, #tpu.memory_space<vmem>>, vector<1x2x128xf32>
    %210 = vector.shape_cast %209 : vector<1x2x128xf32> to vector<2x128xf32>
    %cst_66 = arith.constant dense<0.000000e+00> : vector<2x128xf32>
    %211 = tpu.matmul %178, %8, %cst_66 {dimension_numbers = #tpu.dot_dimension_numbers<[1], [0], [0], [1], [0, 0, 1, 1], [], []>} : vector<2x32xf32>, vector<32x128xf32>, vector<2x128xf32> -> vector<2x128xf32>
    %212 = arith.addf %210, %211 : vector<2x128xf32>
    %213 = arith.negf %212 : vector<2x128xf32>
    %214 = math.exp %213 : vector<2x128xf32>
    %cst_67 = arith.constant 1.000000e+00 : f32
    %215 = vector.broadcast %cst_67 : f32 to vector<2x128xf32>
    %216 = arith.addf %215, %214 : vector<2x128xf32>
    %217 = arith.divf %215, %216 : vector<2x128xf32>
    %218 = math.tanh %212 : vector<2x128xf32>
    %219 = vector.extract_strided_slice %217 {offsets = [0, 0], sizes = [2, 32], strides = [1, 1]} : vector<2x128xf32> to vector<2x32xf32>
    %220 = vector.extract_strided_slice %217 {offsets = [0, 32], sizes = [2, 32], strides = [1, 1]} : vector<2x128xf32> to vector<2x32xf32>
    %221 = vector.extract_strided_slice %218 {offsets = [0, 64], sizes = [2, 32], strides = [1, 1]} : vector<2x128xf32> to vector<2x32xf32>
    %222 = vector.extract_strided_slice %217 {offsets = [0, 96], sizes = [2, 32], strides = [1, 1]} : vector<2x128xf32> to vector<2x32xf32>
    %223 = arith.mulf %220, %176 : vector<2x32xf32>
    %224 = arith.mulf %219, %221 : vector<2x32xf32>
    %225 = arith.addf %223, %224 : vector<2x32xf32>
    %226 = math.tanh %225 : vector<2x32xf32>
    %227 = arith.mulf %222, %226 : vector<2x32xf32>
    %228 = arith.index_cast %207 : i32 to index
    %c0_68 = arith.constant 0 : index
    %c128_69 = arith.constant 128 : index
    %229 = vector.load %arg12[%228, %c0_68, %c128_69] : memref<8x2x256xf32, #tpu.memory_space<vmem>>, vector<1x2x128xf32>
    %230 = vector.shape_cast %229 : vector<1x2x128xf32> to vector<2x128xf32>
    %cst_70 = arith.constant dense<0.000000e+00> : vector<2x128xf32>
    %231 = tpu.matmul %198, %9, %cst_70 {dimension_numbers = #tpu.dot_dimension_numbers<[1], [0], [0], [1], [0, 0, 1, 1], [], []>} : vector<2x32xf32>, vector<32x128xf32>, vector<2x128xf32> -> vector<2x128xf32>
    %232 = arith.addf %230, %231 : vector<2x128xf32>
    %233 = arith.negf %232 : vector<2x128xf32>
    %234 = math.exp %233 : vector<2x128xf32>
    %cst_71 = arith.constant 1.000000e+00 : f32
    %235 = vector.broadcast %cst_71 : f32 to vector<2x128xf32>
    %236 = arith.addf %235, %234 : vector<2x128xf32>
    %237 = arith.divf %235, %236 : vector<2x128xf32>
    %238 = math.tanh %232 : vector<2x128xf32>
    %239 = vector.extract_strided_slice %237 {offsets = [0, 0], sizes = [2, 32], strides = [1, 1]} : vector<2x128xf32> to vector<2x32xf32>
    %240 = vector.extract_strided_slice %237 {offsets = [0, 32], sizes = [2, 32], strides = [1, 1]} : vector<2x128xf32> to vector<2x32xf32>
    %241 = vector.extract_strided_slice %238 {offsets = [0, 64], sizes = [2, 32], strides = [1, 1]} : vector<2x128xf32> to vector<2x32xf32>
    %242 = vector.extract_strided_slice %237 {offsets = [0, 96], sizes = [2, 32], strides = [1, 1]} : vector<2x128xf32> to vector<2x32xf32>
    %243 = arith.mulf %240, %196 : vector<2x32xf32>
    %244 = arith.mulf %239, %241 : vector<2x32xf32>
    %245 = arith.addf %243, %244 : vector<2x32xf32>
    %246 = math.tanh %245 : vector<2x32xf32>
    %247 = arith.mulf %242, %246 : vector<2x32xf32>
    %248 = arith.index_cast %c4_i32 : i32 to index
    %c0_72 = arith.constant 0 : index
    %c0_73 = arith.constant 0 : index
    %249 = vector.load %arg13[%248, %c0_72, %c0_73] : memref<8x2x64xf32, #tpu.memory_space<vmem>>, vector<1x2x32xf32>
    %250 = vector.shape_cast %249 : vector<1x2x32xf32> to vector<2x32xf32>
    %251 = vector.shape_cast %227 : vector<2x32xf32> to vector<1x2x32xf32>
    tpu.vector_store %arg13[%248, %c0_72, %c0_73], %251 {strides = array<i32>} : memref<8x2x64xf32, #tpu.memory_space<vmem>>, vector<1x2x32xf32>,
    %252 = arith.index_cast %207 : i32 to index
    %c0_74 = arith.constant 0 : index
    %c32_75 = arith.constant 32 : index
    %253 = vector.load %arg13[%252, %c0_74, %c32_75] : memref<8x2x64xf32, #tpu.memory_space<vmem>>, vector<1x2x32xf32>
    %254 = vector.shape_cast %253 : vector<1x2x32xf32> to vector<2x32xf32>
    %255 = vector.shape_cast %247 : vector<2x32xf32> to vector<1x2x32xf32>
    tpu.vector_store %arg13[%252, %c0_74, %c32_75], %255 {strides = array<i32>} : memref<8x2x64xf32, #tpu.memory_space<vmem>>, vector<1x2x32xf32>,
    %c5_i32 = arith.constant 5 : i32
    %c7_i32_76 = arith.constant 7 : i32
    %256 = arith.subi %c7_i32_76, %c5_i32 : i32
    %257 = arith.index_cast %c5_i32 : i32 to index
    %c0_77 = arith.constant 0 : index
    %c0_78 = arith.constant 0 : index
    %258 = vector.load %arg12[%257, %c0_77, %c0_78] : memref<8x2x256xf32, #tpu.memory_space<vmem>>, vector<1x2x128xf32>
    %259 = vector.shape_cast %258 : vector<1x2x128xf32> to vector<2x128xf32>
    %cst_79 = arith.constant dense<0.000000e+00> : vector<2x128xf32>
    %260 = tpu.matmul %227, %8, %cst_79 {dimension_numbers = #tpu.dot_dimension_numbers<[1], [0], [0], [1], [0, 0, 1, 1], [], []>} : vector<2x32xf32>, vector<32x128xf32>, vector<2x128xf32> -> vector<2x128xf32>
    %261 = arith.addf %259, %260 : vector<2x128xf32>
    %262 = arith.negf %261 : vector<2x128xf32>
    %263 = math.exp %262 : vector<2x128xf32>
    %cst_80 = arith.constant 1.000000e+00 : f32
    %264 = vector.broadcast %cst_80 : f32 to vector<2x128xf32>
    %265 = arith.addf %264, %263 : vector<2x128xf32>
    %266 = arith.divf %264, %265 : vector<2x128xf32>
    %267 = math.tanh %261 : vector<2x128xf32>
    %268 = vector.extract_strided_slice %266 {offsets = [0, 0], sizes = [2, 32], strides = [1, 1]} : vector<2x128xf32> to vector<2x32xf32>
    %269 = vector.extract_strided_slice %266 {offsets = [0, 32], sizes = [2, 32], strides = [1, 1]} : vector<2x128xf32> to vector<2x32xf32>
    %270 = vector.extract_strided_slice %267 {offsets = [0, 64], sizes = [2, 32], strides = [1, 1]} : vector<2x128xf32> to vector<2x32xf32>
    %271 = vector.extract_strided_slice %266 {offsets = [0, 96], sizes = [2, 32], strides = [1, 1]} : vector<2x128xf32> to vector<2x32xf32>
    %272 = arith.mulf %269, %225 : vector<2x32xf32>
    %273 = arith.mulf %268, %270 : vector<2x32xf32>
    %274 = arith.addf %272, %273 : vector<2x32xf32>
    %275 = math.tanh %274 : vector<2x32xf32>
    %276 = arith.mulf %271, %275 : vector<2x32xf32>
    %277 = arith.index_cast %256 : i32 to index
    %c0_81 = arith.constant 0 : index
    %c128_82 = arith.constant 128 : index
    %278 = vector.load %arg12[%277, %c0_81, %c128_82] : memref<8x2x256xf32, #tpu.memory_space<vmem>>, vector<1x2x128xf32>
    %279 = vector.shape_cast %278 : vector<1x2x128xf32> to vector<2x128xf32>
    %cst_83 = arith.constant dense<0.000000e+00> : vector<2x128xf32>
    %280 = tpu.matmul %247, %9, %cst_83 {dimension_numbers = #tpu.dot_dimension_numbers<[1], [0], [0], [1], [0, 0, 1, 1], [], []>} : vector<2x32xf32>, vector<32x128xf32>, vector<2x128xf32> -> vector<2x128xf32>
    %281 = arith.addf %279, %280 : vector<2x128xf32>
    %282 = arith.negf %281 : vector<2x128xf32>
    %283 = math.exp %282 : vector<2x128xf32>
    %cst_84 = arith.constant 1.000000e+00 : f32
    %284 = vector.broadcast %cst_84 : f32 to vector<2x128xf32>
    %285 = arith.addf %284, %283 : vector<2x128xf32>
    %286 = arith.divf %284, %285 : vector<2x128xf32>
    %287 = math.tanh %281 : vector<2x128xf32>
    %288 = vector.extract_strided_slice %286 {offsets = [0, 0], sizes = [2, 32], strides = [1, 1]} : vector<2x128xf32> to vector<2x32xf32>
    %289 = vector.extract_strided_slice %286 {offsets = [0, 32], sizes = [2, 32], strides = [1, 1]} : vector<2x128xf32> to vector<2x32xf32>
    %290 = vector.extract_strided_slice %287 {offsets = [0, 64], sizes = [2, 32], strides = [1, 1]} : vector<2x128xf32> to vector<2x32xf32>
    %291 = vector.extract_strided_slice %286 {offsets = [0, 96], sizes = [2, 32], strides = [1, 1]} : vector<2x128xf32> to vector<2x32xf32>
    %292 = arith.mulf %289, %245 : vector<2x32xf32>
    %293 = arith.mulf %288, %290 : vector<2x32xf32>
    %294 = arith.addf %292, %293 : vector<2x32xf32>
    %295 = math.tanh %294 : vector<2x32xf32>
    %296 = arith.mulf %291, %295 : vector<2x32xf32>
    %297 = arith.index_cast %c5_i32 : i32 to index
    %c0_85 = arith.constant 0 : index
    %c0_86 = arith.constant 0 : index
    %298 = vector.load %arg13[%297, %c0_85, %c0_86] : memref<8x2x64xf32, #tpu.memory_space<vmem>>, vector<1x2x32xf32>
    %299 = vector.shape_cast %298 : vector<1x2x32xf32> to vector<2x32xf32>
    %300 = vector.shape_cast %276 : vector<2x32xf32> to vector<1x2x32xf32>
    tpu.vector_store %arg13[%297, %c0_85, %c0_86], %300 {strides = array<i32>} : memref<8x2x64xf32, #tpu.memory_space<vmem>>, vector<1x2x32xf32>,
    %301 = arith.index_cast %256 : i32 to index
    %c0_87 = arith.constant 0 : index
    %c32_88 = arith.constant 32 : index
    %302 = vector.load %arg13[%301, %c0_87, %c32_88] : memref<8x2x64xf32, #tpu.memory_space<vmem>>, vector<1x2x32xf32>
    %303 = vector.shape_cast %302 : vector<1x2x32xf32> to vector<2x32xf32>
    %304 = vector.shape_cast %296 : vector<2x32xf32> to vector<1x2x32xf32>
    tpu.vector_store %arg13[%301, %c0_87, %c32_88], %304 {strides = array<i32>} : memref<8x2x64xf32, #tpu.memory_space<vmem>>, vector<1x2x32xf32>,
    %c6_i32 = arith.constant 6 : i32
    %c7_i32_89 = arith.constant 7 : i32
    %305 = arith.subi %c7_i32_89, %c6_i32 : i32
    %306 = arith.index_cast %c6_i32 : i32 to index
    %c0_90 = arith.constant 0 : index
    %c0_91 = arith.constant 0 : index
    %307 = vector.load %arg12[%306, %c0_90, %c0_91] : memref<8x2x256xf32, #tpu.memory_space<vmem>>, vector<1x2x128xf32>
    %308 = vector.shape_cast %307 : vector<1x2x128xf32> to vector<2x128xf32>
    %cst_92 = arith.constant dense<0.000000e+00> : vector<2x128xf32>
    %309 = tpu.matmul %276, %8, %cst_92 {dimension_numbers = #tpu.dot_dimension_numbers<[1], [0], [0], [1], [0, 0, 1, 1], [], []>} : vector<2x32xf32>, vector<32x128xf32>, vector<2x128xf32> -> vector<2x128xf32>
    %310 = arith.addf %308, %309 : vector<2x128xf32>
    %311 = arith.negf %310 : vector<2x128xf32>
    %312 = math.exp %311 : vector<2x128xf32>
    %cst_93 = arith.constant 1.000000e+00 : f32
    %313 = vector.broadcast %cst_93 : f32 to vector<2x128xf32>
    %314 = arith.addf %313, %312 : vector<2x128xf32>
    %315 = arith.divf %313, %314 : vector<2x128xf32>
    %316 = math.tanh %310 : vector<2x128xf32>
    %317 = vector.extract_strided_slice %315 {offsets = [0, 0], sizes = [2, 32], strides = [1, 1]} : vector<2x128xf32> to vector<2x32xf32>
    %318 = vector.extract_strided_slice %315 {offsets = [0, 32], sizes = [2, 32], strides = [1, 1]} : vector<2x128xf32> to vector<2x32xf32>
    %319 = vector.extract_strided_slice %316 {offsets = [0, 64], sizes = [2, 32], strides = [1, 1]} : vector<2x128xf32> to vector<2x32xf32>
    %320 = vector.extract_strided_slice %315 {offsets = [0, 96], sizes = [2, 32], strides = [1, 1]} : vector<2x128xf32> to vector<2x32xf32>
    %321 = arith.mulf %318, %274 : vector<2x32xf32>
    %322 = arith.mulf %317, %319 : vector<2x32xf32>
    %323 = arith.addf %321, %322 : vector<2x32xf32>
    %324 = math.tanh %323 : vector<2x32xf32>
    %325 = arith.mulf %320, %324 : vector<2x32xf32>
    %326 = arith.index_cast %305 : i32 to index
    %c0_94 = arith.constant 0 : index
    %c128_95 = arith.constant 128 : index
    %327 = vector.load %arg12[%326, %c0_94, %c128_95] : memref<8x2x256xf32, #tpu.memory_space<vmem>>, vector<1x2x128xf32>
    %328 = vector.shape_cast %327 : vector<1x2x128xf32> to vector<2x128xf32>
    %cst_96 = arith.constant dense<0.000000e+00> : vector<2x128xf32>
    %329 = tpu.matmul %296, %9, %cst_96 {dimension_numbers = #tpu.dot_dimension_numbers<[1], [0], [0], [1], [0, 0, 1, 1], [], []>} : vector<2x32xf32>, vector<32x128xf32>, vector<2x128xf32> -> vector<2x128xf32>
    %330 = arith.addf %328, %329 : vector<2x128xf32>
    %331 = arith.negf %330 : vector<2x128xf32>
    %332 = math.exp %331 : vector<2x128xf32>
    %cst_97 = arith.constant 1.000000e+00 : f32
    %333 = vector.broadcast %cst_97 : f32 to vector<2x128xf32>
    %334 = arith.addf %333, %332 : vector<2x128xf32>
    %335 = arith.divf %333, %334 : vector<2x128xf32>
    %336 = math.tanh %330 : vector<2x128xf32>
    %337 = vector.extract_strided_slice %335 {offsets = [0, 0], sizes = [2, 32], strides = [1, 1]} : vector<2x128xf32> to vector<2x32xf32>
    %338 = vector.extract_strided_slice %335 {offsets = [0, 32], sizes = [2, 32], strides = [1, 1]} : vector<2x128xf32> to vector<2x32xf32>
    %339 = vector.extract_strided_slice %336 {offsets = [0, 64], sizes = [2, 32], strides = [1, 1]} : vector<2x128xf32> to vector<2x32xf32>
    %340 = vector.extract_strided_slice %335 {offsets = [0, 96], sizes = [2, 32], strides = [1, 1]} : vector<2x128xf32> to vector<2x32xf32>
    %341 = arith.mulf %338, %294 : vector<2x32xf32>
    %342 = arith.mulf %337, %339 : vector<2x32xf32>
    %343 = arith.addf %341, %342 : vector<2x32xf32>
    %344 = math.tanh %343 : vector<2x32xf32>
    %345 = arith.mulf %340, %344 : vector<2x32xf32>
    %346 = arith.index_cast %c6_i32 : i32 to index
    %c0_98 = arith.constant 0 : index
    %c0_99 = arith.constant 0 : index
    %347 = vector.load %arg13[%346, %c0_98, %c0_99] : memref<8x2x64xf32, #tpu.memory_space<vmem>>, vector<1x2x32xf32>
    %348 = vector.shape_cast %347 : vector<1x2x32xf32> to vector<2x32xf32>
    %349 = vector.shape_cast %325 : vector<2x32xf32> to vector<1x2x32xf32>
    tpu.vector_store %arg13[%346, %c0_98, %c0_99], %349 {strides = array<i32>} : memref<8x2x64xf32, #tpu.memory_space<vmem>>, vector<1x2x32xf32>,
    %350 = arith.index_cast %305 : i32 to index
    %c0_100 = arith.constant 0 : index
    %c32_101 = arith.constant 32 : index
    %351 = vector.load %arg13[%350, %c0_100, %c32_101] : memref<8x2x64xf32, #tpu.memory_space<vmem>>, vector<1x2x32xf32>
    %352 = vector.shape_cast %351 : vector<1x2x32xf32> to vector<2x32xf32>
    %353 = vector.shape_cast %345 : vector<2x32xf32> to vector<1x2x32xf32>
    tpu.vector_store %arg13[%350, %c0_100, %c32_101], %353 {strides = array<i32>} : memref<8x2x64xf32, #tpu.memory_space<vmem>>, vector<1x2x32xf32>,
    %c7_i32_102 = arith.constant 7 : i32
    %c7_i32_103 = arith.constant 7 : i32
    %354 = arith.subi %c7_i32_103, %c7_i32_102 : i32
    %355 = arith.index_cast %c7_i32_102 : i32 to index
    %c0_104 = arith.constant 0 : index
    %c0_105 = arith.constant 0 : index
    %356 = vector.load %arg12[%355, %c0_104, %c0_105] : memref<8x2x256xf32, #tpu.memory_space<vmem>>, vector<1x2x128xf32>
    %357 = vector.shape_cast %356 : vector<1x2x128xf32> to vector<2x128xf32>
    %cst_106 = arith.constant dense<0.000000e+00> : vector<2x128xf32>
    %358 = tpu.matmul %325, %8, %cst_106 {dimension_numbers = #tpu.dot_dimension_numbers<[1], [0], [0], [1], [0, 0, 1, 1], [], []>} : vector<2x32xf32>, vector<32x128xf32>, vector<2x128xf32> -> vector<2x128xf32>
    %359 = arith.addf %357, %358 : vector<2x128xf32>
    %360 = arith.negf %359 : vector<2x128xf32>
    %361 = math.exp %360 : vector<2x128xf32>
    %cst_107 = arith.constant 1.000000e+00 : f32
    %362 = vector.broadcast %cst_107 : f32 to vector<2x128xf32>
    %363 = arith.addf %362, %361 : vector<2x128xf32>
    %364 = arith.divf %362, %363 : vector<2x128xf32>
    %365 = math.tanh %359 : vector<2x128xf32>
    %366 = vector.extract_strided_slice %364 {offsets = [0, 0], sizes = [2, 32], strides = [1, 1]} : vector<2x128xf32> to vector<2x32xf32>
    %367 = vector.extract_strided_slice %364 {offsets = [0, 32], sizes = [2, 32], strides = [1, 1]} : vector<2x128xf32> to vector<2x32xf32>
    %368 = vector.extract_strided_slice %365 {offsets = [0, 64], sizes = [2, 32], strides = [1, 1]} : vector<2x128xf32> to vector<2x32xf32>
    %369 = vector.extract_strided_slice %364 {offsets = [0, 96], sizes = [2, 32], strides = [1, 1]} : vector<2x128xf32> to vector<2x32xf32>
    %370 = arith.mulf %367, %323 : vector<2x32xf32>
    %371 = arith.mulf %366, %368 : vector<2x32xf32>
    %372 = arith.addf %370, %371 : vector<2x32xf32>
    %373 = math.tanh %372 : vector<2x32xf32>
    %374 = arith.mulf %369, %373 : vector<2x32xf32>
    %375 = arith.index_cast %354 : i32 to index
    %c0_108 = arith.constant 0 : index
    %c128_109 = arith.constant 128 : index
    %376 = vector.load %arg12[%375, %c0_108, %c128_109] : memref<8x2x256xf32, #tpu.memory_space<vmem>>, vector<1x2x128xf32>
    %377 = vector.shape_cast %376 : vector<1x2x128xf32> to vector<2x128xf32>
    %cst_110 = arith.constant dense<0.000000e+00> : vector<2x128xf32>
    %378 = tpu.matmul %345, %9, %cst_110 {dimension_numbers = #tpu.dot_dimension_numbers<[1], [0], [0], [1], [0, 0, 1, 1], [], []>} : vector<2x32xf32>, vector<32x128xf32>, vector<2x128xf32> -> vector<2x128xf32>
    %379 = arith.addf %377, %378 : vector<2x128xf32>
    %380 = arith.negf %379 : vector<2x128xf32>
    %381 = math.exp %380 : vector<2x128xf32>
    %cst_111 = arith.constant 1.000000e+00 : f32
    %382 = vector.broadcast %cst_111 : f32 to vector<2x128xf32>
    %383 = arith.addf %382, %381 : vector<2x128xf32>
    %384 = arith.divf %382, %383 : vector<2x128xf32>
    %385 = math.tanh %379 : vector<2x128xf32>
    %386 = vector.extract_strided_slice %384 {offsets = [0, 0], sizes = [2, 32], strides = [1, 1]} : vector<2x128xf32> to vector<2x32xf32>
    %387 = vector.extract_strided_slice %384 {offsets = [0, 32], sizes = [2, 32], strides = [1, 1]} : vector<2x128xf32> to vector<2x32xf32>
    %388 = vector.extract_strided_slice %385 {offsets = [0, 64], sizes = [2, 32], strides = [1, 1]} : vector<2x128xf32> to vector<2x32xf32>
    %389 = vector.extract_strided_slice %384 {offsets = [0, 96], sizes = [2, 32], strides = [1, 1]} : vector<2x128xf32> to vector<2x32xf32>
    %390 = arith.mulf %387, %343 : vector<2x32xf32>
    %391 = arith.mulf %386, %388 : vector<2x32xf32>
    %392 = arith.addf %390, %391 : vector<2x32xf32>
    %393 = math.tanh %392 : vector<2x32xf32>
    %394 = arith.mulf %389, %393 : vector<2x32xf32>
    %395 = arith.index_cast %c7_i32_102 : i32 to index
    %c0_112 = arith.constant 0 : index
    %c0_113 = arith.constant 0 : index
    %396 = vector.load %arg13[%395, %c0_112, %c0_113] : memref<8x2x64xf32, #tpu.memory_space<vmem>>, vector<1x2x32xf32>
    %397 = vector.shape_cast %396 : vector<1x2x32xf32> to vector<2x32xf32>
    %398 = vector.shape_cast %374 : vector<2x32xf32> to vector<1x2x32xf32>
    tpu.vector_store %arg13[%395, %c0_112, %c0_113], %398 {strides = array<i32>} : memref<8x2x64xf32, #tpu.memory_space<vmem>>, vector<1x2x32xf32>,
    %399 = arith.index_cast %354 : i32 to index
    %c0_114 = arith.constant 0 : index
    %c32_115 = arith.constant 32 : index
    %400 = vector.load %arg13[%399, %c0_114, %c32_115] : memref<8x2x64xf32, #tpu.memory_space<vmem>>, vector<1x2x32xf32>
    %401 = vector.shape_cast %400 : vector<1x2x32xf32> to vector<2x32xf32>
    %402 = vector.shape_cast %394 : vector<2x32xf32> to vector<1x2x32xf32>
    tpu.vector_store %arg13[%399, %c0_114, %c32_115], %402 {strides = array<i32>} : memref<8x2x64xf32, #tpu.memory_space<vmem>>, vector<1x2x32xf32>,
    %c8_i32 = arith.constant 8 : i32
    %c0_116 = arith.constant 0 : index
    %c0_117 = arith.constant 0 : index
    %c0_118 = arith.constant 0 : index
    %403 = vector.load %arg13[%c0_116, %c0_117, %c0_118] : memref<8x2x64xf32, #tpu.memory_space<vmem>>, vector<8x2x64xf32>
    %c0_119 = arith.constant 0 : index
    %c0_120 = arith.constant 0 : index
    %404 = vector.load %arg5[%c0_119, %c0_120] : memref<64x64xf32, #tpu.memory_space<vmem>>, vector<64x64xf32>
    "tpu.trace_start"() <{level = 10 : i32, message = "tbk,kd->tbd"}> : () -> ()
    %cst_121 = arith.constant dense<0.000000e+00> : vector<8x2x64xf32>
    %405 = tpu.matmul %0, %404, %cst_121 {dimension_numbers = #tpu.dot_dimension_numbers<[2], [0], [0, 1], [1], [0, 0, 0, 1, 1, 1], [], []>} : vector<8x2x64xf32>, vector<64x64xf32>, vector<8x2x64xf32> -> vector<8x2x64xf32>
    "tpu.trace_stop"() : () -> ()
    %c0_122 = arith.constant 0 : index
    %c0_123 = arith.constant 0 : index
    %406 = vector.load %arg6[%c0_122, %c0_123] : memref<1x64xf32, #tpu.memory_space<vmem>>, vector<1x64xf32>
    %407 = vector.shape_cast %406 : vector<1x64xf32> to vector<1x1x64xf32>
    %408 = vector.broadcast %407 : vector<1x1x64xf32> to vector<8x2x64xf32>
    %409 = arith.addf %405, %408 : vector<8x2x64xf32>
    %cst_124 = arith.constant 0.000000e+00 : f32
    %410 = vector.broadcast %cst_124 : f32 to vector<8x2x64xf32>
    %411 = arith.maximumf %409, %410 : vector<8x2x64xf32>
    %c0_125 = arith.constant 0 : index
    %c0_126 = arith.constant 0 : index
    %412 = vector.load %arg7[%c0_125, %c0_126] : memref<64x64xf32, #tpu.memory_space<vmem>>, vector<64x64xf32>
    "tpu.trace_start"() <{level = 10 : i32, message = "tbk,kd->tbd"}> : () -> ()
    %cst_127 = arith.constant dense<0.000000e+00> : vector<8x2x64xf32>
    %413 = tpu.matmul %403, %412, %cst_127 {dimension_numbers = #tpu.dot_dimension_numbers<[2], [0], [0, 1], [1], [0, 0, 0, 1, 1, 1], [], []>} : vector<8x2x64xf32>, vector<64x64xf32>, vector<8x2x64xf32> -> vector<8x2x64xf32>
    "tpu.trace_stop"() : () -> ()
    %c0_128 = arith.constant 0 : index
    %c0_129 = arith.constant 0 : index
    %414 = vector.load %arg8[%c0_128, %c0_129] : memref<1x64xf32, #tpu.memory_space<vmem>>, vector<1x64xf32>
    %415 = vector.shape_cast %414 : vector<1x64xf32> to vector<1x1x64xf32>
    %416 = vector.broadcast %415 : vector<1x1x64xf32> to vector<8x2x64xf32>
    %417 = arith.addf %413, %416 : vector<8x2x64xf32>
    %cst_130 = arith.constant 0.000000e+00 : f32
    %418 = vector.broadcast %cst_130 : f32 to vector<8x2x64xf32>
    %419 = arith.maximumf %417, %418 : vector<8x2x64xf32>
    %420 = arith.addf %0, %403 : vector<8x2x64xf32>
    %421 = arith.addf %420, %411 : vector<8x2x64xf32>
    %422 = arith.addf %421, %419 : vector<8x2x64xf32>
    %c0_131 = arith.constant 0 : index
    %c0_132 = arith.constant 0 : index
    %423 = vector.load %arg9[%c0_131, %c0_132] : memref<64x128xf32, #tpu.memory_space<vmem>>, vector<64x128xf32>
    "tpu.trace_start"() <{level = 10 : i32, message = "tbk,kd->tbd"}> : () -> ()
    %cst_133 = arith.constant dense<0.000000e+00> : vector<8x2x128xf32>
    %424 = tpu.matmul %422, %423, %cst_133 {dimension_numbers = #tpu.dot_dimension_numbers<[2], [0], [0, 1], [1], [0, 0, 0, 1, 1, 1], [], []>} : vector<8x2x64xf32>, vector<64x128xf32>, vector<8x2x128xf32> -> vector<8x2x128xf32>
    "tpu.trace_stop"() : () -> ()
    %c0_134 = arith.constant 0 : index
    %c0_135 = arith.constant 0 : index
    %425 = vector.load %arg10[%c0_134, %c0_135] : memref<1x128xf32, #tpu.memory_space<vmem>>, vector<1x128xf32>
    %426 = vector.shape_cast %425 : vector<1x128xf32> to vector<1x1x128xf32>
    %427 = vector.broadcast %426 : vector<1x1x128xf32> to vector<8x2x128xf32>
    %428 = arith.addf %424, %427 : vector<8x2x128xf32>
    %c0_136 = arith.constant 0 : index
    %c0_137 = arith.constant 0 : index
    %c0_138 = arith.constant 0 : index
    %429 = vector.load %arg11[%c0_136, %c0_137, %c0_138] : memref<8x2x128xf32, #tpu.memory_space<vmem>>, vector<8x2x128xf32>
    tpu.vector_store %arg11[%c0_136, %c0_137, %c0_138], %428 {strides = array<i32>} : memref<8x2x128xf32, #tpu.memory_space<vmem>>, vector<8x2x128xf32>,
    return
  }
}

</mosaic_0001>

<llo_original>
// kernel: neural_net_forward.3
$region0: #{neural_net_forward.3}
  #allocation0 [shape = 'u32[]', space=smem, size = 0x4, offset = 0x4, fixed_abs, tag = 'smem constant byte address 0x4 - core index']
  #allocation1 [shape = 'u32[144,128]{1,0:T(1,128)}', space=vmem, size = 0x12000, scoped, tag = 'internal scratch']
  %s0 = inlined_call_operand.vmem [shape: f32[8,2,32], index: 0, kind: input, shape index: {}]
  %s1 = inlined_call_operand.vmem [shape: f32[3,32,16], index: 1, kind: input, shape index: {}]
  %s2 = inlined_call_operand.vmem [shape: f32[1,16], index: 2, kind: input, shape index: {}]
  %s3 = inlined_call_operand.vmem [shape: f32[3,16,8], index: 3, kind: input, shape index: {}]
  %s4 = inlined_call_operand.vmem [shape: f32[1,8], index: 4, kind: input, shape index: {}]
  %s5 = inlined_call_operand.vmem [shape: f32[8,2,8], index: 5, kind: output, shape index: {}]
  %s6 = sld [smem:[#allocation0]]
  $region30: #{neural_net_forward.3} parent=0
    _
  %s8 = ssub.s32 1, %s6
  %s9 = scalar_select 0, %s8, %s6
  // Predicated region
  $region2: #{neural_net_forward.3} parent=0 // pred_check
    _
  $region3: #{neural_net_forward.3} parent=0 // pred_check_branch
    %11 = sbr.rel (0) target = $region5
  $region4: #{neural_net_forward.3} parent=0 // pred_region
    _
  $region5: #{neural_net_forward.3} parent=0 // pred_fallthru
    _
  // Predicated region
  $region6: #{neural_net_forward.3} parent=0 // pred_check
    _
  $region7: #{neural_net_forward.3} parent=0 // pred_check_branch
    %13 = sbr.rel (0) target = $region9
  $region8: #{neural_net_forward.3} parent=0 // pred_region
    _
  $region9: #{neural_net_forward.3} parent=0 // pred_fallthru
    _
  // Predicated region
  $region10: #{neural_net_forward.3} parent=0 // pred_check
    _
  $region11: #{neural_net_forward.3} parent=0 // pred_check_branch
    %15 = sbr.rel (0) target = $region13
  $region12: #{neural_net_forward.3} parent=0 // pred_region
    _
  $region13: #{neural_net_forward.3} parent=0 // pred_fallthru
    _
  // Predicated region
  $region14: #{neural_net_forward.3} parent=0 // pred_check
    _
  $region15: #{neural_net_forward.3} parent=0 // pred_check_branch
    %17 = sbr.rel (0) target = $region17
  $region16: #{neural_net_forward.3} parent=0 // pred_region
    _
  $region17: #{neural_net_forward.3} parent=0 // pred_fallthru
    _
  // Predicated region
  $region18: #{neural_net_forward.3} parent=0 // pred_check
    _
  $region19: #{neural_net_forward.3} parent=0 // pred_check_branch
    %19 = sbr.rel (0) target = $region21
  $region20: #{neural_net_forward.3} parent=0 // pred_region
    _
  $region21: #{neural_net_forward.3} parent=0 // pred_fallthru
    _
  %v20 = vld [vmem:[%s0] sm:$0x3]
  %v21 = vld [vmem:[%s0 + $0x2] sm:$0x3]
  %v22 = vld [vmem:[%s0 + $0x4] sm:$0x3]
  %v23 = vld [vmem:[%s0 + $0x6] sm:$0x3]
  %v24 = vld [vmem:[%s0 + $0x8] sm:$0x3]
  %v25 = vld [vmem:[%s0 + $0xa] sm:$0x3]
  %v26 = vld [vmem:[%s0 + $0xc] sm:$0x3]
  %v27 = vld [vmem:[%s0 + $0xe] sm:$0x3]
  %v28 = vld [vmem:[%s1] sm:$0xff]
  %v29 = vld [vmem:[%s1 + $0x8] sm:$0xff]
  %v30 = vld [vmem:[%s1 + $0x10] sm:$0xff]
  %v31 = vld [vmem:[%s1 + $0x18] sm:$0xff]
  %s32 = scalar_lea.vmem %s1, 32
  %v33 = vld [vmem:[%s32] sm:$0xff]
  %v34 = vld [vmem:[%s32 + $0x8] sm:$0xff]
  %v35 = vld [vmem:[%s32 + $0x10] sm:$0xff]
  %v36 = vld [vmem:[%s32 + $0x18] sm:$0xff]
  %v45 = vcombine.low %v20, %v21
  %v46 = vcombine.low %v22, %v23
  %v48 = vunpack.c.l.s4 1983009808
  %v49 = vunpack.c.0.s8 %v48
  %v50 = vlaneseq
  %v51 = vshrl.u32 %v50, 7
  %v52 = vsub.s32 %v49, %v51
  %v53 = vrot.slane %v45, %v52
  %v55 = vunpack.c.l.s4 1983009808
  %v56 = vunpack.c.0.s8 %v55
  %v57 = vlaneseq
  %v58 = vshrl.u32 %v57, 7
  %v59 = vsub.s32 %v56, %v58
  %v60 = vrot.slane %v46, %v59
  %v61 = vcombine.low %v53, %v60
  %v62 = vcombine.low %v24, %v25
  %v63 = vcombine.low %v26, %v27
  %v65 = vunpack.c.l.s4 1983009808
  %v66 = vunpack.c.0.s8 %v65
  %v67 = vlaneseq
  %v68 = vshrl.u32 %v67, 7
  %v69 = vsub.s32 %v66, %v68
  %v70 = vrot.slane %v62, %v69
  %v72 = vunpack.c.l.s4 1983009808
  %v73 = vunpack.c.0.s8 %v72
  %v74 = vlaneseq
  %v75 = vshrl.u32 %v74, 7
  %v76 = vsub.s32 %v73, %v75
  %v77 = vrot.slane %v63, %v76
  %v78 = vcombine.low %v70, %v77
  %vm79 = vcmask 261120
  %v80 = vsel %vm79, %v61, 0
  %v82 = vsel %vm79, %v78, 0
  %84 = vmatprep.subr.mxu0 0.0
  %85 = vmatpush1.msra.mxu0 0.0
  %86 = vmatprep.subr.mxu0 0.0
  %87 = vmatpush1.msra.mxu0 0.0
  %88 = vmatprep.subr.mxu0 0.0
  %89 = vmatpush1.msra.mxu0 0.0
  %90 = vmatprep.subr.mxu0 0.0
  %91 = vmatpush1.msra.mxu0 0.0
  %92 = vmatprep.subr.mxu0 0.0
  %93 = vmatpush1.msra.mxu0 0.0
  %94 = vmatprep.subr.mxu0 0.0
  %95 = vmatpush1.msra.mxu0 0.0
  %96 = vmatprep.subr.mxu0 0.0
  %97 = vmatpush1.msra.mxu0 0.0
  %98 = vmatprep.subr.mxu0 0.0
  %99 = vmatpush1.msra.mxu0 0.0
  %100 = vmatprep.subr.mxu0 0.0
  %101 = vmatpush1.msra.mxu0 0.0
  %102 = vmatprep.subr.mxu0 0.0
  %103 = vmatpush1.msra.mxu0 0.0
  %104 = vmatprep.subr.mxu0 0.0
  %105 = vmatpush1.msra.mxu0 0.0
  %106 = vmatprep.subr.mxu0 0.0
  %107 = vmatpush1.msra.mxu0 0.0
  %108 = vmatprep.subr.mxu0 0.0
  %109 = vmatpush1.msra.mxu0 %v36
  %110 = vmatprep.subr.mxu0 0.0
  %111 = vmatpush1.msra.mxu0 %v35
  %112 = vmatprep.subr.mxu0 0.0
  %113 = vmatpush1.msra.mxu0 %v34
  %114 = vmatprep.subr.mxu0 0.0
  %115 = vmatpush1.msra.mxu0 %v33
  %116 = vmatprep.subr.mxu0 0.0
  %117 = vmatpush2.msra.mxu0 0.0
  %118 = vmatprep.subr.mxu0 0.0
  %119 = vmatpush2.msra.mxu0 0.0
  %120 = vmatprep.subr.mxu0 0.0
  %121 = vmatpush2.msra.mxu0 0.0
  %122 = vmatprep.subr.mxu0 0.0
  %123 = vmatpush2.msra.mxu0 0.0
  %124 = vmatprep.subr.mxu0 0.0
  %125 = vmatpush2.msra.mxu0 0.0
  %126 = vmatprep.subr.mxu0 0.0
  %127 = vmatpush2.msra.mxu0 0.0
  %128 = vmatprep.subr.mxu0 0.0
  %129 = vmatpush2.msra.mxu0 0.0
  %130 = vmatprep.subr.mxu0 0.0
  %131 = vmatpush2.msra.mxu0 0.0
  %132 = vmatprep.subr.mxu0 0.0
  %133 = vmatpush2.msra.mxu0 0.0
  %134 = vmatprep.subr.mxu0 0.0
  %135 = vmatpush2.msra.mxu0 0.0
  %136 = vmatprep.subr.mxu0 0.0
  %137 = vmatpush2.msra.mxu0 0.0
  %138 = vmatprep.subr.mxu0 0.0
  %139 = vmatpush2.msra.mxu0 0.0
  %140 = vmatprep.subr.mxu0 0.0
  %141 = vmatpush2.msra.mxu0 0.0
  %142 = vmatprep.subr.mxu0 0.0
  %143 = vmatpush2.msra.mxu0 0.0
  %144 = vmatprep.subr.mxu0 0.0
  %145 = vmatpush2.msra.mxu0 0.0
  %146 = vmatprep.subr.mxu0 0.0
  %147 = vmatpush2.msra.mxu0 0.0
  %148 = vmatprep.mubr.f32.mxu0 0.0
  %149 = vmatmul.mubr.f32.gmra.mxu0 %v80
  %v150 = vpop.f32.mrf.mxu0
  %v151 = vadd.f32 0.0, %v150
  %v152 = vpop.f32.mrf.mxu0
  %153 = vmatprep.mubr.f32.mxu0 0.0
  %154 = vmatmul.mubr.f32.gmra.mxu0 %v82
  %v155 = vpop.f32.mrf.mxu0
  %v156 = vadd.f32 0.0, %v155
  %v157 = vpop.f32.mrf.mxu0
  %158 = vdwg.mxu0
  %v160 = vcombine.low 0.0, %v20
  %v161 = vcombine.low %v21, %v22
  %v163 = vunpack.c.l.s4 1983009808
  %v164 = vunpack.c.0.s8 %v163
  %v165 = vlaneseq
  %v166 = vshrl.u32 %v165, 7
  %v167 = vsub.s32 %v164, %v166
  %v168 = vrot.slane %v160, %v167
  %v170 = vunpack.c.l.s4 1983009808
  %v171 = vunpack.c.0.s8 %v170
  %v172 = vlaneseq
  %v173 = vshrl.u32 %v172, 7
  %v174 = vsub.s32 %v171, %v173
  %v175 = vrot.slane %v161, %v174
  %v176 = vcombine.low %v168, %v175
  %v177 = vcombine.low %v23, %v24
  %v178 = vcombine.low %v25, %v26
  %v180 = vunpack.c.l.s4 1983009808
  %v181 = vunpack.c.0.s8 %v180
  %v182 = vlaneseq
  %v183 = vshrl.u32 %v182, 7
  %v184 = vsub.s32 %v181, %v183
  %v185 = vrot.slane %v177, %v184
  %v187 = vunpack.c.l.s4 1983009808
  %v188 = vunpack.c.0.s8 %v187
  %v189 = vlaneseq
  %v190 = vshrl.u32 %v189, 7
  %v191 = vsub.s32 %v188, %v190
  %v192 = vrot.slane %v178, %v191
  %v193 = vcombine.low %v185, %v192
  %v194 = vsel %vm79, %v176, 0
  %v196 = vsel %vm79, %v193, 0
  %198 = vmatprep.subr.mxu0 0.0
  %199 = vmatpush1.msra.mxu0 0.0
  %200 = vmatprep.subr.mxu0 0.0
  %201 = vmatpush1.msra.mxu0 0.0
  %202 = vmatprep.subr.mxu0 0.0
  %203 = vmatpush1.msra.mxu0 0.0
  %204 = vmatprep.subr.mxu0 0.0
  %205 = vmatpush1.msra.mxu0 0.0
  %206 = vmatprep.subr.mxu0 0.0
  %207 = vmatpush1.msra.mxu0 0.0
  %208 = vmatprep.subr.mxu0 0.0
  %209 = vmatpush1.msra.mxu0 0.0
  %210 = vmatprep.subr.mxu0 0.0
  %211 = vmatpush1.msra.mxu0 0.0
  %212 = vmatprep.subr.mxu0 0.0
  %213 = vmatpush1.msra.mxu0 0.0
  %214 = vmatprep.subr.mxu0 0.0
  %215 = vmatpush1.msra.mxu0 0.0
  %216 = vmatprep.subr.mxu0 0.0
  %217 = vmatpush1.msra.mxu0 0.0
  %218 = vmatprep.subr.mxu0 0.0
  %219 = vmatpush1.msra.mxu0 0.0
  %220 = vmatprep.subr.mxu0 0.0
  %221 = vmatpush1.msra.mxu0 0.0
  %222 = vmatprep.subr.mxu0 0.0
  %223 = vmatpush1.msra.mxu0 %v31
  %224 = vmatprep.subr.mxu0 0.0
  %225 = vmatpush1.msra.mxu0 %v30
  %226 = vmatprep.subr.mxu0 0.0
  %227 = vmatpush1.msra.mxu0 %v29
  %228 = vmatprep.subr.mxu0 0.0
  %229 = vmatpush1.msra.mxu0 %v28
  %230 = vmatprep.subr.mxu0 0.0
  %231 = vmatpush2.msra.mxu0 0.0
  %232 = vmatprep.subr.mxu0 0.0
  %233 = vmatpush2.msra.mxu0 0.0
  %234 = vmatprep.subr.mxu0 0.0
  %235 = vmatpush2.msra.mxu0 0.0
  %236 = vmatprep.subr.mxu0 0.0
  %237 = vmatpush2.msra.mxu0 0.0
  %238 = vmatprep.subr.mxu0 0.0
  %239 = vmatpush2.msra.mxu0 0.0
  %240 = vmatprep.subr.mxu0 0.0
  %241 = vmatpush2.msra.mxu0 0.0
  %242 = vmatprep.subr.mxu0 0.0
  %243 = vmatpush2.msra.mxu0 0.0
  %244 = vmatprep.subr.mxu0 0.0
  %245 = vmatpush2.msra.mxu0 0.0
  %246 = vmatprep.subr.mxu0 0.0
  %247 = vmatpush2.msra.mxu0 0.0
  %248 = vmatprep.subr.mxu0 0.0
  %249 = vmatpush2.msra.mxu0 0.0
  %250 = vmatprep.subr.mxu0 0.0
  %251 = vmatpush2.msra.mxu0 0.0
  %252 = vmatprep.subr.mxu0 0.0
  %253 = vmatpush2.msra.mxu0 0.0
  %254 = vmatprep.subr.mxu0 0.0
  %255 = vmatpush2.msra.mxu0 0.0
  %256 = vmatprep.subr.mxu0 0.0
  %257 = vmatpush2.msra.mxu0 0.0
  %258 = vmatprep.subr.mxu0 0.0
  %259 = vmatpush2.msra.mxu0 0.0
  %260 = vmatprep.subr.mxu0 0.0
  %261 = vmatpush2.msra.mxu0 0.0
  %262 = vmatprep.mubr.f32.mxu0 0.0
  %263 = vmatmul.mubr.f32.gmra.mxu0 %v194
  %v264 = vpop.f32.mrf.mxu0
  %v265 = vadd.f32 %v151, %v264
  %v266 = vpop.f32.mrf.mxu0
  %267 = vmatprep.mubr.f32.mxu0 0.0
  %268 = vmatmul.mubr.f32.gmra.mxu0 %v196
  %v269 = vpop.f32.mrf.mxu0
  %v270 = vadd.f32 %v156, %v269
  %v271 = vpop.f32.mrf.mxu0
  %272 = vdwg.mxu0
  %v275 = vcombine.high %v265, %v265
  %v277 = vunpack.c.l.s4 1983009808
  %v278 = vunpack.c.0.s8 %v277
  %v279 = vlaneseq
  %v280 = vshrl.u32 %v279, 7
  %v281 = vsub.s32 %v278, %v280
  %v282 = vrot.slane %v265, %v281
  %v284 = vunpack.c.l.s4 1983009808
  %v285 = vunpack.c.0.s8 %v284
  %v286 = vlaneseq
  %v287 = vshrl.u32 %v286, 7
  %v288 = vsub.s32 %v285, %v287
  %v289 = vrot.slane %v275, %v288
  %v290 = vcombine.high %v282, %v282
  %v291 = vcombine.high %v289, %v289
  %v292 = vcombine.high %v270, %v270
  %v294 = vunpack.c.l.s4 1983009808
  %v295 = vunpack.c.0.s8 %v294
  %v296 = vlaneseq
  %v297 = vshrl.u32 %v296, 7
  %v298 = vsub.s32 %v295, %v297
  %v299 = vrot.slane %v270, %v298
  %v301 = vunpack.c.l.s4 1983009808
  %v302 = vunpack.c.0.s8 %v301
  %v303 = vlaneseq
  %v304 = vshrl.u32 %v303, 7
  %v305 = vsub.s32 %v302, %v304
  %v306 = vrot.slane %v292, %v305
  %v307 = vcombine.high %v299, %v299
  %v308 = vcombine.high %v306, %v306
  %s317 = scalar_lea.vmem %s1, 64
  %v318 = vld [vmem:[%s317] sm:$0xff]
  %v319 = vld [vmem:[%s317 + $0x8] sm:$0xff]
  %v320 = vld [vmem:[%s317 + $0x10] sm:$0xff]
  %v321 = vld [vmem:[%s317 + $0x18] sm:$0xff]
  %v322 = vcombine.low %v175, %v185
  %v323 = vcombine.low %v27, 0.0
  %v325 = vunpack.c.l.s4 1983009808
  %v326 = vunpack.c.0.s8 %v325
  %v327 = vlaneseq
  %v328 = vshrl.u32 %v327, 7
  %v329 = vsub.s32 %v326, %v328
  %v330 = vrot.slane %v323, %v329
  %v331 = vcombine.low %v192, %v330
  %v332 = vsel %vm79, %v322, 0
  %v334 = vsel %vm79, %v331, 0
  %336 = vmatprep.subr.mxu0 0.0
  %337 = vmatpush1.msra.mxu0 0.0
  %338 = vmatprep.subr.mxu0 0.0
  %339 = vmatpush1.msra.mxu0 0.0
  %340 = vmatprep.subr.mxu0 0.0
  %341 = vmatpush1.msra.mxu0 0.0
  %342 = vmatprep.subr.mxu0 0.0
  %343 = vmatpush1.msra.mxu0 0.0
  %344 = vmatprep.subr.mxu0 0.0
  %345 = vmatpush1.msra.mxu0 0.0
  %346 = vmatprep.subr.mxu0 0.0
  %347 = vmatpush1.msra.mxu0 0.0
  %348 = vmatprep.subr.mxu0 0.0
  %349 = vmatpush1.msra.mxu0 0.0
  %350 = vmatprep.subr.mxu0 0.0
  %351 = vmatpush1.msra.mxu0 0.0
  %352 = vmatprep.subr.mxu0 0.0
  %353 = vmatpush1.msra.mxu0 0.0
  %354 = vmatprep.subr.mxu0 0.0
  %355 = vmatpush1.msra.mxu0 0.0
  %356 = vmatprep.subr.mxu0 0.0
  %357 = vmatpush1.msra.mxu0 0.0
  %358 = vmatprep.subr.mxu0 0.0
  %359 = vmatpush1.msra.mxu0 0.0
  %360 = vmatprep.subr.mxu0 0.0
  %361 = vmatpush1.msra.mxu0 %v321
  %362 = vmatprep.subr.mxu0 0.0
  %363 = vmatpush1.msra.mxu0 %v320
  %364 = vmatprep.subr.mxu0 0.0
  %365 = vmatpush1.msra.mxu0 %v319
  %366 = vmatprep.subr.mxu0 0.0
  %367 = vmatpush1.msra.mxu0 %v318
  %368 = vmatprep.subr.mxu0 0.0
  %369 = vmatpush2.msra.mxu0 0.0
  %370 = vmatprep.subr.mxu0 0.0
  %371 = vmatpush2.msra.mxu0 0.0
  %372 = vmatprep.subr.mxu0 0.0
  %373 = vmatpush2.msra.mxu0 0.0
  %374 = vmatprep.subr.mxu0 0.0
  %375 = vmatpush2.msra.mxu0 0.0
  %376 = vmatprep.subr.mxu0 0.0
  %377 = vmatpush2.msra.mxu0 0.0
  %378 = vmatprep.subr.mxu0 0.0
  %379 = vmatpush2.msra.mxu0 0.0
  %380 = vmatprep.subr.mxu0 0.0
  %381 = vmatpush2.msra.mxu0 0.0
  %382 = vmatprep.subr.mxu0 0.0
  %383 = vmatpush2.msra.mxu0 0.0
  %384 = vmatprep.subr.mxu0 0.0
  %385 = vmatpush2.msra.mxu0 0.0
  %386 = vmatprep.subr.mxu0 0.0
  %387 = vmatpush2.msra.mxu0 0.0
  %388 = vmatprep.subr.mxu0 0.0
  %389 = vmatpush2.msra.mxu0 0.0
  %390 = vmatprep.subr.mxu0 0.0
  %391 = vmatpush2.msra.mxu0 0.0
  %392 = vmatprep.subr.mxu0 0.0
  %393 = vmatpush2.msra.mxu0 0.0
  %394 = vmatprep.subr.mxu0 0.0
  %395 = vmatpush2.msra.mxu0 0.0
  %396 = vmatprep.subr.mxu0 0.0
  %397 = vmatpush2.msra.mxu0 0.0
  %398 = vmatprep.subr.mxu0 0.0
  %399 = vmatpush2.msra.mxu0 0.0
  %400 = vmatprep.mubr.f32.mxu0 0.0
  %401 = vmatmul.mubr.f32.gmra.mxu0 %v332
  %v402 = vpop.f32.mrf.mxu0
  %v403 = vadd.f32 0.0, %v402
  %v404 = vpop.f32.mrf.mxu0
  %405 = vmatprep.mubr.f32.mxu0 0.0
  %406 = vmatmul.mubr.f32.gmra.mxu0 %v334
  %v407 = vpop.f32.mrf.mxu0
  %v408 = vadd.f32 0.0, %v407
  %v409 = vpop.f32.mrf.mxu0
  %410 = vdwg.mxu0
  %v413 = vcombine.high %v403, %v403
  %v415 = vunpack.c.l.s4 1983009808
  %v416 = vunpack.c.0.s8 %v415
  %v417 = vlaneseq
  %v418 = vshrl.u32 %v417, 7
  %v419 = vsub.s32 %v416, %v418
  %v420 = vrot.slane %v403, %v419
  %v422 = vunpack.c.l.s4 1983009808
  %v423 = vunpack.c.0.s8 %v422
  %v424 = vlaneseq
  %v425 = vshrl.u32 %v424, 7
  %v426 = vsub.s32 %v423, %v425
  %v427 = vrot.slane %v413, %v426
  %v428 = vcombine.high %v420, %v420
  %v429 = vcombine.high %v427, %v427
  %v430 = vcombine.high %v408, %v408
  %v432 = vunpack.c.l.s4 1983009808
  %v433 = vunpack.c.0.s8 %v432
  %v434 = vlaneseq
  %v435 = vshrl.u32 %v434, 7
  %v436 = vsub.s32 %v433, %v435
  %v437 = vrot.slane %v408, %v436
  %v439 = vunpack.c.l.s4 1983009808
  %v440 = vunpack.c.0.s8 %v439
  %v441 = vlaneseq
  %v442 = vshrl.u32 %v441, 7
  %v443 = vsub.s32 %v440, %v442
  %v444 = vrot.slane %v430, %v443
  %v445 = vcombine.high %v437, %v437
  %v446 = vcombine.high %v444, %v444
  %v455 = vadd.f32 %v282, %v420
  %v456 = vadd.f32 %v290, %v428
  %v457 = vadd.f32 %v289, %v427
  %v458 = vadd.f32 %v291, %v429
  %v459 = vadd.f32 %v299, %v437
  %v460 = vadd.f32 %v307, %v445
  %v461 = vadd.f32 %v306, %v444
  %v462 = vadd.f32 %v308, %v446
  %v463 = vld [vmem:[%s2] sm:$0x1]
  %v465 = vlaneseq
  %v466 = vshrl.u32 %v465, 7
  %v467 = vsub.s32 0, %v466
  %v468 = vrot.slane %v463, %v467
  %v470 = vadd.f32 %v455, %v468
  %v471 = vadd.f32 %v456, %v468
  %v472 = vadd.f32 %v457, %v468
  %v473 = vadd.f32 %v458, %v468
  %v474 = vadd.f32 %v459, %v468
  %v475 = vadd.f32 %v460, %v468
  %v476 = vadd.f32 %v461, %v468
  %v477 = vadd.f32 %v462, %v468
  %v478 = vmax.f32 %v470, 0.0
  %v479 = vmax.f32 %v471, 0.0
  %v480 = vmax.f32 %v472, 0.0
  %v481 = vmax.f32 %v473, 0.0
  %v482 = vmax.f32 %v474, 0.0
  %v483 = vmax.f32 %v475, 0.0
  %v484 = vmax.f32 %v476, 0.0
  %v485 = vmax.f32 %v477, 0.0
  %v486 = vld [vmem:[%s3] sm:$0xff]
  %v487 = vld [vmem:[%s3 + $0x8] sm:$0xff]
  %s488 = scalar_lea.vmem %s3, 16
  %v489 = vld [vmem:[%s488] sm:$0xff]
  %v490 = vld [vmem:[%s488 + $0x8] sm:$0xff]
  %v499 = vcombine.low %v478, %v479
  %v500 = vcombine.low %v480, %v481
  %v502 = vunpack.c.l.s4 1983009808
  %v503 = vunpack.c.0.s8 %v502
  %v504 = vlaneseq
  %v505 = vshrl.u32 %v504, 7
  %v506 = vsub.s32 %v503, %v505
  %v507 = vrot.slane %v499, %v506
  %v509 = vunpack.c.l.s4 1983009808
  %v510 = vunpack.c.0.s8 %v509
  %v511 = vlaneseq
  %v512 = vshrl.u32 %v511, 7
  %v513 = vsub.s32 %v510, %v512
  %v514 = vrot.slane %v500, %v513
  %v515 = vcombine.low %v507, %v514
  %v516 = vcombine.low %v482, %v483
  %v517 = vcombine.low %v484, %v485
  %v519 = vunpack.c.l.s4 1983009808
  %v520 = vunpack.c.0.s8 %v519
  %v521 = vlaneseq
  %v522 = vshrl.u32 %v521, 7
  %v523 = vsub.s32 %v520, %v522
  %v524 = vrot.slane %v516, %v523
  %v526 = vunpack.c.l.s4 1983009808
  %v527 = vunpack.c.0.s8 %v526
  %v528 = vlaneseq
  %v529 = vshrl.u32 %v528, 7
  %v530 = vsub.s32 %v527, %v529
  %v531 = vrot.slane %v517, %v530
  %v532 = vcombine.low %v524, %v531
  %vm533 = vcmask 130048
  %v534 = vsel %vm533, %v515, 0
  %v536 = vsel %vm533, %v532, 0
  %538 = vmatprep.subr.mxu0 0.0
  %539 = vmatpush1.msra.mxu0 0.0
  %540 = vmatprep.subr.mxu0 0.0
  %541 = vmatpush1.msra.mxu0 0.0
  %542 = vmatprep.subr.mxu0 0.0
  %543 = vmatpush1.msra.mxu0 0.0
  %544 = vmatprep.subr.mxu0 0.0
  %545 = vmatpush1.msra.mxu0 0.0
  %546 = vmatprep.subr.mxu0 0.0
  %547 = vmatpush1.msra.mxu0 0.0
  %548 = vmatprep.subr.mxu0 0.0
  %549 = vmatpush1.msra.mxu0 0.0
  %550 = vmatprep.subr.mxu0 0.0
  %551 = vmatpush1.msra.mxu0 0.0
  %552 = vmatprep.subr.mxu0 0.0
  %553 = vmatpush1.msra.mxu0 0.0
  %554 = vmatprep.subr.mxu0 0.0
  %555 = vmatpush1.msra.mxu0 0.0
  %556 = vmatprep.subr.mxu0 0.0
  %557 = vmatpush1.msra.mxu0 0.0
  %558 = vmatprep.subr.mxu0 0.0
  %559 = vmatpush1.msra.mxu0 0.0
  %560 = vmatprep.subr.mxu0 0.0
  %561 = vmatpush1.msra.mxu0 0.0
  %562 = vmatprep.subr.mxu0 0.0
  %563 = vmatpush1.msra.mxu0 0.0
  %564 = vmatprep.subr.mxu0 0.0
  %565 = vmatpush1.msra.mxu0 0.0
  %566 = vmatprep.subr.mxu0 0.0
  %567 = vmatpush1.msra.mxu0 %v490
  %568 = vmatprep.subr.mxu0 0.0
  %569 = vmatpush1.msra.mxu0 %v489
  %570 = vmatprep.subr.mxu0 0.0
  %571 = vmatpush2.msra.mxu0 0.0
  %572 = vmatprep.subr.mxu0 0.0
  %573 = vmatpush2.msra.mxu0 0.0
  %574 = vmatprep.subr.mxu0 0.0
  %575 = vmatpush2.msra.mxu0 0.0
  %576 = vmatprep.subr.mxu0 0.0
  %577 = vmatpush2.msra.mxu0 0.0
  %578 = vmatprep.subr.mxu0 0.0
  %579 = vmatpush2.msra.mxu0 0.0
  %580 = vmatprep.subr.mxu0 0.0
  %581 = vmatpush2.msra.mxu0 0.0
  %582 = vmatprep.subr.mxu0 0.0
  %583 = vmatpush2.msra.mxu0 0.0
  %584 = vmatprep.subr.mxu0 0.0
  %585 = vmatpush2.msra.mxu0 0.0
  %586 = vmatprep.subr.mxu0 0.0
  %587 = vmatpush2.msra.mxu0 0.0
  %588 = vmatprep.subr.mxu0 0.0
  %589 = vmatpush2.msra.mxu0 0.0
  %590 = vmatprep.subr.mxu0 0.0
  %591 = vmatpush2.msra.mxu0 0.0
  %592 = vmatprep.subr.mxu0 0.0
  %593 = vmatpush2.msra.mxu0 0.0
  %594 = vmatprep.subr.mxu0 0.0
  %595 = vmatpush2.msra.mxu0 0.0
  %596 = vmatprep.subr.mxu0 0.0
  %597 = vmatpush2.msra.mxu0 0.0
  %598 = vmatprep.subr.mxu0 0.0
  %599 = vmatpush2.msra.mxu0 0.0
  %600 = vmatprep.subr.mxu0 0.0
  %601 = vmatpush2.msra.mxu0 0.0
  %602 = vmatprep.mubr.f32.mxu0 0.0
  %603 = vmatmul.mubr.f32.gmra.mxu0 %v534
  %v604 = vpop.f32.mrf.mxu0
  %v605 = vadd.f32 0.0, %v604
  %v606 = vpop.f32.mrf.mxu0
  %607 = vmatprep.mubr.f32.mxu0 0.0
  %608 = vmatmul.mubr.f32.gmra.mxu0 %v536
  %v609 = vpop.f32.mrf.mxu0
  %v610 = vadd.f32 0.0, %v609
  %v611 = vpop.f32.mrf.mxu0
  %612 = vdwg.mxu0
  %v613 = vcombine.low 0.0, %v478
  %v614 = vcombine.low %v479, %v480
  %v616 = vunpack.c.l.s4 1983009808
  %v617 = vunpack.c.0.s8 %v616
  %v618 = vlaneseq
  %v619 = vshrl.u32 %v618, 7
  %v620 = vsub.s32 %v617, %v619
  %v621 = vrot.slane %v613, %v620
  %v623 = vunpack.c.l.s4 1983009808
  %v624 = vunpack.c.0.s8 %v623
  %v625 = vlaneseq
  %v626 = vshrl.u32 %v625, 7
  %v627 = vsub.s32 %v624, %v626
  %v628 = vrot.slane %v614, %v627
  %v629 = vcombine.low %v621, %v628
  %v630 = vcombine.low %v481, %v482
  %v631 = vcombine.low %v483, %v484
  %v633 = vunpack.c.l.s4 1983009808
  %v634 = vunpack.c.0.s8 %v633
  %v635 = vlaneseq
  %v636 = vshrl.u32 %v635, 7
  %v637 = vsub.s32 %v634, %v636
  %v638 = vrot.slane %v630, %v637
  %v640 = vunpack.c.l.s4 1983009808
  %v641 = vunpack.c.0.s8 %v640
  %v642 = vlaneseq
  %v643 = vshrl.u32 %v642, 7
  %v644 = vsub.s32 %v641, %v643
  %v645 = vrot.slane %v631, %v644
  %v646 = vcombine.low %v638, %v645
  %v647 = vsel %vm533, %v629, 0
  %v649 = vsel %vm533, %v646, 0
  %651 = vmatprep.subr.mxu0 0.0
  %652 = vmatpush1.msra.mxu0 0.0
  %653 = vmatprep.subr.mxu0 0.0
  %654 = vmatpush1.msra.mxu0 0.0
  %655 = vmatprep.subr.mxu0 0.0
  %656 = vmatpush1.msra.mxu0 0.0
  %657 = vmatprep.subr.mxu0 0.0
  %658 = vmatpush1.msra.mxu0 0.0
  %659 = vmatprep.subr.mxu0 0.0
  %660 = vmatpush1.msra.mxu0 0.0
  %661 = vmatprep.subr.mxu0 0.0
  %662 = vmatpush1.msra.mxu0 0.0
  %663 = vmatprep.subr.mxu0 0.0
  %664 = vmatpush1.msra.mxu0 0.0
  %665 = vmatprep.subr.mxu0 0.0
  %666 = vmatpush1.msra.mxu0 0.0
  %667 = vmatprep.subr.mxu0 0.0
  %668 = vmatpush1.msra.mxu0 0.0
  %669 = vmatprep.subr.mxu0 0.0
  %670 = vmatpush1.msra.mxu0 0.0
  %671 = vmatprep.subr.mxu0 0.0
  %672 = vmatpush1.msra.mxu0 0.0
  %673 = vmatprep.subr.mxu0 0.0
  %674 = vmatpush1.msra.mxu0 0.0
  %675 = vmatprep.subr.mxu0 0.0
  %676 = vmatpush1.msra.mxu0 0.0
  %677 = vmatprep.subr.mxu0 0.0
  %678 = vmatpush1.msra.mxu0 0.0
  %679 = vmatprep.subr.mxu0 0.0
  %680 = vmatpush1.msra.mxu0 %v487
  %681 = vmatprep.subr.mxu0 0.0
  %682 = vmatpush1.msra.mxu0 %v486
  %683 = vmatprep.subr.mxu0 0.0
  %684 = vmatpush2.msra.mxu0 0.0
  %685 = vmatprep.subr.mxu0 0.0
  %686 = vmatpush2.msra.mxu0 0.0
  %687 = vmatprep.subr.mxu0 0.0
  %688 = vmatpush2.msra.mxu0 0.0
  %689 = vmatprep.subr.mxu0 0.0
  %690 = vmatpush2.msra.mxu0 0.0
  %691 = vmatprep.subr.mxu0 0.0
  %692 = vmatpush2.msra.mxu0 0.0
  %693 = vmatprep.subr.mxu0 0.0
  %694 = vmatpush2.msra.mxu0 0.0
  %695 = vmatprep.subr.mxu0 0.0
  %696 = vmatpush2.msra.mxu0 0.0
  %697 = vmatprep.subr.mxu0 0.0
  %698 = vmatpush2.msra.mxu0 0.0
  %699 = vmatprep.subr.mxu0 0.0
  %700 = vmatpush2.msra.mxu0 0.0
  %701 = vmatprep.subr.mxu0 0.0
  %702 = vmatpush2.msra.mxu0 0.0
  %703 = vmatprep.subr.mxu0 0.0
  %704 = vmatpush2.msra.mxu0 0.0
  %705 = vmatprep.subr.mxu0 0.0
  %706 = vmatpush2.msra.mxu0 0.0
  %707 = vmatprep.subr.mxu0 0.0
  %708 = vmatpush2.msra.mxu0 0.0
  %709 = vmatprep.subr.mxu0 0.0
  %710 = vmatpush2.msra.mxu0 0.0
  %711 = vmatprep.subr.mxu0 0.0
  %712 = vmatpush2.msra.mxu0 0.0
  %713 = vmatprep.subr.mxu0 0.0
  %714 = vmatpush2.msra.mxu0 0.0
  %715 = vmatprep.mubr.f32.mxu0 0.0
  %716 = vmatmul.mubr.f32.gmra.mxu0 %v647
  %v717 = vpop.f32.mrf.mxu0
  %v718 = vadd.f32 %v605, %v717
  %v719 = vpop.f32.mrf.mxu0
  %720 = vmatprep.mubr.f32.mxu0 0.0
  %721 = vmatmul.mubr.f32.gmra.mxu0 %v649
  %v722 = vpop.f32.mrf.mxu0
  %v723 = vadd.f32 %v610, %v722
  %v724 = vpop.f32.mrf.mxu0
  %725 = vdwg.mxu0
  %v728 = vcombine.high %v718, %v718
  %v730 = vunpack.c.l.s4 1983009808
  %v731 = vunpack.c.0.s8 %v730
  %v732 = vlaneseq
  %v733 = vshrl.u32 %v732, 7
  %v734 = vsub.s32 %v731, %v733
  %v735 = vrot.slane %v718, %v734
  %v737 = vunpack.c.l.s4 1983009808
  %v738 = vunpack.c.0.s8 %v737
  %v739 = vlaneseq
  %v740 = vshrl.u32 %v739, 7
  %v741 = vsub.s32 %v738, %v740
  %v742 = vrot.slane %v728, %v741
  %v743 = vcombine.high %v735, %v735
  %v744 = vcombine.high %v742, %v742
  %v745 = vcombine.high %v723, %v723
  %v747 = vunpack.c.l.s4 1983009808
  %v748 = vunpack.c.0.s8 %v747
  %v749 = vlaneseq
  %v750 = vshrl.u32 %v749, 7
  %v751 = vsub.s32 %v748, %v750
  %v752 = vrot.slane %v723, %v751
  %v754 = vunpack.c.l.s4 1983009808
  %v755 = vunpack.c.0.s8 %v754
  %v756 = vlaneseq
  %v757 = vshrl.u32 %v756, 7
  %v758 = vsub.s32 %v755, %v757
  %v759 = vrot.slane %v745, %v758
  %v760 = vcombine.high %v752, %v752
  %v761 = vcombine.high %v759, %v759
  %s770 = scalar_lea.vmem %s3, 32
  %v771 = vld [vmem:[%s770] sm:$0xff]
  %v772 = vld [vmem:[%s770 + $0x8] sm:$0xff]
  %v773 = vcombine.low %v628, %v638
  %v774 = vcombine.low %v485, 0.0
  %v776 = vunpack.c.l.s4 1983009808
  %v777 = vunpack.c.0.s8 %v776
  %v778 = vlaneseq
  %v779 = vshrl.u32 %v778, 7
  %v780 = vsub.s32 %v777, %v779
  %v781 = vrot.slane %v774, %v780
  %v782 = vcombine.low %v645, %v781
  %v783 = vsel %vm533, %v773, 0
  %v785 = vsel %vm533, %v782, 0
  %787 = vmatprep.subr.mxu0 0.0
  %788 = vmatpush1.msra.mxu0 0.0
  %789 = vmatprep.subr.mxu0 0.0
  %790 = vmatpush1.msra.mxu0 0.0
  %791 = vmatprep.subr.mxu0 0.0
  %792 = vmatpush1.msra.mxu0 0.0
  %793 = vmatprep.subr.mxu0 0.0
  %794 = vmatpush1.msra.mxu0 0.0
  %795 = vmatprep.subr.mxu0 0.0
  %796 = vmatpush1.msra.mxu0 0.0
  %797 = vmatprep.subr.mxu0 0.0
  %798 = vmatpush1.msra.mxu0 0.0
  %799 = vmatprep.subr.mxu0 0.0
  %800 = vmatpush1.msra.mxu0 0.0
  %801 = vmatprep.subr.mxu0 0.0
  %802 = vmatpush1.msra.mxu0 0.0
  %803 = vmatprep.subr.mxu0 0.0
  %804 = vmatpush1.msra.mxu0 0.0
  %805 = vmatprep.subr.mxu0 0.0
  %806 = vmatpush1.msra.mxu0 0.0
  %807 = vmatprep.subr.mxu0 0.0
  %808 = vmatpush1.msra.mxu0 0.0
  %809 = vmatprep.subr.mxu0 0.0
  %810 = vmatpush1.msra.mxu0 0.0
  %811 = vmatprep.subr.mxu0 0.0
  %812 = vmatpush1.msra.mxu0 0.0
  %813 = vmatprep.subr.mxu0 0.0
  %814 = vmatpush1.msra.mxu0 0.0
  %815 = vmatprep.subr.mxu0 0.0
  %816 = vmatpush1.msra.mxu0 %v772
  %817 = vmatprep.subr.mxu0 0.0
  %818 = vmatpush1.msra.mxu0 %v771
  %819 = vmatprep.subr.mxu0 0.0
  %820 = vmatpush2.msra.mxu0 0.0
  %821 = vmatprep.subr.mxu0 0.0
  %822 = vmatpush2.msra.mxu0 0.0
  %823 = vmatprep.subr.mxu0 0.0
  %824 = vmatpush2.msra.mxu0 0.0
  %825 = vmatprep.subr.mxu0 0.0
  %826 = vmatpush2.msra.mxu0 0.0
  %827 = vmatprep.subr.mxu0 0.0
  %828 = vmatpush2.msra.mxu0 0.0
  %829 = vmatprep.subr.mxu0 0.0
  %830 = vmatpush2.msra.mxu0 0.0
  %831 = vmatprep.subr.mxu0 0.0
  %832 = vmatpush2.msra.mxu0 0.0
  %833 = vmatprep.subr.mxu0 0.0
  %834 = vmatpush2.msra.mxu0 0.0
  %835 = vmatprep.subr.mxu0 0.0
  %836 = vmatpush2.msra.mxu0 0.0
  %837 = vmatprep.subr.mxu0 0.0
  %838 = vmatpush2.msra.mxu0 0.0
  %839 = vmatprep.subr.mxu0 0.0
  %840 = vmatpush2.msra.mxu0 0.0
  %841 = vmatprep.subr.mxu0 0.0
  %842 = vmatpush2.msra.mxu0 0.0
  %843 = vmatprep.subr.mxu0 0.0
  %844 = vmatpush2.msra.mxu0 0.0
  %845 = vmatprep.subr.mxu0 0.0
  %846 = vmatpush2.msra.mxu0 0.0
  %847 = vmatprep.subr.mxu0 0.0
  %848 = vmatpush2.msra.mxu0 0.0
  %849 = vmatprep.subr.mxu0 0.0
  %850 = vmatpush2.msra.mxu0 0.0
  %851 = vmatprep.mubr.f32.mxu0 0.0
  %852 = vmatmul.mubr.f32.gmra.mxu0 %v783
  %v853 = vpop.f32.mrf.mxu0
  %v854 = vadd.f32 0.0, %v853
  %v855 = vpop.f32.mrf.mxu0
  %856 = vmatprep.mubr.f32.mxu0 0.0
  %857 = vmatmul.mubr.f32.gmra.mxu0 %v785
  %v858 = vpop.f32.mrf.mxu0
  %v859 = vadd.f32 0.0, %v858
  %v860 = vpop.f32.mrf.mxu0
  %861 = vdwg.mxu0
  %v864 = vcombine.high %v854, %v854
  %v866 = vunpack.c.l.s4 1983009808
  %v867 = vunpack.c.0.s8 %v866
  %v868 = vlaneseq
  %v869 = vshrl.u32 %v868, 7
  %v870 = vsub.s32 %v867, %v869
  %v871 = vrot.slane %v854, %v870
  %v873 = vunpack.c.l.s4 1983009808
  %v874 = vunpack.c.0.s8 %v873
  %v875 = vlaneseq
  %v876 = vshrl.u32 %v875, 7
  %v877 = vsub.s32 %v874, %v876
  %v878 = vrot.slane %v864, %v877
  %v879 = vcombine.high %v871, %v871
  %v880 = vcombine.high %v878, %v878
  %v881 = vcombine.high %v859, %v859
  %v883 = vunpack.c.l.s4 1983009808
  %v884 = vunpack.c.0.s8 %v883
  %v885 = vlaneseq
  %v886 = vshrl.u32 %v885, 7
  %v887 = vsub.s32 %v884, %v886
  %v888 = vrot.slane %v859, %v887
  %v890 = vunpack.c.l.s4 1983009808
  %v891 = vunpack.c.0.s8 %v890
  %v892 = vlaneseq
  %v893 = vshrl.u32 %v892, 7
  %v894 = vsub.s32 %v891, %v893
  %v895 = vrot.slane %v881, %v894
  %v896 = vcombine.high %v888, %v888
  %v897 = vcombine.high %v895, %v895
  %v906 = vadd.f32 %v735, %v871
  %v907 = vadd.f32 %v743, %v879
  %v908 = vadd.f32 %v742, %v878
  %v909 = vadd.f32 %v744, %v880
  %v910 = vadd.f32 %v752, %v888
  %v911 = vadd.f32 %v760, %v896
  %v912 = vadd.f32 %v759, %v895
  %v913 = vadd.f32 %v761, %v897
  %v914 = vld [vmem:[%s4] sm:$0x1]
  %v916 = vlaneseq
  %v917 = vshrl.u32 %v916, 7
  %v918 = vsub.s32 0, %v917
  %v919 = vrot.slane %v914, %v918
  %v921 = vadd.f32 %v906, %v919
  %v922 = vadd.f32 %v907, %v919
  %v923 = vadd.f32 %v908, %v919
  %v924 = vadd.f32 %v909, %v919
  %v925 = vadd.f32 %v910, %v919
  %v926 = vadd.f32 %v911, %v919
  %v927 = vadd.f32 %v912, %v919
  %v928 = vadd.f32 %v913, %v919
  %v929 = vmax.f32 %v921, 0.0
  %v930 = vmax.f32 %v922, 0.0
  %v931 = vmax.f32 %v923, 0.0
  %v932 = vmax.f32 %v924, 0.0
  %v933 = vmax.f32 %v925, 0.0
  %v934 = vmax.f32 %v926, 0.0
  %v935 = vmax.f32 %v927, 0.0
  %v936 = vmax.f32 %v928, 0.0
  %vm937 = vcmask 58368
  %938 = vst.msk [vmem:[%s5] sm:$0x3] %vm937, %v929
  %939 = vst.msk [vmem:[%s5 + $0x2] sm:$0x3] %vm937, %v930
  %940 = vst.msk [vmem:[%s5 + $0x4] sm:$0x3] %vm937, %v931
  %941 = vst.msk [vmem:[%s5 + $0x6] sm:$0x3] %vm937, %v932
  %942 = vst.msk [vmem:[%s5 + $0x8] sm:$0x3] %vm937, %v933
  %943 = vst.msk [vmem:[%s5 + $0xa] sm:$0x3] %vm937, %v934
  %944 = vst.msk [vmem:[%s5 + $0xc] sm:$0x3] %vm937, %v935
  %945 = vst.msk [vmem:[%s5 + $0xe] sm:$0x3] %vm937, %v936
  // Predicated region
  $region22: #{neural_net_forward.3} parent=0 // pred_check
    _
  $region23: #{neural_net_forward.3} parent=0 // pred_check_branch
    %947 = sbr.rel (0) target = $region25
  $region24: #{neural_net_forward.3} parent=0 // pred_region
    _
  $region25: #{neural_net_forward.3} parent=0 // pred_fallthru
    _
  // Predicated region
  $region26: #{neural_net_forward.3} parent=0 // pred_check
    _
  $region27: #{neural_net_forward.3} parent=0 // pred_check_branch
    %949 = sbr.rel (0) target = $region29
  $region28: #{neural_net_forward.3} parent=0 // pred_region
    _
  $region29: #{neural_net_forward.3} parent=0 // pred_fallthru
    _

// kernel: neural_net_forward.4
$region0: #{neural_net_forward.4}
  #allocation0 [shape = 'u32[]', space=smem, size = 0x4, offset = 0x4, fixed_abs, tag = 'smem constant byte address 0x4 - core index']
  #allocation1 [shape = 'u32[144,128]{1,0:T(1,128)}', space=vmem, size = 0x12000, scoped, tag = 'internal scratch']
  #allocation2 [shape = 'f32[8,2,256]{2,1,0:T(2,128)}', space=vmem, size = 0x4000, scoped, tag = 'scratch operand']
  %s0 = inlined_call_operand.vmem [shape: f32[8,2,8], index: 0, kind: input, shape index: {}]
  %s1 = inlined_call_operand.vmem [shape: f32[8,256], index: 1, kind: input, shape index: {}]
  %s2 = inlined_call_operand.vmem [shape: f32[32,128], index: 2, kind: input, shape index: {}]
  %s3 = inlined_call_operand.vmem [shape: f32[32,128], index: 3, kind: input, shape index: {}]
  %s4 = inlined_call_operand.vmem [shape: f32[1,256], index: 4, kind: input, shape index: {}]
  %s5 = inlined_call_operand.vmem [shape: f32[8,2,64], index: 5, kind: output, shape index: {}]
  %s6 = sld [smem:[#allocation0]]
  $region30: #{neural_net_forward.4} parent=0
    _
  %s8 = ssub.s32 1, %s6
  %s9 = scalar_select 0, %s8, %s6
  // Predicated region
  $region2: #{neural_net_forward.4} parent=0 // pred_check
    _
  $region3: #{neural_net_forward.4} parent=0 // pred_check_branch
    %11 = sbr.rel (0) target = $region5
  $region4: #{neural_net_forward.4} parent=0 // pred_region
    _
  $region5: #{neural_net_forward.4} parent=0 // pred_fallthru
    _
  // Predicated region
  $region6: #{neural_net_forward.4} parent=0 // pred_check
    _
  $region7: #{neural_net_forward.4} parent=0 // pred_check_branch
    %13 = sbr.rel (0) target = $region9
  $region8: #{neural_net_forward.4} parent=0 // pred_region
    _
  $region9: #{neural_net_forward.4} parent=0 // pred_fallthru
    _
  // Predicated region
  $region10: #{neural_net_forward.4} parent=0 // pred_check
    _
  $region11: #{neural_net_forward.4} parent=0 // pred_check_branch
    %15 = sbr.rel (0) target = $region13
  $region12: #{neural_net_forward.4} parent=0 // pred_region
    _
  $region13: #{neural_net_forward.4} parent=0 // pred_fallthru
    _
  // Predicated region
  $region14: #{neural_net_forward.4} parent=0 // pred_check
    _
  $region15: #{neural_net_forward.4} parent=0 // pred_check_branch
    %17 = sbr.rel (0) target = $region17
  $region16: #{neural_net_forward.4} parent=0 // pred_region
    _
  $region17: #{neural_net_forward.4} parent=0 // pred_fallthru
    _
  // Predicated region
  $region18: #{neural_net_forward.4} parent=0 // pred_check
    _
  $region19: #{neural_net_forward.4} parent=0 // pred_check_branch
    %19 = sbr.rel (0) target = $region21
  $region20: #{neural_net_forward.4} parent=0 // pred_region
    _
  $region21: #{neural_net_forward.4} parent=0 // pred_fallthru
    _
  %v20 = vld [vmem:[%s0] sm:$0x3]
  %v21 = vld [vmem:[%s0 + $0x2] sm:$0x3]
  %v22 = vld [vmem:[%s0 + $0x4] sm:$0x3]
  %v23 = vld [vmem:[%s0 + $0x6] sm:$0x3]
  %v24 = vld [vmem:[%s0 + $0x8] sm:$0x3]
  %v25 = vld [vmem:[%s0 + $0xa] sm:$0x3]
  %v26 = vld [vmem:[%s0 + $0xc] sm:$0x3]
  %v27 = vld [vmem:[%s0 + $0xe] sm:$0x3]
  %v28 = vld [vmem:[%s1] sm:$0xff]
  %v29 = vld [vmem:[%s1 + $0x8] sm:$0xff]
  %v30 = vld [vmem:[%s4] sm:$0x3]
  %v32 = vlaneseq
  %v33 = vshrl.u32 %v32, 7
  %v34 = vsub.s32 0, %v33
  %v35 = vrot.slane %v30, %v34
  %v36 = vlaneseq
  %v37 = vshrl.u32 %v36, 7
  %v38 = vsub.s32 1, %v37
  %v39 = vrot.slane %v30, %v38
  %v40 = vcombine.low %v35, %v39
  %v42 = vunpack.c.l.s4 1983009808
  %v43 = vunpack.c.0.s8 %v42
  %v44 = vlaneseq
  %v45 = vshrl.u32 %v44, 7
  %v46 = vsub.s32 %v43, %v45
  %v47 = vrot.slane %v40, %v46
  %v56 = vcombine.low %v20, %v21
  %v57 = vcombine.low %v22, %v23
  %v59 = vunpack.c.l.s4 1983009808
  %v60 = vunpack.c.0.s8 %v59
  %v61 = vlaneseq
  %v62 = vshrl.u32 %v61, 7
  %v63 = vsub.s32 %v60, %v62
  %v64 = vrot.slane %v56, %v63
  %v66 = vunpack.c.l.s4 1983009808
  %v67 = vunpack.c.0.s8 %v66
  %v68 = vlaneseq
  %v69 = vshrl.u32 %v68, 7
  %v70 = vsub.s32 %v67, %v69
  %v71 = vrot.slane %v57, %v70
  %v72 = vcombine.low %v64, %v71
  %v73 = vcombine.low %v24, %v25
  %v74 = vcombine.low %v26, %v27
  %v76 = vunpack.c.l.s4 1983009808
  %v77 = vunpack.c.0.s8 %v76
  %v78 = vlaneseq
  %v79 = vshrl.u32 %v78, 7
  %v80 = vsub.s32 %v77, %v79
  %v81 = vrot.slane %v73, %v80
  %v83 = vunpack.c.l.s4 1983009808
  %v84 = vunpack.c.0.s8 %v83
  %v85 = vlaneseq
  %v86 = vshrl.u32 %v85, 7
  %v87 = vsub.s32 %v84, %v86
  %v88 = vrot.slane %v74, %v87
  %v89 = vcombine.low %v81, %v88
  %v90 = vcombine.low %v47, %v47
  %v92 = vunpack.c.l.s4 1983009808
  %v93 = vunpack.c.0.s8 %v92
  %v94 = vlaneseq
  %v95 = vshrl.u32 %v94, 7
  %v96 = vsub.s32 %v93, %v95
  %v97 = vrot.slane %v90, %v96
  %v98 = vcombine.low %v97, %v97
  %v99 = vcombine.high %v97, %v97
  %vm102 = vcmask 64512
  %v103 = vsel %vm102, %v72, 0
  %v105 = vsel %vm102, %v89, 0
  %107 = vmatprep.subr.mxu0 0.0
  %108 = vmatpush1.msra.mxu0 0.0
  %109 = vmatprep.subr.mxu0 0.0
  %110 = vmatpush1.msra.mxu0 0.0
  %111 = vmatprep.subr.mxu0 0.0
  %112 = vmatpush1.msra.mxu0 0.0
  %113 = vmatprep.subr.mxu0 0.0
  %114 = vmatpush1.msra.mxu0 0.0
  %115 = vmatprep.subr.mxu0 0.0
  %116 = vmatpush1.msra.mxu0 0.0
  %117 = vmatprep.subr.mxu0 0.0
  %118 = vmatpush1.msra.mxu0 0.0
  %119 = vmatprep.subr.mxu0 0.0
  %120 = vmatpush1.msra.mxu0 0.0
  %121 = vmatprep.subr.mxu0 0.0
  %122 = vmatpush1.msra.mxu0 0.0
  %123 = vmatprep.subr.mxu0 0.0
  %124 = vmatpush1.msra.mxu0 0.0
  %125 = vmatprep.subr.mxu0 0.0
  %126 = vmatpush1.msra.mxu0 0.0
  %127 = vmatprep.subr.mxu0 0.0
  %128 = vmatpush1.msra.mxu0 0.0
  %129 = vmatprep.subr.mxu0 0.0
  %130 = vmatpush1.msra.mxu0 0.0
  %131 = vmatprep.subr.mxu0 0.0
  %132 = vmatpush1.msra.mxu0 0.0
  %133 = vmatprep.subr.mxu0 0.0
  %134 = vmatpush1.msra.mxu0 0.0
  %135 = vmatprep.subr.mxu0 0.0
  %136 = vmatpush1.msra.mxu0 0.0
  %137 = vmatprep.subr.mxu0 %v29
  %138 = vmatpush1.msra.mxu0 %v28
  %139 = vmatprep.subr.mxu0 0.0
  %140 = vmatpush2.msra.mxu0 0.0
  %141 = vmatprep.subr.mxu0 0.0
  %142 = vmatpush2.msra.mxu0 0.0
  %143 = vmatprep.subr.mxu0 0.0
  %144 = vmatpush2.msra.mxu0 0.0
  %145 = vmatprep.subr.mxu0 0.0
  %146 = vmatpush2.msra.mxu0 0.0
  %147 = vmatprep.subr.mxu0 0.0
  %148 = vmatpush2.msra.mxu0 0.0
  %149 = vmatprep.subr.mxu0 0.0
  %150 = vmatpush2.msra.mxu0 0.0
  %151 = vmatprep.subr.mxu0 0.0
  %152 = vmatpush2.msra.mxu0 0.0
  %153 = vmatprep.subr.mxu0 0.0
  %154 = vmatpush2.msra.mxu0 0.0
  %155 = vmatprep.subr.mxu0 0.0
  %156 = vmatpush2.msra.mxu0 0.0
  %157 = vmatprep.subr.mxu0 0.0
  %158 = vmatpush2.msra.mxu0 0.0
  %159 = vmatprep.subr.mxu0 0.0
  %160 = vmatpush2.msra.mxu0 0.0
  %161 = vmatprep.subr.mxu0 0.0
  %162 = vmatpush2.msra.mxu0 0.0
  %163 = vmatprep.subr.mxu0 0.0
  %164 = vmatpush2.msra.mxu0 0.0
  %165 = vmatprep.subr.mxu0 0.0
  %166 = vmatpush2.msra.mxu0 0.0
  %167 = vmatprep.subr.mxu0 0.0
  %168 = vmatpush2.msra.mxu0 0.0
  %169 = vmatprep.subr.mxu0 0.0
  %170 = vmatpush2.msra.mxu0 0.0
  %171 = vmatprep.mubr.f32.mxu0 0.0
  %172 = vmatmul.mubr.f32.gmra.mxu0 %v103
  %v173 = vpop.f32.mrf.mxu0
  %v174 = vadd.f32 %v98, %v173
  %v175 = vpop.f32.mrf.mxu0
  %v176 = vadd.f32 %v99, %v175
  %177 = vmatprep.mubr.f32.mxu0 0.0
  %178 = vmatmul.mubr.f32.gmra.mxu0 %v105
  %v179 = vpop.f32.mrf.mxu0
  %v180 = vadd.f32 %v98, %v179
  %v181 = vpop.f32.mrf.mxu0
  %v182 = vadd.f32 %v99, %v181
  %183 = vdwg.mxu0
  %v188 = vcombine.low %v174, %v176
  %v189 = vcombine.high %v174, %v176
  %v191 = vunpack.c.l.s4 1983009808
  %v192 = vunpack.c.0.s8 %v191
  %v193 = vlaneseq
  %v194 = vshrl.u32 %v193, 7
  %v195 = vsub.s32 %v192, %v194
  %v196 = vrot.slane %v188, %v195
  %v198 = vunpack.c.l.s4 1983009808
  %v199 = vunpack.c.0.s8 %v198
  %v200 = vlaneseq
  %v201 = vshrl.u32 %v200, 7
  %v202 = vsub.s32 %v199, %v201
  %v203 = vrot.slane %v189, %v202
  %v204 = vcombine.high %v196, %v196
  %v205 = vcombine.high %v203, %v203
  %v206 = vcombine.low %v180, %v182
  %v207 = vcombine.high %v180, %v182
  %v209 = vunpack.c.l.s4 1983009808
  %v210 = vunpack.c.0.s8 %v209
  %v211 = vlaneseq
  %v212 = vshrl.u32 %v211, 7
  %v213 = vsub.s32 %v210, %v212
  %v214 = vrot.slane %v206, %v213
  %v216 = vunpack.c.l.s4 1983009808
  %v217 = vunpack.c.0.s8 %v216
  %v218 = vlaneseq
  %v219 = vshrl.u32 %v218, 7
  %v220 = vsub.s32 %v217, %v219
  %v221 = vrot.slane %v207, %v220
  %v222 = vcombine.high %v214, %v214
  %v223 = vcombine.high %v221, %v221
  %232 = vst [vmem:[#allocation2] sm:$0xf] %v196
  %233 = vst [vmem:[#allocation2 + $0x4] sm:$0xf] %v204
  %234 = vst [vmem:[#allocation2 + $0x8] sm:$0xf] %v203
  %235 = vst [vmem:[#allocation2 + $0xc] sm:$0xf] %v205
  %236 = vst [vmem:[#allocation2 + $0x10] sm:$0xf] %v214
  %237 = vst [vmem:[#allocation2 + $0x14] sm:$0xf] %v222
  %238 = vst [vmem:[#allocation2 + $0x18] sm:$0xf] %v221
  %239 = vst [vmem:[#allocation2 + $0x1c] sm:$0xf] %v223
  %v240 = vld [vmem:[%s2] sm:$0xff]
  %v241 = vld [vmem:[%s2 + $0x8] sm:$0xff]
  %v242 = vld [vmem:[%s2 + $0x10] sm:$0xff]
  %v243 = vld [vmem:[%s2 + $0x18] sm:$0xff]
  %v244 = vld [vmem:[%s3] sm:$0xff]
  %v245 = vld [vmem:[%s3 + $0x8] sm:$0xff]
  %v246 = vld [vmem:[%s3 + $0x10] sm:$0xff]
  %v247 = vld [vmem:[%s3 + $0x18] sm:$0xff]
  %v248 = vld [vmem:[#allocation2] sm:$0x3]
  %vm249 = vcmask 261120
  %v251 = vsel %vm249, 0.0, 0
  %253 = vmatprep.subr.mxu0 0.0
  %254 = vmatpush1.msra.mxu0 0.0
  %255 = vmatprep.subr.mxu0 0.0
  %256 = vmatpush1.msra.mxu0 0.0
  %257 = vmatprep.subr.mxu0 0.0
  %258 = vmatpush1.msra.mxu0 0.0
  %259 = vmatprep.subr.mxu0 0.0
  %260 = vmatpush1.msra.mxu0 0.0
  %261 = vmatprep.subr.mxu0 0.0
  %262 = vmatpush1.msra.mxu0 0.0
  %263 = vmatprep.subr.mxu0 0.0
  %264 = vmatpush1.msra.mxu0 0.0
  %265 = vmatprep.subr.mxu0 0.0
  %266 = vmatpush1.msra.mxu0 0.0
  %267 = vmatprep.subr.mxu0 0.0
  %268 = vmatpush1.msra.mxu0 0.0
  %269 = vmatprep.subr.mxu0 0.0
  %270 = vmatpush1.msra.mxu0 0.0
  %271 = vmatprep.subr.mxu0 0.0
  %272 = vmatpush1.msra.mxu0 0.0
  %273 = vmatprep.subr.mxu0 0.0
  %274 = vmatpush1.msra.mxu0 0.0
  %275 = vmatprep.subr.mxu0 0.0
  %276 = vmatpush1.msra.mxu0 0.0
  %277 = vmatprep.subr.mxu0 0.0
  %278 = vmatpush1.msra.mxu0 %v243
  %279 = vmatprep.subr.mxu0 0.0
  %280 = vmatpush1.msra.mxu0 %v242
  %281 = vmatprep.subr.mxu0 0.0
  %282 = vmatpush1.msra.mxu0 %v241
  %283 = vmatprep.subr.mxu0 0.0
  %284 = vmatpush1.msra.mxu0 %v240
  %285 = vmatprep.subr.mxu0 0.0
  %286 = vmatpush2.msra.mxu0 0.0
  %287 = vmatprep.subr.mxu0 0.0
  %288 = vmatpush2.msra.mxu0 0.0
  %289 = vmatprep.subr.mxu0 0.0
  %290 = vmatpush2.msra.mxu0 0.0
  %291 = vmatprep.subr.mxu0 0.0
  %292 = vmatpush2.msra.mxu0 0.0
  %293 = vmatprep.subr.mxu0 0.0
  %294 = vmatpush2.msra.mxu0 0.0
  %295 = vmatprep.subr.mxu0 0.0
  %296 = vmatpush2.msra.mxu0 0.0
  %297 = vmatprep.subr.mxu0 0.0
  %298 = vmatpush2.msra.mxu0 0.0
  %299 = vmatprep.subr.mxu0 0.0
  %300 = vmatpush2.msra.mxu0 0.0
  %301 = vmatprep.subr.mxu0 0.0
  %302 = vmatpush2.msra.mxu0 0.0
  %303 = vmatprep.subr.mxu0 0.0
  %304 = vmatpush2.msra.mxu0 0.0
  %305 = vmatprep.subr.mxu0 0.0
  %306 = vmatpush2.msra.mxu0 0.0
  %307 = vmatprep.subr.mxu0 0.0
  %308 = vmatpush2.msra.mxu0 0.0
  %309 = vmatprep.subr.mxu0 0.0
  %310 = vmatpush2.msra.mxu0 0.0
  %311 = vmatprep.subr.mxu0 0.0
  %312 = vmatpush2.msra.mxu0 0.0
  %313 = vmatprep.subr.mxu0 0.0
  %314 = vmatpush2.msra.mxu0 0.0
  %315 = vmatprep.subr.mxu0 0.0
  %316 = vmatpush2.msra.mxu0 0.0
  %317 = vmatprep.mubr.f32.mxu0 0.0
  %318 = vmatmul.mubr.f32.gmra.mxu0 %v251
  %v319 = vpop.f32.mrf.mxu0
  %v320 = vadd.f32 0.0, %v319
  %v321 = vpop.f32.mrf.mxu0
  %322 = vdwg.mxu0
  %v323 = vadd.f32 %v248, %v320
  %v324 = vxor.u32 %v323, 2147483648
  %v325 = vmul.f32 %v324, 1.442695
  %v326 = vpow.pop %v325
  %v327 = vadd.f32 %v326, 1.0
  %v328 = vrcp.pop %v327
  %v329 = vmul.f32 1.0, %v328
  %v330 = vtanh.pop %v323
  %v331 = vmul.f32 %v329, 0.0
  %333 = vrot.lane.b32.xlu0 %v330, 64
  %v334 = vpop.permute.xlu0 %333
  %v336 = vmul.f32 %v329, %v334
  %338 = vrot.lane.b32.xlu0 %v336, 32
  %v339 = vpop.permute.xlu0 %338
  %v341 = vadd.f32 %v331, %v339
  %v342 = vtanh.pop %v341
  %344 = vrot.lane.b32.xlu0 %v342, 64
  %v345 = vpop.permute.xlu0 %344
  %v347 = vmul.f32 %v329, %v345
  %s348 = scalar_lea.vmem [#allocation2], 28
  %v349 = vld [vmem:[%s348 + $0x2] sm:$0x3]
  %350 = vmatprep.subr.mxu0 0.0
  %351 = vmatpush1.msra.mxu0 0.0
  %352 = vmatprep.subr.mxu0 0.0
  %353 = vmatpush1.msra.mxu0 0.0
  %354 = vmatprep.subr.mxu0 0.0
  %355 = vmatpush1.msra.mxu0 0.0
  %356 = vmatprep.subr.mxu0 0.0
  %357 = vmatpush1.msra.mxu0 0.0
  %358 = vmatprep.subr.mxu0 0.0
  %359 = vmatpush1.msra.mxu0 0.0
  %360 = vmatprep.subr.mxu0 0.0
  %361 = vmatpush1.msra.mxu0 0.0
  %362 = vmatprep.subr.mxu0 0.0
  %363 = vmatpush1.msra.mxu0 0.0
  %364 = vmatprep.subr.mxu0 0.0
  %365 = vmatpush1.msra.mxu0 0.0
  %366 = vmatprep.subr.mxu0 0.0
  %367 = vmatpush1.msra.mxu0 0.0
  %368 = vmatprep.subr.mxu0 0.0
  %369 = vmatpush1.msra.mxu0 0.0
  %370 = vmatprep.subr.mxu0 0.0
  %371 = vmatpush1.msra.mxu0 0.0
  %372 = vmatprep.subr.mxu0 0.0
  %373 = vmatpush1.msra.mxu0 0.0
  %374 = vmatprep.subr.mxu0 0.0
  %375 = vmatpush1.msra.mxu0 %v247
  %376 = vmatprep.subr.mxu0 0.0
  %377 = vmatpush1.msra.mxu0 %v246
  %378 = vmatprep.subr.mxu0 0.0
  %379 = vmatpush1.msra.mxu0 %v245
  %380 = vmatprep.subr.mxu0 0.0
  %381 = vmatpush1.msra.mxu0 %v244
  %382 = vmatprep.subr.mxu0 0.0
  %383 = vmatpush2.msra.mxu0 0.0
  %384 = vmatprep.subr.mxu0 0.0
  %385 = vmatpush2.msra.mxu0 0.0
  %386 = vmatprep.subr.mxu0 0.0
  %387 = vmatpush2.msra.mxu0 0.0
  %388 = vmatprep.subr.mxu0 0.0
  %389 = vmatpush2.msra.mxu0 0.0
  %390 = vmatprep.subr.mxu0 0.0
  %391 = vmatpush2.msra.mxu0 0.0
  %392 = vmatprep.subr.mxu0 0.0
  %393 = vmatpush2.msra.mxu0 0.0
  %394 = vmatprep.subr.mxu0 0.0
  %395 = vmatpush2.msra.mxu0 0.0
  %396 = vmatprep.subr.mxu0 0.0
  %397 = vmatpush2.msra.mxu0 0.0
  %398 = vmatprep.subr.mxu0 0.0
  %399 = vmatpush2.msra.mxu0 0.0
  %400 = vmatprep.subr.mxu0 0.0
  %401 = vmatpush2.msra.mxu0 0.0
  %402 = vmatprep.subr.mxu0 0.0
  %403 = vmatpush2.msra.mxu0 0.0
  %404 = vmatprep.subr.mxu0 0.0
  %405 = vmatpush2.msra.mxu0 0.0
  %406 = vmatprep.subr.mxu0 0.0
  %407 = vmatpush2.msra.mxu0 0.0
  %408 = vmatprep.subr.mxu0 0.0
  %409 = vmatpush2.msra.mxu0 0.0
  %410 = vmatprep.subr.mxu0 0.0
  %411 = vmatpush2.msra.mxu0 0.0
  %412 = vmatprep.subr.mxu0 0.0
  %413 = vmatpush2.msra.mxu0 0.0
  %414 = vmatprep.mubr.f32.mxu0 0.0
  %415 = vmatmul.mubr.f32.gmra.mxu0 %v251
  %v416 = vpop.f32.mrf.mxu0
  %v417 = vadd.f32 0.0, %v416
  %v418 = vpop.f32.mrf.mxu0
  %419 = vdwg.mxu0
  %v420 = vadd.f32 %v349, %v417
  %v421 = vxor.u32 %v420, 2147483648
  %v422 = vmul.f32 %v421, 1.442695
  %v423 = vpow.pop %v422
  %v424 = vadd.f32 %v423, 1.0
  %v425 = vrcp.pop %v424
  %v426 = vmul.f32 1.0, %v425
  %v427 = vtanh.pop %v420
  %v428 = vmul.f32 %v426, 0.0
  %430 = vrot.lane.b32.xlu0 %v427, 64
  %v431 = vpop.permute.xlu0 %430
  %v433 = vmul.f32 %v426, %v431
  %435 = vrot.lane.b32.xlu0 %v433, 32
  %v436 = vpop.permute.xlu0 %435
  %v438 = vadd.f32 %v428, %v436
  %v439 = vtanh.pop %v438
  %441 = vrot.lane.b32.xlu0 %v439, 64
  %v442 = vpop.permute.xlu0 %441
  %v444 = vmul.f32 %v426, %v442
  %v447 = vunpack.c.l.s4 1983009808
  %v448 = vunpack.c.0.s8 %v447
  %v449 = vlaneseq
  %v450 = vshrl.u32 %v449, 7
  %v451 = vsub.s32 %v448, %v450
  %v452 = vrot.slane %v347, %v451
  %453 = vrot.lane.b32.xlu0 %v452, 32
  %v454 = vpop.permute.xlu0 %453
  %vm456 = vcmask 254976
  %457 = vst.msk [vmem:[%s5] sm:$0x3] %vm456, %v454
  %v460 = vunpack.c.l.s4 1983009808
  %v461 = vunpack.c.0.s8 %v460
  %v462 = vlaneseq
  %v463 = vshrl.u32 %v462, 7
  %v464 = vsub.s32 %v461, %v463
  %v465 = vrot.slane %v444, %v464
  %466 = vrot.lane.b32.xlu0 %v465, 64
  %v467 = vpop.permute.xlu0 %466
  %s469 = scalar_lea.vmem %s5, 14
  %vm470 = vcmask 517376
  %471 = vst.msk [vmem:[%s469] sm:$0x3] %vm470, %v467
  %s472 = scalar_lea.vmem [#allocation2], 4
  %v473 = vld [vmem:[%s472] sm:$0x3]
  %v474 = vsel %vm249, %v454, 0
  %476 = vmatprep.subr.mxu0 0.0
  %477 = vmatpush1.msra.mxu0 0.0
  %478 = vmatprep.subr.mxu0 0.0
  %479 = vmatpush1.msra.mxu0 0.0
  %480 = vmatprep.subr.mxu0 0.0
  %481 = vmatpush1.msra.mxu0 0.0
  %482 = vmatprep.subr.mxu0 0.0
  %483 = vmatpush1.msra.mxu0 0.0
  %484 = vmatprep.subr.mxu0 0.0
  %485 = vmatpush1.msra.mxu0 0.0
  %486 = vmatprep.subr.mxu0 0.0
  %487 = vmatpush1.msra.mxu0 0.0
  %488 = vmatprep.subr.mxu0 0.0
  %489 = vmatpush1.msra.mxu0 0.0
  %490 = vmatprep.subr.mxu0 0.0
  %491 = vmatpush1.msra.mxu0 0.0
  %492 = vmatprep.subr.mxu0 0.0
  %493 = vmatpush1.msra.mxu0 0.0
  %494 = vmatprep.subr.mxu0 0.0
  %495 = vmatpush1.msra.mxu0 0.0
  %496 = vmatprep.subr.mxu0 0.0
  %497 = vmatpush1.msra.mxu0 0.0
  %498 = vmatprep.subr.mxu0 0.0
  %499 = vmatpush1.msra.mxu0 0.0
  %500 = vmatprep.subr.mxu0 0.0
  %501 = vmatpush1.msra.mxu0 %v243
  %502 = vmatprep.subr.mxu0 0.0
  %503 = vmatpush1.msra.mxu0 %v242
  %504 = vmatprep.subr.mxu0 0.0
  %505 = vmatpush1.msra.mxu0 %v241
  %506 = vmatprep.subr.mxu0 0.0
  %507 = vmatpush1.msra.mxu0 %v240
  %508 = vmatprep.subr.mxu0 0.0
  %509 = vmatpush2.msra.mxu0 0.0
  %510 = vmatprep.subr.mxu0 0.0
  %511 = vmatpush2.msra.mxu0 0.0
  %512 = vmatprep.subr.mxu0 0.0
  %513 = vmatpush2.msra.mxu0 0.0
  %514 = vmatprep.subr.mxu0 0.0
  %515 = vmatpush2.msra.mxu0 0.0
  %516 = vmatprep.subr.mxu0 0.0
  %517 = vmatpush2.msra.mxu0 0.0
  %518 = vmatprep.subr.mxu0 0.0
  %519 = vmatpush2.msra.mxu0 0.0
  %520 = vmatprep.subr.mxu0 0.0
  %521 = vmatpush2.msra.mxu0 0.0
  %522 = vmatprep.subr.mxu0 0.0
  %523 = vmatpush2.msra.mxu0 0.0
  %524 = vmatprep.subr.mxu0 0.0
  %525 = vmatpush2.msra.mxu0 0.0
  %526 = vmatprep.subr.mxu0 0.0
  %527 = vmatpush2.msra.mxu0 0.0
  %528 = vmatprep.subr.mxu0 0.0
  %529 = vmatpush2.msra.mxu0 0.0
  %530 = vmatprep.subr.mxu0 0.0
  %531 = vmatpush2.msra.mxu0 0.0
  %532 = vmatprep.subr.mxu0 0.0
  %533 = vmatpush2.msra.mxu0 0.0
  %534 = vmatprep.subr.mxu0 0.0
  %535 = vmatpush2.msra.mxu0 0.0
  %536 = vmatprep.subr.mxu0 0.0
  %537 = vmatpush2.msra.mxu0 0.0
  %538 = vmatprep.subr.mxu0 0.0
  %539 = vmatpush2.msra.mxu0 0.0
  %540 = vmatprep.mubr.f32.mxu0 0.0
  %541 = vmatmul.mubr.f32.gmra.mxu0 %v474
  %v542 = vpop.f32.mrf.mxu0
  %v543 = vadd.f32 0.0, %v542
  %v544 = vpop.f32.mrf.mxu0
  %545 = vdwg.mxu0
  %v546 = vadd.f32 %v473, %v543
  %v547 = vxor.u32 %v546, 2147483648
  %v548 = vmul.f32 %v547, 1.442695
  %v549 = vpow.pop %v548
  %v550 = vadd.f32 %v549, 1.0
  %v551 = vrcp.pop %v550
  %v552 = vmul.f32 1.0, %v551
  %v553 = vtanh.pop %v546
  %v554 = vmul.f32 %v552, %v341
  %556 = vrot.lane.b32.xlu0 %v553, 64
  %v557 = vpop.permute.xlu0 %556
  %v559 = vmul.f32 %v552, %v557
  %561 = vrot.lane.b32.xlu0 %v559, 32
  %v562 = vpop.permute.xlu0 %561
  %v564 = vadd.f32 %v554, %v562
  %v565 = vtanh.pop %v564
  %567 = vrot.lane.b32.xlu0 %v565, 64
  %v568 = vpop.permute.xlu0 %567
  %v570 = vmul.f32 %v552, %v568
  %s571 = scalar_lea.vmem [#allocation2], 24
  %v572 = vld [vmem:[%s571 + $0x2] sm:$0x3]
  %573 = vrot.lane.b32.xlu0 %v465, 32
  %v574 = vpop.permute.xlu0 %573
  %v575 = vsel %vm249, %v574, 0
  %577 = vmatprep.subr.mxu0 0.0
  %578 = vmatpush1.msra.mxu0 0.0
  %579 = vmatprep.subr.mxu0 0.0
  %580 = vmatpush1.msra.mxu0 0.0
  %581 = vmatprep.subr.mxu0 0.0
  %582 = vmatpush1.msra.mxu0 0.0
  %583 = vmatprep.subr.mxu0 0.0
  %584 = vmatpush1.msra.mxu0 0.0
  %585 = vmatprep.subr.mxu0 0.0
  %586 = vmatpush1.msra.mxu0 0.0
  %587 = vmatprep.subr.mxu0 0.0
  %588 = vmatpush1.msra.mxu0 0.0
  %589 = vmatprep.subr.mxu0 0.0
  %590 = vmatpush1.msra.mxu0 0.0
  %591 = vmatprep.subr.mxu0 0.0
  %592 = vmatpush1.msra.mxu0 0.0
  %593 = vmatprep.subr.mxu0 0.0
  %594 = vmatpush1.msra.mxu0 0.0
  %595 = vmatprep.subr.mxu0 0.0
  %596 = vmatpush1.msra.mxu0 0.0
  %597 = vmatprep.subr.mxu0 0.0
  %598 = vmatpush1.msra.mxu0 0.0
  %599 = vmatprep.subr.mxu0 0.0
  %600 = vmatpush1.msra.mxu0 0.0
  %601 = vmatprep.subr.mxu0 0.0
  %602 = vmatpush1.msra.mxu0 %v247
  %603 = vmatprep.subr.mxu0 0.0
  %604 = vmatpush1.msra.mxu0 %v246
  %605 = vmatprep.subr.mxu0 0.0
  %606 = vmatpush1.msra.mxu0 %v245
  %607 = vmatprep.subr.mxu0 0.0
  %608 = vmatpush1.msra.mxu0 %v244
  %609 = vmatprep.subr.mxu0 0.0
  %610 = vmatpush2.msra.mxu0 0.0
  %611 = vmatprep.subr.mxu0 0.0
  %612 = vmatpush2.msra.mxu0 0.0
  %613 = vmatprep.subr.mxu0 0.0
  %614 = vmatpush2.msra.mxu0 0.0
  %615 = vmatprep.subr.mxu0 0.0
  %616 = vmatpush2.msra.mxu0 0.0
  %617 = vmatprep.subr.mxu0 0.0
  %618 = vmatpush2.msra.mxu0 0.0
  %619 = vmatprep.subr.mxu0 0.0
  %620 = vmatpush2.msra.mxu0 0.0
  %621 = vmatprep.subr.mxu0 0.0
  %622 = vmatpush2.msra.mxu0 0.0
  %623 = vmatprep.subr.mxu0 0.0
  %624 = vmatpush2.msra.mxu0 0.0
  %625 = vmatprep.subr.mxu0 0.0
  %626 = vmatpush2.msra.mxu0 0.0
  %627 = vmatprep.subr.mxu0 0.0
  %628 = vmatpush2.msra.mxu0 0.0
  %629 = vmatprep.subr.mxu0 0.0
  %630 = vmatpush2.msra.mxu0 0.0
  %631 = vmatprep.subr.mxu0 0.0
  %632 = vmatpush2.msra.mxu0 0.0
  %633 = vmatprep.subr.mxu0 0.0
  %634 = vmatpush2.msra.mxu0 0.0
  %635 = vmatprep.subr.mxu0 0.0
  %636 = vmatpush2.msra.mxu0 0.0
  %637 = vmatprep.subr.mxu0 0.0
  %638 = vmatpush2.msra.mxu0 0.0
  %639 = vmatprep.subr.mxu0 0.0
  %640 = vmatpush2.msra.mxu0 0.0
  %641 = vmatprep.mubr.f32.mxu0 0.0
  %642 = vmatmul.mubr.f32.gmra.mxu0 %v575
  %v643 = vpop.f32.mrf.mxu0
  %v644 = vadd.f32 0.0, %v643
  %v645 = vpop.f32.mrf.mxu0
  %646 = vdwg.mxu0
  %v647 = vadd.f32 %v572, %v644
  %v648 = vxor.u32 %v647, 2147483648
  %v649 = vmul.f32 %v648, 1.442695
  %v650 = vpow.pop %v649
  %v651 = vadd.f32 %v650, 1.0
  %v652 = vrcp.pop %v651
  %v653 = vmul.f32 1.0, %v652
  %v654 = vtanh.pop %v647
  %v655 = vmul.f32 %v653, %v438
  %657 = vrot.lane.b32.xlu0 %v654, 64
  %v658 = vpop.permute.xlu0 %657
  %v660 = vmul.f32 %v653, %v658
  %662 = vrot.lane.b32.xlu0 %v660, 32
  %v663 = vpop.permute.xlu0 %662
  %v665 = vadd.f32 %v655, %v663
  %v666 = vtanh.pop %v665
  %668 = vrot.lane.b32.xlu0 %v666, 64
  %v669 = vpop.permute.xlu0 %668
  %v671 = vmul.f32 %v653, %v669
  %v674 = vunpack.c.l.s4 1983009808
  %v675 = vunpack.c.0.s8 %v674
  %v676 = vlaneseq
  %v677 = vshrl.u32 %v676, 7
  %v678 = vsub.s32 %v675, %v677
  %v679 = vrot.slane %v570, %v678
  %680 = vrot.lane.b32.xlu0 %v679, 32
  %v681 = vpop.permute.xlu0 %680
  %s683 = scalar_lea.vmem %s5, 2
  %684 = vst.msk [vmem:[%s683] sm:$0x3] %vm456, %v681
  %v687 = vunpack.c.l.s4 1983009808
  %v688 = vunpack.c.0.s8 %v687
  %v689 = vlaneseq
  %v690 = vshrl.u32 %v689, 7
  %v691 = vsub.s32 %v688, %v690
  %v692 = vrot.slane %v671, %v691
  %693 = vrot.lane.b32.xlu0 %v692, 64
  %v694 = vpop.permute.xlu0 %693
  %s696 = scalar_lea.vmem %s5, 12
  %697 = vst.msk [vmem:[%s696] sm:$0x3] %vm470, %v694
  %s698 = scalar_lea.vmem [#allocation2], 8
  %v699 = vld [vmem:[%s698] sm:$0x3]
  %v700 = vsel %vm249, %v681, 0
  %702 = vmatprep.subr.mxu0 0.0
  %703 = vmatpush1.msra.mxu0 0.0
  %704 = vmatprep.subr.mxu0 0.0
  %705 = vmatpush1.msra.mxu0 0.0
  %706 = vmatprep.subr.mxu0 0.0
  %707 = vmatpush1.msra.mxu0 0.0
  %708 = vmatprep.subr.mxu0 0.0
  %709 = vmatpush1.msra.mxu0 0.0
  %710 = vmatprep.subr.mxu0 0.0
  %711 = vmatpush1.msra.mxu0 0.0
  %712 = vmatprep.subr.mxu0 0.0
  %713 = vmatpush1.msra.mxu0 0.0
  %714 = vmatprep.subr.mxu0 0.0
  %715 = vmatpush1.msra.mxu0 0.0
  %716 = vmatprep.subr.mxu0 0.0
  %717 = vmatpush1.msra.mxu0 0.0
  %718 = vmatprep.subr.mxu0 0.0
  %719 = vmatpush1.msra.mxu0 0.0
  %720 = vmatprep.subr.mxu0 0.0
  %721 = vmatpush1.msra.mxu0 0.0
  %722 = vmatprep.subr.mxu0 0.0
  %723 = vmatpush1.msra.mxu0 0.0
  %724 = vmatprep.subr.mxu0 0.0
  %725 = vmatpush1.msra.mxu0 0.0
  %726 = vmatprep.subr.mxu0 0.0
  %727 = vmatpush1.msra.mxu0 %v243
  %728 = vmatprep.subr.mxu0 0.0
  %729 = vmatpush1.msra.mxu0 %v242
  %730 = vmatprep.subr.mxu0 0.0
  %731 = vmatpush1.msra.mxu0 %v241
  %732 = vmatprep.subr.mxu0 0.0
  %733 = vmatpush1.msra.mxu0 %v240
  %734 = vmatprep.subr.mxu0 0.0
  %735 = vmatpush2.msra.mxu0 0.0
  %736 = vmatprep.subr.mxu0 0.0
  %737 = vmatpush2.msra.mxu0 0.0
  %738 = vmatprep.subr.mxu0 0.0
  %739 = vmatpush2.msra.mxu0 0.0
  %740 = vmatprep.subr.mxu0 0.0
  %741 = vmatpush2.msra.mxu0 0.0
  %742 = vmatprep.subr.mxu0 0.0
  %743 = vmatpush2.msra.mxu0 0.0
  %744 = vmatprep.subr.mxu0 0.0
  %745 = vmatpush2.msra.mxu0 0.0
  %746 = vmatprep.subr.mxu0 0.0
  %747 = vmatpush2.msra.mxu0 0.0
  %748 = vmatprep.subr.mxu0 0.0
  %749 = vmatpush2.msra.mxu0 0.0
  %750 = vmatprep.subr.mxu0 0.0
  %751 = vmatpush2.msra.mxu0 0.0
  %752 = vmatprep.subr.mxu0 0.0
  %753 = vmatpush2.msra.mxu0 0.0
  %754 = vmatprep.subr.mxu0 0.0
  %755 = vmatpush2.msra.mxu0 0.0
  %756 = vmatprep.subr.mxu0 0.0
  %757 = vmatpush2.msra.mxu0 0.0
  %758 = vmatprep.subr.mxu0 0.0
  %759 = vmatpush2.msra.mxu0 0.0
  %760 = vmatprep.subr.mxu0 0.0
  %761 = vmatpush2.msra.mxu0 0.0
  %762 = vmatprep.subr.mxu0 0.0
  %763 = vmatpush2.msra.mxu0 0.0
  %764 = vmatprep.subr.mxu0 0.0
  %765 = vmatpush2.msra.mxu0 0.0
  %766 = vmatprep.mubr.f32.mxu0 0.0
  %767 = vmatmul.mubr.f32.gmra.mxu0 %v700
  %v768 = vpop.f32.mrf.mxu0
  %v769 = vadd.f32 0.0, %v768
  %v770 = vpop.f32.mrf.mxu0
  %771 = vdwg.mxu0
  %v772 = vadd.f32 %v699, %v769
  %v773 = vxor.u32 %v772, 2147483648
  %v774 = vmul.f32 %v773, 1.442695
  %v775 = vpow.pop %v774
  %v776 = vadd.f32 %v775, 1.0
  %v777 = vrcp.pop %v776
  %v778 = vmul.f32 1.0, %v777
  %v779 = vtanh.pop %v772
  %v780 = vmul.f32 %v778, %v564
  %782 = vrot.lane.b32.xlu0 %v779, 64
  %v783 = vpop.permute.xlu0 %782
  %v785 = vmul.f32 %v778, %v783
  %787 = vrot.lane.b32.xlu0 %v785, 32
  %v788 = vpop.permute.xlu0 %787
  %v790 = vadd.f32 %v780, %v788
  %v791 = vtanh.pop %v790
  %793 = vrot.lane.b32.xlu0 %v791, 64
  %v794 = vpop.permute.xlu0 %793
  %v796 = vmul.f32 %v778, %v794
  %s797 = scalar_lea.vmem [#allocation2], 20
  %v798 = vld [vmem:[%s797 + $0x2] sm:$0x3]
  %799 = vrot.lane.b32.xlu0 %v692, 32
  %v800 = vpop.permute.xlu0 %799
  %v801 = vsel %vm249, %v800, 0
  %803 = vmatprep.subr.mxu0 0.0
  %804 = vmatpush1.msra.mxu0 0.0
  %805 = vmatprep.subr.mxu0 0.0
  %806 = vmatpush1.msra.mxu0 0.0
  %807 = vmatprep.subr.mxu0 0.0
  %808 = vmatpush1.msra.mxu0 0.0
  %809 = vmatprep.subr.mxu0 0.0
  %810 = vmatpush1.msra.mxu0 0.0
  %811 = vmatprep.subr.mxu0 0.0
  %812 = vmatpush1.msra.mxu0 0.0
  %813 = vmatprep.subr.mxu0 0.0
  %814 = vmatpush1.msra.mxu0 0.0
  %815 = vmatprep.subr.mxu0 0.0
  %816 = vmatpush1.msra.mxu0 0.0
  %817 = vmatprep.subr.mxu0 0.0
  %818 = vmatpush1.msra.mxu0 0.0
  %819 = vmatprep.subr.mxu0 0.0
  %820 = vmatpush1.msra.mxu0 0.0
  %821 = vmatprep.subr.mxu0 0.0
  %822 = vmatpush1.msra.mxu0 0.0
  %823 = vmatprep.subr.mxu0 0.0
  %824 = vmatpush1.msra.mxu0 0.0
  %825 = vmatprep.subr.mxu0 0.0
  %826 = vmatpush1.msra.mxu0 0.0
  %827 = vmatprep.subr.mxu0 0.0
  %828 = vmatpush1.msra.mxu0 %v247
  %829 = vmatprep.subr.mxu0 0.0
  %830 = vmatpush1.msra.mxu0 %v246
  %831 = vmatprep.subr.mxu0 0.0
  %832 = vmatpush1.msra.mxu0 %v245
  %833 = vmatprep.subr.mxu0 0.0
  %834 = vmatpush1.msra.mxu0 %v244
  %835 = vmatprep.subr.mxu0 0.0
  %836 = vmatpush2.msra.mxu0 0.0
  %837 = vmatprep.subr.mxu0 0.0
  %838 = vmatpush2.msra.mxu0 0.0
  %839 = vmatprep.subr.mxu0 0.0
  %840 = vmatpush2.msra.mxu0 0.0
  %841 = vmatprep.subr.mxu0 0.0
  %842 = vmatpush2.msra.mxu0 0.0
  %843 = vmatprep.subr.mxu0 0.0
  %844 = vmatpush2.msra.mxu0 0.0
  %845 = vmatprep.subr.mxu0 0.0
  %846 = vmatpush2.msra.mxu0 0.0
  %847 = vmatprep.subr.mxu0 0.0
  %848 = vmatpush2.msra.mxu0 0.0
  %849 = vmatprep.subr.mxu0 0.0
  %850 = vmatpush2.msra.mxu0 0.0
  %851 = vmatprep.subr.mxu0 0.0
  %852 = vmatpush2.msra.mxu0 0.0
  %853 = vmatprep.subr.mxu0 0.0
  %854 = vmatpush2.msra.mxu0 0.0
  %855 = vmatprep.subr.mxu0 0.0
  %856 = vmatpush2.msra.mxu0 0.0
  %857 = vmatprep.subr.mxu0 0.0
  %858 = vmatpush2.msra.mxu0 0.0
  %859 = vmatprep.subr.mxu0 0.0
  %860 = vmatpush2.msra.mxu0 0.0
  %861 = vmatprep.subr.mxu0 0.0
  %862 = vmatpush2.msra.mxu0 0.0
  %863 = vmatprep.subr.mxu0 0.0
  %864 = vmatpush2.msra.mxu0 0.0
  %865 = vmatprep.subr.mxu0 0.0
  %866 = vmatpush2.msra.mxu0 0.0
  %867 = vmatprep.mubr.f32.mxu0 0.0
  %868 = vmatmul.mubr.f32.gmra.mxu0 %v801
  %v869 = vpop.f32.mrf.mxu0
  %v870 = vadd.f32 0.0, %v869
  %v871 = vpop.f32.mrf.mxu0
  %872 = vdwg.mxu0
  %v873 = vadd.f32 %v798, %v870
  %v874 = vxor.u32 %v873, 2147483648
  %v875 = vmul.f32 %v874, 1.442695
  %v876 = vpow.pop %v875
  %v877 = vadd.f32 %v876, 1.0
  %v878 = vrcp.pop %v877
  %v879 = vmul.f32 1.0, %v878
  %v880 = vtanh.pop %v873
  %v881 = vmul.f32 %v879, %v665
  %883 = vrot.lane.b32.xlu0 %v880, 64
  %v884 = vpop.permute.xlu0 %883
  %v886 = vmul.f32 %v879, %v884
  %888 = vrot.lane.b32.xlu0 %v886, 32
  %v889 = vpop.permute.xlu0 %888
  %v891 = vadd.f32 %v881, %v889
  %v892 = vtanh.pop %v891
  %894 = vrot.lane.b32.xlu0 %v892, 64
  %v895 = vpop.permute.xlu0 %894
  %v897 = vmul.f32 %v879, %v895
  %v900 = vunpack.c.l.s4 1983009808
  %v901 = vunpack.c.0.s8 %v900
  %v902 = vlaneseq
  %v903 = vshrl.u32 %v902, 7
  %v904 = vsub.s32 %v901, %v903
  %v905 = vrot.slane %v796, %v904
  %906 = vrot.lane.b32.xlu0 %v905, 32
  %v907 = vpop.permute.xlu0 %906
  %s909 = scalar_lea.vmem %s5, 4
  %910 = vst.msk [vmem:[%s909] sm:$0x3] %vm456, %v907
  %v913 = vunpack.c.l.s4 1983009808
  %v914 = vunpack.c.0.s8 %v913
  %v915 = vlaneseq
  %v916 = vshrl.u32 %v915, 7
  %v917 = vsub.s32 %v914, %v916
  %v918 = vrot.slane %v897, %v917
  %919 = vrot.lane.b32.xlu0 %v918, 64
  %v920 = vpop.permute.xlu0 %919
  %s922 = scalar_lea.vmem %s5, 10
  %923 = vst.msk [vmem:[%s922] sm:$0x3] %vm470, %v920
  %s924 = scalar_lea.vmem [#allocation2], 12
  %v925 = vld [vmem:[%s924] sm:$0x3]
  %v926 = vsel %vm249, %v907, 0
  %928 = vmatprep.subr.mxu0 0.0
  %929 = vmatpush1.msra.mxu0 0.0
  %930 = vmatprep.subr.mxu0 0.0
  %931 = vmatpush1.msra.mxu0 0.0
  %932 = vmatprep.subr.mxu0 0.0
  %933 = vmatpush1.msra.mxu0 0.0
  %934 = vmatprep.subr.mxu0 0.0
  %935 = vmatpush1.msra.mxu0 0.0
  %936 = vmatprep.subr.mxu0 0.0
  %937 = vmatpush1.msra.mxu0 0.0
  %938 = vmatprep.subr.mxu0 0.0
  %939 = vmatpush1.msra.mxu0 0.0
  %940 = vmatprep.subr.mxu0 0.0
  %941 = vmatpush1.msra.mxu0 0.0
  %942 = vmatprep.subr.mxu0 0.0
  %943 = vmatpush1.msra.mxu0 0.0
  %944 = vmatprep.subr.mxu0 0.0
  %945 = vmatpush1.msra.mxu0 0.0
  %946 = vmatprep.subr.mxu0 0.0
  %947 = vmatpush1.msra.mxu0 0.0
  %948 = vmatprep.subr.mxu0 0.0
  %949 = vmatpush1.msra.mxu0 0.0
  %950 = vmatprep.subr.mxu0 0.0
  %951 = vmatpush1.msra.mxu0 0.0
  %952 = vmatprep.subr.mxu0 0.0
  %953 = vmatpush1.msra.mxu0 %v243
  %954 = vmatprep.subr.mxu0 0.0
  %955 = vmatpush1.msra.mxu0 %v242
  %956 = vmatprep.subr.mxu0 0.0
  %957 = vmatpush1.msra.mxu0 %v241
  %958 = vmatprep.subr.mxu0 0.0
  %959 = vmatpush1.msra.mxu0 %v240
  %960 = vmatprep.subr.mxu0 0.0
  %961 = vmatpush2.msra.mxu0 0.0
  %962 = vmatprep.subr.mxu0 0.0
  %963 = vmatpush2.msra.mxu0 0.0
  %964 = vmatprep.subr.mxu0 0.0
  %965 = vmatpush2.msra.mxu0 0.0
  %966 = vmatprep.subr.mxu0 0.0
  %967 = vmatpush2.msra.mxu0 0.0
  %968 = vmatprep.subr.mxu0 0.0
  %969 = vmatpush2.msra.mxu0 0.0
  %970 = vmatprep.subr.mxu0 0.0
  %971 = vmatpush2.msra.mxu0 0.0
  %972 = vmatprep.subr.mxu0 0.0
  %973 = vmatpush2.msra.mxu0 0.0
  %974 = vmatprep.subr.mxu0 0.0
  %975 = vmatpush2.msra.mxu0 0.0
  %976 = vmatprep.subr.mxu0 0.0
  %977 = vmatpush2.msra.mxu0 0.0
  %978 = vmatprep.subr.mxu0 0.0
  %979 = vmatpush2.msra.mxu0 0.0
  %980 = vmatprep.subr.mxu0 0.0
  %981 = vmatpush2.msra.mxu0 0.0
  %982 = vmatprep.subr.mxu0 0.0
  %983 = vmatpush2.msra.mxu0 0.0
  %984 = vmatprep.subr.mxu0 0.0
  %985 = vmatpush2.msra.mxu0 0.0
  %986 = vmatprep.subr.mxu0 0.0
  %987 = vmatpush2.msra.mxu0 0.0
  %988 = vmatprep.subr.mxu0 0.0
  %989 = vmatpush2.msra.mxu0 0.0
  %990 = vmatprep.subr.mxu0 0.0
  %991 = vmatpush2.msra.mxu0 0.0
  %992 = vmatprep.mubr.f32.mxu0 0.0
  %993 = vmatmul.mubr.f32.gmra.mxu0 %v926
  %v994 = vpop.f32.mrf.mxu0
  %v995 = vadd.f32 0.0, %v994
  %v996 = vpop.f32.mrf.mxu0
  %997 = vdwg.mxu0
  %v998 = vadd.f32 %v925, %v995
  %v999 = vxor.u32 %v998, 2147483648
  %v1000 = vmul.f32 %v999, 1.442695
  %v1001 = vpow.pop %v1000
  %v1002 = vadd.f32 %v1001, 1.0
  %v1003 = vrcp.pop %v1002
  %v1004 = vmul.f32 1.0, %v1003
  %v1005 = vtanh.pop %v998
  %v1006 = vmul.f32 %v1004, %v790
  %1008 = vrot.lane.b32.xlu0 %v1005, 64
  %v1009 = vpop.permute.xlu0 %1008
  %v1011 = vmul.f32 %v1004, %v1009
  %1013 = vrot.lane.b32.xlu0 %v1011, 32
  %v1014 = vpop.permute.xlu0 %1013
  %v1016 = vadd.f32 %v1006, %v1014
  %v1017 = vtanh.pop %v1016
  %1019 = vrot.lane.b32.xlu0 %v1017, 64
  %v1020 = vpop.permute.xlu0 %1019
  %v1022 = vmul.f32 %v1004, %v1020
  %s1023 = scalar_lea.vmem [#allocation2], 16
  %v1024 = vld [vmem:[%s1023 + $0x2] sm:$0x3]
  %1025 = vrot.lane.b32.xlu0 %v918, 32
  %v1026 = vpop.permute.xlu0 %1025
  %v1027 = vsel %vm249, %v1026, 0
  %1029 = vmatprep.subr.mxu0 0.0
  %1030 = vmatpush1.msra.mxu0 0.0
  %1031 = vmatprep.subr.mxu0 0.0
  %1032 = vmatpush1.msra.mxu0 0.0
  %1033 = vmatprep.subr.mxu0 0.0
  %1034 = vmatpush1.msra.mxu0 0.0
  %1035 = vmatprep.subr.mxu0 0.0
  %1036 = vmatpush1.msra.mxu0 0.0
  %1037 = vmatprep.subr.mxu0 0.0
  %1038 = vmatpush1.msra.mxu0 0.0
  %1039 = vmatprep.subr.mxu0 0.0
  %1040 = vmatpush1.msra.mxu0 0.0
  %1041 = vmatprep.subr.mxu0 0.0
  %1042 = vmatpush1.msra.mxu0 0.0
  %1043 = vmatprep.subr.mxu0 0.0
  %1044 = vmatpush1.msra.mxu0 0.0
  %1045 = vmatprep.subr.mxu0 0.0
  %1046 = vmatpush1.msra.mxu0 0.0
  %1047 = vmatprep.subr.mxu0 0.0
  %1048 = vmatpush1.msra.mxu0 0.0
  %1049 = vmatprep.subr.mxu0 0.0
  %1050 = vmatpush1.msra.mxu0 0.0
  %1051 = vmatprep.subr.mxu0 0.0
  %1052 = vmatpush1.msra.mxu0 0.0
  %1053 = vmatprep.subr.mxu0 0.0
  %1054 = vmatpush1.msra.mxu0 %v247
  %1055 = vmatprep.subr.mxu0 0.0
  %1056 = vmatpush1.msra.mxu0 %v246
  %1057 = vmatprep.subr.mxu0 0.0
  %1058 = vmatpush1.msra.mxu0 %v245
  %1059 = vmatprep.subr.mxu0 0.0
  %1060 = vmatpush1.msra.mxu0 %v244
  %1061 = vmatprep.subr.mxu0 0.0
  %1062 = vmatpush2.msra.mxu0 0.0
  %1063 = vmatprep.subr.mxu0 0.0
  %1064 = vmatpush2.msra.mxu0 0.0
  %1065 = vmatprep.subr.mxu0 0.0
  %1066 = vmatpush2.msra.mxu0 0.0
  %1067 = vmatprep.subr.mxu0 0.0
  %1068 = vmatpush2.msra.mxu0 0.0
  %1069 = vmatprep.subr.mxu0 0.0
  %1070 = vmatpush2.msra.mxu0 0.0
  %1071 = vmatprep.subr.mxu0 0.0
  %1072 = vmatpush2.msra.mxu0 0.0
  %1073 = vmatprep.subr.mxu0 0.0
  %1074 = vmatpush2.msra.mxu0 0.0
  %1075 = vmatprep.subr.mxu0 0.0
  %1076 = vmatpush2.msra.mxu0 0.0
  %1077 = vmatprep.subr.mxu0 0.0
  %1078 = vmatpush2.msra.mxu0 0.0
  %1079 = vmatprep.subr.mxu0 0.0
  %1080 = vmatpush2.msra.mxu0 0.0
  %1081 = vmatprep.subr.mxu0 0.0
  %1082 = vmatpush2.msra.mxu0 0.0
  %1083 = vmatprep.subr.mxu0 0.0
  %1084 = vmatpush2.msra.mxu0 0.0
  %1085 = vmatprep.subr.mxu0 0.0
  %1086 = vmatpush2.msra.mxu0 0.0
  %1087 = vmatprep.subr.mxu0 0.0
  %1088 = vmatpush2.msra.mxu0 0.0
  %1089 = vmatprep.subr.mxu0 0.0
  %1090 = vmatpush2.msra.mxu0 0.0
  %1091 = vmatprep.subr.mxu0 0.0
  %1092 = vmatpush2.msra.mxu0 0.0
  %1093 = vmatprep.mubr.f32.mxu0 0.0
  %1094 = vmatmul.mubr.f32.gmra.mxu0 %v1027
  %v1095 = vpop.f32.mrf.mxu0
  %v1096 = vadd.f32 0.0, %v1095
  %v1097 = vpop.f32.mrf.mxu0
  %1098 = vdwg.mxu0
  %v1099 = vadd.f32 %v1024, %v1096
  %v1100 = vxor.u32 %v1099, 2147483648
  %v1101 = vmul.f32 %v1100, 1.442695
  %v1102 = vpow.pop %v1101
  %v1103 = vadd.f32 %v1102, 1.0
  %v1104 = vrcp.pop %v1103
  %v1105 = vmul.f32 1.0, %v1104
  %v1106 = vtanh.pop %v1099
  %v1107 = vmul.f32 %v1105, %v891
  %1109 = vrot.lane.b32.xlu0 %v1106, 64
  %v1110 = vpop.permute.xlu0 %1109
  %v1112 = vmul.f32 %v1105, %v1110
  %1114 = vrot.lane.b32.xlu0 %v1112, 32
  %v1115 = vpop.permute.xlu0 %1114
  %v1117 = vadd.f32 %v1107, %v1115
  %v1118 = vtanh.pop %v1117
  %1120 = vrot.lane.b32.xlu0 %v1118, 64
  %v1121 = vpop.permute.xlu0 %1120
  %v1123 = vmul.f32 %v1105, %v1121
  %v1126 = vunpack.c.l.s4 1983009808
  %v1127 = vunpack.c.0.s8 %v1126
  %v1128 = vlaneseq
  %v1129 = vshrl.u32 %v1128, 7
  %v1130 = vsub.s32 %v1127, %v1129
  %v1131 = vrot.slane %v1022, %v1130
  %1132 = vrot.lane.b32.xlu0 %v1131, 32
  %v1133 = vpop.permute.xlu0 %1132
  %s1135 = scalar_lea.vmem %s5, 6
  %1136 = vst.msk [vmem:[%s1135] sm:$0x3] %vm456, %v1133
  %v1139 = vunpack.c.l.s4 1983009808
  %v1140 = vunpack.c.0.s8 %v1139
  %v1141 = vlaneseq
  %v1142 = vshrl.u32 %v1141, 7
  %v1143 = vsub.s32 %v1140, %v1142
  %v1144 = vrot.slane %v1123, %v1143
  %1145 = vrot.lane.b32.xlu0 %v1144, 64
  %v1146 = vpop.permute.xlu0 %1145
  %s1148 = scalar_lea.vmem %s5, 8
  %1149 = vst.msk [vmem:[%s1148] sm:$0x3] %vm470, %v1146
  %v1150 = vld [vmem:[%s1023] sm:$0x3]
  %v1151 = vsel %vm249, %v1133, 0
  %1153 = vmatprep.subr.mxu0 0.0
  %1154 = vmatpush1.msra.mxu0 0.0
  %1155 = vmatprep.subr.mxu0 0.0
  %1156 = vmatpush1.msra.mxu0 0.0
  %1157 = vmatprep.subr.mxu0 0.0
  %1158 = vmatpush1.msra.mxu0 0.0
  %1159 = vmatprep.subr.mxu0 0.0
  %1160 = vmatpush1.msra.mxu0 0.0
  %1161 = vmatprep.subr.mxu0 0.0
  %1162 = vmatpush1.msra.mxu0 0.0
  %1163 = vmatprep.subr.mxu0 0.0
  %1164 = vmatpush1.msra.mxu0 0.0
  %1165 = vmatprep.subr.mxu0 0.0
  %1166 = vmatpush1.msra.mxu0 0.0
  %1167 = vmatprep.subr.mxu0 0.0
  %1168 = vmatpush1.msra.mxu0 0.0
  %1169 = vmatprep.subr.mxu0 0.0
  %1170 = vmatpush1.msra.mxu0 0.0
  %1171 = vmatprep.subr.mxu0 0.0
  %1172 = vmatpush1.msra.mxu0 0.0
  %1173 = vmatprep.subr.mxu0 0.0
  %1174 = vmatpush1.msra.mxu0 0.0
  %1175 = vmatprep.subr.mxu0 0.0
  %1176 = vmatpush1.msra.mxu0 0.0
  %1177 = vmatprep.subr.mxu0 0.0
  %1178 = vmatpush1.msra.mxu0 %v243
  %1179 = vmatprep.subr.mxu0 0.0
  %1180 = vmatpush1.msra.mxu0 %v242
  %1181 = vmatprep.subr.mxu0 0.0
  %1182 = vmatpush1.msra.mxu0 %v241
  %1183 = vmatprep.subr.mxu0 0.0
  %1184 = vmatpush1.msra.mxu0 %v240
  %1185 = vmatprep.subr.mxu0 0.0
  %1186 = vmatpush2.msra.mxu0 0.0
  %1187 = vmatprep.subr.mxu0 0.0
  %1188 = vmatpush2.msra.mxu0 0.0
  %1189 = vmatprep.subr.mxu0 0.0
  %1190 = vmatpush2.msra.mxu0 0.0
  %1191 = vmatprep.subr.mxu0 0.0
  %1192 = vmatpush2.msra.mxu0 0.0
  %1193 = vmatprep.subr.mxu0 0.0
  %1194 = vmatpush2.msra.mxu0 0.0
  %1195 = vmatprep.subr.mxu0 0.0
  %1196 = vmatpush2.msra.mxu0 0.0
  %1197 = vmatprep.subr.mxu0 0.0
  %1198 = vmatpush2.msra.mxu0 0.0
  %1199 = vmatprep.subr.mxu0 0.0
  %1200 = vmatpush2.msra.mxu0 0.0
  %1201 = vmatprep.subr.mxu0 0.0
  %1202 = vmatpush2.msra.mxu0 0.0
  %1203 = vmatprep.subr.mxu0 0.0
  %1204 = vmatpush2.msra.mxu0 0.0
  %1205 = vmatprep.subr.mxu0 0.0
  %1206 = vmatpush2.msra.mxu0 0.0
  %1207 = vmatprep.subr.mxu0 0.0
  %1208 = vmatpush2.msra.mxu0 0.0
  %1209 = vmatprep.subr.mxu0 0.0
  %1210 = vmatpush2.msra.mxu0 0.0
  %1211 = vmatprep.subr.mxu0 0.0
  %1212 = vmatpush2.msra.mxu0 0.0
  %1213 = vmatprep.subr.mxu0 0.0
  %1214 = vmatpush2.msra.mxu0 0.0
  %1215 = vmatprep.subr.mxu0 0.0
  %1216 = vmatpush2.msra.mxu0 0.0
  %1217 = vmatprep.mubr.f32.mxu0 0.0
  %1218 = vmatmul.mubr.f32.gmra.mxu0 %v1151
  %v1219 = vpop.f32.mrf.mxu0
  %v1220 = vadd.f32 0.0, %v1219
  %v1221 = vpop.f32.mrf.mxu0
  %1222 = vdwg.mxu0
  %v1223 = vadd.f32 %v1150, %v1220
  %v1224 = vxor.u32 %v1223, 2147483648
  %v1225 = vmul.f32 %v1224, 1.442695
  %v1226 = vpow.pop %v1225
  %v1227 = vadd.f32 %v1226, 1.0
  %v1228 = vrcp.pop %v1227
  %v1229 = vmul.f32 1.0, %v1228
  %v1230 = vtanh.pop %v1223
  %v1231 = vmul.f32 %v1229, %v1016
  %1233 = vrot.lane.b32.xlu0 %v1230, 64
  %v1234 = vpop.permute.xlu0 %1233
  %v1236 = vmul.f32 %v1229, %v1234
  %1238 = vrot.lane.b32.xlu0 %v1236, 32
  %v1239 = vpop.permute.xlu0 %1238
  %v1241 = vadd.f32 %v1231, %v1239
  %v1242 = vtanh.pop %v1241
  %1244 = vrot.lane.b32.xlu0 %v1242, 64
  %v1245 = vpop.permute.xlu0 %1244
  %v1247 = vmul.f32 %v1229, %v1245
  %v1248 = vld [vmem:[%s924 + $0x2] sm:$0x3]
  %1249 = vrot.lane.b32.xlu0 %v1144, 32
  %v1250 = vpop.permute.xlu0 %1249
  %v1251 = vsel %vm249, %v1250, 0
  %1253 = vmatprep.subr.mxu0 0.0
  %1254 = vmatpush1.msra.mxu0 0.0
  %1255 = vmatprep.subr.mxu0 0.0
  %1256 = vmatpush1.msra.mxu0 0.0
  %1257 = vmatprep.subr.mxu0 0.0
  %1258 = vmatpush1.msra.mxu0 0.0
  %1259 = vmatprep.subr.mxu0 0.0
  %1260 = vmatpush1.msra.mxu0 0.0
  %1261 = vmatprep.subr.mxu0 0.0
  %1262 = vmatpush1.msra.mxu0 0.0
  %1263 = vmatprep.subr.mxu0 0.0
  %1264 = vmatpush1.msra.mxu0 0.0
  %1265 = vmatprep.subr.mxu0 0.0
  %1266 = vmatpush1.msra.mxu0 0.0
  %1267 = vmatprep.subr.mxu0 0.0
  %1268 = vmatpush1.msra.mxu0 0.0
  %1269 = vmatprep.subr.mxu0 0.0
  %1270 = vmatpush1.msra.mxu0 0.0
  %1271 = vmatprep.subr.mxu0 0.0
  %1272 = vmatpush1.msra.mxu0 0.0
  %1273 = vmatprep.subr.mxu0 0.0
  %1274 = vmatpush1.msra.mxu0 0.0
  %1275 = vmatprep.subr.mxu0 0.0
  %1276 = vmatpush1.msra.mxu0 0.0
  %1277 = vmatprep.subr.mxu0 0.0
  %1278 = vmatpush1.msra.mxu0 %v247
  %1279 = vmatprep.subr.mxu0 0.0
  %1280 = vmatpush1.msra.mxu0 %v246
  %1281 = vmatprep.subr.mxu0 0.0
  %1282 = vmatpush1.msra.mxu0 %v245
  %1283 = vmatprep.subr.mxu0 0.0
  %1284 = vmatpush1.msra.mxu0 %v244
  %1285 = vmatprep.subr.mxu0 0.0
  %1286 = vmatpush2.msra.mxu0 0.0
  %1287 = vmatprep.subr.mxu0 0.0
  %1288 = vmatpush2.msra.mxu0 0.0
  %1289 = vmatprep.subr.mxu0 0.0
  %1290 = vmatpush2.msra.mxu0 0.0
  %1291 = vmatprep.subr.mxu0 0.0
  %1292 = vmatpush2.msra.mxu0 0.0
  %1293 = vmatprep.subr.mxu0 0.0
  %1294 = vmatpush2.msra.mxu0 0.0
  %1295 = vmatprep.subr.mxu0 0.0
  %1296 = vmatpush2.msra.mxu0 0.0
  %1297 = vmatprep.subr.mxu0 0.0
  %1298 = vmatpush2.msra.mxu0 0.0
  %1299 = vmatprep.subr.mxu0 0.0
  %1300 = vmatpush2.msra.mxu0 0.0
  %1301 = vmatprep.subr.mxu0 0.0
  %1302 = vmatpush2.msra.mxu0 0.0
  %1303 = vmatprep.subr.mxu0 0.0
  %1304 = vmatpush2.msra.mxu0 0.0
  %1305 = vmatprep.subr.mxu0 0.0
  %1306 = vmatpush2.msra.mxu0 0.0
  %1307 = vmatprep.subr.mxu0 0.0
  %1308 = vmatpush2.msra.mxu0 0.0
  %1309 = vmatprep.subr.mxu0 0.0
  %1310 = vmatpush2.msra.mxu0 0.0
  %1311 = vmatprep.subr.mxu0 0.0
  %1312 = vmatpush2.msra.mxu0 0.0
  %1313 = vmatprep.subr.mxu0 0.0
  %1314 = vmatpush2.msra.mxu0 0.0
  %1315 = vmatprep.subr.mxu0 0.0
  %1316 = vmatpush2.msra.mxu0 0.0
  %1317 = vmatprep.mubr.f32.mxu0 0.0
  %1318 = vmatmul.mubr.f32.gmra.mxu0 %v1251
  %v1319 = vpop.f32.mrf.mxu0
  %v1320 = vadd.f32 0.0, %v1319
  %v1321 = vpop.f32.mrf.mxu0
  %1322 = vdwg.mxu0
  %v1323 = vadd.f32 %v1248, %v1320
  %v1324 = vxor.u32 %v1323, 2147483648
  %v1325 = vmul.f32 %v1324, 1.442695
  %v1326 = vpow.pop %v1325
  %v1327 = vadd.f32 %v1326, 1.0
  %v1328 = vrcp.pop %v1327
  %v1329 = vmul.f32 1.0, %v1328
  %v1330 = vtanh.pop %v1323
  %v1331 = vmul.f32 %v1329, %v1117
  %1333 = vrot.lane.b32.xlu0 %v1330, 64
  %v1334 = vpop.permute.xlu0 %1333
  %v1336 = vmul.f32 %v1329, %v1334
  %1338 = vrot.lane.b32.xlu0 %v1336, 32
  %v1339 = vpop.permute.xlu0 %1338
  %v1341 = vadd.f32 %v1331, %v1339
  %v1342 = vtanh.pop %v1341
  %1344 = vrot.lane.b32.xlu0 %v1342, 64
  %v1345 = vpop.permute.xlu0 %1344
  %v1347 = vmul.f32 %v1329, %v1345
  %v1350 = vunpack.c.l.s4 1983009808
  %v1351 = vunpack.c.0.s8 %v1350
  %v1352 = vlaneseq
  %v1353 = vshrl.u32 %v1352, 7
  %v1354 = vsub.s32 %v1351, %v1353
  %v1355 = vrot.slane %v1247, %v1354
  %1356 = vrot.lane.b32.xlu0 %v1355, 32
  %v1357 = vpop.permute.xlu0 %1356
  %1359 = vst.msk [vmem:[%s1148] sm:$0x3] %vm456, %v1357
  %v1362 = vunpack.c.l.s4 1983009808
  %v1363 = vunpack.c.0.s8 %v1362
  %v1364 = vlaneseq
  %v1365 = vshrl.u32 %v1364, 7
  %v1366 = vsub.s32 %v1363, %v1365
  %v1367 = vrot.slane %v1347, %v1366
  %1368 = vrot.lane.b32.xlu0 %v1367, 64
  %v1369 = vpop.permute.xlu0 %1368
  %1371 = vst.msk [vmem:[%s1135] sm:$0x3] %vm470, %v1369
  %v1372 = vld [vmem:[%s797] sm:$0x3]
  %v1373 = vsel %vm249, %v1357, 0
  %1375 = vmatprep.subr.mxu0 0.0
  %1376 = vmatpush1.msra.mxu0 0.0
  %1377 = vmatprep.subr.mxu0 0.0
  %1378 = vmatpush1.msra.mxu0 0.0
  %1379 = vmatprep.subr.mxu0 0.0
  %1380 = vmatpush1.msra.mxu0 0.0
  %1381 = vmatprep.subr.mxu0 0.0
  %1382 = vmatpush1.msra.mxu0 0.0
  %1383 = vmatprep.subr.mxu0 0.0
  %1384 = vmatpush1.msra.mxu0 0.0
  %1385 = vmatprep.subr.mxu0 0.0
  %1386 = vmatpush1.msra.mxu0 0.0
  %1387 = vmatprep.subr.mxu0 0.0
  %1388 = vmatpush1.msra.mxu0 0.0
  %1389 = vmatprep.subr.mxu0 0.0
  %1390 = vmatpush1.msra.mxu0 0.0
  %1391 = vmatprep.subr.mxu0 0.0
  %1392 = vmatpush1.msra.mxu0 0.0
  %1393 = vmatprep.subr.mxu0 0.0
  %1394 = vmatpush1.msra.mxu0 0.0
  %1395 = vmatprep.subr.mxu0 0.0
  %1396 = vmatpush1.msra.mxu0 0.0
  %1397 = vmatprep.subr.mxu0 0.0
  %1398 = vmatpush1.msra.mxu0 0.0
  %1399 = vmatprep.subr.mxu0 0.0
  %1400 = vmatpush1.msra.mxu0 %v243
  %1401 = vmatprep.subr.mxu0 0.0
  %1402 = vmatpush1.msra.mxu0 %v242
  %1403 = vmatprep.subr.mxu0 0.0
  %1404 = vmatpush1.msra.mxu0 %v241
  %1405 = vmatprep.subr.mxu0 0.0
  %1406 = vmatpush1.msra.mxu0 %v240
  %1407 = vmatprep.subr.mxu0 0.0
  %1408 = vmatpush2.msra.mxu0 0.0
  %1409 = vmatprep.subr.mxu0 0.0
  %1410 = vmatpush2.msra.mxu0 0.0
  %1411 = vmatprep.subr.mxu0 0.0
  %1412 = vmatpush2.msra.mxu0 0.0
  %1413 = vmatprep.subr.mxu0 0.0
  %1414 = vmatpush2.msra.mxu0 0.0
  %1415 = vmatprep.subr.mxu0 0.0
  %1416 = vmatpush2.msra.mxu0 0.0
  %1417 = vmatprep.subr.mxu0 0.0
  %1418 = vmatpush2.msra.mxu0 0.0
  %1419 = vmatprep.subr.mxu0 0.0
  %1420 = vmatpush2.msra.mxu0 0.0
  %1421 = vmatprep.subr.mxu0 0.0
  %1422 = vmatpush2.msra.mxu0 0.0
  %1423 = vmatprep.subr.mxu0 0.0
  %1424 = vmatpush2.msra.mxu0 0.0
  %1425 = vmatprep.subr.mxu0 0.0
  %1426 = vmatpush2.msra.mxu0 0.0
  %1427 = vmatprep.subr.mxu0 0.0
  %1428 = vmatpush2.msra.mxu0 0.0
  %1429 = vmatprep.subr.mxu0 0.0
  %1430 = vmatpush2.msra.mxu0 0.0
  %1431 = vmatprep.subr.mxu0 0.0
  %1432 = vmatpush2.msra.mxu0 0.0
  %1433 = vmatprep.subr.mxu0 0.0
  %1434 = vmatpush2.msra.mxu0 0.0
  %1435 = vmatprep.subr.mxu0 0.0
  %1436 = vmatpush2.msra.mxu0 0.0
  %1437 = vmatprep.subr.mxu0 0.0
  %1438 = vmatpush2.msra.mxu0 0.0
  %1439 = vmatprep.mubr.f32.mxu0 0.0
  %1440 = vmatmul.mubr.f32.gmra.mxu0 %v1373
  %v1441 = vpop.f32.mrf.mxu0
  %v1442 = vadd.f32 0.0, %v1441
  %v1443 = vpop.f32.mrf.mxu0
  %1444 = vdwg.mxu0
  %v1445 = vadd.f32 %v1372, %v1442
  %v1446 = vxor.u32 %v1445, 2147483648
  %v1447 = vmul.f32 %v1446, 1.442695
  %v1448 = vpow.pop %v1447
  %v1449 = vadd.f32 %v1448, 1.0
  %v1450 = vrcp.pop %v1449
  %v1451 = vmul.f32 1.0, %v1450
  %v1452 = vtanh.pop %v1445
  %v1453 = vmul.f32 %v1451, %v1241
  %1455 = vrot.lane.b32.xlu0 %v1452, 64
  %v1456 = vpop.permute.xlu0 %1455
  %v1458 = vmul.f32 %v1451, %v1456
  %1460 = vrot.lane.b32.xlu0 %v1458, 32
  %v1461 = vpop.permute.xlu0 %1460
  %v1463 = vadd.f32 %v1453, %v1461
  %v1464 = vtanh.pop %v1463
  %1466 = vrot.lane.b32.xlu0 %v1464, 64
  %v1467 = vpop.permute.xlu0 %1466
  %v1469 = vmul.f32 %v1451, %v1467
  %v1470 = vld [vmem:[%s698 + $0x2] sm:$0x3]
  %1471 = vrot.lane.b32.xlu0 %v1367, 32
  %v1472 = vpop.permute.xlu0 %1471
  %v1473 = vsel %vm249, %v1472, 0
  %1475 = vmatprep.subr.mxu0 0.0
  %1476 = vmatpush1.msra.mxu0 0.0
  %1477 = vmatprep.subr.mxu0 0.0
  %1478 = vmatpush1.msra.mxu0 0.0
  %1479 = vmatprep.subr.mxu0 0.0
  %1480 = vmatpush1.msra.mxu0 0.0
  %1481 = vmatprep.subr.mxu0 0.0
  %1482 = vmatpush1.msra.mxu0 0.0
  %1483 = vmatprep.subr.mxu0 0.0
  %1484 = vmatpush1.msra.mxu0 0.0
  %1485 = vmatprep.subr.mxu0 0.0
  %1486 = vmatpush1.msra.mxu0 0.0
  %1487 = vmatprep.subr.mxu0 0.0
  %1488 = vmatpush1.msra.mxu0 0.0
  %1489 = vmatprep.subr.mxu0 0.0
  %1490 = vmatpush1.msra.mxu0 0.0
  %1491 = vmatprep.subr.mxu0 0.0
  %1492 = vmatpush1.msra.mxu0 0.0
  %1493 = vmatprep.subr.mxu0 0.0
  %1494 = vmatpush1.msra.mxu0 0.0
  %1495 = vmatprep.subr.mxu0 0.0
  %1496 = vmatpush1.msra.mxu0 0.0
  %1497 = vmatprep.subr.mxu0 0.0
  %1498 = vmatpush1.msra.mxu0 0.0
  %1499 = vmatprep.subr.mxu0 0.0
  %1500 = vmatpush1.msra.mxu0 %v247
  %1501 = vmatprep.subr.mxu0 0.0
  %1502 = vmatpush1.msra.mxu0 %v246
  %1503 = vmatprep.subr.mxu0 0.0
  %1504 = vmatpush1.msra.mxu0 %v245
  %1505 = vmatprep.subr.mxu0 0.0
  %1506 = vmatpush1.msra.mxu0 %v244
  %1507 = vmatprep.subr.mxu0 0.0
  %1508 = vmatpush2.msra.mxu0 0.0
  %1509 = vmatprep.subr.mxu0 0.0
  %1510 = vmatpush2.msra.mxu0 0.0
  %1511 = vmatprep.subr.mxu0 0.0
  %1512 = vmatpush2.msra.mxu0 0.0
  %1513 = vmatprep.subr.mxu0 0.0
  %1514 = vmatpush2.msra.mxu0 0.0
  %1515 = vmatprep.subr.mxu0 0.0
  %1516 = vmatpush2.msra.mxu0 0.0
  %1517 = vmatprep.subr.mxu0 0.0
  %1518 = vmatpush2.msra.mxu0 0.0
  %1519 = vmatprep.subr.mxu0 0.0
  %1520 = vmatpush2.msra.mxu0 0.0
  %1521 = vmatprep.subr.mxu0 0.0
  %1522 = vmatpush2.msra.mxu0 0.0
  %1523 = vmatprep.subr.mxu0 0.0
  %1524 = vmatpush2.msra.mxu0 0.0
  %1525 = vmatprep.subr.mxu0 0.0
  %1526 = vmatpush2.msra.mxu0 0.0
  %1527 = vmatprep.subr.mxu0 0.0
  %1528 = vmatpush2.msra.mxu0 0.0
  %1529 = vmatprep.subr.mxu0 0.0
  %1530 = vmatpush2.msra.mxu0 0.0
  %1531 = vmatprep.subr.mxu0 0.0
  %1532 = vmatpush2.msra.mxu0 0.0
  %1533 = vmatprep.subr.mxu0 0.0
  %1534 = vmatpush2.msra.mxu0 0.0
  %1535 = vmatprep.subr.mxu0 0.0
  %1536 = vmatpush2.msra.mxu0 0.0
  %1537 = vmatprep.subr.mxu0 0.0
  %1538 = vmatpush2.msra.mxu0 0.0
  %1539 = vmatprep.mubr.f32.mxu0 0.0
  %1540 = vmatmul.mubr.f32.gmra.mxu0 %v1473
  %v1541 = vpop.f32.mrf.mxu0
  %v1542 = vadd.f32 0.0, %v1541
  %v1543 = vpop.f32.mrf.mxu0
  %1544 = vdwg.mxu0
  %v1545 = vadd.f32 %v1470, %v1542
  %v1546 = vxor.u32 %v1545, 2147483648
  %v1547 = vmul.f32 %v1546, 1.442695
  %v1548 = vpow.pop %v1547
  %v1549 = vadd.f32 %v1548, 1.0
  %v1550 = vrcp.pop %v1549
  %v1551 = vmul.f32 1.0, %v1550
  %v1552 = vtanh.pop %v1545
  %v1553 = vmul.f32 %v1551, %v1341
  %1555 = vrot.lane.b32.xlu0 %v1552, 64
  %v1556 = vpop.permute.xlu0 %1555
  %v1558 = vmul.f32 %v1551, %v1556
  %1560 = vrot.lane.b32.xlu0 %v1558, 32
  %v1561 = vpop.permute.xlu0 %1560
  %v1563 = vadd.f32 %v1553, %v1561
  %v1564 = vtanh.pop %v1563
  %1566 = vrot.lane.b32.xlu0 %v1564, 64
  %v1567 = vpop.permute.xlu0 %1566
  %v1569 = vmul.f32 %v1551, %v1567
  %v1572 = vunpack.c.l.s4 1983009808
  %v1573 = vunpack.c.0.s8 %v1572
  %v1574 = vlaneseq
  %v1575 = vshrl.u32 %v1574, 7
  %v1576 = vsub.s32 %v1573, %v1575
  %v1577 = vrot.slane %v1469, %v1576
  %1578 = vrot.lane.b32.xlu0 %v1577, 32
  %v1579 = vpop.permute.xlu0 %1578
  %1581 = vst.msk [vmem:[%s922] sm:$0x3] %vm456, %v1579
  %v1584 = vunpack.c.l.s4 1983009808
  %v1585 = vunpack.c.0.s8 %v1584
  %v1586 = vlaneseq
  %v1587 = vshrl.u32 %v1586, 7
  %v1588 = vsub.s32 %v1585, %v1587
  %v1589 = vrot.slane %v1569, %v1588
  %1590 = vrot.lane.b32.xlu0 %v1589, 64
  %v1591 = vpop.permute.xlu0 %1590
  %1593 = vst.msk [vmem:[%s909] sm:$0x3] %vm470, %v1591
  %v1594 = vld [vmem:[%s571] sm:$0x3]
  %v1595 = vsel %vm249, %v1579, 0
  %1597 = vmatprep.subr.mxu0 0.0
  %1598 = vmatpush1.msra.mxu0 0.0
  %1599 = vmatprep.subr.mxu0 0.0
  %1600 = vmatpush1.msra.mxu0 0.0
  %1601 = vmatprep.subr.mxu0 0.0
  %1602 = vmatpush1.msra.mxu0 0.0
  %1603 = vmatprep.subr.mxu0 0.0
  %1604 = vmatpush1.msra.mxu0 0.0
  %1605 = vmatprep.subr.mxu0 0.0
  %1606 = vmatpush1.msra.mxu0 0.0
  %1607 = vmatprep.subr.mxu0 0.0
  %1608 = vmatpush1.msra.mxu0 0.0
  %1609 = vmatprep.subr.mxu0 0.0
  %1610 = vmatpush1.msra.mxu0 0.0
  %1611 = vmatprep.subr.mxu0 0.0
  %1612 = vmatpush1.msra.mxu0 0.0
  %1613 = vmatprep.subr.mxu0 0.0
  %1614 = vmatpush1.msra.mxu0 0.0
  %1615 = vmatprep.subr.mxu0 0.0
  %1616 = vmatpush1.msra.mxu0 0.0
  %1617 = vmatprep.subr.mxu0 0.0
  %1618 = vmatpush1.msra.mxu0 0.0
  %1619 = vmatprep.subr.mxu0 0.0
  %1620 = vmatpush1.msra.mxu0 0.0
  %1621 = vmatprep.subr.mxu0 0.0
  %1622 = vmatpush1.msra.mxu0 %v243
  %1623 = vmatprep.subr.mxu0 0.0
  %1624 = vmatpush1.msra.mxu0 %v242
  %1625 = vmatprep.subr.mxu0 0.0
  %1626 = vmatpush1.msra.mxu0 %v241
  %1627 = vmatprep.subr.mxu0 0.0
  %1628 = vmatpush1.msra.mxu0 %v240
  %1629 = vmatprep.subr.mxu0 0.0
  %1630 = vmatpush2.msra.mxu0 0.0
  %1631 = vmatprep.subr.mxu0 0.0
  %1632 = vmatpush2.msra.mxu0 0.0
  %1633 = vmatprep.subr.mxu0 0.0
  %1634 = vmatpush2.msra.mxu0 0.0
  %1635 = vmatprep.subr.mxu0 0.0
  %1636 = vmatpush2.msra.mxu0 0.0
  %1637 = vmatprep.subr.mxu0 0.0
  %1638 = vmatpush2.msra.mxu0 0.0
  %1639 = vmatprep.subr.mxu0 0.0
  %1640 = vmatpush2.msra.mxu0 0.0
  %1641 = vmatprep.subr.mxu0 0.0
  %1642 = vmatpush2.msra.mxu0 0.0
  %1643 = vmatprep.subr.mxu0 0.0
  %1644 = vmatpush2.msra.mxu0 0.0
  %1645 = vmatprep.subr.mxu0 0.0
  %1646 = vmatpush2.msra.mxu0 0.0
  %1647 = vmatprep.subr.mxu0 0.0
  %1648 = vmatpush2.msra.mxu0 0.0
  %1649 = vmatprep.subr.mxu0 0.0
  %1650 = vmatpush2.msra.mxu0 0.0
  %1651 = vmatprep.subr.mxu0 0.0
  %1652 = vmatpush2.msra.mxu0 0.0
  %1653 = vmatprep.subr.mxu0 0.0
  %1654 = vmatpush2.msra.mxu0 0.0
  %1655 = vmatprep.subr.mxu0 0.0
  %1656 = vmatpush2.msra.mxu0 0.0
  %1657 = vmatprep.subr.mxu0 0.0
  %1658 = vmatpush2.msra.mxu0 0.0
  %1659 = vmatprep.subr.mxu0 0.0
  %1660 = vmatpush2.msra.mxu0 0.0
  %1661 = vmatprep.mubr.f32.mxu0 0.0
  %1662 = vmatmul.mubr.f32.gmra.mxu0 %v1595
  %v1663 = vpop.f32.mrf.mxu0
  %v1664 = vadd.f32 0.0, %v1663
  %v1665 = vpop.f32.mrf.mxu0
  %1666 = vdwg.mxu0
  %v1667 = vadd.f32 %v1594, %v1664
  %v1668 = vxor.u32 %v1667, 2147483648
  %v1669 = vmul.f32 %v1668, 1.442695
  %v1670 = vpow.pop %v1669
  %v1671 = vadd.f32 %v1670, 1.0
  %v1672 = vrcp.pop %v1671
  %v1673 = vmul.f32 1.0, %v1672
  %v1674 = vtanh.pop %v1667
  %v1675 = vmul.f32 %v1673, %v1463
  %1677 = vrot.lane.b32.xlu0 %v1674, 64
  %v1678 = vpop.permute.xlu0 %1677
  %v1680 = vmul.f32 %v1673, %v1678
  %1682 = vrot.lane.b32.xlu0 %v1680, 32
  %v1683 = vpop.permute.xlu0 %1682
  %v1685 = vadd.f32 %v1675, %v1683
  %v1686 = vtanh.pop %v1685
  %1688 = vrot.lane.b32.xlu0 %v1686, 64
  %v1689 = vpop.permute.xlu0 %1688
  %v1691 = vmul.f32 %v1673, %v1689
  %v1692 = vld [vmem:[%s472 + $0x2] sm:$0x3]
  %1693 = vrot.lane.b32.xlu0 %v1589, 32
  %v1694 = vpop.permute.xlu0 %1693
  %v1695 = vsel %vm249, %v1694, 0
  %1697 = vmatprep.subr.mxu0 0.0
  %1698 = vmatpush1.msra.mxu0 0.0
  %1699 = vmatprep.subr.mxu0 0.0
  %1700 = vmatpush1.msra.mxu0 0.0
  %1701 = vmatprep.subr.mxu0 0.0
  %1702 = vmatpush1.msra.mxu0 0.0
  %1703 = vmatprep.subr.mxu0 0.0
  %1704 = vmatpush1.msra.mxu0 0.0
  %1705 = vmatprep.subr.mxu0 0.0
  %1706 = vmatpush1.msra.mxu0 0.0
  %1707 = vmatprep.subr.mxu0 0.0
  %1708 = vmatpush1.msra.mxu0 0.0
  %1709 = vmatprep.subr.mxu0 0.0
  %1710 = vmatpush1.msra.mxu0 0.0
  %1711 = vmatprep.subr.mxu0 0.0
  %1712 = vmatpush1.msra.mxu0 0.0
  %1713 = vmatprep.subr.mxu0 0.0
  %1714 = vmatpush1.msra.mxu0 0.0
  %1715 = vmatprep.subr.mxu0 0.0
  %1716 = vmatpush1.msra.mxu0 0.0
  %1717 = vmatprep.subr.mxu0 0.0
  %1718 = vmatpush1.msra.mxu0 0.0
  %1719 = vmatprep.subr.mxu0 0.0
  %1720 = vmatpush1.msra.mxu0 0.0
  %1721 = vmatprep.subr.mxu0 0.0
  %1722 = vmatpush1.msra.mxu0 %v247
  %1723 = vmatprep.subr.mxu0 0.0
  %1724 = vmatpush1.msra.mxu0 %v246
  %1725 = vmatprep.subr.mxu0 0.0
  %1726 = vmatpush1.msra.mxu0 %v245
  %1727 = vmatprep.subr.mxu0 0.0
  %1728 = vmatpush1.msra.mxu0 %v244
  %1729 = vmatprep.subr.mxu0 0.0
  %1730 = vmatpush2.msra.mxu0 0.0
  %1731 = vmatprep.subr.mxu0 0.0
  %1732 = vmatpush2.msra.mxu0 0.0
  %1733 = vmatprep.subr.mxu0 0.0
  %1734 = vmatpush2.msra.mxu0 0.0
  %1735 = vmatprep.subr.mxu0 0.0
  %1736 = vmatpush2.msra.mxu0 0.0
  %1737 = vmatprep.subr.mxu0 0.0
  %1738 = vmatpush2.msra.mxu0 0.0
  %1739 = vmatprep.subr.mxu0 0.0
  %1740 = vmatpush2.msra.mxu0 0.0
  %1741 = vmatprep.subr.mxu0 0.0
  %1742 = vmatpush2.msra.mxu0 0.0
  %1743 = vmatprep.subr.mxu0 0.0
  %1744 = vmatpush2.msra.mxu0 0.0
  %1745 = vmatprep.subr.mxu0 0.0
  %1746 = vmatpush2.msra.mxu0 0.0
  %1747 = vmatprep.subr.mxu0 0.0
  %1748 = vmatpush2.msra.mxu0 0.0
  %1749 = vmatprep.subr.mxu0 0.0
  %1750 = vmatpush2.msra.mxu0 0.0
  %1751 = vmatprep.subr.mxu0 0.0
  %1752 = vmatpush2.msra.mxu0 0.0
  %1753 = vmatprep.subr.mxu0 0.0
  %1754 = vmatpush2.msra.mxu0 0.0
  %1755 = vmatprep.subr.mxu0 0.0
  %1756 = vmatpush2.msra.mxu0 0.0
  %1757 = vmatprep.subr.mxu0 0.0
  %1758 = vmatpush2.msra.mxu0 0.0
  %1759 = vmatprep.subr.mxu0 0.0
  %1760 = vmatpush2.msra.mxu0 0.0
  %1761 = vmatprep.mubr.f32.mxu0 0.0
  %1762 = vmatmul.mubr.f32.gmra.mxu0 %v1695
  %v1763 = vpop.f32.mrf.mxu0
  %v1764 = vadd.f32 0.0, %v1763
  %v1765 = vpop.f32.mrf.mxu0
  %1766 = vdwg.mxu0
  %v1767 = vadd.f32 %v1692, %v1764
  %v1768 = vxor.u32 %v1767, 2147483648
  %v1769 = vmul.f32 %v1768, 1.442695
  %v1770 = vpow.pop %v1769
  %v1771 = vadd.f32 %v1770, 1.0
  %v1772 = vrcp.pop %v1771
  %v1773 = vmul.f32 1.0, %v1772
  %v1774 = vtanh.pop %v1767
  %v1775 = vmul.f32 %v1773, %v1563
  %1777 = vrot.lane.b32.xlu0 %v1774, 64
  %v1778 = vpop.permute.xlu0 %1777
  %v1780 = vmul.f32 %v1773, %v1778
  %1782 = vrot.lane.b32.xlu0 %v1780, 32
  %v1783 = vpop.permute.xlu0 %1782
  %v1785 = vadd.f32 %v1775, %v1783
  %v1786 = vtanh.pop %v1785
  %1788 = vrot.lane.b32.xlu0 %v1786, 64
  %v1789 = vpop.permute.xlu0 %1788
  %v1791 = vmul.f32 %v1773, %v1789
  %v1794 = vunpack.c.l.s4 1983009808
  %v1795 = vunpack.c.0.s8 %v1794
  %v1796 = vlaneseq
  %v1797 = vshrl.u32 %v1796, 7
  %v1798 = vsub.s32 %v1795, %v1797
  %v1799 = vrot.slane %v1691, %v1798
  %1800 = vrot.lane.b32.xlu0 %v1799, 32
  %v1801 = vpop.permute.xlu0 %1800
  %1803 = vst.msk [vmem:[%s696] sm:$0x3] %vm456, %v1801
  %v1806 = vunpack.c.l.s4 1983009808
  %v1807 = vunpack.c.0.s8 %v1806
  %v1808 = vlaneseq
  %v1809 = vshrl.u32 %v1808, 7
  %v1810 = vsub.s32 %v1807, %v1809
  %v1811 = vrot.slane %v1791, %v1810
  %1812 = vrot.lane.b32.xlu0 %v1811, 64
  %v1813 = vpop.permute.xlu0 %1812
  %1815 = vst.msk [vmem:[%s683] sm:$0x3] %vm470, %v1813
  %v1816 = vld [vmem:[%s348] sm:$0x3]
  %v1817 = vsel %vm249, %v1801, 0
  %1819 = vmatprep.subr.mxu0 0.0
  %1820 = vmatpush1.msra.mxu0 0.0
  %1821 = vmatprep.subr.mxu0 0.0
  %1822 = vmatpush1.msra.mxu0 0.0
  %1823 = vmatprep.subr.mxu0 0.0
  %1824 = vmatpush1.msra.mxu0 0.0
  %1825 = vmatprep.subr.mxu0 0.0
  %1826 = vmatpush1.msra.mxu0 0.0
  %1827 = vmatprep.subr.mxu0 0.0
  %1828 = vmatpush1.msra.mxu0 0.0
  %1829 = vmatprep.subr.mxu0 0.0
  %1830 = vmatpush1.msra.mxu0 0.0
  %1831 = vmatprep.subr.mxu0 0.0
  %1832 = vmatpush1.msra.mxu0 0.0
  %1833 = vmatprep.subr.mxu0 0.0
  %1834 = vmatpush1.msra.mxu0 0.0
  %1835 = vmatprep.subr.mxu0 0.0
  %1836 = vmatpush1.msra.mxu0 0.0
  %1837 = vmatprep.subr.mxu0 0.0
  %1838 = vmatpush1.msra.mxu0 0.0
  %1839 = vmatprep.subr.mxu0 0.0
  %1840 = vmatpush1.msra.mxu0 0.0
  %1841 = vmatprep.subr.mxu0 0.0
  %1842 = vmatpush1.msra.mxu0 0.0
  %1843 = vmatprep.subr.mxu0 0.0
  %1844 = vmatpush1.msra.mxu0 %v243
  %1845 = vmatprep.subr.mxu0 0.0
  %1846 = vmatpush1.msra.mxu0 %v242
  %1847 = vmatprep.subr.mxu0 0.0
  %1848 = vmatpush1.msra.mxu0 %v241
  %1849 = vmatprep.subr.mxu0 0.0
  %1850 = vmatpush1.msra.mxu0 %v240
  %1851 = vmatprep.subr.mxu0 0.0
  %1852 = vmatpush2.msra.mxu0 0.0
  %1853 = vmatprep.subr.mxu0 0.0
  %1854 = vmatpush2.msra.mxu0 0.0
  %1855 = vmatprep.subr.mxu0 0.0
  %1856 = vmatpush2.msra.mxu0 0.0
  %1857 = vmatprep.subr.mxu0 0.0
  %1858 = vmatpush2.msra.mxu0 0.0
  %1859 = vmatprep.subr.mxu0 0.0
  %1860 = vmatpush2.msra.mxu0 0.0
  %1861 = vmatprep.subr.mxu0 0.0
  %1862 = vmatpush2.msra.mxu0 0.0
  %1863 = vmatprep.subr.mxu0 0.0
  %1864 = vmatpush2.msra.mxu0 0.0
  %1865 = vmatprep.subr.mxu0 0.0
  %1866 = vmatpush2.msra.mxu0 0.0
  %1867 = vmatprep.subr.mxu0 0.0
  %1868 = vmatpush2.msra.mxu0 0.0
  %1869 = vmatprep.subr.mxu0 0.0
  %1870 = vmatpush2.msra.mxu0 0.0
  %1871 = vmatprep.subr.mxu0 0.0
  %1872 = vmatpush2.msra.mxu0 0.0
  %1873 = vmatprep.subr.mxu0 0.0
  %1874 = vmatpush2.msra.mxu0 0.0
  %1875 = vmatprep.subr.mxu0 0.0
  %1876 = vmatpush2.msra.mxu0 0.0
  %1877 = vmatprep.subr.mxu0 0.0
  %1878 = vmatpush2.msra.mxu0 0.0
  %1879 = vmatprep.subr.mxu0 0.0
  %1880 = vmatpush2.msra.mxu0 0.0
  %1881 = vmatprep.subr.mxu0 0.0
  %1882 = vmatpush2.msra.mxu0 0.0
  %1883 = vmatprep.mubr.f32.mxu0 0.0
  %1884 = vmatmul.mubr.f32.gmra.mxu0 %v1817
  %v1885 = vpop.f32.mrf.mxu0
  %v1886 = vadd.f32 0.0, %v1885
  %v1887 = vpop.f32.mrf.mxu0
  %1888 = vdwg.mxu0
  %v1889 = vadd.f32 %v1816, %v1886
  %v1890 = vxor.u32 %v1889, 2147483648
  %v1891 = vmul.f32 %v1890, 1.442695
  %v1892 = vpow.pop %v1891
  %v1893 = vadd.f32 %v1892, 1.0
  %v1894 = vrcp.pop %v1893
  %v1895 = vmul.f32 1.0, %v1894
  %v1896 = vtanh.pop %v1889
  %v1897 = vmul.f32 %v1895, %v1685
  %1899 = vrot.lane.b32.xlu0 %v1896, 64
  %v1900 = vpop.permute.xlu0 %1899
  %v1902 = vmul.f32 %v1895, %v1900
  %1904 = vrot.lane.b32.xlu0 %v1902, 32
  %v1905 = vpop.permute.xlu0 %1904
  %v1907 = vadd.f32 %v1897, %v1905
  %v1908 = vtanh.pop %v1907
  %1910 = vrot.lane.b32.xlu0 %v1908, 64
  %v1911 = vpop.permute.xlu0 %1910
  %v1913 = vmul.f32 %v1895, %v1911
  %v1914 = vld [vmem:[#allocation2 + $0x2] sm:$0x3]
  %1915 = vrot.lane.b32.xlu0 %v1811, 32
  %v1916 = vpop.permute.xlu0 %1915
  %v1917 = vsel %vm249, %v1916, 0
  %1919 = vmatprep.subr.mxu0 0.0
  %1920 = vmatpush1.msra.mxu0 0.0
  %1921 = vmatprep.subr.mxu0 0.0
  %1922 = vmatpush1.msra.mxu0 0.0
  %1923 = vmatprep.subr.mxu0 0.0
  %1924 = vmatpush1.msra.mxu0 0.0
  %1925 = vmatprep.subr.mxu0 0.0
  %1926 = vmatpush1.msra.mxu0 0.0
  %1927 = vmatprep.subr.mxu0 0.0
  %1928 = vmatpush1.msra.mxu0 0.0
  %1929 = vmatprep.subr.mxu0 0.0
  %1930 = vmatpush1.msra.mxu0 0.0
  %1931 = vmatprep.subr.mxu0 0.0
  %1932 = vmatpush1.msra.mxu0 0.0
  %1933 = vmatprep.subr.mxu0 0.0
  %1934 = vmatpush1.msra.mxu0 0.0
  %1935 = vmatprep.subr.mxu0 0.0
  %1936 = vmatpush1.msra.mxu0 0.0
  %1937 = vmatprep.subr.mxu0 0.0
  %1938 = vmatpush1.msra.mxu0 0.0
  %1939 = vmatprep.subr.mxu0 0.0
  %1940 = vmatpush1.msra.mxu0 0.0
  %1941 = vmatprep.subr.mxu0 0.0
  %1942 = vmatpush1.msra.mxu0 0.0
  %1943 = vmatprep.subr.mxu0 0.0
  %1944 = vmatpush1.msra.mxu0 %v247
  %1945 = vmatprep.subr.mxu0 0.0
  %1946 = vmatpush1.msra.mxu0 %v246
  %1947 = vmatprep.subr.mxu0 0.0
  %1948 = vmatpush1.msra.mxu0 %v245
  %1949 = vmatprep.subr.mxu0 0.0
  %1950 = vmatpush1.msra.mxu0 %v244
  %1951 = vmatprep.subr.mxu0 0.0
  %1952 = vmatpush2.msra.mxu0 0.0
  %1953 = vmatprep.subr.mxu0 0.0
  %1954 = vmatpush2.msra.mxu0 0.0
  %1955 = vmatprep.subr.mxu0 0.0
  %1956 = vmatpush2.msra.mxu0 0.0
  %1957 = vmatprep.subr.mxu0 0.0
  %1958 = vmatpush2.msra.mxu0 0.0
  %1959 = vmatprep.subr.mxu0 0.0
  %1960 = vmatpush2.msra.mxu0 0.0
  %1961 = vmatprep.subr.mxu0 0.0
  %1962 = vmatpush2.msra.mxu0 0.0
  %1963 = vmatprep.subr.mxu0 0.0
  %1964 = vmatpush2.msra.mxu0 0.0
  %1965 = vmatprep.subr.mxu0 0.0
  %1966 = vmatpush2.msra.mxu0 0.0
  %1967 = vmatprep.subr.mxu0 0.0
  %1968 = vmatpush2.msra.mxu0 0.0
  %1969 = vmatprep.subr.mxu0 0.0
  %1970 = vmatpush2.msra.mxu0 0.0
  %1971 = vmatprep.subr.mxu0 0.0
  %1972 = vmatpush2.msra.mxu0 0.0
  %1973 = vmatprep.subr.mxu0 0.0
  %1974 = vmatpush2.msra.mxu0 0.0
  %1975 = vmatprep.subr.mxu0 0.0
  %1976 = vmatpush2.msra.mxu0 0.0
  %1977 = vmatprep.subr.mxu0 0.0
  %1978 = vmatpush2.msra.mxu0 0.0
  %1979 = vmatprep.subr.mxu0 0.0
  %1980 = vmatpush2.msra.mxu0 0.0
  %1981 = vmatprep.subr.mxu0 0.0
  %1982 = vmatpush2.msra.mxu0 0.0
  %1983 = vmatprep.mubr.f32.mxu0 0.0
  %1984 = vmatmul.mubr.f32.gmra.mxu0 %v1917
  %v1985 = vpop.f32.mrf.mxu0
  %v1986 = vadd.f32 0.0, %v1985
  %v1987 = vpop.f32.mrf.mxu0
  %1988 = vdwg.mxu0
  %v1989 = vadd.f32 %v1914, %v1986
  %v1990 = vxor.u32 %v1989, 2147483648
  %v1991 = vmul.f32 %v1990, 1.442695
  %v1992 = vpow.pop %v1991
  %v1993 = vadd.f32 %v1992, 1.0
  %v1994 = vrcp.pop %v1993
  %v1995 = vmul.f32 1.0, %v1994
  %v1996 = vtanh.pop %v1989
  %v1997 = vmul.f32 %v1995, %v1785
  %1999 = vrot.lane.b32.xlu0 %v1996, 64
  %v2000 = vpop.permute.xlu0 %1999
  %v2002 = vmul.f32 %v1995, %v2000
  %2004 = vrot.lane.b32.xlu0 %v2002, 32
  %v2005 = vpop.permute.xlu0 %2004
  %v2007 = vadd.f32 %v1997, %v2005
  %v2008 = vtanh.pop %v2007
  %2010 = vrot.lane.b32.xlu0 %v2008, 64
  %v2011 = vpop.permute.xlu0 %2010
  %v2013 = vmul.f32 %v1995, %v2011
  %v2016 = vunpack.c.l.s4 1983009808
  %v2017 = vunpack.c.0.s8 %v2016
  %v2018 = vlaneseq
  %v2019 = vshrl.u32 %v2018, 7
  %v2020 = vsub.s32 %v2017, %v2019
  %v2021 = vrot.slane %v1913, %v2020
  %2022 = vrot.lane.b32.xlu0 %v2021, 32
  %v2023 = vpop.permute.xlu0 %2022
  %2025 = vst.msk [vmem:[%s469] sm:$0x3] %vm456, %v2023
  %v2028 = vunpack.c.l.s4 1983009808
  %v2029 = vunpack.c.0.s8 %v2028
  %v2030 = vlaneseq
  %v2031 = vshrl.u32 %v2030, 7
  %v2032 = vsub.s32 %v2029, %v2031
  %v2033 = vrot.slane %v2013, %v2032
  %2034 = vrot.lane.b32.xlu0 %v2033, 64
  %v2035 = vpop.permute.xlu0 %2034
  %2037 = vst.msk [vmem:[%s5] sm:$0x3] %vm470, %v2035
  // Predicated region
  $region22: #{neural_net_forward.4} parent=0 // pred_check
    _
  $region23: #{neural_net_forward.4} parent=0 // pred_check_branch
    %2039 = sbr.rel (0) target = $region25
  $region24: #{neural_net_forward.4} parent=0 // pred_region
    _
  $region25: #{neural_net_forward.4} parent=0 // pred_fallthru
    _
  // Predicated region
  $region26: #{neural_net_forward.4} parent=0 // pred_check
    _
  $region27: #{neural_net_forward.4} parent=0 // pred_check_branch
    %2041 = sbr.rel (0) target = $region29
  $region28: #{neural_net_forward.4} parent=0 // pred_region
    _
  $region29: #{neural_net_forward.4} parent=0 // pred_fallthru
    _

// kernel: neural_net_forward.5
$region0: #{neural_net_forward.5}
  #allocation0 [shape = 'u32[]', space=smem, size = 0x4, offset = 0x4, fixed_abs, tag = 'smem constant byte address 0x4 - core index']
  #allocation1 [shape = 'u32[144,128]{1,0:T(1,128)}', space=vmem, size = 0x12000, scoped, tag = 'internal scratch']
  #allocation2 [shape = 'f32[8,2,256]{2,1,0:T(2,128)}', space=vmem, size = 0x4000, scoped, tag = 'scratch operand']
  #allocation3 [shape = 'f32[8,2,64]{2,1,0:T(2,128)}', space=vmem, size = 0x2000, scoped, tag = 'scratch operand']
  %s0 = inlined_call_operand.vmem [shape: f32[8,2,64], index: 0, kind: input, shape index: {}]
  %s1 = inlined_call_operand.vmem [shape: f32[64,256], index: 1, kind: input, shape index: {}]
  %s2 = inlined_call_operand.vmem [shape: f32[32,128], index: 2, kind: input, shape index: {}]
  %s3 = inlined_call_operand.vmem [shape: f32[32,128], index: 3, kind: input, shape index: {}]
  %s4 = inlined_call_operand.vmem [shape: f32[1,256], index: 4, kind: input, shape index: {}]
  %s5 = inlined_call_operand.vmem [shape: f32[64,64], index: 5, kind: input, shape index: {}]
  %s6 = inlined_call_operand.vmem [shape: f32[1,64], index: 6, kind: input, shape index: {}]
  %s7 = inlined_call_operand.vmem [shape: f32[64,64], index: 7, kind: input, shape index: {}]
  %s8 = inlined_call_operand.vmem [shape: f32[1,64], index: 8, kind: input, shape index: {}]
  %s9 = inlined_call_operand.vmem [shape: f32[64,128], index: 9, kind: input, shape index: {}]
  %s10 = inlined_call_operand.vmem [shape: f32[1,128], index: 10, kind: input, shape index: {}]
  %s11 = inlined_call_operand.vmem [shape: f32[8,2,128], index: 11, kind: output, shape index: {}]
  %s12 = sld [smem:[#allocation0]]
  $region54: #{neural_net_forward.5} parent=0
    _
  %s14 = ssub.s32 1, %s12
  %s15 = scalar_select 0, %s14, %s12
  // Predicated region
  $region2: #{neural_net_forward.5} parent=0 // pred_check
    _
  $region3: #{neural_net_forward.5} parent=0 // pred_check_branch
    %17 = sbr.rel (0) target = $region5
  $region4: #{neural_net_forward.5} parent=0 // pred_region
    _
  $region5: #{neural_net_forward.5} parent=0 // pred_fallthru
    _
  // Predicated region
  $region6: #{neural_net_forward.5} parent=0 // pred_check
    _
  $region7: #{neural_net_forward.5} parent=0 // pred_check_branch
    %19 = sbr.rel (0) target = $region9
  $region8: #{neural_net_forward.5} parent=0 // pred_region
    _
  $region9: #{neural_net_forward.5} parent=0 // pred_fallthru
    _
  // Predicated region
  $region10: #{neural_net_forward.5} parent=0 // pred_check
    _
  $region11: #{neural_net_forward.5} parent=0 // pred_check_branch
    %21 = sbr.rel (0) target = $region13
  $region12: #{neural_net_forward.5} parent=0 // pred_region
    _
  $region13: #{neural_net_forward.5} parent=0 // pred_fallthru
    _
  // Predicated region
  $region14: #{neural_net_forward.5} parent=0 // pred_check
    _
  $region15: #{neural_net_forward.5} parent=0 // pred_check_branch
    %23 = sbr.rel (0) target = $region17
  $region16: #{neural_net_forward.5} parent=0 // pred_region
    _
  $region17: #{neural_net_forward.5} parent=0 // pred_fallthru
    _
  // Predicated region
  $region18: #{neural_net_forward.5} parent=0 // pred_check
    _
  $region19: #{neural_net_forward.5} parent=0 // pred_check_branch
    %25 = sbr.rel (0) target = $region21
  $region20: #{neural_net_forward.5} parent=0 // pred_region
    _
  $region21: #{neural_net_forward.5} parent=0 // pred_fallthru
    _
  // Predicated region
  $region22: #{neural_net_forward.5} parent=0 // pred_check
    _
  $region23: #{neural_net_forward.5} parent=0 // pred_check_branch
    %27 = sbr.rel (0) target = $region25
  $region24: #{neural_net_forward.5} parent=0 // pred_region
    _
  $region25: #{neural_net_forward.5} parent=0 // pred_fallthru
    _
  // Predicated region
  $region26: #{neural_net_forward.5} parent=0 // pred_check
    _
  $region27: #{neural_net_forward.5} parent=0 // pred_check_branch
    %29 = sbr.rel (0) target = $region29
  $region28: #{neural_net_forward.5} parent=0 // pred_region
    _
  $region29: #{neural_net_forward.5} parent=0 // pred_fallthru
    _
  // Predicated region
  $region30: #{neural_net_forward.5} parent=0 // pred_check
    _
  $region31: #{neural_net_forward.5} parent=0 // pred_check_branch
    %31 = sbr.rel (0) target = $region33
  $region32: #{neural_net_forward.5} parent=0 // pred_region
    _
  $region33: #{neural_net_forward.5} parent=0 // pred_fallthru
    _
  // Predicated region
  $region34: #{neural_net_forward.5} parent=0 // pred_check
    _
  $region35: #{neural_net_forward.5} parent=0 // pred_check_branch
    %33 = sbr.rel (0) target = $region37
  $region36: #{neural_net_forward.5} parent=0 // pred_region
    _
  $region37: #{neural_net_forward.5} parent=0 // pred_fallthru
    _
  // Predicated region
  $region38: #{neural_net_forward.5} parent=0 // pred_check
    _
  $region39: #{neural_net_forward.5} parent=0 // pred_check_branch
    %35 = sbr.rel (0) target = $region41
  $region40: #{neural_net_forward.5} parent=0 // pred_region
    _
  $region41: #{neural_net_forward.5} parent=0 // pred_fallthru
    _
  // Predicated region
  $region42: #{neural_net_forward.5} parent=0 // pred_check
    _
  $region43: #{neural_net_forward.5} parent=0 // pred_check_branch
    %37 = sbr.rel (0) target = $region45
  $region44: #{neural_net_forward.5} parent=0 // pred_region
    _
  $region45: #{neural_net_forward.5} parent=0 // pred_fallthru
    _
  %v38 = vld [vmem:[%s0] sm:$0x3]
  %v39 = vld [vmem:[%s0 + $0x2] sm:$0x3]
  %v40 = vld [vmem:[%s0 + $0x4] sm:$0x3]
  %v41 = vld [vmem:[%s0 + $0x6] sm:$0x3]
  %v42 = vld [vmem:[%s0 + $0x8] sm:$0x3]
  %v43 = vld [vmem:[%s0 + $0xa] sm:$0x3]
  %v44 = vld [vmem:[%s0 + $0xc] sm:$0x3]
  %v45 = vld [vmem:[%s0 + $0xe] sm:$0x3]
  %v46 = vld [vmem:[%s1] sm:$0xff]
  %v47 = vld [vmem:[%s1 + $0x8] sm:$0xff]
  %v48 = vld [vmem:[%s1 + $0x10] sm:$0xff]
  %v49 = vld [vmem:[%s1 + $0x18] sm:$0xff]
  %v50 = vld [vmem:[%s1 + $0x20] sm:$0xff]
  %v51 = vld [vmem:[%s1 + $0x28] sm:$0xff]
  %v52 = vld [vmem:[%s1 + $0x30] sm:$0xff]
  %v53 = vld [vmem:[%s1 + $0x38] sm:$0xff]
  %v54 = vld [vmem:[%s1 + $0x40] sm:$0xff]
  %v55 = vld [vmem:[%s1 + $0x48] sm:$0xff]
  %v56 = vld [vmem:[%s1 + $0x50] sm:$0xff]
  %v57 = vld [vmem:[%s1 + $0x58] sm:$0xff]
  %v58 = vld [vmem:[%s1 + $0x60] sm:$0xff]
  %v59 = vld [vmem:[%s1 + $0x68] sm:$0xff]
  %v60 = vld [vmem:[%s1 + $0x70] sm:$0xff]
  %v61 = vld [vmem:[%s1 + $0x78] sm:$0xff]
  %v62 = vld [vmem:[%s4] sm:$0x3]
  %v64 = vlaneseq
  %v65 = vshrl.u32 %v64, 7
  %v66 = vsub.s32 0, %v65
  %v67 = vrot.slane %v62, %v66
  %v68 = vlaneseq
  %v69 = vshrl.u32 %v68, 7
  %v70 = vsub.s32 1, %v69
  %v71 = vrot.slane %v62, %v70
  %v72 = vcombine.low %v67, %v71
  %v74 = vunpack.c.l.s4 1983009808
  %v75 = vunpack.c.0.s8 %v74
  %v76 = vlaneseq
  %v77 = vshrl.u32 %v76, 7
  %v78 = vsub.s32 %v75, %v77
  %v79 = vrot.slane %v72, %v78
  %v88 = vcombine.low %v38, %v39
  %v89 = vcombine.low %v40, %v41
  %v91 = vunpack.c.l.s4 1983009808
  %v92 = vunpack.c.0.s8 %v91
  %v93 = vlaneseq
  %v94 = vshrl.u32 %v93, 7
  %v95 = vsub.s32 %v92, %v94
  %v96 = vrot.slane %v88, %v95
  %v98 = vunpack.c.l.s4 1983009808
  %v99 = vunpack.c.0.s8 %v98
  %v100 = vlaneseq
  %v101 = vshrl.u32 %v100, 7
  %v102 = vsub.s32 %v99, %v101
  %v103 = vrot.slane %v89, %v102
  %v104 = vcombine.low %v96, %v103
  %v105 = vcombine.low %v42, %v43
  %v106 = vcombine.low %v44, %v45
  %v108 = vunpack.c.l.s4 1983009808
  %v109 = vunpack.c.0.s8 %v108
  %v110 = vlaneseq
  %v111 = vshrl.u32 %v110, 7
  %v112 = vsub.s32 %v109, %v111
  %v113 = vrot.slane %v105, %v112
  %v115 = vunpack.c.l.s4 1983009808
  %v116 = vunpack.c.0.s8 %v115
  %v117 = vlaneseq
  %v118 = vshrl.u32 %v117, 7
  %v119 = vsub.s32 %v116, %v118
  %v120 = vrot.slane %v106, %v119
  %v121 = vcombine.low %v113, %v120
  %v122 = vcombine.low %v79, %v79
  %v124 = vunpack.c.l.s4 1983009808
  %v125 = vunpack.c.0.s8 %v124
  %v126 = vlaneseq
  %v127 = vshrl.u32 %v126, 7
  %v128 = vsub.s32 %v125, %v127
  %v129 = vrot.slane %v122, %v128
  %v130 = vcombine.low %v129, %v129
  %v131 = vcombine.high %v129, %v129
  %vm134 = vcmask 523264
  %v135 = vsel %vm134, %v104, 0
  %v137 = vsel %vm134, %v121, 0
  %139 = vmatprep.subr.mxu0 0.0
  %140 = vmatpush1.msra.mxu0 0.0
  %141 = vmatprep.subr.mxu0 0.0
  %142 = vmatpush1.msra.mxu0 0.0
  %143 = vmatprep.subr.mxu0 0.0
  %144 = vmatpush1.msra.mxu0 0.0
  %145 = vmatprep.subr.mxu0 0.0
  %146 = vmatpush1.msra.mxu0 0.0
  %147 = vmatprep.subr.mxu0 0.0
  %148 = vmatpush1.msra.mxu0 0.0
  %149 = vmatprep.subr.mxu0 0.0
  %150 = vmatpush1.msra.mxu0 0.0
  %151 = vmatprep.subr.mxu0 0.0
  %152 = vmatpush1.msra.mxu0 0.0
  %153 = vmatprep.subr.mxu0 0.0
  %154 = vmatpush1.msra.mxu0 0.0
  %155 = vmatprep.subr.mxu0 %v61
  %156 = vmatpush1.msra.mxu0 %v60
  %157 = vmatprep.subr.mxu0 %v59
  %158 = vmatpush1.msra.mxu0 %v58
  %159 = vmatprep.subr.mxu0 %v57
  %160 = vmatpush1.msra.mxu0 %v56
  %161 = vmatprep.subr.mxu0 %v55
  %162 = vmatpush1.msra.mxu0 %v54
  %163 = vmatprep.subr.mxu0 %v53
  %164 = vmatpush1.msra.mxu0 %v52
  %165 = vmatprep.subr.mxu0 %v51
  %166 = vmatpush1.msra.mxu0 %v50
  %167 = vmatprep.subr.mxu0 %v49
  %168 = vmatpush1.msra.mxu0 %v48
  %169 = vmatprep.subr.mxu0 %v47
  %170 = vmatpush1.msra.mxu0 %v46
  %171 = vmatprep.subr.mxu0 0.0
  %172 = vmatpush2.msra.mxu0 0.0
  %173 = vmatprep.subr.mxu0 0.0
  %174 = vmatpush2.msra.mxu0 0.0
  %175 = vmatprep.subr.mxu0 0.0
  %176 = vmatpush2.msra.mxu0 0.0
  %177 = vmatprep.subr.mxu0 0.0
  %178 = vmatpush2.msra.mxu0 0.0
  %179 = vmatprep.subr.mxu0 0.0
  %180 = vmatpush2.msra.mxu0 0.0
  %181 = vmatprep.subr.mxu0 0.0
  %182 = vmatpush2.msra.mxu0 0.0
  %183 = vmatprep.subr.mxu0 0.0
  %184 = vmatpush2.msra.mxu0 0.0
  %185 = vmatprep.subr.mxu0 0.0
  %186 = vmatpush2.msra.mxu0 0.0
  %187 = vmatprep.subr.mxu0 0.0
  %188 = vmatpush2.msra.mxu0 0.0
  %189 = vmatprep.subr.mxu0 0.0
  %190 = vmatpush2.msra.mxu0 0.0
  %191 = vmatprep.subr.mxu0 0.0
  %192 = vmatpush2.msra.mxu0 0.0
  %193 = vmatprep.subr.mxu0 0.0
  %194 = vmatpush2.msra.mxu0 0.0
  %195 = vmatprep.subr.mxu0 0.0
  %196 = vmatpush2.msra.mxu0 0.0
  %197 = vmatprep.subr.mxu0 0.0
  %198 = vmatpush2.msra.mxu0 0.0
  %199 = vmatprep.subr.mxu0 0.0
  %200 = vmatpush2.msra.mxu0 0.0
  %201 = vmatprep.subr.mxu0 0.0
  %202 = vmatpush2.msra.mxu0 0.0
  %203 = vmatprep.mubr.f32.mxu0 0.0
  %204 = vmatmul.mubr.f32.gmra.mxu0 %v135
  %v205 = vpop.f32.mrf.mxu0
  %v206 = vadd.f32 %v130, %v205
  %v207 = vpop.f32.mrf.mxu0
  %v208 = vadd.f32 %v131, %v207
  %209 = vmatprep.mubr.f32.mxu0 0.0
  %210 = vmatmul.mubr.f32.gmra.mxu0 %v137
  %v211 = vpop.f32.mrf.mxu0
  %v212 = vadd.f32 %v130, %v211
  %v213 = vpop.f32.mrf.mxu0
  %v214 = vadd.f32 %v131, %v213
  %215 = vdwg.mxu0
  %v220 = vcombine.low %v206, %v208
  %v221 = vcombine.high %v206, %v208
  %v223 = vunpack.c.l.s4 1983009808
  %v224 = vunpack.c.0.s8 %v223
  %v225 = vlaneseq
  %v226 = vshrl.u32 %v225, 7
  %v227 = vsub.s32 %v224, %v226
  %v228 = vrot.slane %v220, %v227
  %v230 = vunpack.c.l.s4 1983009808
  %v231 = vunpack.c.0.s8 %v230
  %v232 = vlaneseq
  %v233 = vshrl.u32 %v232, 7
  %v234 = vsub.s32 %v231, %v233
  %v235 = vrot.slane %v221, %v234
  %v236 = vcombine.high %v228, %v228
  %v237 = vcombine.high %v235, %v235
  %v238 = vcombine.low %v212, %v214
  %v239 = vcombine.high %v212, %v214
  %v241 = vunpack.c.l.s4 1983009808
  %v242 = vunpack.c.0.s8 %v241
  %v243 = vlaneseq
  %v244 = vshrl.u32 %v243, 7
  %v245 = vsub.s32 %v242, %v244
  %v246 = vrot.slane %v238, %v245
  %v248 = vunpack.c.l.s4 1983009808
  %v249 = vunpack.c.0.s8 %v248
  %v250 = vlaneseq
  %v251 = vshrl.u32 %v250, 7
  %v252 = vsub.s32 %v249, %v251
  %v253 = vrot.slane %v239, %v252
  %v254 = vcombine.high %v246, %v246
  %v255 = vcombine.high %v253, %v253
  %264 = vst [vmem:[#allocation2] sm:$0xf] %v228
  %265 = vst [vmem:[#allocation2 + $0x4] sm:$0xf] %v236
  %266 = vst [vmem:[#allocation2 + $0x8] sm:$0xf] %v235
  %267 = vst [vmem:[#allocation2 + $0xc] sm:$0xf] %v237
  %268 = vst [vmem:[#allocation2 + $0x10] sm:$0xf] %v246
  %269 = vst [vmem:[#allocation2 + $0x14] sm:$0xf] %v254
  %270 = vst [vmem:[#allocation2 + $0x18] sm:$0xf] %v253
  %271 = vst [vmem:[#allocation2 + $0x1c] sm:$0xf] %v255
  %v272 = vld [vmem:[%s2] sm:$0xff]
  %v273 = vld [vmem:[%s2 + $0x8] sm:$0xff]
  %v274 = vld [vmem:[%s2 + $0x10] sm:$0xff]
  %v275 = vld [vmem:[%s2 + $0x18] sm:$0xff]
  %v276 = vld [vmem:[%s3] sm:$0xff]
  %v277 = vld [vmem:[%s3 + $0x8] sm:$0xff]
  %v278 = vld [vmem:[%s3 + $0x10] sm:$0xff]
  %v279 = vld [vmem:[%s3 + $0x18] sm:$0xff]
  %v280 = vld [vmem:[#allocation2] sm:$0x3]
  %vm281 = vcmask 261120
  %v283 = vsel %vm281, 0.0, 0
  %285 = vmatprep.subr.mxu0 0.0
  %286 = vmatpush1.msra.mxu0 0.0
  %287 = vmatprep.subr.mxu0 0.0
  %288 = vmatpush1.msra.mxu0 0.0
  %289 = vmatprep.subr.mxu0 0.0
  %290 = vmatpush1.msra.mxu0 0.0
  %291 = vmatprep.subr.mxu0 0.0
  %292 = vmatpush1.msra.mxu0 0.0
  %293 = vmatprep.subr.mxu0 0.0
  %294 = vmatpush1.msra.mxu0 0.0
  %295 = vmatprep.subr.mxu0 0.0
  %296 = vmatpush1.msra.mxu0 0.0
  %297 = vmatprep.subr.mxu0 0.0
  %298 = vmatpush1.msra.mxu0 0.0
  %299 = vmatprep.subr.mxu0 0.0
  %300 = vmatpush1.msra.mxu0 0.0
  %301 = vmatprep.subr.mxu0 0.0
  %302 = vmatpush1.msra.mxu0 0.0
  %303 = vmatprep.subr.mxu0 0.0
  %304 = vmatpush1.msra.mxu0 0.0
  %305 = vmatprep.subr.mxu0 0.0
  %306 = vmatpush1.msra.mxu0 0.0
  %307 = vmatprep.subr.mxu0 0.0
  %308 = vmatpush1.msra.mxu0 0.0
  %309 = vmatprep.subr.mxu0 0.0
  %310 = vmatpush1.msra.mxu0 %v275
  %311 = vmatprep.subr.mxu0 0.0
  %312 = vmatpush1.msra.mxu0 %v274
  %313 = vmatprep.subr.mxu0 0.0
  %314 = vmatpush1.msra.mxu0 %v273
  %315 = vmatprep.subr.mxu0 0.0
  %316 = vmatpush1.msra.mxu0 %v272
  %317 = vmatprep.subr.mxu0 0.0
  %318 = vmatpush2.msra.mxu0 0.0
  %319 = vmatprep.subr.mxu0 0.0
  %320 = vmatpush2.msra.mxu0 0.0
  %321 = vmatprep.subr.mxu0 0.0
  %322 = vmatpush2.msra.mxu0 0.0
  %323 = vmatprep.subr.mxu0 0.0
  %324 = vmatpush2.msra.mxu0 0.0
  %325 = vmatprep.subr.mxu0 0.0
  %326 = vmatpush2.msra.mxu0 0.0
  %327 = vmatprep.subr.mxu0 0.0
  %328 = vmatpush2.msra.mxu0 0.0
  %329 = vmatprep.subr.mxu0 0.0
  %330 = vmatpush2.msra.mxu0 0.0
  %331 = vmatprep.subr.mxu0 0.0
  %332 = vmatpush2.msra.mxu0 0.0
  %333 = vmatprep.subr.mxu0 0.0
  %334 = vmatpush2.msra.mxu0 0.0
  %335 = vmatprep.subr.mxu0 0.0
  %336 = vmatpush2.msra.mxu0 0.0
  %337 = vmatprep.subr.mxu0 0.0
  %338 = vmatpush2.msra.mxu0 0.0
  %339 = vmatprep.subr.mxu0 0.0
  %340 = vmatpush2.msra.mxu0 0.0
  %341 = vmatprep.subr.mxu0 0.0
  %342 = vmatpush2.msra.mxu0 0.0
  %343 = vmatprep.subr.mxu0 0.0
  %344 = vmatpush2.msra.mxu0 0.0
  %345 = vmatprep.subr.mxu0 0.0
  %346 = vmatpush2.msra.mxu0 0.0
  %347 = vmatprep.subr.mxu0 0.0
  %348 = vmatpush2.msra.mxu0 0.0
  %349 = vmatprep.mubr.f32.mxu0 0.0
  %350 = vmatmul.mubr.f32.gmra.mxu0 %v283
  %v351 = vpop.f32.mrf.mxu0
  %v352 = vadd.f32 0.0, %v351
  %v353 = vpop.f32.mrf.mxu0
  %354 = vdwg.mxu0
  %v355 = vadd.f32 %v280, %v352
  %v356 = vxor.u32 %v355, 2147483648
  %v357 = vmul.f32 %v356, 1.442695
  %v358 = vpow.pop %v357
  %v359 = vadd.f32 %v358, 1.0
  %v360 = vrcp.pop %v359
  %v361 = vmul.f32 1.0, %v360
  %v362 = vtanh.pop %v355
  %v363 = vmul.f32 %v361, 0.0
  %365 = vrot.lane.b32.xlu0 %v362, 64
  %v366 = vpop.permute.xlu0 %365
  %v368 = vmul.f32 %v361, %v366
  %370 = vrot.lane.b32.xlu0 %v368, 32
  %v371 = vpop.permute.xlu0 %370
  %v373 = vadd.f32 %v363, %v371
  %v374 = vtanh.pop %v373
  %376 = vrot.lane.b32.xlu0 %v374, 64
  %v377 = vpop.permute.xlu0 %376
  %v379 = vmul.f32 %v361, %v377
  %s380 = scalar_lea.vmem [#allocation2], 28
  %v381 = vld [vmem:[%s380 + $0x2] sm:$0x3]
  %382 = vmatprep.subr.mxu0 0.0
  %383 = vmatpush1.msra.mxu0 0.0
  %384 = vmatprep.subr.mxu0 0.0
  %385 = vmatpush1.msra.mxu0 0.0
  %386 = vmatprep.subr.mxu0 0.0
  %387 = vmatpush1.msra.mxu0 0.0
  %388 = vmatprep.subr.mxu0 0.0
  %389 = vmatpush1.msra.mxu0 0.0
  %390 = vmatprep.subr.mxu0 0.0
  %391 = vmatpush1.msra.mxu0 0.0
  %392 = vmatprep.subr.mxu0 0.0
  %393 = vmatpush1.msra.mxu0 0.0
  %394 = vmatprep.subr.mxu0 0.0
  %395 = vmatpush1.msra.mxu0 0.0
  %396 = vmatprep.subr.mxu0 0.0
  %397 = vmatpush1.msra.mxu0 0.0
  %398 = vmatprep.subr.mxu0 0.0
  %399 = vmatpush1.msra.mxu0 0.0
  %400 = vmatprep.subr.mxu0 0.0
  %401 = vmatpush1.msra.mxu0 0.0
  %402 = vmatprep.subr.mxu0 0.0
  %403 = vmatpush1.msra.mxu0 0.0
  %404 = vmatprep.subr.mxu0 0.0
  %405 = vmatpush1.msra.mxu0 0.0
  %406 = vmatprep.subr.mxu0 0.0
  %407 = vmatpush1.msra.mxu0 %v279
  %408 = vmatprep.subr.mxu0 0.0
  %409 = vmatpush1.msra.mxu0 %v278
  %410 = vmatprep.subr.mxu0 0.0
  %411 = vmatpush1.msra.mxu0 %v277
  %412 = vmatprep.subr.mxu0 0.0
  %413 = vmatpush1.msra.mxu0 %v276
  %414 = vmatprep.subr.mxu0 0.0
  %415 = vmatpush2.msra.mxu0 0.0
  %416 = vmatprep.subr.mxu0 0.0
  %417 = vmatpush2.msra.mxu0 0.0
  %418 = vmatprep.subr.mxu0 0.0
  %419 = vmatpush2.msra.mxu0 0.0
  %420 = vmatprep.subr.mxu0 0.0
  %421 = vmatpush2.msra.mxu0 0.0
  %422 = vmatprep.subr.mxu0 0.0
  %423 = vmatpush2.msra.mxu0 0.0
  %424 = vmatprep.subr.mxu0 0.0
  %425 = vmatpush2.msra.mxu0 0.0
  %426 = vmatprep.subr.mxu0 0.0
  %427 = vmatpush2.msra.mxu0 0.0
  %428 = vmatprep.subr.mxu0 0.0
  %429 = vmatpush2.msra.mxu0 0.0
  %430 = vmatprep.subr.mxu0 0.0
  %431 = vmatpush2.msra.mxu0 0.0
  %432 = vmatprep.subr.mxu0 0.0
  %433 = vmatpush2.msra.mxu0 0.0
  %434 = vmatprep.subr.mxu0 0.0
  %435 = vmatpush2.msra.mxu0 0.0
  %436 = vmatprep.subr.mxu0 0.0
  %437 = vmatpush2.msra.mxu0 0.0
  %438 = vmatprep.subr.mxu0 0.0
  %439 = vmatpush2.msra.mxu0 0.0
  %440 = vmatprep.subr.mxu0 0.0
  %441 = vmatpush2.msra.mxu0 0.0
  %442 = vmatprep.subr.mxu0 0.0
  %443 = vmatpush2.msra.mxu0 0.0
  %444 = vmatprep.subr.mxu0 0.0
  %445 = vmatpush2.msra.mxu0 0.0
  %446 = vmatprep.mubr.f32.mxu0 0.0
  %447 = vmatmul.mubr.f32.gmra.mxu0 %v283
  %v448 = vpop.f32.mrf.mxu0
  %v449 = vadd.f32 0.0, %v448
  %v450 = vpop.f32.mrf.mxu0
  %451 = vdwg.mxu0
  %v452 = vadd.f32 %v381, %v449
  %v453 = vxor.u32 %v452, 2147483648
  %v454 = vmul.f32 %v453, 1.442695
  %v455 = vpow.pop %v454
  %v456 = vadd.f32 %v455, 1.0
  %v457 = vrcp.pop %v456
  %v458 = vmul.f32 1.0, %v457
  %v459 = vtanh.pop %v452
  %v460 = vmul.f32 %v458, 0.0
  %462 = vrot.lane.b32.xlu0 %v459, 64
  %v463 = vpop.permute.xlu0 %462
  %v465 = vmul.f32 %v458, %v463
  %467 = vrot.lane.b32.xlu0 %v465, 32
  %v468 = vpop.permute.xlu0 %467
  %v470 = vadd.f32 %v460, %v468
  %v471 = vtanh.pop %v470
  %473 = vrot.lane.b32.xlu0 %v471, 64
  %v474 = vpop.permute.xlu0 %473
  %v476 = vmul.f32 %v458, %v474
  %v479 = vunpack.c.l.s4 1983009808
  %v480 = vunpack.c.0.s8 %v479
  %v481 = vlaneseq
  %v482 = vshrl.u32 %v481, 7
  %v483 = vsub.s32 %v480, %v482
  %v484 = vrot.slane %v379, %v483
  %485 = vrot.lane.b32.xlu0 %v484, 32
  %v486 = vpop.permute.xlu0 %485
  %vm488 = vcmask 254976
  %489 = vst.msk [vmem:[#allocation3] sm:$0x3] %vm488, %v486
  %v492 = vunpack.c.l.s4 1983009808
  %v493 = vunpack.c.0.s8 %v492
  %v494 = vlaneseq
  %v495 = vshrl.u32 %v494, 7
  %v496 = vsub.s32 %v493, %v495
  %v497 = vrot.slane %v476, %v496
  %498 = vrot.lane.b32.xlu0 %v497, 64
  %v499 = vpop.permute.xlu0 %498
  %s501 = scalar_lea.vmem [#allocation3], 14
  %vm502 = vcmask 517376
  %503 = vst.msk [vmem:[%s501] sm:$0x3] %vm502, %v499
  %s504 = scalar_lea.vmem [#allocation2], 4
  %v505 = vld [vmem:[%s504] sm:$0x3]
  %v506 = vsel %vm281, %v486, 0
  %508 = vmatprep.subr.mxu0 0.0
  %509 = vmatpush1.msra.mxu0 0.0
  %510 = vmatprep.subr.mxu0 0.0
  %511 = vmatpush1.msra.mxu0 0.0
  %512 = vmatprep.subr.mxu0 0.0
  %513 = vmatpush1.msra.mxu0 0.0
  %514 = vmatprep.subr.mxu0 0.0
  %515 = vmatpush1.msra.mxu0 0.0
  %516 = vmatprep.subr.mxu0 0.0
  %517 = vmatpush1.msra.mxu0 0.0
  %518 = vmatprep.subr.mxu0 0.0
  %519 = vmatpush1.msra.mxu0 0.0
  %520 = vmatprep.subr.mxu0 0.0
  %521 = vmatpush1.msra.mxu0 0.0
  %522 = vmatprep.subr.mxu0 0.0
  %523 = vmatpush1.msra.mxu0 0.0
  %524 = vmatprep.subr.mxu0 0.0
  %525 = vmatpush1.msra.mxu0 0.0
  %526 = vmatprep.subr.mxu0 0.0
  %527 = vmatpush1.msra.mxu0 0.0
  %528 = vmatprep.subr.mxu0 0.0
  %529 = vmatpush1.msra.mxu0 0.0
  %530 = vmatprep.subr.mxu0 0.0
  %531 = vmatpush1.msra.mxu0 0.0
  %532 = vmatprep.subr.mxu0 0.0
  %533 = vmatpush1.msra.mxu0 %v275
  %534 = vmatprep.subr.mxu0 0.0
  %535 = vmatpush1.msra.mxu0 %v274
  %536 = vmatprep.subr.mxu0 0.0
  %537 = vmatpush1.msra.mxu0 %v273
  %538 = vmatprep.subr.mxu0 0.0
  %539 = vmatpush1.msra.mxu0 %v272
  %540 = vmatprep.subr.mxu0 0.0
  %541 = vmatpush2.msra.mxu0 0.0
  %542 = vmatprep.subr.mxu0 0.0
  %543 = vmatpush2.msra.mxu0 0.0
  %544 = vmatprep.subr.mxu0 0.0
  %545 = vmatpush2.msra.mxu0 0.0
  %546 = vmatprep.subr.mxu0 0.0
  %547 = vmatpush2.msra.mxu0 0.0
  %548 = vmatprep.subr.mxu0 0.0
  %549 = vmatpush2.msra.mxu0 0.0
  %550 = vmatprep.subr.mxu0 0.0
  %551 = vmatpush2.msra.mxu0 0.0
  %552 = vmatprep.subr.mxu0 0.0
  %553 = vmatpush2.msra.mxu0 0.0
  %554 = vmatprep.subr.mxu0 0.0
  %555 = vmatpush2.msra.mxu0 0.0
  %556 = vmatprep.subr.mxu0 0.0
  %557 = vmatpush2.msra.mxu0 0.0
  %558 = vmatprep.subr.mxu0 0.0
  %559 = vmatpush2.msra.mxu0 0.0
  %560 = vmatprep.subr.mxu0 0.0
  %561 = vmatpush2.msra.mxu0 0.0
  %562 = vmatprep.subr.mxu0 0.0
  %563 = vmatpush2.msra.mxu0 0.0
  %564 = vmatprep.subr.mxu0 0.0
  %565 = vmatpush2.msra.mxu0 0.0
  %566 = vmatprep.subr.mxu0 0.0
  %567 = vmatpush2.msra.mxu0 0.0
  %568 = vmatprep.subr.mxu0 0.0
  %569 = vmatpush2.msra.mxu0 0.0
  %570 = vmatprep.subr.mxu0 0.0
  %571 = vmatpush2.msra.mxu0 0.0
  %572 = vmatprep.mubr.f32.mxu0 0.0
  %573 = vmatmul.mubr.f32.gmra.mxu0 %v506
  %v574 = vpop.f32.mrf.mxu0
  %v575 = vadd.f32 0.0, %v574
  %v576 = vpop.f32.mrf.mxu0
  %577 = vdwg.mxu0
  %v578 = vadd.f32 %v505, %v575
  %v579 = vxor.u32 %v578, 2147483648
  %v580 = vmul.f32 %v579, 1.442695
  %v581 = vpow.pop %v580
  %v582 = vadd.f32 %v581, 1.0
  %v583 = vrcp.pop %v582
  %v584 = vmul.f32 1.0, %v583
  %v585 = vtanh.pop %v578
  %v586 = vmul.f32 %v584, %v373
  %588 = vrot.lane.b32.xlu0 %v585, 64
  %v589 = vpop.permute.xlu0 %588
  %v591 = vmul.f32 %v584, %v589
  %593 = vrot.lane.b32.xlu0 %v591, 32
  %v594 = vpop.permute.xlu0 %593
  %v596 = vadd.f32 %v586, %v594
  %v597 = vtanh.pop %v596
  %599 = vrot.lane.b32.xlu0 %v597, 64
  %v600 = vpop.permute.xlu0 %599
  %v602 = vmul.f32 %v584, %v600
  %s603 = scalar_lea.vmem [#allocation2], 24
  %v604 = vld [vmem:[%s603 + $0x2] sm:$0x3]
  %605 = vrot.lane.b32.xlu0 %v497, 32
  %v606 = vpop.permute.xlu0 %605
  %v607 = vsel %vm281, %v606, 0
  %609 = vmatprep.subr.mxu0 0.0
  %610 = vmatpush1.msra.mxu0 0.0
  %611 = vmatprep.subr.mxu0 0.0
  %612 = vmatpush1.msra.mxu0 0.0
  %613 = vmatprep.subr.mxu0 0.0
  %614 = vmatpush1.msra.mxu0 0.0
  %615 = vmatprep.subr.mxu0 0.0
  %616 = vmatpush1.msra.mxu0 0.0
  %617 = vmatprep.subr.mxu0 0.0
  %618 = vmatpush1.msra.mxu0 0.0
  %619 = vmatprep.subr.mxu0 0.0
  %620 = vmatpush1.msra.mxu0 0.0
  %621 = vmatprep.subr.mxu0 0.0
  %622 = vmatpush1.msra.mxu0 0.0
  %623 = vmatprep.subr.mxu0 0.0
  %624 = vmatpush1.msra.mxu0 0.0
  %625 = vmatprep.subr.mxu0 0.0
  %626 = vmatpush1.msra.mxu0 0.0
  %627 = vmatprep.subr.mxu0 0.0
  %628 = vmatpush1.msra.mxu0 0.0
  %629 = vmatprep.subr.mxu0 0.0
  %630 = vmatpush1.msra.mxu0 0.0
  %631 = vmatprep.subr.mxu0 0.0
  %632 = vmatpush1.msra.mxu0 0.0
  %633 = vmatprep.subr.mxu0 0.0
  %634 = vmatpush1.msra.mxu0 %v279
  %635 = vmatprep.subr.mxu0 0.0
  %636 = vmatpush1.msra.mxu0 %v278
  %637 = vmatprep.subr.mxu0 0.0
  %638 = vmatpush1.msra.mxu0 %v277
  %639 = vmatprep.subr.mxu0 0.0
  %640 = vmatpush1.msra.mxu0 %v276
  %641 = vmatprep.subr.mxu0 0.0
  %642 = vmatpush2.msra.mxu0 0.0
  %643 = vmatprep.subr.mxu0 0.0
  %644 = vmatpush2.msra.mxu0 0.0
  %645 = vmatprep.subr.mxu0 0.0
  %646 = vmatpush2.msra.mxu0 0.0
  %647 = vmatprep.subr.mxu0 0.0
  %648 = vmatpush2.msra.mxu0 0.0
  %649 = vmatprep.subr.mxu0 0.0
  %650 = vmatpush2.msra.mxu0 0.0
  %651 = vmatprep.subr.mxu0 0.0
  %652 = vmatpush2.msra.mxu0 0.0
  %653 = vmatprep.subr.mxu0 0.0
  %654 = vmatpush2.msra.mxu0 0.0
  %655 = vmatprep.subr.mxu0 0.0
  %656 = vmatpush2.msra.mxu0 0.0
  %657 = vmatprep.subr.mxu0 0.0
  %658 = vmatpush2.msra.mxu0 0.0
  %659 = vmatprep.subr.mxu0 0.0
  %660 = vmatpush2.msra.mxu0 0.0
  %661 = vmatprep.subr.mxu0 0.0
  %662 = vmatpush2.msra.mxu0 0.0
  %663 = vmatprep.subr.mxu0 0.0
  %664 = vmatpush2.msra.mxu0 0.0
  %665 = vmatprep.subr.mxu0 0.0
  %666 = vmatpush2.msra.mxu0 0.0
  %667 = vmatprep.subr.mxu0 0.0
  %668 = vmatpush2.msra.mxu0 0.0
  %669 = vmatprep.subr.mxu0 0.0
  %670 = vmatpush2.msra.mxu0 0.0
  %671 = vmatprep.subr.mxu0 0.0
  %672 = vmatpush2.msra.mxu0 0.0
  %673 = vmatprep.mubr.f32.mxu0 0.0
  %674 = vmatmul.mubr.f32.gmra.mxu0 %v607
  %v675 = vpop.f32.mrf.mxu0
  %v676 = vadd.f32 0.0, %v675
  %v677 = vpop.f32.mrf.mxu0
  %678 = vdwg.mxu0
  %v679 = vadd.f32 %v604, %v676
  %v680 = vxor.u32 %v679, 2147483648
  %v681 = vmul.f32 %v680, 1.442695
  %v682 = vpow.pop %v681
  %v683 = vadd.f32 %v682, 1.0
  %v684 = vrcp.pop %v683
  %v685 = vmul.f32 1.0, %v684
  %v686 = vtanh.pop %v679
  %v687 = vmul.f32 %v685, %v470
  %689 = vrot.lane.b32.xlu0 %v686, 64
  %v690 = vpop.permute.xlu0 %689
  %v692 = vmul.f32 %v685, %v690
  %694 = vrot.lane.b32.xlu0 %v692, 32
  %v695 = vpop.permute.xlu0 %694
  %v697 = vadd.f32 %v687, %v695
  %v698 = vtanh.pop %v697
  %700 = vrot.lane.b32.xlu0 %v698, 64
  %v701 = vpop.permute.xlu0 %700
  %v703 = vmul.f32 %v685, %v701
  %v706 = vunpack.c.l.s4 1983009808
  %v707 = vunpack.c.0.s8 %v706
  %v708 = vlaneseq
  %v709 = vshrl.u32 %v708, 7
  %v710 = vsub.s32 %v707, %v709
  %v711 = vrot.slane %v602, %v710
  %712 = vrot.lane.b32.xlu0 %v711, 32
  %v713 = vpop.permute.xlu0 %712
  %s715 = scalar_lea.vmem [#allocation3], 2
  %716 = vst.msk [vmem:[%s715] sm:$0x3] %vm488, %v713
  %v719 = vunpack.c.l.s4 1983009808
  %v720 = vunpack.c.0.s8 %v719
  %v721 = vlaneseq
  %v722 = vshrl.u32 %v721, 7
  %v723 = vsub.s32 %v720, %v722
  %v724 = vrot.slane %v703, %v723
  %725 = vrot.lane.b32.xlu0 %v724, 64
  %v726 = vpop.permute.xlu0 %725
  %s728 = scalar_lea.vmem [#allocation3], 12
  %729 = vst.msk [vmem:[%s728] sm:$0x3] %vm502, %v726
  %s730 = scalar_lea.vmem [#allocation2], 8
  %v731 = vld [vmem:[%s730] sm:$0x3]
  %v732 = vsel %vm281, %v713, 0
  %734 = vmatprep.subr.mxu0 0.0
  %735 = vmatpush1.msra.mxu0 0.0
  %736 = vmatprep.subr.mxu0 0.0
  %737 = vmatpush1.msra.mxu0 0.0
  %738 = vmatprep.subr.mxu0 0.0
  %739 = vmatpush1.msra.mxu0 0.0
  %740 = vmatprep.subr.mxu0 0.0
  %741 = vmatpush1.msra.mxu0 0.0
  %742 = vmatprep.subr.mxu0 0.0
  %743 = vmatpush1.msra.mxu0 0.0
  %744 = vmatprep.subr.mxu0 0.0
  %745 = vmatpush1.msra.mxu0 0.0
  %746 = vmatprep.subr.mxu0 0.0
  %747 = vmatpush1.msra.mxu0 0.0
  %748 = vmatprep.subr.mxu0 0.0
  %749 = vmatpush1.msra.mxu0 0.0
  %750 = vmatprep.subr.mxu0 0.0
  %751 = vmatpush1.msra.mxu0 0.0
  %752 = vmatprep.subr.mxu0 0.0
  %753 = vmatpush1.msra.mxu0 0.0
  %754 = vmatprep.subr.mxu0 0.0
  %755 = vmatpush1.msra.mxu0 0.0
  %756 = vmatprep.subr.mxu0 0.0
  %757 = vmatpush1.msra.mxu0 0.0
  %758 = vmatprep.subr.mxu0 0.0
  %759 = vmatpush1.msra.mxu0 %v275
  %760 = vmatprep.subr.mxu0 0.0
  %761 = vmatpush1.msra.mxu0 %v274
  %762 = vmatprep.subr.mxu0 0.0
  %763 = vmatpush1.msra.mxu0 %v273
  %764 = vmatprep.subr.mxu0 0.0
  %765 = vmatpush1.msra.mxu0 %v272
  %766 = vmatprep.subr.mxu0 0.0
  %767 = vmatpush2.msra.mxu0 0.0
  %768 = vmatprep.subr.mxu0 0.0
  %769 = vmatpush2.msra.mxu0 0.0
  %770 = vmatprep.subr.mxu0 0.0
  %771 = vmatpush2.msra.mxu0 0.0
  %772 = vmatprep.subr.mxu0 0.0
  %773 = vmatpush2.msra.mxu0 0.0
  %774 = vmatprep.subr.mxu0 0.0
  %775 = vmatpush2.msra.mxu0 0.0
  %776 = vmatprep.subr.mxu0 0.0
  %777 = vmatpush2.msra.mxu0 0.0
  %778 = vmatprep.subr.mxu0 0.0
  %779 = vmatpush2.msra.mxu0 0.0
  %780 = vmatprep.subr.mxu0 0.0
  %781 = vmatpush2.msra.mxu0 0.0
  %782 = vmatprep.subr.mxu0 0.0
  %783 = vmatpush2.msra.mxu0 0.0
  %784 = vmatprep.subr.mxu0 0.0
  %785 = vmatpush2.msra.mxu0 0.0
  %786 = vmatprep.subr.mxu0 0.0
  %787 = vmatpush2.msra.mxu0 0.0
  %788 = vmatprep.subr.mxu0 0.0
  %789 = vmatpush2.msra.mxu0 0.0
  %790 = vmatprep.subr.mxu0 0.0
  %791 = vmatpush2.msra.mxu0 0.0
  %792 = vmatprep.subr.mxu0 0.0
  %793 = vmatpush2.msra.mxu0 0.0
  %794 = vmatprep.subr.mxu0 0.0
  %795 = vmatpush2.msra.mxu0 0.0
  %796 = vmatprep.subr.mxu0 0.0
  %797 = vmatpush2.msra.mxu0 0.0
  %798 = vmatprep.mubr.f32.mxu0 0.0
  %799 = vmatmul.mubr.f32.gmra.mxu0 %v732
  %v800 = vpop.f32.mrf.mxu0
  %v801 = vadd.f32 0.0, %v800
  %v802 = vpop.f32.mrf.mxu0
  %803 = vdwg.mxu0
  %v804 = vadd.f32 %v731, %v801
  %v805 = vxor.u32 %v804, 2147483648
  %v806 = vmul.f32 %v805, 1.442695
  %v807 = vpow.pop %v806
  %v808 = vadd.f32 %v807, 1.0
  %v809 = vrcp.pop %v808
  %v810 = vmul.f32 1.0, %v809
  %v811 = vtanh.pop %v804
  %v812 = vmul.f32 %v810, %v596
  %814 = vrot.lane.b32.xlu0 %v811, 64
  %v815 = vpop.permute.xlu0 %814
  %v817 = vmul.f32 %v810, %v815
  %819 = vrot.lane.b32.xlu0 %v817, 32
  %v820 = vpop.permute.xlu0 %819
  %v822 = vadd.f32 %v812, %v820
  %v823 = vtanh.pop %v822
  %825 = vrot.lane.b32.xlu0 %v823, 64
  %v826 = vpop.permute.xlu0 %825
  %v828 = vmul.f32 %v810, %v826
  %s829 = scalar_lea.vmem [#allocation2], 20
  %v830 = vld [vmem:[%s829 + $0x2] sm:$0x3]
  %831 = vrot.lane.b32.xlu0 %v724, 32
  %v832 = vpop.permute.xlu0 %831
  %v833 = vsel %vm281, %v832, 0
  %835 = vmatprep.subr.mxu0 0.0
  %836 = vmatpush1.msra.mxu0 0.0
  %837 = vmatprep.subr.mxu0 0.0
  %838 = vmatpush1.msra.mxu0 0.0
  %839 = vmatprep.subr.mxu0 0.0
  %840 = vmatpush1.msra.mxu0 0.0
  %841 = vmatprep.subr.mxu0 0.0
  %842 = vmatpush1.msra.mxu0 0.0
  %843 = vmatprep.subr.mxu0 0.0
  %844 = vmatpush1.msra.mxu0 0.0
  %845 = vmatprep.subr.mxu0 0.0
  %846 = vmatpush1.msra.mxu0 0.0
  %847 = vmatprep.subr.mxu0 0.0
  %848 = vmatpush1.msra.mxu0 0.0
  %849 = vmatprep.subr.mxu0 0.0
  %850 = vmatpush1.msra.mxu0 0.0
  %851 = vmatprep.subr.mxu0 0.0
  %852 = vmatpush1.msra.mxu0 0.0
  %853 = vmatprep.subr.mxu0 0.0
  %854 = vmatpush1.msra.mxu0 0.0
  %855 = vmatprep.subr.mxu0 0.0
  %856 = vmatpush1.msra.mxu0 0.0
  %857 = vmatprep.subr.mxu0 0.0
  %858 = vmatpush1.msra.mxu0 0.0
  %859 = vmatprep.subr.mxu0 0.0
  %860 = vmatpush1.msra.mxu0 %v279
  %861 = vmatprep.subr.mxu0 0.0
  %862 = vmatpush1.msra.mxu0 %v278
  %863 = vmatprep.subr.mxu0 0.0
  %864 = vmatpush1.msra.mxu0 %v277
  %865 = vmatprep.subr.mxu0 0.0
  %866 = vmatpush1.msra.mxu0 %v276
  %867 = vmatprep.subr.mxu0 0.0
  %868 = vmatpush2.msra.mxu0 0.0
  %869 = vmatprep.subr.mxu0 0.0
  %870 = vmatpush2.msra.mxu0 0.0
  %871 = vmatprep.subr.mxu0 0.0
  %872 = vmatpush2.msra.mxu0 0.0
  %873 = vmatprep.subr.mxu0 0.0
  %874 = vmatpush2.msra.mxu0 0.0
  %875 = vmatprep.subr.mxu0 0.0
  %876 = vmatpush2.msra.mxu0 0.0
  %877 = vmatprep.subr.mxu0 0.0
  %878 = vmatpush2.msra.mxu0 0.0
  %879 = vmatprep.subr.mxu0 0.0
  %880 = vmatpush2.msra.mxu0 0.0
  %881 = vmatprep.subr.mxu0 0.0
  %882 = vmatpush2.msra.mxu0 0.0
  %883 = vmatprep.subr.mxu0 0.0
  %884 = vmatpush2.msra.mxu0 0.0
  %885 = vmatprep.subr.mxu0 0.0
  %886 = vmatpush2.msra.mxu0 0.0
  %887 = vmatprep.subr.mxu0 0.0
  %888 = vmatpush2.msra.mxu0 0.0
  %889 = vmatprep.subr.mxu0 0.0
  %890 = vmatpush2.msra.mxu0 0.0
  %891 = vmatprep.subr.mxu0 0.0
  %892 = vmatpush2.msra.mxu0 0.0
  %893 = vmatprep.subr.mxu0 0.0
  %894 = vmatpush2.msra.mxu0 0.0
  %895 = vmatprep.subr.mxu0 0.0
  %896 = vmatpush2.msra.mxu0 0.0
  %897 = vmatprep.subr.mxu0 0.0
  %898 = vmatpush2.msra.mxu0 0.0
  %899 = vmatprep.mubr.f32.mxu0 0.0
  %900 = vmatmul.mubr.f32.gmra.mxu0 %v833
  %v901 = vpop.f32.mrf.mxu0
  %v902 = vadd.f32 0.0, %v901
  %v903 = vpop.f32.mrf.mxu0
  %904 = vdwg.mxu0
  %v905 = vadd.f32 %v830, %v902
  %v906 = vxor.u32 %v905, 2147483648
  %v907 = vmul.f32 %v906, 1.442695
  %v908 = vpow.pop %v907
  %v909 = vadd.f32 %v908, 1.0
  %v910 = vrcp.pop %v909
  %v911 = vmul.f32 1.0, %v910
  %v912 = vtanh.pop %v905
  %v913 = vmul.f32 %v911, %v697
  %915 = vrot.lane.b32.xlu0 %v912, 64
  %v916 = vpop.permute.xlu0 %915
  %v918 = vmul.f32 %v911, %v916
  %920 = vrot.lane.b32.xlu0 %v918, 32
  %v921 = vpop.permute.xlu0 %920
  %v923 = vadd.f32 %v913, %v921
  %v924 = vtanh.pop %v923
  %926 = vrot.lane.b32.xlu0 %v924, 64
  %v927 = vpop.permute.xlu0 %926
  %v929 = vmul.f32 %v911, %v927
  %v932 = vunpack.c.l.s4 1983009808
  %v933 = vunpack.c.0.s8 %v932
  %v934 = vlaneseq
  %v935 = vshrl.u32 %v934, 7
  %v936 = vsub.s32 %v933, %v935
  %v937 = vrot.slane %v828, %v936
  %938 = vrot.lane.b32.xlu0 %v937, 32
  %v939 = vpop.permute.xlu0 %938
  %s941 = scalar_lea.vmem [#allocation3], 4
  %942 = vst.msk [vmem:[%s941] sm:$0x3] %vm488, %v939
  %v945 = vunpack.c.l.s4 1983009808
  %v946 = vunpack.c.0.s8 %v945
  %v947 = vlaneseq
  %v948 = vshrl.u32 %v947, 7
  %v949 = vsub.s32 %v946, %v948
  %v950 = vrot.slane %v929, %v949
  %951 = vrot.lane.b32.xlu0 %v950, 64
  %v952 = vpop.permute.xlu0 %951
  %s954 = scalar_lea.vmem [#allocation3], 10
  %955 = vst.msk [vmem:[%s954] sm:$0x3] %vm502, %v952
  %s956 = scalar_lea.vmem [#allocation2], 12
  %v957 = vld [vmem:[%s956] sm:$0x3]
  %v958 = vsel %vm281, %v939, 0
  %960 = vmatprep.subr.mxu0 0.0
  %961 = vmatpush1.msra.mxu0 0.0
  %962 = vmatprep.subr.mxu0 0.0
  %963 = vmatpush1.msra.mxu0 0.0
  %964 = vmatprep.subr.mxu0 0.0
  %965 = vmatpush1.msra.mxu0 0.0
  %966 = vmatprep.subr.mxu0 0.0
  %967 = vmatpush1.msra.mxu0 0.0
  %968 = vmatprep.subr.mxu0 0.0
  %969 = vmatpush1.msra.mxu0 0.0
  %970 = vmatprep.subr.mxu0 0.0
  %971 = vmatpush1.msra.mxu0 0.0
  %972 = vmatprep.subr.mxu0 0.0
  %973 = vmatpush1.msra.mxu0 0.0
  %974 = vmatprep.subr.mxu0 0.0
  %975 = vmatpush1.msra.mxu0 0.0
  %976 = vmatprep.subr.mxu0 0.0
  %977 = vmatpush1.msra.mxu0 0.0
  %978 = vmatprep.subr.mxu0 0.0
  %979 = vmatpush1.msra.mxu0 0.0
  %980 = vmatprep.subr.mxu0 0.0
  %981 = vmatpush1.msra.mxu0 0.0
  %982 = vmatprep.subr.mxu0 0.0
  %983 = vmatpush1.msra.mxu0 0.0
  %984 = vmatprep.subr.mxu0 0.0
  %985 = vmatpush1.msra.mxu0 %v275
  %986 = vmatprep.subr.mxu0 0.0
  %987 = vmatpush1.msra.mxu0 %v274
  %988 = vmatprep.subr.mxu0 0.0
  %989 = vmatpush1.msra.mxu0 %v273
  %990 = vmatprep.subr.mxu0 0.0
  %991 = vmatpush1.msra.mxu0 %v272
  %992 = vmatprep.subr.mxu0 0.0
  %993 = vmatpush2.msra.mxu0 0.0
  %994 = vmatprep.subr.mxu0 0.0
  %995 = vmatpush2.msra.mxu0 0.0
  %996 = vmatprep.subr.mxu0 0.0
  %997 = vmatpush2.msra.mxu0 0.0
  %998 = vmatprep.subr.mxu0 0.0
  %999 = vmatpush2.msra.mxu0 0.0
  %1000 = vmatprep.subr.mxu0 0.0
  %1001 = vmatpush2.msra.mxu0 0.0
  %1002 = vmatprep.subr.mxu0 0.0
  %1003 = vmatpush2.msra.mxu0 0.0
  %1004 = vmatprep.subr.mxu0 0.0
  %1005 = vmatpush2.msra.mxu0 0.0
  %1006 = vmatprep.subr.mxu0 0.0
  %1007 = vmatpush2.msra.mxu0 0.0
  %1008 = vmatprep.subr.mxu0 0.0
  %1009 = vmatpush2.msra.mxu0 0.0
  %1010 = vmatprep.subr.mxu0 0.0
  %1011 = vmatpush2.msra.mxu0 0.0
  %1012 = vmatprep.subr.mxu0 0.0
  %1013 = vmatpush2.msra.mxu0 0.0
  %1014 = vmatprep.subr.mxu0 0.0
  %1015 = vmatpush2.msra.mxu0 0.0
  %1016 = vmatprep.subr.mxu0 0.0
  %1017 = vmatpush2.msra.mxu0 0.0
  %1018 = vmatprep.subr.mxu0 0.0
  %1019 = vmatpush2.msra.mxu0 0.0
  %1020 = vmatprep.subr.mxu0 0.0
  %1021 = vmatpush2.msra.mxu0 0.0
  %1022 = vmatprep.subr.mxu0 0.0
  %1023 = vmatpush2.msra.mxu0 0.0
  %1024 = vmatprep.mubr.f32.mxu0 0.0
  %1025 = vmatmul.mubr.f32.gmra.mxu0 %v958
  %v1026 = vpop.f32.mrf.mxu0
  %v1027 = vadd.f32 0.0, %v1026
  %v1028 = vpop.f32.mrf.mxu0
  %1029 = vdwg.mxu0
  %v1030 = vadd.f32 %v957, %v1027
  %v1031 = vxor.u32 %v1030, 2147483648
  %v1032 = vmul.f32 %v1031, 1.442695
  %v1033 = vpow.pop %v1032
  %v1034 = vadd.f32 %v1033, 1.0
  %v1035 = vrcp.pop %v1034
  %v1036 = vmul.f32 1.0, %v1035
  %v1037 = vtanh.pop %v1030
  %v1038 = vmul.f32 %v1036, %v822
  %1040 = vrot.lane.b32.xlu0 %v1037, 64
  %v1041 = vpop.permute.xlu0 %1040
  %v1043 = vmul.f32 %v1036, %v1041
  %1045 = vrot.lane.b32.xlu0 %v1043, 32
  %v1046 = vpop.permute.xlu0 %1045
  %v1048 = vadd.f32 %v1038, %v1046
  %v1049 = vtanh.pop %v1048
  %1051 = vrot.lane.b32.xlu0 %v1049, 64
  %v1052 = vpop.permute.xlu0 %1051
  %v1054 = vmul.f32 %v1036, %v1052
  %s1055 = scalar_lea.vmem [#allocation2], 16
  %v1056 = vld [vmem:[%s1055 + $0x2] sm:$0x3]
  %1057 = vrot.lane.b32.xlu0 %v950, 32
  %v1058 = vpop.permute.xlu0 %1057
  %v1059 = vsel %vm281, %v1058, 0
  %1061 = vmatprep.subr.mxu0 0.0
  %1062 = vmatpush1.msra.mxu0 0.0
  %1063 = vmatprep.subr.mxu0 0.0
  %1064 = vmatpush1.msra.mxu0 0.0
  %1065 = vmatprep.subr.mxu0 0.0
  %1066 = vmatpush1.msra.mxu0 0.0
  %1067 = vmatprep.subr.mxu0 0.0
  %1068 = vmatpush1.msra.mxu0 0.0
  %1069 = vmatprep.subr.mxu0 0.0
  %1070 = vmatpush1.msra.mxu0 0.0
  %1071 = vmatprep.subr.mxu0 0.0
  %1072 = vmatpush1.msra.mxu0 0.0
  %1073 = vmatprep.subr.mxu0 0.0
  %1074 = vmatpush1.msra.mxu0 0.0
  %1075 = vmatprep.subr.mxu0 0.0
  %1076 = vmatpush1.msra.mxu0 0.0
  %1077 = vmatprep.subr.mxu0 0.0
  %1078 = vmatpush1.msra.mxu0 0.0
  %1079 = vmatprep.subr.mxu0 0.0
  %1080 = vmatpush1.msra.mxu0 0.0
  %1081 = vmatprep.subr.mxu0 0.0
  %1082 = vmatpush1.msra.mxu0 0.0
  %1083 = vmatprep.subr.mxu0 0.0
  %1084 = vmatpush1.msra.mxu0 0.0
  %1085 = vmatprep.subr.mxu0 0.0
  %1086 = vmatpush1.msra.mxu0 %v279
  %1087 = vmatprep.subr.mxu0 0.0
  %1088 = vmatpush1.msra.mxu0 %v278
  %1089 = vmatprep.subr.mxu0 0.0
  %1090 = vmatpush1.msra.mxu0 %v277
  %1091 = vmatprep.subr.mxu0 0.0
  %1092 = vmatpush1.msra.mxu0 %v276
  %1093 = vmatprep.subr.mxu0 0.0
  %1094 = vmatpush2.msra.mxu0 0.0
  %1095 = vmatprep.subr.mxu0 0.0
  %1096 = vmatpush2.msra.mxu0 0.0
  %1097 = vmatprep.subr.mxu0 0.0
  %1098 = vmatpush2.msra.mxu0 0.0
  %1099 = vmatprep.subr.mxu0 0.0
  %1100 = vmatpush2.msra.mxu0 0.0
  %1101 = vmatprep.subr.mxu0 0.0
  %1102 = vmatpush2.msra.mxu0 0.0
  %1103 = vmatprep.subr.mxu0 0.0
  %1104 = vmatpush2.msra.mxu0 0.0
  %1105 = vmatprep.subr.mxu0 0.0
  %1106 = vmatpush2.msra.mxu0 0.0
  %1107 = vmatprep.subr.mxu0 0.0
  %1108 = vmatpush2.msra.mxu0 0.0
  %1109 = vmatprep.subr.mxu0 0.0
  %1110 = vmatpush2.msra.mxu0 0.0
  %1111 = vmatprep.subr.mxu0 0.0
  %1112 = vmatpush2.msra.mxu0 0.0
  %1113 = vmatprep.subr.mxu0 0.0
  %1114 = vmatpush2.msra.mxu0 0.0
  %1115 = vmatprep.subr.mxu0 0.0
  %1116 = vmatpush2.msra.mxu0 0.0
  %1117 = vmatprep.subr.mxu0 0.0
  %1118 = vmatpush2.msra.mxu0 0.0
  %1119 = vmatprep.subr.mxu0 0.0
  %1120 = vmatpush2.msra.mxu0 0.0
  %1121 = vmatprep.subr.mxu0 0.0
  %1122 = vmatpush2.msra.mxu0 0.0
  %1123 = vmatprep.subr.mxu0 0.0
  %1124 = vmatpush2.msra.mxu0 0.0
  %1125 = vmatprep.mubr.f32.mxu0 0.0
  %1126 = vmatmul.mubr.f32.gmra.mxu0 %v1059
  %v1127 = vpop.f32.mrf.mxu0
  %v1128 = vadd.f32 0.0, %v1127
  %v1129 = vpop.f32.mrf.mxu0
  %1130 = vdwg.mxu0
  %v1131 = vadd.f32 %v1056, %v1128
  %v1132 = vxor.u32 %v1131, 2147483648
  %v1133 = vmul.f32 %v1132, 1.442695
  %v1134 = vpow.pop %v1133
  %v1135 = vadd.f32 %v1134, 1.0
  %v1136 = vrcp.pop %v1135
  %v1137 = vmul.f32 1.0, %v1136
  %v1138 = vtanh.pop %v1131
  %v1139 = vmul.f32 %v1137, %v923
  %1141 = vrot.lane.b32.xlu0 %v1138, 64
  %v1142 = vpop.permute.xlu0 %1141
  %v1144 = vmul.f32 %v1137, %v1142
  %1146 = vrot.lane.b32.xlu0 %v1144, 32
  %v1147 = vpop.permute.xlu0 %1146
  %v1149 = vadd.f32 %v1139, %v1147
  %v1150 = vtanh.pop %v1149
  %1152 = vrot.lane.b32.xlu0 %v1150, 64
  %v1153 = vpop.permute.xlu0 %1152
  %v1155 = vmul.f32 %v1137, %v1153
  %v1158 = vunpack.c.l.s4 1983009808
  %v1159 = vunpack.c.0.s8 %v1158
  %v1160 = vlaneseq
  %v1161 = vshrl.u32 %v1160, 7
  %v1162 = vsub.s32 %v1159, %v1161
  %v1163 = vrot.slane %v1054, %v1162
  %1164 = vrot.lane.b32.xlu0 %v1163, 32
  %v1165 = vpop.permute.xlu0 %1164
  %s1167 = scalar_lea.vmem [#allocation3], 6
  %1168 = vst.msk [vmem:[%s1167] sm:$0x3] %vm488, %v1165
  %v1171 = vunpack.c.l.s4 1983009808
  %v1172 = vunpack.c.0.s8 %v1171
  %v1173 = vlaneseq
  %v1174 = vshrl.u32 %v1173, 7
  %v1175 = vsub.s32 %v1172, %v1174
  %v1176 = vrot.slane %v1155, %v1175
  %1177 = vrot.lane.b32.xlu0 %v1176, 64
  %v1178 = vpop.permute.xlu0 %1177
  %s1180 = scalar_lea.vmem [#allocation3], 8
  %1181 = vst.msk [vmem:[%s1180] sm:$0x3] %vm502, %v1178
  %v1182 = vld [vmem:[%s1055] sm:$0x3]
  %v1183 = vsel %vm281, %v1165, 0
  %1185 = vmatprep.subr.mxu0 0.0
  %1186 = vmatpush1.msra.mxu0 0.0
  %1187 = vmatprep.subr.mxu0 0.0
  %1188 = vmatpush1.msra.mxu0 0.0
  %1189 = vmatprep.subr.mxu0 0.0
  %1190 = vmatpush1.msra.mxu0 0.0
  %1191 = vmatprep.subr.mxu0 0.0
  %1192 = vmatpush1.msra.mxu0 0.0
  %1193 = vmatprep.subr.mxu0 0.0
  %1194 = vmatpush1.msra.mxu0 0.0
  %1195 = vmatprep.subr.mxu0 0.0
  %1196 = vmatpush1.msra.mxu0 0.0
  %1197 = vmatprep.subr.mxu0 0.0
  %1198 = vmatpush1.msra.mxu0 0.0
  %1199 = vmatprep.subr.mxu0 0.0
  %1200 = vmatpush1.msra.mxu0 0.0
  %1201 = vmatprep.subr.mxu0 0.0
  %1202 = vmatpush1.msra.mxu0 0.0
  %1203 = vmatprep.subr.mxu0 0.0
  %1204 = vmatpush1.msra.mxu0 0.0
  %1205 = vmatprep.subr.mxu0 0.0
  %1206 = vmatpush1.msra.mxu0 0.0
  %1207 = vmatprep.subr.mxu0 0.0
  %1208 = vmatpush1.msra.mxu0 0.0
  %1209 = vmatprep.subr.mxu0 0.0
  %1210 = vmatpush1.msra.mxu0 %v275
  %1211 = vmatprep.subr.mxu0 0.0
  %1212 = vmatpush1.msra.mxu0 %v274
  %1213 = vmatprep.subr.mxu0 0.0
  %1214 = vmatpush1.msra.mxu0 %v273
  %1215 = vmatprep.subr.mxu0 0.0
  %1216 = vmatpush1.msra.mxu0 %v272
  %1217 = vmatprep.subr.mxu0 0.0
  %1218 = vmatpush2.msra.mxu0 0.0
  %1219 = vmatprep.subr.mxu0 0.0
  %1220 = vmatpush2.msra.mxu0 0.0
  %1221 = vmatprep.subr.mxu0 0.0
  %1222 = vmatpush2.msra.mxu0 0.0
  %1223 = vmatprep.subr.mxu0 0.0
  %1224 = vmatpush2.msra.mxu0 0.0
  %1225 = vmatprep.subr.mxu0 0.0
  %1226 = vmatpush2.msra.mxu0 0.0
  %1227 = vmatprep.subr.mxu0 0.0
  %1228 = vmatpush2.msra.mxu0 0.0
  %1229 = vmatprep.subr.mxu0 0.0
  %1230 = vmatpush2.msra.mxu0 0.0
  %1231 = vmatprep.subr.mxu0 0.0
  %1232 = vmatpush2.msra.mxu0 0.0
  %1233 = vmatprep.subr.mxu0 0.0
  %1234 = vmatpush2.msra.mxu0 0.0
  %1235 = vmatprep.subr.mxu0 0.0
  %1236 = vmatpush2.msra.mxu0 0.0
  %1237 = vmatprep.subr.mxu0 0.0
  %1238 = vmatpush2.msra.mxu0 0.0
  %1239 = vmatprep.subr.mxu0 0.0
  %1240 = vmatpush2.msra.mxu0 0.0
  %1241 = vmatprep.subr.mxu0 0.0
  %1242 = vmatpush2.msra.mxu0 0.0
  %1243 = vmatprep.subr.mxu0 0.0
  %1244 = vmatpush2.msra.mxu0 0.0
  %1245 = vmatprep.subr.mxu0 0.0
  %1246 = vmatpush2.msra.mxu0 0.0
  %1247 = vmatprep.subr.mxu0 0.0
  %1248 = vmatpush2.msra.mxu0 0.0
  %1249 = vmatprep.mubr.f32.mxu0 0.0
  %1250 = vmatmul.mubr.f32.gmra.mxu0 %v1183
  %v1251 = vpop.f32.mrf.mxu0
  %v1252 = vadd.f32 0.0, %v1251
  %v1253 = vpop.f32.mrf.mxu0
  %1254 = vdwg.mxu0
  %v1255 = vadd.f32 %v1182, %v1252
  %v1256 = vxor.u32 %v1255, 2147483648
  %v1257 = vmul.f32 %v1256, 1.442695
  %v1258 = vpow.pop %v1257
  %v1259 = vadd.f32 %v1258, 1.0
  %v1260 = vrcp.pop %v1259
  %v1261 = vmul.f32 1.0, %v1260
  %v1262 = vtanh.pop %v1255
  %v1263 = vmul.f32 %v1261, %v1048
  %1265 = vrot.lane.b32.xlu0 %v1262, 64
  %v1266 = vpop.permute.xlu0 %1265
  %v1268 = vmul.f32 %v1261, %v1266
  %1270 = vrot.lane.b32.xlu0 %v1268, 32
  %v1271 = vpop.permute.xlu0 %1270
  %v1273 = vadd.f32 %v1263, %v1271
  %v1274 = vtanh.pop %v1273
  %1276 = vrot.lane.b32.xlu0 %v1274, 64
  %v1277 = vpop.permute.xlu0 %1276
  %v1279 = vmul.f32 %v1261, %v1277
  %v1280 = vld [vmem:[%s956 + $0x2] sm:$0x3]
  %1281 = vrot.lane.b32.xlu0 %v1176, 32
  %v1282 = vpop.permute.xlu0 %1281
  %v1283 = vsel %vm281, %v1282, 0
  %1285 = vmatprep.subr.mxu0 0.0
  %1286 = vmatpush1.msra.mxu0 0.0
  %1287 = vmatprep.subr.mxu0 0.0
  %1288 = vmatpush1.msra.mxu0 0.0
  %1289 = vmatprep.subr.mxu0 0.0
  %1290 = vmatpush1.msra.mxu0 0.0
  %1291 = vmatprep.subr.mxu0 0.0
  %1292 = vmatpush1.msra.mxu0 0.0
  %1293 = vmatprep.subr.mxu0 0.0
  %1294 = vmatpush1.msra.mxu0 0.0
  %1295 = vmatprep.subr.mxu0 0.0
  %1296 = vmatpush1.msra.mxu0 0.0
  %1297 = vmatprep.subr.mxu0 0.0
  %1298 = vmatpush1.msra.mxu0 0.0
  %1299 = vmatprep.subr.mxu0 0.0
  %1300 = vmatpush1.msra.mxu0 0.0
  %1301 = vmatprep.subr.mxu0 0.0
  %1302 = vmatpush1.msra.mxu0 0.0
  %1303 = vmatprep.subr.mxu0 0.0
  %1304 = vmatpush1.msra.mxu0 0.0
  %1305 = vmatprep.subr.mxu0 0.0
  %1306 = vmatpush1.msra.mxu0 0.0
  %1307 = vmatprep.subr.mxu0 0.0
  %1308 = vmatpush1.msra.mxu0 0.0
  %1309 = vmatprep.subr.mxu0 0.0
  %1310 = vmatpush1.msra.mxu0 %v279
  %1311 = vmatprep.subr.mxu0 0.0
  %1312 = vmatpush1.msra.mxu0 %v278
  %1313 = vmatprep.subr.mxu0 0.0
  %1314 = vmatpush1.msra.mxu0 %v277
  %1315 = vmatprep.subr.mxu0 0.0
  %1316 = vmatpush1.msra.mxu0 %v276
  %1317 = vmatprep.subr.mxu0 0.0
  %1318 = vmatpush2.msra.mxu0 0.0
  %1319 = vmatprep.subr.mxu0 0.0
  %1320 = vmatpush2.msra.mxu0 0.0
  %1321 = vmatprep.subr.mxu0 0.0
  %1322 = vmatpush2.msra.mxu0 0.0
  %1323 = vmatprep.subr.mxu0 0.0
  %1324 = vmatpush2.msra.mxu0 0.0
  %1325 = vmatprep.subr.mxu0 0.0
  %1326 = vmatpush2.msra.mxu0 0.0
  %1327 = vmatprep.subr.mxu0 0.0
  %1328 = vmatpush2.msra.mxu0 0.0
  %1329 = vmatprep.subr.mxu0 0.0
  %1330 = vmatpush2.msra.mxu0 0.0
  %1331 = vmatprep.subr.mxu0 0.0
  %1332 = vmatpush2.msra.mxu0 0.0
  %1333 = vmatprep.subr.mxu0 0.0
  %1334 = vmatpush2.msra.mxu0 0.0
  %1335 = vmatprep.subr.mxu0 0.0
  %1336 = vmatpush2.msra.mxu0 0.0
  %1337 = vmatprep.subr.mxu0 0.0
  %1338 = vmatpush2.msra.mxu0 0.0
  %1339 = vmatprep.subr.mxu0 0.0
  %1340 = vmatpush2.msra.mxu0 0.0
  %1341 = vmatprep.subr.mxu0 0.0
  %1342 = vmatpush2.msra.mxu0 0.0
  %1343 = vmatprep.subr.mxu0 0.0
  %1344 = vmatpush2.msra.mxu0 0.0
  %1345 = vmatprep.subr.mxu0 0.0
  %1346 = vmatpush2.msra.mxu0 0.0
  %1347 = vmatprep.subr.mxu0 0.0
  %1348 = vmatpush2.msra.mxu0 0.0
  %1349 = vmatprep.mubr.f32.mxu0 0.0
  %1350 = vmatmul.mubr.f32.gmra.mxu0 %v1283
  %v1351 = vpop.f32.mrf.mxu0
  %v1352 = vadd.f32 0.0, %v1351
  %v1353 = vpop.f32.mrf.mxu0
  %1354 = vdwg.mxu0
  %v1355 = vadd.f32 %v1280, %v1352
  %v1356 = vxor.u32 %v1355, 2147483648
  %v1357 = vmul.f32 %v1356, 1.442695
  %v1358 = vpow.pop %v1357
  %v1359 = vadd.f32 %v1358, 1.0
  %v1360 = vrcp.pop %v1359
  %v1361 = vmul.f32 1.0, %v1360
  %v1362 = vtanh.pop %v1355
  %v1363 = vmul.f32 %v1361, %v1149
  %1365 = vrot.lane.b32.xlu0 %v1362, 64
  %v1366 = vpop.permute.xlu0 %1365
  %v1368 = vmul.f32 %v1361, %v1366
  %1370 = vrot.lane.b32.xlu0 %v1368, 32
  %v1371 = vpop.permute.xlu0 %1370
  %v1373 = vadd.f32 %v1363, %v1371
  %v1374 = vtanh.pop %v1373
  %1376 = vrot.lane.b32.xlu0 %v1374, 64
  %v1377 = vpop.permute.xlu0 %1376
  %v1379 = vmul.f32 %v1361, %v1377
  %v1382 = vunpack.c.l.s4 1983009808
  %v1383 = vunpack.c.0.s8 %v1382
  %v1384 = vlaneseq
  %v1385 = vshrl.u32 %v1384, 7
  %v1386 = vsub.s32 %v1383, %v1385
  %v1387 = vrot.slane %v1279, %v1386
  %1388 = vrot.lane.b32.xlu0 %v1387, 32
  %v1389 = vpop.permute.xlu0 %1388
  %1391 = vst.msk [vmem:[%s1180] sm:$0x3] %vm488, %v1389
  %v1394 = vunpack.c.l.s4 1983009808
  %v1395 = vunpack.c.0.s8 %v1394
  %v1396 = vlaneseq
  %v1397 = vshrl.u32 %v1396, 7
  %v1398 = vsub.s32 %v1395, %v1397
  %v1399 = vrot.slane %v1379, %v1398
  %1400 = vrot.lane.b32.xlu0 %v1399, 64
  %v1401 = vpop.permute.xlu0 %1400
  %1403 = vst.msk [vmem:[%s1167] sm:$0x3] %vm502, %v1401
  %v1404 = vld [vmem:[%s829] sm:$0x3]
  %v1405 = vsel %vm281, %v1389, 0
  %1407 = vmatprep.subr.mxu0 0.0
  %1408 = vmatpush1.msra.mxu0 0.0
  %1409 = vmatprep.subr.mxu0 0.0
  %1410 = vmatpush1.msra.mxu0 0.0
  %1411 = vmatprep.subr.mxu0 0.0
  %1412 = vmatpush1.msra.mxu0 0.0
  %1413 = vmatprep.subr.mxu0 0.0
  %1414 = vmatpush1.msra.mxu0 0.0
  %1415 = vmatprep.subr.mxu0 0.0
  %1416 = vmatpush1.msra.mxu0 0.0
  %1417 = vmatprep.subr.mxu0 0.0
  %1418 = vmatpush1.msra.mxu0 0.0
  %1419 = vmatprep.subr.mxu0 0.0
  %1420 = vmatpush1.msra.mxu0 0.0
  %1421 = vmatprep.subr.mxu0 0.0
  %1422 = vmatpush1.msra.mxu0 0.0
  %1423 = vmatprep.subr.mxu0 0.0
  %1424 = vmatpush1.msra.mxu0 0.0
  %1425 = vmatprep.subr.mxu0 0.0
  %1426 = vmatpush1.msra.mxu0 0.0
  %1427 = vmatprep.subr.mxu0 0.0
  %1428 = vmatpush1.msra.mxu0 0.0
  %1429 = vmatprep.subr.mxu0 0.0
  %1430 = vmatpush1.msra.mxu0 0.0
  %1431 = vmatprep.subr.mxu0 0.0
  %1432 = vmatpush1.msra.mxu0 %v275
  %1433 = vmatprep.subr.mxu0 0.0
  %1434 = vmatpush1.msra.mxu0 %v274
  %1435 = vmatprep.subr.mxu0 0.0
  %1436 = vmatpush1.msra.mxu0 %v273
  %1437 = vmatprep.subr.mxu0 0.0
  %1438 = vmatpush1.msra.mxu0 %v272
  %1439 = vmatprep.subr.mxu0 0.0
  %1440 = vmatpush2.msra.mxu0 0.0
  %1441 = vmatprep.subr.mxu0 0.0
  %1442 = vmatpush2.msra.mxu0 0.0
  %1443 = vmatprep.subr.mxu0 0.0
  %1444 = vmatpush2.msra.mxu0 0.0
  %1445 = vmatprep.subr.mxu0 0.0
  %1446 = vmatpush2.msra.mxu0 0.0
  %1447 = vmatprep.subr.mxu0 0.0
  %1448 = vmatpush2.msra.mxu0 0.0
  %1449 = vmatprep.subr.mxu0 0.0
  %1450 = vmatpush2.msra.mxu0 0.0
  %1451 = vmatprep.subr.mxu0 0.0
  %1452 = vmatpush2.msra.mxu0 0.0
  %1453 = vmatprep.subr.mxu0 0.0
  %1454 = vmatpush2.msra.mxu0 0.0
  %1455 = vmatprep.subr.mxu0 0.0
  %1456 = vmatpush2.msra.mxu0 0.0
  %1457 = vmatprep.subr.mxu0 0.0
  %1458 = vmatpush2.msra.mxu0 0.0
  %1459 = vmatprep.subr.mxu0 0.0
  %1460 = vmatpush2.msra.mxu0 0.0
  %1461 = vmatprep.subr.mxu0 0.0
  %1462 = vmatpush2.msra.mxu0 0.0
  %1463 = vmatprep.subr.mxu0 0.0
  %1464 = vmatpush2.msra.mxu0 0.0
  %1465 = vmatprep.subr.mxu0 0.0
  %1466 = vmatpush2.msra.mxu0 0.0
  %1467 = vmatprep.subr.mxu0 0.0
  %1468 = vmatpush2.msra.mxu0 0.0
  %1469 = vmatprep.subr.mxu0 0.0
  %1470 = vmatpush2.msra.mxu0 0.0
  %1471 = vmatprep.mubr.f32.mxu0 0.0
  %1472 = vmatmul.mubr.f32.gmra.mxu0 %v1405
  %v1473 = vpop.f32.mrf.mxu0
  %v1474 = vadd.f32 0.0, %v1473
  %v1475 = vpop.f32.mrf.mxu0
  %1476 = vdwg.mxu0
  %v1477 = vadd.f32 %v1404, %v1474
  %v1478 = vxor.u32 %v1477, 2147483648
  %v1479 = vmul.f32 %v1478, 1.442695
  %v1480 = vpow.pop %v1479
  %v1481 = vadd.f32 %v1480, 1.0
  %v1482 = vrcp.pop %v1481
  %v1483 = vmul.f32 1.0, %v1482
  %v1484 = vtanh.pop %v1477
  %v1485 = vmul.f32 %v1483, %v1273
  %1487 = vrot.lane.b32.xlu0 %v1484, 64
  %v1488 = vpop.permute.xlu0 %1487
  %v1490 = vmul.f32 %v1483, %v1488
  %1492 = vrot.lane.b32.xlu0 %v1490, 32
  %v1493 = vpop.permute.xlu0 %1492
  %v1495 = vadd.f32 %v1485, %v1493
  %v1496 = vtanh.pop %v1495
  %1498 = vrot.lane.b32.xlu0 %v1496, 64
  %v1499 = vpop.permute.xlu0 %1498
  %v1501 = vmul.f32 %v1483, %v1499
  %v1502 = vld [vmem:[%s730 + $0x2] sm:$0x3]
  %1503 = vrot.lane.b32.xlu0 %v1399, 32
  %v1504 = vpop.permute.xlu0 %1503
  %v1505 = vsel %vm281, %v1504, 0
  %1507 = vmatprep.subr.mxu0 0.0
  %1508 = vmatpush1.msra.mxu0 0.0
  %1509 = vmatprep.subr.mxu0 0.0
  %1510 = vmatpush1.msra.mxu0 0.0
  %1511 = vmatprep.subr.mxu0 0.0
  %1512 = vmatpush1.msra.mxu0 0.0
  %1513 = vmatprep.subr.mxu0 0.0
  %1514 = vmatpush1.msra.mxu0 0.0
  %1515 = vmatprep.subr.mxu0 0.0
  %1516 = vmatpush1.msra.mxu0 0.0
  %1517 = vmatprep.subr.mxu0 0.0
  %1518 = vmatpush1.msra.mxu0 0.0
  %1519 = vmatprep.subr.mxu0 0.0
  %1520 = vmatpush1.msra.mxu0 0.0
  %1521 = vmatprep.subr.mxu0 0.0
  %1522 = vmatpush1.msra.mxu0 0.0
  %1523 = vmatprep.subr.mxu0 0.0
  %1524 = vmatpush1.msra.mxu0 0.0
  %1525 = vmatprep.subr.mxu0 0.0
  %1526 = vmatpush1.msra.mxu0 0.0
  %1527 = vmatprep.subr.mxu0 0.0
  %1528 = vmatpush1.msra.mxu0 0.0
  %1529 = vmatprep.subr.mxu0 0.0
  %1530 = vmatpush1.msra.mxu0 0.0
  %1531 = vmatprep.subr.mxu0 0.0
  %1532 = vmatpush1.msra.mxu0 %v279
  %1533 = vmatprep.subr.mxu0 0.0
  %1534 = vmatpush1.msra.mxu0 %v278
  %1535 = vmatprep.subr.mxu0 0.0
  %1536 = vmatpush1.msra.mxu0 %v277
  %1537 = vmatprep.subr.mxu0 0.0
  %1538 = vmatpush1.msra.mxu0 %v276
  %1539 = vmatprep.subr.mxu0 0.0
  %1540 = vmatpush2.msra.mxu0 0.0
  %1541 = vmatprep.subr.mxu0 0.0
  %1542 = vmatpush2.msra.mxu0 0.0
  %1543 = vmatprep.subr.mxu0 0.0
  %1544 = vmatpush2.msra.mxu0 0.0
  %1545 = vmatprep.subr.mxu0 0.0
  %1546 = vmatpush2.msra.mxu0 0.0
  %1547 = vmatprep.subr.mxu0 0.0
  %1548 = vmatpush2.msra.mxu0 0.0
  %1549 = vmatprep.subr.mxu0 0.0
  %1550 = vmatpush2.msra.mxu0 0.0
  %1551 = vmatprep.subr.mxu0 0.0
  %1552 = vmatpush2.msra.mxu0 0.0
  %1553 = vmatprep.subr.mxu0 0.0
  %1554 = vmatpush2.msra.mxu0 0.0
  %1555 = vmatprep.subr.mxu0 0.0
  %1556 = vmatpush2.msra.mxu0 0.0
  %1557 = vmatprep.subr.mxu0 0.0
  %1558 = vmatpush2.msra.mxu0 0.0
  %1559 = vmatprep.subr.mxu0 0.0
  %1560 = vmatpush2.msra.mxu0 0.0
  %1561 = vmatprep.subr.mxu0 0.0
  %1562 = vmatpush2.msra.mxu0 0.0
  %1563 = vmatprep.subr.mxu0 0.0
  %1564 = vmatpush2.msra.mxu0 0.0
  %1565 = vmatprep.subr.mxu0 0.0
  %1566 = vmatpush2.msra.mxu0 0.0
  %1567 = vmatprep.subr.mxu0 0.0
  %1568 = vmatpush2.msra.mxu0 0.0
  %1569 = vmatprep.subr.mxu0 0.0
  %1570 = vmatpush2.msra.mxu0 0.0
  %1571 = vmatprep.mubr.f32.mxu0 0.0
  %1572 = vmatmul.mubr.f32.gmra.mxu0 %v1505
  %v1573 = vpop.f32.mrf.mxu0
  %v1574 = vadd.f32 0.0, %v1573
  %v1575 = vpop.f32.mrf.mxu0
  %1576 = vdwg.mxu0
  %v1577 = vadd.f32 %v1502, %v1574
  %v1578 = vxor.u32 %v1577, 2147483648
  %v1579 = vmul.f32 %v1578, 1.442695
  %v1580 = vpow.pop %v1579
  %v1581 = vadd.f32 %v1580, 1.0
  %v1582 = vrcp.pop %v1581
  %v1583 = vmul.f32 1.0, %v1582
  %v1584 = vtanh.pop %v1577
  %v1585 = vmul.f32 %v1583, %v1373
  %1587 = vrot.lane.b32.xlu0 %v1584, 64
  %v1588 = vpop.permute.xlu0 %1587
  %v1590 = vmul.f32 %v1583, %v1588
  %1592 = vrot.lane.b32.xlu0 %v1590, 32
  %v1593 = vpop.permute.xlu0 %1592
  %v1595 = vadd.f32 %v1585, %v1593
  %v1596 = vtanh.pop %v1595
  %1598 = vrot.lane.b32.xlu0 %v1596, 64
  %v1599 = vpop.permute.xlu0 %1598
  %v1601 = vmul.f32 %v1583, %v1599
  %v1604 = vunpack.c.l.s4 1983009808
  %v1605 = vunpack.c.0.s8 %v1604
  %v1606 = vlaneseq
  %v1607 = vshrl.u32 %v1606, 7
  %v1608 = vsub.s32 %v1605, %v1607
  %v1609 = vrot.slane %v1501, %v1608
  %1610 = vrot.lane.b32.xlu0 %v1609, 32
  %v1611 = vpop.permute.xlu0 %1610
  %1613 = vst.msk [vmem:[%s954] sm:$0x3] %vm488, %v1611
  %v1616 = vunpack.c.l.s4 1983009808
  %v1617 = vunpack.c.0.s8 %v1616
  %v1618 = vlaneseq
  %v1619 = vshrl.u32 %v1618, 7
  %v1620 = vsub.s32 %v1617, %v1619
  %v1621 = vrot.slane %v1601, %v1620
  %1622 = vrot.lane.b32.xlu0 %v1621, 64
  %v1623 = vpop.permute.xlu0 %1622
  %1625 = vst.msk [vmem:[%s941] sm:$0x3] %vm502, %v1623
  %v1626 = vld [vmem:[%s603] sm:$0x3]
  %v1627 = vsel %vm281, %v1611, 0
  %1629 = vmatprep.subr.mxu0 0.0
  %1630 = vmatpush1.msra.mxu0 0.0
  %1631 = vmatprep.subr.mxu0 0.0
  %1632 = vmatpush1.msra.mxu0 0.0
  %1633 = vmatprep.subr.mxu0 0.0
  %1634 = vmatpush1.msra.mxu0 0.0
  %1635 = vmatprep.subr.mxu0 0.0
  %1636 = vmatpush1.msra.mxu0 0.0
  %1637 = vmatprep.subr.mxu0 0.0
  %1638 = vmatpush1.msra.mxu0 0.0
  %1639 = vmatprep.subr.mxu0 0.0
  %1640 = vmatpush1.msra.mxu0 0.0
  %1641 = vmatprep.subr.mxu0 0.0
  %1642 = vmatpush1.msra.mxu0 0.0
  %1643 = vmatprep.subr.mxu0 0.0
  %1644 = vmatpush1.msra.mxu0 0.0
  %1645 = vmatprep.subr.mxu0 0.0
  %1646 = vmatpush1.msra.mxu0 0.0
  %1647 = vmatprep.subr.mxu0 0.0
  %1648 = vmatpush1.msra.mxu0 0.0
  %1649 = vmatprep.subr.mxu0 0.0
  %1650 = vmatpush1.msra.mxu0 0.0
  %1651 = vmatprep.subr.mxu0 0.0
  %1652 = vmatpush1.msra.mxu0 0.0
  %1653 = vmatprep.subr.mxu0 0.0
  %1654 = vmatpush1.msra.mxu0 %v275
  %1655 = vmatprep.subr.mxu0 0.0
  %1656 = vmatpush1.msra.mxu0 %v274
  %1657 = vmatprep.subr.mxu0 0.0
  %1658 = vmatpush1.msra.mxu0 %v273
  %1659 = vmatprep.subr.mxu0 0.0
  %1660 = vmatpush1.msra.mxu0 %v272
  %1661 = vmatprep.subr.mxu0 0.0
  %1662 = vmatpush2.msra.mxu0 0.0
  %1663 = vmatprep.subr.mxu0 0.0
  %1664 = vmatpush2.msra.mxu0 0.0
  %1665 = vmatprep.subr.mxu0 0.0
  %1666 = vmatpush2.msra.mxu0 0.0
  %1667 = vmatprep.subr.mxu0 0.0
  %1668 = vmatpush2.msra.mxu0 0.0
  %1669 = vmatprep.subr.mxu0 0.0
  %1670 = vmatpush2.msra.mxu0 0.0
  %1671 = vmatprep.subr.mxu0 0.0
  %1672 = vmatpush2.msra.mxu0 0.0
  %1673 = vmatprep.subr.mxu0 0.0
  %1674 = vmatpush2.msra.mxu0 0.0
  %1675 = vmatprep.subr.mxu0 0.0
  %1676 = vmatpush2.msra.mxu0 0.0
  %1677 = vmatprep.subr.mxu0 0.0
  %1678 = vmatpush2.msra.mxu0 0.0
  %1679 = vmatprep.subr.mxu0 0.0
  %1680 = vmatpush2.msra.mxu0 0.0
  %1681 = vmatprep.subr.mxu0 0.0
  %1682 = vmatpush2.msra.mxu0 0.0
  %1683 = vmatprep.subr.mxu0 0.0
  %1684 = vmatpush2.msra.mxu0 0.0
  %1685 = vmatprep.subr.mxu0 0.0
  %1686 = vmatpush2.msra.mxu0 0.0
  %1687 = vmatprep.subr.mxu0 0.0
  %1688 = vmatpush2.msra.mxu0 0.0
  %1689 = vmatprep.subr.mxu0 0.0
  %1690 = vmatpush2.msra.mxu0 0.0
  %1691 = vmatprep.subr.mxu0 0.0
  %1692 = vmatpush2.msra.mxu0 0.0
  %1693 = vmatprep.mubr.f32.mxu0 0.0
  %1694 = vmatmul.mubr.f32.gmra.mxu0 %v1627
  %v1695 = vpop.f32.mrf.mxu0
  %v1696 = vadd.f32 0.0, %v1695
  %v1697 = vpop.f32.mrf.mxu0
  %1698 = vdwg.mxu0
  %v1699 = vadd.f32 %v1626, %v1696
  %v1700 = vxor.u32 %v1699, 2147483648
  %v1701 = vmul.f32 %v1700, 1.442695
  %v1702 = vpow.pop %v1701
  %v1703 = vadd.f32 %v1702, 1.0
  %v1704 = vrcp.pop %v1703
  %v1705 = vmul.f32 1.0, %v1704
  %v1706 = vtanh.pop %v1699
  %v1707 = vmul.f32 %v1705, %v1495
  %1709 = vrot.lane.b32.xlu0 %v1706, 64
  %v1710 = vpop.permute.xlu0 %1709
  %v1712 = vmul.f32 %v1705, %v1710
  %1714 = vrot.lane.b32.xlu0 %v1712, 32
  %v1715 = vpop.permute.xlu0 %1714
  %v1717 = vadd.f32 %v1707, %v1715
  %v1718 = vtanh.pop %v1717
  %1720 = vrot.lane.b32.xlu0 %v1718, 64
  %v1721 = vpop.permute.xlu0 %1720
  %v1723 = vmul.f32 %v1705, %v1721
  %v1724 = vld [vmem:[%s504 + $0x2] sm:$0x3]
  %1725 = vrot.lane.b32.xlu0 %v1621, 32
  %v1726 = vpop.permute.xlu0 %1725
  %v1727 = vsel %vm281, %v1726, 0
  %1729 = vmatprep.subr.mxu0 0.0
  %1730 = vmatpush1.msra.mxu0 0.0
  %1731 = vmatprep.subr.mxu0 0.0
  %1732 = vmatpush1.msra.mxu0 0.0
  %1733 = vmatprep.subr.mxu0 0.0
  %1734 = vmatpush1.msra.mxu0 0.0
  %1735 = vmatprep.subr.mxu0 0.0
  %1736 = vmatpush1.msra.mxu0 0.0
  %1737 = vmatprep.subr.mxu0 0.0
  %1738 = vmatpush1.msra.mxu0 0.0
  %1739 = vmatprep.subr.mxu0 0.0
  %1740 = vmatpush1.msra.mxu0 0.0
  %1741 = vmatprep.subr.mxu0 0.0
  %1742 = vmatpush1.msra.mxu0 0.0
  %1743 = vmatprep.subr.mxu0 0.0
  %1744 = vmatpush1.msra.mxu0 0.0
  %1745 = vmatprep.subr.mxu0 0.0
  %1746 = vmatpush1.msra.mxu0 0.0
  %1747 = vmatprep.subr.mxu0 0.0
  %1748 = vmatpush1.msra.mxu0 0.0
  %1749 = vmatprep.subr.mxu0 0.0
  %1750 = vmatpush1.msra.mxu0 0.0
  %1751 = vmatprep.subr.mxu0 0.0
  %1752 = vmatpush1.msra.mxu0 0.0
  %1753 = vmatprep.subr.mxu0 0.0
  %1754 = vmatpush1.msra.mxu0 %v279
  %1755 = vmatprep.subr.mxu0 0.0
  %1756 = vmatpush1.msra.mxu0 %v278
  %1757 = vmatprep.subr.mxu0 0.0
  %1758 = vmatpush1.msra.mxu0 %v277
  %1759 = vmatprep.subr.mxu0 0.0
  %1760 = vmatpush1.msra.mxu0 %v276
  %1761 = vmatprep.subr.mxu0 0.0
  %1762 = vmatpush2.msra.mxu0 0.0
  %1763 = vmatprep.subr.mxu0 0.0
  %1764 = vmatpush2.msra.mxu0 0.0
  %1765 = vmatprep.subr.mxu0 0.0
  %1766 = vmatpush2.msra.mxu0 0.0
  %1767 = vmatprep.subr.mxu0 0.0
  %1768 = vmatpush2.msra.mxu0 0.0
  %1769 = vmatprep.subr.mxu0 0.0
  %1770 = vmatpush2.msra.mxu0 0.0
  %1771 = vmatprep.subr.mxu0 0.0
  %1772 = vmatpush2.msra.mxu0 0.0
  %1773 = vmatprep.subr.mxu0 0.0
  %1774 = vmatpush2.msra.mxu0 0.0
  %1775 = vmatprep.subr.mxu0 0.0
  %1776 = vmatpush2.msra.mxu0 0.0
  %1777 = vmatprep.subr.mxu0 0.0
  %1778 = vmatpush2.msra.mxu0 0.0
  %1779 = vmatprep.subr.mxu0 0.0
  %1780 = vmatpush2.msra.mxu0 0.0
  %1781 = vmatprep.subr.mxu0 0.0
  %1782 = vmatpush2.msra.mxu0 0.0
  %1783 = vmatprep.subr.mxu0 0.0
  %1784 = vmatpush2.msra.mxu0 0.0
  %1785 = vmatprep.subr.mxu0 0.0
  %1786 = vmatpush2.msra.mxu0 0.0
  %1787 = vmatprep.subr.mxu0 0.0
  %1788 = vmatpush2.msra.mxu0 0.0
  %1789 = vmatprep.subr.mxu0 0.0
  %1790 = vmatpush2.msra.mxu0 0.0
  %1791 = vmatprep.subr.mxu0 0.0
  %1792 = vmatpush2.msra.mxu0 0.0
  %1793 = vmatprep.mubr.f32.mxu0 0.0
  %1794 = vmatmul.mubr.f32.gmra.mxu0 %v1727
  %v1795 = vpop.f32.mrf.mxu0
  %v1796 = vadd.f32 0.0, %v1795
  %v1797 = vpop.f32.mrf.mxu0
  %1798 = vdwg.mxu0
  %v1799 = vadd.f32 %v1724, %v1796
  %v1800 = vxor.u32 %v1799, 2147483648
  %v1801 = vmul.f32 %v1800, 1.442695
  %v1802 = vpow.pop %v1801
  %v1803 = vadd.f32 %v1802, 1.0
  %v1804 = vrcp.pop %v1803
  %v1805 = vmul.f32 1.0, %v1804
  %v1806 = vtanh.pop %v1799
  %v1807 = vmul.f32 %v1805, %v1595
  %1809 = vrot.lane.b32.xlu0 %v1806, 64
  %v1810 = vpop.permute.xlu0 %1809
  %v1812 = vmul.f32 %v1805, %v1810
  %1814 = vrot.lane.b32.xlu0 %v1812, 32
  %v1815 = vpop.permute.xlu0 %1814
  %v1817 = vadd.f32 %v1807, %v1815
  %v1818 = vtanh.pop %v1817
  %1820 = vrot.lane.b32.xlu0 %v1818, 64
  %v1821 = vpop.permute.xlu0 %1820
  %v1823 = vmul.f32 %v1805, %v1821
  %v1826 = vunpack.c.l.s4 1983009808
  %v1827 = vunpack.c.0.s8 %v1826
  %v1828 = vlaneseq
  %v1829 = vshrl.u32 %v1828, 7
  %v1830 = vsub.s32 %v1827, %v1829
  %v1831 = vrot.slane %v1723, %v1830
  %1832 = vrot.lane.b32.xlu0 %v1831, 32
  %v1833 = vpop.permute.xlu0 %1832
  %1835 = vst.msk [vmem:[%s728] sm:$0x3] %vm488, %v1833
  %v1838 = vunpack.c.l.s4 1983009808
  %v1839 = vunpack.c.0.s8 %v1838
  %v1840 = vlaneseq
  %v1841 = vshrl.u32 %v1840, 7
  %v1842 = vsub.s32 %v1839, %v1841
  %v1843 = vrot.slane %v1823, %v1842
  %1844 = vrot.lane.b32.xlu0 %v1843, 64
  %v1845 = vpop.permute.xlu0 %1844
  %1847 = vst.msk [vmem:[%s715] sm:$0x3] %vm502, %v1845
  %v1848 = vld [vmem:[%s380] sm:$0x3]
  %v1849 = vsel %vm281, %v1833, 0
  %1851 = vmatprep.subr.mxu0 0.0
  %1852 = vmatpush1.msra.mxu0 0.0
  %1853 = vmatprep.subr.mxu0 0.0
  %1854 = vmatpush1.msra.mxu0 0.0
  %1855 = vmatprep.subr.mxu0 0.0
  %1856 = vmatpush1.msra.mxu0 0.0
  %1857 = vmatprep.subr.mxu0 0.0
  %1858 = vmatpush1.msra.mxu0 0.0
  %1859 = vmatprep.subr.mxu0 0.0
  %1860 = vmatpush1.msra.mxu0 0.0
  %1861 = vmatprep.subr.mxu0 0.0
  %1862 = vmatpush1.msra.mxu0 0.0
  %1863 = vmatprep.subr.mxu0 0.0
  %1864 = vmatpush1.msra.mxu0 0.0
  %1865 = vmatprep.subr.mxu0 0.0
  %1866 = vmatpush1.msra.mxu0 0.0
  %1867 = vmatprep.subr.mxu0 0.0
  %1868 = vmatpush1.msra.mxu0 0.0
  %1869 = vmatprep.subr.mxu0 0.0
  %1870 = vmatpush1.msra.mxu0 0.0
  %1871 = vmatprep.subr.mxu0 0.0
  %1872 = vmatpush1.msra.mxu0 0.0
  %1873 = vmatprep.subr.mxu0 0.0
  %1874 = vmatpush1.msra.mxu0 0.0
  %1875 = vmatprep.subr.mxu0 0.0
  %1876 = vmatpush1.msra.mxu0 %v275
  %1877 = vmatprep.subr.mxu0 0.0
  %1878 = vmatpush1.msra.mxu0 %v274
  %1879 = vmatprep.subr.mxu0 0.0
  %1880 = vmatpush1.msra.mxu0 %v273
  %1881 = vmatprep.subr.mxu0 0.0
  %1882 = vmatpush1.msra.mxu0 %v272
  %1883 = vmatprep.subr.mxu0 0.0
  %1884 = vmatpush2.msra.mxu0 0.0
  %1885 = vmatprep.subr.mxu0 0.0
  %1886 = vmatpush2.msra.mxu0 0.0
  %1887 = vmatprep.subr.mxu0 0.0
  %1888 = vmatpush2.msra.mxu0 0.0
  %1889 = vmatprep.subr.mxu0 0.0
  %1890 = vmatpush2.msra.mxu0 0.0
  %1891 = vmatprep.subr.mxu0 0.0
  %1892 = vmatpush2.msra.mxu0 0.0
  %1893 = vmatprep.subr.mxu0 0.0
  %1894 = vmatpush2.msra.mxu0 0.0
  %1895 = vmatprep.subr.mxu0 0.0
  %1896 = vmatpush2.msra.mxu0 0.0
  %1897 = vmatprep.subr.mxu0 0.0
  %1898 = vmatpush2.msra.mxu0 0.0
  %1899 = vmatprep.subr.mxu0 0.0
  %1900 = vmatpush2.msra.mxu0 0.0
  %1901 = vmatprep.subr.mxu0 0.0
  %1902 = vmatpush2.msra.mxu0 0.0
  %1903 = vmatprep.subr.mxu0 0.0
  %1904 = vmatpush2.msra.mxu0 0.0
  %1905 = vmatprep.subr.mxu0 0.0
  %1906 = vmatpush2.msra.mxu0 0.0
  %1907 = vmatprep.subr.mxu0 0.0
  %1908 = vmatpush2.msra.mxu0 0.0
  %1909 = vmatprep.subr.mxu0 0.0
  %1910 = vmatpush2.msra.mxu0 0.0
  %1911 = vmatprep.subr.mxu0 0.0
  %1912 = vmatpush2.msra.mxu0 0.0
  %1913 = vmatprep.subr.mxu0 0.0
  %1914 = vmatpush2.msra.mxu0 0.0
  %1915 = vmatprep.mubr.f32.mxu0 0.0
  %1916 = vmatmul.mubr.f32.gmra.mxu0 %v1849
  %v1917 = vpop.f32.mrf.mxu0
  %v1918 = vadd.f32 0.0, %v1917
  %v1919 = vpop.f32.mrf.mxu0
  %1920 = vdwg.mxu0
  %v1921 = vadd.f32 %v1848, %v1918
  %v1922 = vxor.u32 %v1921, 2147483648
  %v1923 = vmul.f32 %v1922, 1.442695
  %v1924 = vpow.pop %v1923
  %v1925 = vadd.f32 %v1924, 1.0
  %v1926 = vrcp.pop %v1925
  %v1927 = vmul.f32 1.0, %v1926
  %v1928 = vtanh.pop %v1921
  %v1929 = vmul.f32 %v1927, %v1717
  %1931 = vrot.lane.b32.xlu0 %v1928, 64
  %v1932 = vpop.permute.xlu0 %1931
  %v1934 = vmul.f32 %v1927, %v1932
  %1936 = vrot.lane.b32.xlu0 %v1934, 32
  %v1937 = vpop.permute.xlu0 %1936
  %v1939 = vadd.f32 %v1929, %v1937
  %v1940 = vtanh.pop %v1939
  %1942 = vrot.lane.b32.xlu0 %v1940, 64
  %v1943 = vpop.permute.xlu0 %1942
  %v1945 = vmul.f32 %v1927, %v1943
  %v1946 = vld [vmem:[#allocation2 + $0x2] sm:$0x3]
  %1947 = vrot.lane.b32.xlu0 %v1843, 32
  %v1948 = vpop.permute.xlu0 %1947
  %v1949 = vsel %vm281, %v1948, 0
  %1951 = vmatprep.subr.mxu0 0.0
  %1952 = vmatpush1.msra.mxu0 0.0
  %1953 = vmatprep.subr.mxu0 0.0
  %1954 = vmatpush1.msra.mxu0 0.0
  %1955 = vmatprep.subr.mxu0 0.0
  %1956 = vmatpush1.msra.mxu0 0.0
  %1957 = vmatprep.subr.mxu0 0.0
  %1958 = vmatpush1.msra.mxu0 0.0
  %1959 = vmatprep.subr.mxu0 0.0
  %1960 = vmatpush1.msra.mxu0 0.0
  %1961 = vmatprep.subr.mxu0 0.0
  %1962 = vmatpush1.msra.mxu0 0.0
  %1963 = vmatprep.subr.mxu0 0.0
  %1964 = vmatpush1.msra.mxu0 0.0
  %1965 = vmatprep.subr.mxu0 0.0
  %1966 = vmatpush1.msra.mxu0 0.0
  %1967 = vmatprep.subr.mxu0 0.0
  %1968 = vmatpush1.msra.mxu0 0.0
  %1969 = vmatprep.subr.mxu0 0.0
  %1970 = vmatpush1.msra.mxu0 0.0
  %1971 = vmatprep.subr.mxu0 0.0
  %1972 = vmatpush1.msra.mxu0 0.0
  %1973 = vmatprep.subr.mxu0 0.0
  %1974 = vmatpush1.msra.mxu0 0.0
  %1975 = vmatprep.subr.mxu0 0.0
  %1976 = vmatpush1.msra.mxu0 %v279
  %1977 = vmatprep.subr.mxu0 0.0
  %1978 = vmatpush1.msra.mxu0 %v278
  %1979 = vmatprep.subr.mxu0 0.0
  %1980 = vmatpush1.msra.mxu0 %v277
  %1981 = vmatprep.subr.mxu0 0.0
  %1982 = vmatpush1.msra.mxu0 %v276
  %1983 = vmatprep.subr.mxu0 0.0
  %1984 = vmatpush2.msra.mxu0 0.0
  %1985 = vmatprep.subr.mxu0 0.0
  %1986 = vmatpush2.msra.mxu0 0.0
  %1987 = vmatprep.subr.mxu0 0.0
  %1988 = vmatpush2.msra.mxu0 0.0
  %1989 = vmatprep.subr.mxu0 0.0
  %1990 = vmatpush2.msra.mxu0 0.0
  %1991 = vmatprep.subr.mxu0 0.0
  %1992 = vmatpush2.msra.mxu0 0.0
  %1993 = vmatprep.subr.mxu0 0.0
  %1994 = vmatpush2.msra.mxu0 0.0
  %1995 = vmatprep.subr.mxu0 0.0
  %1996 = vmatpush2.msra.mxu0 0.0
  %1997 = vmatprep.subr.mxu0 0.0
  %1998 = vmatpush2.msra.mxu0 0.0
  %1999 = vmatprep.subr.mxu0 0.0
  %2000 = vmatpush2.msra.mxu0 0.0
  %2001 = vmatprep.subr.mxu0 0.0
  %2002 = vmatpush2.msra.mxu0 0.0
  %2003 = vmatprep.subr.mxu0 0.0
  %2004 = vmatpush2.msra.mxu0 0.0
  %2005 = vmatprep.subr.mxu0 0.0
  %2006 = vmatpush2.msra.mxu0 0.0
  %2007 = vmatprep.subr.mxu0 0.0
  %2008 = vmatpush2.msra.mxu0 0.0
  %2009 = vmatprep.subr.mxu0 0.0
  %2010 = vmatpush2.msra.mxu0 0.0
  %2011 = vmatprep.subr.mxu0 0.0
  %2012 = vmatpush2.msra.mxu0 0.0
  %2013 = vmatprep.subr.mxu0 0.0
  %2014 = vmatpush2.msra.mxu0 0.0
  %2015 = vmatprep.mubr.f32.mxu0 0.0
  %2016 = vmatmul.mubr.f32.gmra.mxu0 %v1949
  %v2017 = vpop.f32.mrf.mxu0
  %v2018 = vadd.f32 0.0, %v2017
  %v2019 = vpop.f32.mrf.mxu0
  %2020 = vdwg.mxu0
  %v2021 = vadd.f32 %v1946, %v2018
  %v2022 = vxor.u32 %v2021, 2147483648
  %v2023 = vmul.f32 %v2022, 1.442695
  %v2024 = vpow.pop %v2023
  %v2025 = vadd.f32 %v2024, 1.0
  %v2026 = vrcp.pop %v2025
  %v2027 = vmul.f32 1.0, %v2026
  %v2028 = vtanh.pop %v2021
  %v2029 = vmul.f32 %v2027, %v1817
  %2031 = vrot.lane.b32.xlu0 %v2028, 64
  %v2032 = vpop.permute.xlu0 %2031
  %v2034 = vmul.f32 %v2027, %v2032
  %2036 = vrot.lane.b32.xlu0 %v2034, 32
  %v2037 = vpop.permute.xlu0 %2036
  %v2039 = vadd.f32 %v2029, %v2037
  %v2040 = vtanh.pop %v2039
  %2042 = vrot.lane.b32.xlu0 %v2040, 64
  %v2043 = vpop.permute.xlu0 %2042
  %v2045 = vmul.f32 %v2027, %v2043
  %v2048 = vunpack.c.l.s4 1983009808
  %v2049 = vunpack.c.0.s8 %v2048
  %v2050 = vlaneseq
  %v2051 = vshrl.u32 %v2050, 7
  %v2052 = vsub.s32 %v2049, %v2051
  %v2053 = vrot.slane %v1945, %v2052
  %2054 = vrot.lane.b32.xlu0 %v2053, 32
  %v2055 = vpop.permute.xlu0 %2054
  %2057 = vst.msk [vmem:[%s501] sm:$0x3] %vm488, %v2055
  %v2060 = vunpack.c.l.s4 1983009808
  %v2061 = vunpack.c.0.s8 %v2060
  %v2062 = vlaneseq
  %v2063 = vshrl.u32 %v2062, 7
  %v2064 = vsub.s32 %v2061, %v2063
  %v2065 = vrot.slane %v2045, %v2064
  %2066 = vrot.lane.b32.xlu0 %v2065, 64
  %v2067 = vpop.permute.xlu0 %2066
  %2069 = vst.msk [vmem:[#allocation3] sm:$0x3] %vm502, %v2067
  %v2070 = vld [vmem:[#allocation3] sm:$0x3]
  %v2071 = vld [vmem:[#allocation3 + $0x2] sm:$0x3]
  %v2072 = vld [vmem:[#allocation3 + $0x4] sm:$0x3]
  %v2073 = vld [vmem:[#allocation3 + $0x6] sm:$0x3]
  %v2074 = vld [vmem:[#allocation3 + $0x8] sm:$0x3]
  %v2075 = vld [vmem:[#allocation3 + $0xa] sm:$0x3]
  %v2076 = vld [vmem:[#allocation3 + $0xc] sm:$0x3]
  %v2077 = vld [vmem:[#allocation3 + $0xe] sm:$0x3]
  %v2078 = vld [vmem:[%s5] sm:$0xff]
  %v2079 = vld [vmem:[%s5 + $0x8] sm:$0xff]
  %v2080 = vld [vmem:[%s5 + $0x10] sm:$0xff]
  %v2081 = vld [vmem:[%s5 + $0x18] sm:$0xff]
  %v2082 = vld [vmem:[%s5 + $0x20] sm:$0xff]
  %v2083 = vld [vmem:[%s5 + $0x28] sm:$0xff]
  %v2084 = vld [vmem:[%s5 + $0x30] sm:$0xff]
  %v2085 = vld [vmem:[%s5 + $0x38] sm:$0xff]
  %v2086 = vld [vmem:[%s6] sm:$0x1]
  %v2088 = vlaneseq
  %v2089 = vshrl.u32 %v2088, 7
  %v2090 = vsub.s32 0, %v2089
  %v2091 = vrot.slane %v2086, %v2090
  %v2092 = vcombine.low %v2091, %v2091
  %v2094 = vunpack.c.l.s4 1983009808
  %v2095 = vunpack.c.0.s8 %v2094
  %v2096 = vlaneseq
  %v2097 = vshrl.u32 %v2096, 7
  %v2098 = vsub.s32 %v2095, %v2097
  %v2099 = vrot.slane %v2092, %v2098
  %v2100 = vcombine.low %v2099, %v2099
  %2102 = vmatprep.subr.mxu0 0.0
  %2103 = vmatpush1.msra.mxu0 0.0
  %2104 = vmatprep.subr.mxu0 0.0
  %2105 = vmatpush1.msra.mxu0 0.0
  %2106 = vmatprep.subr.mxu0 0.0
  %2107 = vmatpush1.msra.mxu0 0.0
  %2108 = vmatprep.subr.mxu0 0.0
  %2109 = vmatpush1.msra.mxu0 0.0
  %2110 = vmatprep.subr.mxu0 0.0
  %2111 = vmatpush1.msra.mxu0 0.0
  %2112 = vmatprep.subr.mxu0 0.0
  %2113 = vmatpush1.msra.mxu0 0.0
  %2114 = vmatprep.subr.mxu0 0.0
  %2115 = vmatpush1.msra.mxu0 0.0
  %2116 = vmatprep.subr.mxu0 0.0
  %2117 = vmatpush1.msra.mxu0 0.0
  %2118 = vmatprep.subr.mxu0 0.0
  %2119 = vmatpush1.msra.mxu0 %v2085
  %2120 = vmatprep.subr.mxu0 0.0
  %2121 = vmatpush1.msra.mxu0 %v2084
  %2122 = vmatprep.subr.mxu0 0.0
  %2123 = vmatpush1.msra.mxu0 %v2083
  %2124 = vmatprep.subr.mxu0 0.0
  %2125 = vmatpush1.msra.mxu0 %v2082
  %2126 = vmatprep.subr.mxu0 0.0
  %2127 = vmatpush1.msra.mxu0 %v2081
  %2128 = vmatprep.subr.mxu0 0.0
  %2129 = vmatpush1.msra.mxu0 %v2080
  %2130 = vmatprep.subr.mxu0 0.0
  %2131 = vmatpush1.msra.mxu0 %v2079
  %2132 = vmatprep.subr.mxu0 0.0
  %2133 = vmatpush1.msra.mxu0 %v2078
  %2134 = vmatprep.subr.mxu0 0.0
  %2135 = vmatpush2.msra.mxu0 0.0
  %2136 = vmatprep.subr.mxu0 0.0
  %2137 = vmatpush2.msra.mxu0 0.0
  %2138 = vmatprep.subr.mxu0 0.0
  %2139 = vmatpush2.msra.mxu0 0.0
  %2140 = vmatprep.subr.mxu0 0.0
  %2141 = vmatpush2.msra.mxu0 0.0
  %2142 = vmatprep.subr.mxu0 0.0
  %2143 = vmatpush2.msra.mxu0 0.0
  %2144 = vmatprep.subr.mxu0 0.0
  %2145 = vmatpush2.msra.mxu0 0.0
  %2146 = vmatprep.subr.mxu0 0.0
  %2147 = vmatpush2.msra.mxu0 0.0
  %2148 = vmatprep.subr.mxu0 0.0
  %2149 = vmatpush2.msra.mxu0 0.0
  %2150 = vmatprep.subr.mxu0 0.0
  %2151 = vmatpush2.msra.mxu0 0.0
  %2152 = vmatprep.subr.mxu0 0.0
  %2153 = vmatpush2.msra.mxu0 0.0
  %2154 = vmatprep.subr.mxu0 0.0
  %2155 = vmatpush2.msra.mxu0 0.0
  %2156 = vmatprep.subr.mxu0 0.0
  %2157 = vmatpush2.msra.mxu0 0.0
  %2158 = vmatprep.subr.mxu0 0.0
  %2159 = vmatpush2.msra.mxu0 0.0
  %2160 = vmatprep.subr.mxu0 0.0
  %2161 = vmatpush2.msra.mxu0 0.0
  %2162 = vmatprep.subr.mxu0 0.0
  %2163 = vmatpush2.msra.mxu0 0.0
  %2164 = vmatprep.subr.mxu0 0.0
  %2165 = vmatpush2.msra.mxu0 0.0
  %2166 = vmatprep.mubr.f32.mxu0 0.0
  %2167 = vmatmul.mubr.f32.gmra.mxu0 %v135
  %v2168 = vpop.f32.mrf.mxu0
  %v2169 = vadd.f32 %v2100, %v2168
  %v2170 = vpop.f32.mrf.mxu0
  %2171 = vmatprep.mubr.f32.mxu0 0.0
  %2172 = vmatmul.mubr.f32.gmra.mxu0 %v137
  %v2173 = vpop.f32.mrf.mxu0
  %v2174 = vadd.f32 %v2100, %v2173
  %v2175 = vpop.f32.mrf.mxu0
  %2176 = vdwg.mxu0
  %v2179 = vcombine.high %v2169, %v2169
  %v2181 = vunpack.c.l.s4 1983009808
  %v2182 = vunpack.c.0.s8 %v2181
  %v2183 = vlaneseq
  %v2184 = vshrl.u32 %v2183, 7
  %v2185 = vsub.s32 %v2182, %v2184
  %v2186 = vrot.slane %v2169, %v2185
  %v2188 = vunpack.c.l.s4 1983009808
  %v2189 = vunpack.c.0.s8 %v2188
  %v2190 = vlaneseq
  %v2191 = vshrl.u32 %v2190, 7
  %v2192 = vsub.s32 %v2189, %v2191
  %v2193 = vrot.slane %v2179, %v2192
  %v2194 = vcombine.high %v2186, %v2186
  %v2195 = vcombine.high %v2193, %v2193
  %v2196 = vcombine.high %v2174, %v2174
  %v2198 = vunpack.c.l.s4 1983009808
  %v2199 = vunpack.c.0.s8 %v2198
  %v2200 = vlaneseq
  %v2201 = vshrl.u32 %v2200, 7
  %v2202 = vsub.s32 %v2199, %v2201
  %v2203 = vrot.slane %v2174, %v2202
  %v2205 = vunpack.c.l.s4 1983009808
  %v2206 = vunpack.c.0.s8 %v2205
  %v2207 = vlaneseq
  %v2208 = vshrl.u32 %v2207, 7
  %v2209 = vsub.s32 %v2206, %v2208
  %v2210 = vrot.slane %v2196, %v2209
  %v2211 = vcombine.high %v2203, %v2203
  %v2212 = vcombine.high %v2210, %v2210
  %v2221 = vmax.f32 %v2186, 0.0
  %v2222 = vmax.f32 %v2194, 0.0
  %v2223 = vmax.f32 %v2193, 0.0
  %v2224 = vmax.f32 %v2195, 0.0
  %v2225 = vmax.f32 %v2203, 0.0
  %v2226 = vmax.f32 %v2211, 0.0
  %v2227 = vmax.f32 %v2210, 0.0
  %v2228 = vmax.f32 %v2212, 0.0
  %v2229 = vld [vmem:[%s7] sm:$0xff]
  %v2230 = vld [vmem:[%s7 + $0x8] sm:$0xff]
  %v2231 = vld [vmem:[%s7 + $0x10] sm:$0xff]
  %v2232 = vld [vmem:[%s7 + $0x18] sm:$0xff]
  %v2233 = vld [vmem:[%s7 + $0x20] sm:$0xff]
  %v2234 = vld [vmem:[%s7 + $0x28] sm:$0xff]
  %v2235 = vld [vmem:[%s7 + $0x30] sm:$0xff]
  %v2236 = vld [vmem:[%s7 + $0x38] sm:$0xff]
  %v2237 = vld [vmem:[%s8] sm:$0x1]
  %v2239 = vlaneseq
  %v2240 = vshrl.u32 %v2239, 7
  %v2241 = vsub.s32 0, %v2240
  %v2242 = vrot.slane %v2237, %v2241
  %v2251 = vcombine.low %v2070, %v2071
  %v2252 = vcombine.low %v2072, %v2073
  %v2254 = vunpack.c.l.s4 1983009808
  %v2255 = vunpack.c.0.s8 %v2254
  %v2256 = vlaneseq
  %v2257 = vshrl.u32 %v2256, 7
  %v2258 = vsub.s32 %v2255, %v2257
  %v2259 = vrot.slane %v2251, %v2258
  %v2261 = vunpack.c.l.s4 1983009808
  %v2262 = vunpack.c.0.s8 %v2261
  %v2263 = vlaneseq
  %v2264 = vshrl.u32 %v2263, 7
  %v2265 = vsub.s32 %v2262, %v2264
  %v2266 = vrot.slane %v2252, %v2265
  %v2267 = vcombine.low %v2259, %v2266
  %v2268 = vcombine.low %v2074, %v2075
  %v2269 = vcombine.low %v2076, %v2077
  %v2271 = vunpack.c.l.s4 1983009808
  %v2272 = vunpack.c.0.s8 %v2271
  %v2273 = vlaneseq
  %v2274 = vshrl.u32 %v2273, 7
  %v2275 = vsub.s32 %v2272, %v2274
  %v2276 = vrot.slane %v2268, %v2275
  %v2278 = vunpack.c.l.s4 1983009808
  %v2279 = vunpack.c.0.s8 %v2278
  %v2280 = vlaneseq
  %v2281 = vshrl.u32 %v2280, 7
  %v2282 = vsub.s32 %v2279, %v2281
  %v2283 = vrot.slane %v2269, %v2282
  %v2284 = vcombine.low %v2276, %v2283
  %v2285 = vcombine.low %v2242, %v2242
  %v2287 = vunpack.c.l.s4 1983009808
  %v2288 = vunpack.c.0.s8 %v2287
  %v2289 = vlaneseq
  %v2290 = vshrl.u32 %v2289, 7
  %v2291 = vsub.s32 %v2288, %v2290
  %v2292 = vrot.slane %v2285, %v2291
  %v2293 = vcombine.low %v2292, %v2292
  %v2295 = vsel %vm134, %v2267, 0
  %v2297 = vsel %vm134, %v2284, 0
  %2299 = vmatprep.subr.mxu0 0.0
  %2300 = vmatpush1.msra.mxu0 0.0
  %2301 = vmatprep.subr.mxu0 0.0
  %2302 = vmatpush1.msra.mxu0 0.0
  %2303 = vmatprep.subr.mxu0 0.0
  %2304 = vmatpush1.msra.mxu0 0.0
  %2305 = vmatprep.subr.mxu0 0.0
  %2306 = vmatpush1.msra.mxu0 0.0
  %2307 = vmatprep.subr.mxu0 0.0
  %2308 = vmatpush1.msra.mxu0 0.0
  %2309 = vmatprep.subr.mxu0 0.0
  %2310 = vmatpush1.msra.mxu0 0.0
  %2311 = vmatprep.subr.mxu0 0.0
  %2312 = vmatpush1.msra.mxu0 0.0
  %2313 = vmatprep.subr.mxu0 0.0
  %2314 = vmatpush1.msra.mxu0 0.0
  %2315 = vmatprep.subr.mxu0 0.0
  %2316 = vmatpush1.msra.mxu0 %v2236
  %2317 = vmatprep.subr.mxu0 0.0
  %2318 = vmatpush1.msra.mxu0 %v2235
  %2319 = vmatprep.subr.mxu0 0.0
  %2320 = vmatpush1.msra.mxu0 %v2234
  %2321 = vmatprep.subr.mxu0 0.0
  %2322 = vmatpush1.msra.mxu0 %v2233
  %2323 = vmatprep.subr.mxu0 0.0
  %2324 = vmatpush1.msra.mxu0 %v2232
  %2325 = vmatprep.subr.mxu0 0.0
  %2326 = vmatpush1.msra.mxu0 %v2231
  %2327 = vmatprep.subr.mxu0 0.0
  %2328 = vmatpush1.msra.mxu0 %v2230
  %2329 = vmatprep.subr.mxu0 0.0
  %2330 = vmatpush1.msra.mxu0 %v2229
  %2331 = vmatprep.subr.mxu0 0.0
  %2332 = vmatpush2.msra.mxu0 0.0
  %2333 = vmatprep.subr.mxu0 0.0
  %2334 = vmatpush2.msra.mxu0 0.0
  %2335 = vmatprep.subr.mxu0 0.0
  %2336 = vmatpush2.msra.mxu0 0.0
  %2337 = vmatprep.subr.mxu0 0.0
  %2338 = vmatpush2.msra.mxu0 0.0
  %2339 = vmatprep.subr.mxu0 0.0
  %2340 = vmatpush2.msra.mxu0 0.0
  %2341 = vmatprep.subr.mxu0 0.0
  %2342 = vmatpush2.msra.mxu0 0.0
  %2343 = vmatprep.subr.mxu0 0.0
  %2344 = vmatpush2.msra.mxu0 0.0
  %2345 = vmatprep.subr.mxu0 0.0
  %2346 = vmatpush2.msra.mxu0 0.0
  %2347 = vmatprep.subr.mxu0 0.0
  %2348 = vmatpush2.msra.mxu0 0.0
  %2349 = vmatprep.subr.mxu0 0.0
  %2350 = vmatpush2.msra.mxu0 0.0
  %2351 = vmatprep.subr.mxu0 0.0
  %2352 = vmatpush2.msra.mxu0 0.0
  %2353 = vmatprep.subr.mxu0 0.0
  %2354 = vmatpush2.msra.mxu0 0.0
  %2355 = vmatprep.subr.mxu0 0.0
  %2356 = vmatpush2.msra.mxu0 0.0
  %2357 = vmatprep.subr.mxu0 0.0
  %2358 = vmatpush2.msra.mxu0 0.0
  %2359 = vmatprep.subr.mxu0 0.0
  %2360 = vmatpush2.msra.mxu0 0.0
  %2361 = vmatprep.subr.mxu0 0.0
  %2362 = vmatpush2.msra.mxu0 0.0
  %2363 = vmatprep.mubr.f32.mxu0 0.0
  %2364 = vmatmul.mubr.f32.gmra.mxu0 %v2295
  %v2365 = vpop.f32.mrf.mxu0
  %v2366 = vadd.f32 %v2293, %v2365
  %v2367 = vpop.f32.mrf.mxu0
  %2368 = vmatprep.mubr.f32.mxu0 0.0
  %2369 = vmatmul.mubr.f32.gmra.mxu0 %v2297
  %v2370 = vpop.f32.mrf.mxu0
  %v2371 = vadd.f32 %v2293, %v2370
  %v2372 = vpop.f32.mrf.mxu0
  %2373 = vdwg.mxu0
  %v2376 = vcombine.high %v2366, %v2366
  %v2378 = vunpack.c.l.s4 1983009808
  %v2379 = vunpack.c.0.s8 %v2378
  %v2380 = vlaneseq
  %v2381 = vshrl.u32 %v2380, 7
  %v2382 = vsub.s32 %v2379, %v2381
  %v2383 = vrot.slane %v2366, %v2382
  %v2385 = vunpack.c.l.s4 1983009808
  %v2386 = vunpack.c.0.s8 %v2385
  %v2387 = vlaneseq
  %v2388 = vshrl.u32 %v2387, 7
  %v2389 = vsub.s32 %v2386, %v2388
  %v2390 = vrot.slane %v2376, %v2389
  %v2391 = vcombine.high %v2383, %v2383
  %v2392 = vcombine.high %v2390, %v2390
  %v2393 = vcombine.high %v2371, %v2371
  %v2395 = vunpack.c.l.s4 1983009808
  %v2396 = vunpack.c.0.s8 %v2395
  %v2397 = vlaneseq
  %v2398 = vshrl.u32 %v2397, 7
  %v2399 = vsub.s32 %v2396, %v2398
  %v2400 = vrot.slane %v2371, %v2399
  %v2402 = vunpack.c.l.s4 1983009808
  %v2403 = vunpack.c.0.s8 %v2402
  %v2404 = vlaneseq
  %v2405 = vshrl.u32 %v2404, 7
  %v2406 = vsub.s32 %v2403, %v2405
  %v2407 = vrot.slane %v2393, %v2406
  %v2408 = vcombine.high %v2400, %v2400
  %v2409 = vcombine.high %v2407, %v2407
  %v2418 = vmax.f32 %v2383, 0.0
  %v2419 = vmax.f32 %v2391, 0.0
  %v2420 = vmax.f32 %v2390, 0.0
  %v2421 = vmax.f32 %v2392, 0.0
  %v2422 = vmax.f32 %v2400, 0.0
  %v2423 = vmax.f32 %v2408, 0.0
  %v2424 = vmax.f32 %v2407, 0.0
  %v2425 = vmax.f32 %v2409, 0.0
  %v2426 = vadd.f32 %v38, %v2070
  %v2427 = vadd.f32 %v39, %v2071
  %v2428 = vadd.f32 %v40, %v2072
  %v2429 = vadd.f32 %v41, %v2073
  %v2430 = vadd.f32 %v42, %v2074
  %v2431 = vadd.f32 %v43, %v2075
  %v2432 = vadd.f32 %v44, %v2076
  %v2433 = vadd.f32 %v45, %v2077
  %v2434 = vadd.f32 %v2426, %v2221
  %v2435 = vadd.f32 %v2427, %v2222
  %v2436 = vadd.f32 %v2428, %v2223
  %v2437 = vadd.f32 %v2429, %v2224
  %v2438 = vadd.f32 %v2430, %v2225
  %v2439 = vadd.f32 %v2431, %v2226
  %v2440 = vadd.f32 %v2432, %v2227
  %v2441 = vadd.f32 %v2433, %v2228
  %v2442 = vadd.f32 %v2434, %v2418
  %v2443 = vadd.f32 %v2435, %v2419
  %v2444 = vadd.f32 %v2436, %v2420
  %v2445 = vadd.f32 %v2437, %v2421
  %v2446 = vadd.f32 %v2438, %v2422
  %v2447 = vadd.f32 %v2439, %v2423
  %v2448 = vadd.f32 %v2440, %v2424
  %v2449 = vadd.f32 %v2441, %v2425
  %v2450 = vld [vmem:[%s9] sm:$0xff]
  %v2451 = vld [vmem:[%s9 + $0x8] sm:$0xff]
  %v2452 = vld [vmem:[%s9 + $0x10] sm:$0xff]
  %v2453 = vld [vmem:[%s9 + $0x18] sm:$0xff]
  %v2454 = vld [vmem:[%s9 + $0x20] sm:$0xff]
  %v2455 = vld [vmem:[%s9 + $0x28] sm:$0xff]
  %v2456 = vld [vmem:[%s9 + $0x30] sm:$0xff]
  %v2457 = vld [vmem:[%s9 + $0x38] sm:$0xff]
  %v2458 = vld [vmem:[%s10] sm:$0x1]
  %v2460 = vlaneseq
  %v2461 = vshrl.u32 %v2460, 7
  %v2462 = vsub.s32 0, %v2461
  %v2463 = vrot.slane %v2458, %v2462
  %v2472 = vcombine.low %v2442, %v2443
  %v2473 = vcombine.low %v2444, %v2445
  %v2475 = vunpack.c.l.s4 1983009808
  %v2476 = vunpack.c.0.s8 %v2475
  %v2477 = vlaneseq
  %v2478 = vshrl.u32 %v2477, 7
  %v2479 = vsub.s32 %v2476, %v2478
  %v2480 = vrot.slane %v2472, %v2479
  %v2482 = vunpack.c.l.s4 1983009808
  %v2483 = vunpack.c.0.s8 %v2482
  %v2484 = vlaneseq
  %v2485 = vshrl.u32 %v2484, 7
  %v2486 = vsub.s32 %v2483, %v2485
  %v2487 = vrot.slane %v2473, %v2486
  %v2488 = vcombine.low %v2480, %v2487
  %v2489 = vcombine.low %v2446, %v2447
  %v2490 = vcombine.low %v2448, %v2449
  %v2492 = vunpack.c.l.s4 1983009808
  %v2493 = vunpack.c.0.s8 %v2492
  %v2494 = vlaneseq
  %v2495 = vshrl.u32 %v2494, 7
  %v2496 = vsub.s32 %v2493, %v2495
  %v2497 = vrot.slane %v2489, %v2496
  %v2499 = vunpack.c.l.s4 1983009808
  %v2500 = vunpack.c.0.s8 %v2499
  %v2501 = vlaneseq
  %v2502 = vshrl.u32 %v2501, 7
  %v2503 = vsub.s32 %v2500, %v2502
  %v2504 = vrot.slane %v2490, %v2503
  %v2505 = vcombine.low %v2497, %v2504
  %v2506 = vcombine.low %v2463, %v2463
  %v2508 = vunpack.c.l.s4 1983009808
  %v2509 = vunpack.c.0.s8 %v2508
  %v2510 = vlaneseq
  %v2511 = vshrl.u32 %v2510, 7
  %v2512 = vsub.s32 %v2509, %v2511
  %v2513 = vrot.slane %v2506, %v2512
  %v2514 = vcombine.low %v2513, %v2513
  %v2516 = vsel %vm134, %v2488, 0
  %v2518 = vsel %vm134, %v2505, 0
  %2520 = vmatprep.subr.mxu0 0.0
  %2521 = vmatpush1.msra.mxu0 0.0
  %2522 = vmatprep.subr.mxu0 0.0
  %2523 = vmatpush1.msra.mxu0 0.0
  %2524 = vmatprep.subr.mxu0 0.0
  %2525 = vmatpush1.msra.mxu0 0.0
  %2526 = vmatprep.subr.mxu0 0.0
  %2527 = vmatpush1.msra.mxu0 0.0
  %2528 = vmatprep.subr.mxu0 0.0
  %2529 = vmatpush1.msra.mxu0 0.0
  %2530 = vmatprep.subr.mxu0 0.0
  %2531 = vmatpush1.msra.mxu0 0.0
  %2532 = vmatprep.subr.mxu0 0.0
  %2533 = vmatpush1.msra.mxu0 0.0
  %2534 = vmatprep.subr.mxu0 0.0
  %2535 = vmatpush1.msra.mxu0 0.0
  %2536 = vmatprep.subr.mxu0 0.0
  %2537 = vmatpush1.msra.mxu0 %v2457
  %2538 = vmatprep.subr.mxu0 0.0
  %2539 = vmatpush1.msra.mxu0 %v2456
  %2540 = vmatprep.subr.mxu0 0.0
  %2541 = vmatpush1.msra.mxu0 %v2455
  %2542 = vmatprep.subr.mxu0 0.0
  %2543 = vmatpush1.msra.mxu0 %v2454
  %2544 = vmatprep.subr.mxu0 0.0
  %2545 = vmatpush1.msra.mxu0 %v2453
  %2546 = vmatprep.subr.mxu0 0.0
  %2547 = vmatpush1.msra.mxu0 %v2452
  %2548 = vmatprep.subr.mxu0 0.0
  %2549 = vmatpush1.msra.mxu0 %v2451
  %2550 = vmatprep.subr.mxu0 0.0
  %2551 = vmatpush1.msra.mxu0 %v2450
  %2552 = vmatprep.subr.mxu0 0.0
  %2553 = vmatpush2.msra.mxu0 0.0
  %2554 = vmatprep.subr.mxu0 0.0
  %2555 = vmatpush2.msra.mxu0 0.0
  %2556 = vmatprep.subr.mxu0 0.0
  %2557 = vmatpush2.msra.mxu0 0.0
  %2558 = vmatprep.subr.mxu0 0.0
  %2559 = vmatpush2.msra.mxu0 0.0
  %2560 = vmatprep.subr.mxu0 0.0
  %2561 = vmatpush2.msra.mxu0 0.0
  %2562 = vmatprep.subr.mxu0 0.0
  %2563 = vmatpush2.msra.mxu0 0.0
  %2564 = vmatprep.subr.mxu0 0.0
  %2565 = vmatpush2.msra.mxu0 0.0
  %2566 = vmatprep.subr.mxu0 0.0
  %2567 = vmatpush2.msra.mxu0 0.0
  %2568 = vmatprep.subr.mxu0 0.0
  %2569 = vmatpush2.msra.mxu0 0.0
  %2570 = vmatprep.subr.mxu0 0.0
  %2571 = vmatpush2.msra.mxu0 0.0
  %2572 = vmatprep.subr.mxu0 0.0
  %2573 = vmatpush2.msra.mxu0 0.0
  %2574 = vmatprep.subr.mxu0 0.0
  %2575 = vmatpush2.msra.mxu0 0.0
  %2576 = vmatprep.subr.mxu0 0.0
  %2577 = vmatpush2.msra.mxu0 0.0
  %2578 = vmatprep.subr.mxu0 0.0
  %2579 = vmatpush2.msra.mxu0 0.0
  %2580 = vmatprep.subr.mxu0 0.0
  %2581 = vmatpush2.msra.mxu0 0.0
  %2582 = vmatprep.subr.mxu0 0.0
  %2583 = vmatpush2.msra.mxu0 0.0
  %2584 = vmatprep.mubr.f32.mxu0 0.0
  %2585 = vmatmul.mubr.f32.gmra.mxu0 %v2516
  %v2586 = vpop.f32.mrf.mxu0
  %v2587 = vadd.f32 %v2514, %v2586
  %v2588 = vpop.f32.mrf.mxu0
  %2589 = vmatprep.mubr.f32.mxu0 0.0
  %2590 = vmatmul.mubr.f32.gmra.mxu0 %v2518
  %v2591 = vpop.f32.mrf.mxu0
  %v2592 = vadd.f32 %v2514, %v2591
  %v2593 = vpop.f32.mrf.mxu0
  %2594 = vdwg.mxu0
  %v2597 = vcombine.high %v2587, %v2587
  %v2599 = vunpack.c.l.s4 1983009808
  %v2600 = vunpack.c.0.s8 %v2599
  %v2601 = vlaneseq
  %v2602 = vshrl.u32 %v2601, 7
  %v2603 = vsub.s32 %v2600, %v2602
  %v2604 = vrot.slane %v2587, %v2603
  %v2606 = vunpack.c.l.s4 1983009808
  %v2607 = vunpack.c.0.s8 %v2606
  %v2608 = vlaneseq
  %v2609 = vshrl.u32 %v2608, 7
  %v2610 = vsub.s32 %v2607, %v2609
  %v2611 = vrot.slane %v2597, %v2610
  %v2612 = vcombine.high %v2604, %v2604
  %v2613 = vcombine.high %v2611, %v2611
  %v2614 = vcombine.high %v2592, %v2592
  %v2616 = vunpack.c.l.s4 1983009808
  %v2617 = vunpack.c.0.s8 %v2616
  %v2618 = vlaneseq
  %v2619 = vshrl.u32 %v2618, 7
  %v2620 = vsub.s32 %v2617, %v2619
  %v2621 = vrot.slane %v2592, %v2620
  %v2623 = vunpack.c.l.s4 1983009808
  %v2624 = vunpack.c.0.s8 %v2623
  %v2625 = vlaneseq
  %v2626 = vshrl.u32 %v2625, 7
  %v2627 = vsub.s32 %v2624, %v2626
  %v2628 = vrot.slane %v2614, %v2627
  %v2629 = vcombine.high %v2621, %v2621
  %v2630 = vcombine.high %v2628, %v2628
  %2639 = vst [vmem:[%s11] sm:$0x3] %v2604
  %2640 = vst [vmem:[%s11 + $0x2] sm:$0x3] %v2612
  %2641 = vst [vmem:[%s11 + $0x4] sm:$0x3] %v2611
  %2642 = vst [vmem:[%s11 + $0x6] sm:$0x3] %v2613
  %2643 = vst [vmem:[%s11 + $0x8] sm:$0x3] %v2621
  %2644 = vst [vmem:[%s11 + $0xa] sm:$0x3] %v2629
  %2645 = vst [vmem:[%s11 + $0xc] sm:$0x3] %v2628
  %2646 = vst [vmem:[%s11 + $0xe] sm:$0x3] %v2630
  // Predicated region
  $region46: #{neural_net_forward.5} parent=0 // pred_check
    _
  $region47: #{neural_net_forward.5} parent=0 // pred_check_branch
    %2648 = sbr.rel (0) target = $region49
  $region48: #{neural_net_forward.5} parent=0 // pred_region
    _
  $region49: #{neural_net_forward.5} parent=0 // pred_fallthru
    _
  // Predicated region
  $region50: #{neural_net_forward.5} parent=0 // pred_check
    _
  $region51: #{neural_net_forward.5} parent=0 // pred_check_branch
    %2650 = sbr.rel (0) target = $region53
  $region52: #{neural_net_forward.5} parent=0 // pred_region
    _
  $region53: #{neural_net_forward.5} parent=0 // pred_fallthru
    _

</llo_original>
